<compile_context>
chip_gen: v7x
topology: tpu7x:2x2x1
jax: 0.10.0
libtpu: 0.0.40
codegen_flags: <defaults>
</compile_context>

<pallas_src>
import functools

import jax
import jax.numpy as jnp
from jax.experimental import pallas as pl
from jax.experimental.pallas import tpu as pltpu


# lane-dense padded dimensions
KP = 32          # im2col K: 3*3*3 = 27 -> 32
STEM_P = 128     # stem output channels: 40 -> 128
FEAT = 1536      # efficientnet_b3 feature dim (already a multiple of 128)
H1_P = 640       # classifier hidden: 625 -> 640
H2 = 256
OUT_P = 128      # logits: 2 -> 128 (sliced back to 2 in the wrapper)


# ----------------------------------------------------------------------------
# fused stem-conv -> head-conv -> GAP -> classifier kernel
# ----------------------------------------------------------------------------
def _fused_forward_kernel(cols_ref, ws_ref, bs_ref, wh_ref, bh_ref,
                          w1_ref, b1_ref, w2_ref, b2_ref, w3_ref, b3_ref,
                          o_ref, acc_ref, *, hw, tile_m):
    t = pl.program_id(1)

    @pl.when(t == 0)
    def _():
        acc_ref[...] = jnp.zeros_like(acc_ref)

    # stem 3x3/s2 conv as im2col matmul + SiLU (bf16 MXU, f32 accumulate)
    cols = cols_ref[...]                                        # [TILE_M, KP] bf16
    stem = jnp.dot(cols, ws_ref[...], preferred_element_type=jnp.float32)
    stem = stem + bs_ref[...]
    stem = stem * jax.nn.sigmoid(stem)                          # SiLU in f32 (EUP)

    # 1x1 head conv + SiLU
    feats = jnp.dot(stem.astype(jnp.bfloat16), wh_ref[...],
                    preferred_element_type=jnp.float32)
    feats = feats + bh_ref[...]
    feats = feats * jax.nn.sigmoid(feats)                       # [TILE_M, 1536] f32

    if hw % tile_m:
        # mask rows of a partial last tile (OOB block rows are undefined)
        row = jax.lax.broadcasted_iota(jnp.int32, (tile_m, 1), 0) + t * tile_m
        feats = jnp.where(row < hw, feats, 0.0)

    # global-average-pool partial sum (XLU reduce; free slot next to the MXU)
    acc_ref[...] += jnp.sum(feats, axis=0, keepdims=True)       # [1, 1536] f32

    @pl.when(t == pl.num_programs(1) - 1)
    def _():
        mean = acc_ref[...] * (1.0 / hw)                        # static 1/HW
        # Linear(1536->625[pad 640]) + ReLU
        h = jnp.dot(mean.astype(jnp.bfloat16), w1_ref[...],
                    preferred_element_type=jnp.float32) + b1_ref[...]
        h = jnp.maximum(h, 0.0)
        # Dropout(p=0.3) is identity at inference time
        # Linear(625->256) + ReLU
        h = jnp.dot(h.astype(jnp.bfloat16), w2_ref[...],
                    preferred_element_type=jnp.float32) + b2_ref[...]
        h = jnp.maximum(h, 0.0)
        # Linear(256->2[pad 128])
        out = jnp.dot(h.astype(jnp.bfloat16), w3_ref[...],
                      preferred_element_type=jnp.float32) + b3_ref[...]
        o_ref[...] = out.astype(o_ref.dtype)                    # [1, OUT_P]


def fused_forward(cols, ws, bs, wh, bh, w1, b1, w2, b2, w3, b3):
    """cols: [B, HW, KP] bf16 -> padded logits [B, 1, OUT_P] f32."""
    B, HW, kp = cols.shape
    assert kp == KP
    # TILE_M: multiple of 8 (512) when HW is large, else the full HW extent.
    tile_m = min(512, HW)
    n_tiles = pl.cdiv(HW, tile_m)
    const = lambda b, t: (0, 0)     # weights stay resident (block idx constant)

    return pl.pallas_call(
        functools.partial(_fused_forward_kernel, hw=HW, tile_m=tile_m),
        out_shape=jax.ShapeDtypeStruct((B, 1, OUT_P), jnp.float32),
        grid_spec=pltpu.PrefetchScalarGridSpec(
            num_scalar_prefetch=0,
            grid=(B, n_tiles),
            in_specs=[
                pl.BlockSpec((None, tile_m, KP), lambda b, t: (b, t, 0)),
                pl.BlockSpec((KP, STEM_P), const),
                pl.BlockSpec((1, STEM_P), const),
                pl.BlockSpec((STEM_P, FEAT), const),
                pl.BlockSpec((1, FEAT), const),
                pl.BlockSpec((FEAT, H1_P), const),
                pl.BlockSpec((1, H1_P), const),
                pl.BlockSpec((H1_P, H2), const),
                pl.BlockSpec((1, H2), const),
                pl.BlockSpec((H2, OUT_P), const),
                pl.BlockSpec((1, OUT_P), const),
            ],
            out_specs=pl.BlockSpec((None, 1, OUT_P), lambda b, t: (b, 0, 0)),
            scratch_shapes=[pltpu.VMEM((1, FEAT), jnp.float32)],
        ),
        compiler_params=pltpu.CompilerParams(
            dimension_semantics=("parallel", "arbitrary"),
            vmem_limit_bytes=32 * 1024 * 1024,
        ),
    )(cols, ws, bs, wh, bh, w1, b1, w2, b2, w3, b3)


# ----------------------------------------------------------------------------
# model wrapper (synthetic weights, zero-padded to lane-dense widths)
# ----------------------------------------------------------------------------
class WaterMarkModelPallas:
    """Synthetic-weight re-implementation of WaterMarkModel's forward pass."""

    def __init__(self, key):
        ks = jax.random.split(key, 8)
        s = 0.02
        f32 = jnp.float32
        # stem conv 3x3 s2: 3 -> 40, stored im2col [27,40], padded to [32,128]
        w_stem = jax.random.normal(ks[0], (27, 40), f32) * s
        self.w_stem = jnp.pad(w_stem, ((0, KP - 27), (0, STEM_P - 40))
                              ).astype(jnp.bfloat16)
        self.b_stem = jnp.zeros((1, STEM_P), f32)
        # head conv 1x1: 40 -> 1536, rows padded to 128
        w_head = jax.random.normal(ks[1], (40, FEAT), f32) * s
        self.w_head = jnp.pad(w_head, ((0, STEM_P - 40), (0, 0))
                              ).astype(jnp.bfloat16)
        self.b_head = jnp.zeros((1, FEAT), f32)
        # classifier: Linear(1536,625) ReLU Dropout Linear(625,256) ReLU Linear(256,2)
        w1 = jax.random.normal(ks[2], (1536, 625), f32) * s
        b1 = jax.random.normal(ks[3], (625,), f32) * s
        w2 = jax.random.normal(ks[4], (625, 256), f32) * s
        b2 = jax.random.normal(ks[5], (256,), f32) * s
        w3 = jax.random.normal(ks[6], (256, 2), f32) * s
        b3 = jax.random.normal(ks[7], (2,), f32) * s
        self.w1 = jnp.pad(w1, ((0, 0), (0, H1_P - 625))).astype(jnp.bfloat16)
        self.b1 = jnp.pad(b1, (0, H1_P - 625)).reshape(1, H1_P)
        self.w2 = jnp.pad(w2, ((0, H1_P - 625), (0, 0))).astype(jnp.bfloat16)
        self.b2 = b2.reshape(1, H2)
        self.w3 = jnp.pad(w3, ((0, 0), (0, OUT_P - 2))).astype(jnp.bfloat16)
        self.b3 = jnp.pad(b3, (0, OUT_P - 2)).reshape(1, OUT_P)

    def __call__(self, x_nchw):
        # glue: NCHW -> NHWC + im2col for the 3x3/s2/p1 stem.  The cols tensor is
        # kept in bf16 (~1.3x the raw image bytes, vs 9x f32 before).
        # TODO(synk): fold im2col into the kernel via manual DMAs on the padded
        #             NHWC image so even this small tensor never hits HBM.
        x = jnp.transpose(x_nchw, (0, 2, 3, 1)).astype(jnp.float32)   # [B,H,W,3]
        B, H, W, C = x.shape
        assert 9 * C == 27, "stem expects 3 input channels"
        OH = (H - 1) // 2 + 1
        OW = (W - 1) // 2 + 1
        xp = jnp.pad(x, ((0, 0), (1, 1), (1, 1), (0, 0)))
        patches = []
        for dh in range(3):
            for dw in range(3):
                patches.append(xp[:, dh:dh + 2 * OH:2, dw:dw + 2 * OW:2, :])
        cols = jnp.concatenate(patches, axis=-1).reshape(B, OH * OW, 9 * C)
        cols = jnp.pad(cols, ((0, 0), (0, 0), (0, KP - 9 * C))
                       ).astype(jnp.bfloat16)

        out = fused_forward(cols, self.w_stem, self.b_stem,
                            self.w_head, self.b_head,
                            self.w1, self.b1, self.w2, self.b2,
                            self.w3, self.b3)
        return out[:, 0, :2]                                   # [B, 2]


# ----------------------------------------------------------------------------
# main
# ----------------------------------------------------------------------------
if __name__ == "__main__":
    key = jax.random.PRNGKey(0)
    k_param, k_input = jax.random.split(key)
    model = WaterMarkModelPallas(k_param)

    # small NCHW image batch, 3 channels (what the PyTorch model consumes)
    x = jax.random.normal(k_input, (2, 3, 16, 16), dtype=jnp.float32)

    logits = jax.block_until_ready(model(x))
    assert logits.shape == (2, 2), logits.shape
    assert bool(jnp.all(jnp.isfinite(logits)))
    print("KERNEL_OK")
</pallas_src>

<mosaic_0001>
module attributes {stable_mosaic.version = 11 : i64} {
  func.func @_fused_forward_kernel(%arg0: i32, %arg1: i32, %arg2: memref<1x64x32xbf16, #tpu.memory_space<vmem>>, %arg3: memref<32x128xbf16, #tpu.memory_space<vmem>>, %arg4: memref<1x128xf32, #tpu.memory_space<vmem>>, %arg5: memref<128x1536xbf16, #tpu.memory_space<vmem>>, %arg6: memref<1x1536xf32, #tpu.memory_space<vmem>>, %arg7: memref<1536x640xbf16, #tpu.memory_space<vmem>>, %arg8: memref<1x640xf32, #tpu.memory_space<vmem>>, %arg9: memref<640x256xbf16, #tpu.memory_space<vmem>>, %arg10: memref<1x256xf32, #tpu.memory_space<vmem>>, %arg11: memref<256x128xbf16, #tpu.memory_space<vmem>>, %arg12: memref<1x128xf32, #tpu.memory_space<vmem>>, %arg13: memref<1x1x128xf32, #tpu.memory_space<vmem>>, %arg14: memref<1x1536xf32, #tpu.memory_space<vmem>>) attributes {dimension_semantics = [#tpu.dimension_semantics<parallel>, #tpu.dimension_semantics<arbitrary>], iteration_bounds = array<i64: 2, 1>, scalar_prefetch = 0 : i64, scratch_operands = 1 : i64, tpu.core_type = #tpu.core_type<tc>, window_params = [{transform_indices = @transform_0, window_bounds = array<i64: 1, 64, 32>}, {pipeline_mode = #tpu.pipeline_mode<synchronous>, transform_indices = @transform_1, window_bounds = array<i64: 32, 128>}, {pipeline_mode = #tpu.pipeline_mode<synchronous>, transform_indices = @transform_2, window_bounds = array<i64: 1, 128>}, {pipeline_mode = #tpu.pipeline_mode<synchronous>, transform_indices = @transform_3, window_bounds = array<i64: 128, 1536>}, {pipeline_mode = #tpu.pipeline_mode<synchronous>, transform_indices = @transform_4, window_bounds = array<i64: 1, 1536>}, {pipeline_mode = #tpu.pipeline_mode<synchronous>, transform_indices = @transform_5, window_bounds = array<i64: 1536, 640>}, {pipeline_mode = #tpu.pipeline_mode<synchronous>, transform_indices = @transform_6, window_bounds = array<i64: 1, 640>}, {pipeline_mode = #tpu.pipeline_mode<synchronous>, transform_indices = @transform_7, window_bounds = array<i64: 640, 256>}, {pipeline_mode = #tpu.pipeline_mode<synchronous>, transform_indices = @transform_8, window_bounds = array<i64: 1, 256>}, {pipeline_mode = #tpu.pipeline_mode<synchronous>, transform_indices = @transform_9, window_bounds = array<i64: 256, 128>}, {pipeline_mode = #tpu.pipeline_mode<synchronous>, transform_indices = @transform_10, window_bounds = array<i64: 1, 128>}, {transform_indices = @transform_11, window_bounds = array<i64: 1, 1, 128>}]} {
    %c0_i32 = arith.constant 0 : i32
    %0 = arith.cmpi eq, %arg1, %c0_i32 : i32
    %1 = arith.extui %0 : i1 to i32
    %c0_i32_0 = arith.constant 0 : i32
    %2 = arith.cmpi ne, %1, %c0_i32_0 : i32
    scf.if %2 {
      %cst_21 = arith.constant 0.000000e+00 : f32
      %36 = vector.broadcast %cst_21 : f32 to vector<1x1536xf32>
      %c0_22 = arith.constant 0 : index
      %c0_23 = arith.constant 0 : index
      %37 = vector.load %arg14[%c0_22, %c0_23] : memref<1x1536xf32, #tpu.memory_space<vmem>>, vector<1x1536xf32>
      tpu.vector_store %arg14[%c0_22, %c0_23], %36 {strides = array<i32>} : memref<1x1536xf32, #tpu.memory_space<vmem>>, vector<1x1536xf32>,
    } else {
    }
    %c0 = arith.constant 0 : index
    %c0_1 = arith.constant 0 : index
    %c0_2 = arith.constant 0 : index
    %3 = vector.load %arg2[%c0, %c0_1, %c0_2] : memref<1x64x32xbf16, #tpu.memory_space<vmem>>, vector<1x64x32xbf16>
    %4 = vector.shape_cast %3 : vector<1x64x32xbf16> to vector<64x32xbf16>
    %c0_3 = arith.constant 0 : index
    %c0_4 = arith.constant 0 : index
    %5 = vector.load %arg3[%c0_3, %c0_4] : memref<32x128xbf16, #tpu.memory_space<vmem>>, vector<32x128xbf16>
    %cst = arith.constant dense<0.000000e+00> : vector<64x128xf32>
    %6 = tpu.matmul %4, %5, %cst {dimension_numbers = #tpu.dot_dimension_numbers<[1], [0], [0], [1], [0, 0, 1, 1], [], []>} : vector<64x32xbf16>, vector<32x128xbf16>, vector<64x128xf32> -> vector<64x128xf32>
    %c0_5 = arith.constant 0 : index
    %c0_6 = arith.constant 0 : index
    %7 = vector.load %arg4[%c0_5, %c0_6] : memref<1x128xf32, #tpu.memory_space<vmem>>, vector<1x128xf32>
    %8 = vector.broadcast %7 : vector<1x128xf32> to vector<64x128xf32>
    %9 = arith.addf %6, %8 : vector<64x128xf32>
    %10 = arith.negf %9 : vector<64x128xf32>
    %11 = math.exp %10 : vector<64x128xf32>
    %cst_7 = arith.constant 1.000000e+00 : f32
    %12 = vector.broadcast %cst_7 : f32 to vector<64x128xf32>
    %13 = arith.addf %12, %11 : vector<64x128xf32>
    %14 = arith.divf %12, %13 : vector<64x128xf32>
    %15 = arith.mulf %9, %14 : vector<64x128xf32>
    %16 = arith.truncf %15 : vector<64x128xf32> to vector<64x128xbf16>
    %c0_8 = arith.constant 0 : index
    %c0_9 = arith.constant 0 : index
    %17 = vector.load %arg5[%c0_8, %c0_9] : memref<128x1536xbf16, #tpu.memory_space<vmem>>, vector<128x1536xbf16>
    %cst_10 = arith.constant dense<0.000000e+00> : vector<64x1536xf32>
    %18 = tpu.matmul %16, %17, %cst_10 {dimension_numbers = #tpu.dot_dimension_numbers<[1], [0], [0], [1], [0, 0, 1, 1], [], []>} : vector<64x128xbf16>, vector<128x1536xbf16>, vector<64x1536xf32> -> vector<64x1536xf32>
    %c0_11 = arith.constant 0 : index
    %c0_12 = arith.constant 0 : index
    %19 = vector.load %arg6[%c0_11, %c0_12] : memref<1x1536xf32, #tpu.memory_space<vmem>>, vector<1x1536xf32>
    %20 = vector.broadcast %19 : vector<1x1536xf32> to vector<64x1536xf32>
    %21 = arith.addf %18, %20 : vector<64x1536xf32>
    %22 = arith.negf %21 : vector<64x1536xf32>
    %23 = math.exp %22 : vector<64x1536xf32>
    %cst_13 = arith.constant 1.000000e+00 : f32
    %24 = vector.broadcast %cst_13 : f32 to vector<64x1536xf32>
    %25 = arith.addf %24, %23 : vector<64x1536xf32>
    %26 = arith.divf %24, %25 : vector<64x1536xf32>
    %27 = arith.mulf %21, %26 : vector<64x1536xf32>
    %c0_14 = arith.constant 0 : index
    %c0_15 = arith.constant 0 : index
    %28 = vector.load %arg14[%c0_14, %c0_15] : memref<1x1536xf32, #tpu.memory_space<vmem>>, vector<1x1536xf32>
    %cst_16 = arith.constant dense<0.000000e+00> : vector<1536xf32>
    %29 = vector.multi_reduction <add>, %27, %cst_16 [0] : vector<64x1536xf32> to vector<1536xf32>
    %30 = vector.shape_cast %29 : vector<1536xf32> to vector<1x1536xf32>
    %31 = arith.addf %28, %30 : vector<1x1536xf32>
    %c0_17 = arith.constant 0 : index
    %c0_18 = arith.constant 0 : index
    %32 = vector.load %arg14[%c0_17, %c0_18] : memref<1x1536xf32, #tpu.memory_space<vmem>>, vector<1x1536xf32>
    tpu.vector_store %arg14[%c0_17, %c0_18], %31 {strides = array<i32>} : memref<1x1536xf32, #tpu.memory_space<vmem>>, vector<1x1536xf32>,
    %c0_i32_19 = arith.constant 0 : i32
    %33 = arith.cmpi eq, %arg1, %c0_i32_19 : i32
    %34 = arith.extui %33 : i1 to i32
    %c0_i32_20 = arith.constant 0 : i32
    %35 = arith.cmpi ne, %34, %c0_i32_20 : i32
    scf.if %35 {
      %c0_21 = arith.constant 0 : index
      %c0_22 = arith.constant 0 : index
      %36 = vector.load %arg14[%c0_21, %c0_22] : memref<1x1536xf32, #tpu.memory_space<vmem>>, vector<1x1536xf32>
      %cst_23 = arith.constant 1.562500e-02 : f32
      %37 = vector.broadcast %cst_23 : f32 to vector<1x1536xf32>
      %38 = arith.mulf %36, %37 : vector<1x1536xf32>
      %39 = arith.truncf %38 : vector<1x1536xf32> to vector<1x1536xbf16>
      %c0_24 = arith.constant 0 : index
      %c0_25 = arith.constant 0 : index
      %40 = vector.load %arg7[%c0_24, %c0_25] : memref<1536x640xbf16, #tpu.memory_space<vmem>>, vector<1536x640xbf16>
      %cst_26 = arith.constant dense<0.000000e+00> : vector<1x640xf32>
      %41 = tpu.matmul %39, %40, %cst_26 {dimension_numbers = #tpu.dot_dimension_numbers<[1], [0], [0], [1], [0, 0, 1, 1], [], []>} : vector<1x1536xbf16>, vector<1536x640xbf16>, vector<1x640xf32> -> vector<1x640xf32>
      %c0_27 = arith.constant 0 : index
      %c0_28 = arith.constant 0 : index
      %42 = vector.load %arg8[%c0_27, %c0_28] : memref<1x640xf32, #tpu.memory_space<vmem>>, vector<1x640xf32>
      %43 = arith.addf %41, %42 : vector<1x640xf32>
      %cst_29 = arith.constant 0.000000e+00 : f32
      %44 = vector.broadcast %cst_29 : f32 to vector<1x640xf32>
      %45 = arith.maximumf %43, %44 : vector<1x640xf32>
      %46 = arith.truncf %45 : vector<1x640xf32> to vector<1x640xbf16>
      %c0_30 = arith.constant 0 : index
      %c0_31 = arith.constant 0 : index
      %47 = vector.load %arg9[%c0_30, %c0_31] : memref<640x256xbf16, #tpu.memory_space<vmem>>, vector<640x256xbf16>
      %cst_32 = arith.constant dense<0.000000e+00> : vector<1x256xf32>
      %48 = tpu.matmul %46, %47, %cst_32 {dimension_numbers = #tpu.dot_dimension_numbers<[1], [0], [0], [1], [0, 0, 1, 1], [], []>} : vector<1x640xbf16>, vector<640x256xbf16>, vector<1x256xf32> -> vector<1x256xf32>
      %c0_33 = arith.constant 0 : index
      %c0_34 = arith.constant 0 : index
      %49 = vector.load %arg10[%c0_33, %c0_34] : memref<1x256xf32, #tpu.memory_space<vmem>>, vector<1x256xf32>
      %50 = arith.addf %48, %49 : vector<1x256xf32>
      %cst_35 = arith.constant 0.000000e+00 : f32
      %51 = vector.broadcast %cst_35 : f32 to vector<1x256xf32>
      %52 = arith.maximumf %50, %51 : vector<1x256xf32>
      %53 = arith.truncf %52 : vector<1x256xf32> to vector<1x256xbf16>
      %c0_36 = arith.constant 0 : index
      %c0_37 = arith.constant 0 : index
      %54 = vector.load %arg11[%c0_36, %c0_37] : memref<256x128xbf16, #tpu.memory_space<vmem>>, vector<256x128xbf16>
      %cst_38 = arith.constant dense<0.000000e+00> : vector<1x128xf32>
      %55 = tpu.matmul %53, %54, %cst_38 {dimension_numbers = #tpu.dot_dimension_numbers<[1], [0], [0], [1], [0, 0, 1, 1], [], []>} : vector<1x256xbf16>, vector<256x128xbf16>, vector<1x128xf32> -> vector<1x128xf32>
      %c0_39 = arith.constant 0 : index
      %c0_40 = arith.constant 0 : index
      %56 = vector.load %arg12[%c0_39, %c0_40] : memref<1x128xf32, #tpu.memory_space<vmem>>, vector<1x128xf32>
      %57 = arith.addf %55, %56 : vector<1x128xf32>
      %c0_41 = arith.constant 0 : index
      %c0_42 = arith.constant 0 : index
      %c0_43 = arith.constant 0 : index
      %58 = vector.load %arg13[%c0_41, %c0_42, %c0_43] : memref<1x1x128xf32, #tpu.memory_space<vmem>>, vector<1x1x128xf32>
      %59 = vector.shape_cast %58 : vector<1x1x128xf32> to vector<1x128xf32>
      %60 = vector.shape_cast %57 : vector<1x128xf32> to vector<1x1x128xf32>
      tpu.vector_store %arg13[%c0_41, %c0_42, %c0_43], %60 {strides = array<i32>} : memref<1x1x128xf32, #tpu.memory_space<vmem>>, vector<1x1x128xf32>,
    } else {
    }
    return
  }
  func.func @transform_0(%arg0: i32, %arg1: i32) -> (i32, i32, i32) {
    %c0_i32 = arith.constant 0 : i32
    %c0_i32_0 = arith.constant 0 : i32
    return %arg0, %arg1, %c0_i32 : i32, i32, i32
  }
  func.func @transform_1(%arg0: i32, %arg1: i32) -> (i32, i32) {
    %c0_i32 = arith.constant 0 : i32
    %c0_i32_0 = arith.constant 0 : i32
    %c0_i32_1 = arith.constant 0 : i32
    return %c0_i32, %c0_i32_0 : i32, i32
  }
  func.func @transform_2(%arg0: i32, %arg1: i32) -> (i32, i32) {
    %c0_i32 = arith.constant 0 : i32
    %c0_i32_0 = arith.constant 0 : i32
    %c0_i32_1 = arith.constant 0 : i32
    return %c0_i32, %c0_i32_0 : i32, i32
  }
  func.func @transform_3(%arg0: i32, %arg1: i32) -> (i32, i32) {
    %c0_i32 = arith.constant 0 : i32
    %c0_i32_0 = arith.constant 0 : i32
    %c0_i32_1 = arith.constant 0 : i32
    return %c0_i32, %c0_i32_0 : i32, i32
  }
  func.func @transform_4(%arg0: i32, %arg1: i32) -> (i32, i32) {
    %c0_i32 = arith.constant 0 : i32
    %c0_i32_0 = arith.constant 0 : i32
    %c0_i32_1 = arith.constant 0 : i32
    return %c0_i32, %c0_i32_0 : i32, i32
  }
  func.func @transform_5(%arg0: i32, %arg1: i32) -> (i32, i32) {
    %c0_i32 = arith.constant 0 : i32
    %c0_i32_0 = arith.constant 0 : i32
    %c0_i32_1 = arith.constant 0 : i32
    return %c0_i32, %c0_i32_0 : i32, i32
  }
  func.func @transform_6(%arg0: i32, %arg1: i32) -> (i32, i32) {
    %c0_i32 = arith.constant 0 : i32
    %c0_i32_0 = arith.constant 0 : i32
    %c0_i32_1 = arith.constant 0 : i32
    return %c0_i32, %c0_i32_0 : i32, i32
  }
  func.func @transform_7(%arg0: i32, %arg1: i32) -> (i32, i32) {
    %c0_i32 = arith.constant 0 : i32
    %c0_i32_0 = arith.constant 0 : i32
    %c0_i32_1 = arith.constant 0 : i32
    return %c0_i32, %c0_i32_0 : i32, i32
  }
  func.func @transform_8(%arg0: i32, %arg1: i32) -> (i32, i32) {
    %c0_i32 = arith.constant 0 : i32
    %c0_i32_0 = arith.constant 0 : i32
    %c0_i32_1 = arith.constant 0 : i32
    return %c0_i32, %c0_i32_0 : i32, i32
  }
  func.func @transform_9(%arg0: i32, %arg1: i32) -> (i32, i32) {
    %c0_i32 = arith.constant 0 : i32
    %c0_i32_0 = arith.constant 0 : i32
    %c0_i32_1 = arith.constant 0 : i32
    return %c0_i32, %c0_i32_0 : i32, i32
  }
  func.func @transform_10(%arg0: i32, %arg1: i32) -> (i32, i32) {
    %c0_i32 = arith.constant 0 : i32
    %c0_i32_0 = arith.constant 0 : i32
    %c0_i32_1 = arith.constant 0 : i32
    return %c0_i32, %c0_i32_0 : i32, i32
  }
  func.func @transform_11(%arg0: i32, %arg1: i32) -> (i32, i32, i32) {
    %c0_i32 = arith.constant 0 : i32
    %c0_i32_0 = arith.constant 0 : i32
    %c0_i32_1 = arith.constant 0 : i32
    return %arg0, %c0_i32, %c0_i32_0 : i32, i32, i32
  }
}

</mosaic_0001>

<llo_original>
// kernel: tpu_custom_call.1
$region0: #{tpu_custom_call.1}
  #allocation0 [shape = 'u32[]', space=smem, size = 0x4, offset = 0x4, fixed_abs, tag = 'smem constant byte address 0x4 - core index']
  #allocation1 [shape = 'u32[144,128]{1,0:T(1,128)}', space=vmem, size = 0x12000, scoped, tag = 'internal scratch']
  #allocation2 [shape = 'f32[1,1536]{1,0:T(1,128)}', space=vmem, size = 0x1800, scoped, tag = 'scratch operand']
  %s0 = inlined_call_operand.vmem [shape: bf16[2,64,32], index: 0, kind: input, shape index: {}]
  %s1 = inlined_call_operand.hbm [shape: bf16[32,128], index: 1, kind: input, shape index: {}]
  %s2 = inlined_call_operand.hbm [shape: f32[1,128], index: 2, kind: input, shape index: {}]
  %s3 = inlined_call_operand.hbm [shape: bf16[128,1536], index: 3, kind: input, shape index: {}]
  %s4 = inlined_call_operand.hbm [shape: f32[1,1536], index: 4, kind: input, shape index: {}]
  %s5 = inlined_call_operand.hbm [shape: bf16[1536,640], index: 5, kind: input, shape index: {}]
  %s6 = inlined_call_operand.hbm [shape: f32[1,640], index: 6, kind: input, shape index: {}]
  %s7 = inlined_call_operand.hbm [shape: bf16[640,256], index: 7, kind: input, shape index: {}]
  %s8 = inlined_call_operand.hbm [shape: f32[1,256], index: 8, kind: input, shape index: {}]
  %s9 = inlined_call_operand.hbm [shape: bf16[256,128], index: 9, kind: input, shape index: {}]
  %s10 = inlined_call_operand.hbm [shape: f32[1,128], index: 10, kind: input, shape index: {}]
  %s11 = inlined_call_operand.hbm [shape: f32[2,1,128], index: 11, kind: output, shape index: {}]
  %s12 = sld [smem:[#allocation0]]
  $region125: #{tpu_custom_call.1} parent=0
    _
  %s14 = ssub.s32 1, %s12
  %s15 = scalar_select 0, %s14, %s12
  $region1: #{tpu_custom_call.1} parent=0
    #allocation3 [shape = 'u8[8192]{0}', space=vmem, size = 0x2000, scoped, tag = 'input window, operand 1, single buffered']
    #allocation4 [shape = 's32[2]{0}', space=sflag, size = 0x8, scoped, tag = 'scoped memory for tpu_custom_call.1']
    #allocation5 [shape = 's32[2]{0}', space=sflag, size = 0x8, scoped, tag = 'scoped memory for tpu_custom_call.1']
    #allocation6 [shape = 'u8[512]{0}', space=vmem, size = 0x400, scoped, tag = 'input window, operand 2, single buffered']
    #allocation7 [shape = 's32[1]{0}', space=sflag, size = 0x4, scoped, tag = 'scoped memory for tpu_custom_call.1']
    #allocation8 [shape = 'u8[393216]{0}', space=vmem, size = 0x60000, scoped, tag = 'input window, operand 3, single buffered']
    #allocation9 [shape = 'u8[6144]{0}', space=vmem, size = 0x1800, scoped, tag = 'input window, operand 4, single buffered']
    #allocation10 [shape = 's32[1]{0}', space=sflag, size = 0x4, scoped, tag = 'scoped memory for tpu_custom_call.1']
    #allocation11 [shape = 'u8[1966080]{0}', space=vmem, size = 0x1e0000, scoped, tag = 'input window, operand 5, single buffered']
    #allocation12 [shape = 'u8[2560]{0}', space=vmem, size = 0xc00, scoped, tag = 'input window, operand 6, single buffered']
    #allocation13 [shape = 's32[1]{0}', space=sflag, size = 0x4, scoped, tag = 'scoped memory for tpu_custom_call.1']
    #allocation14 [shape = 'u8[327680]{0}', space=vmem, size = 0x50000, scoped, tag = 'input window, operand 7, single buffered']
    #allocation15 [shape = 'u8[1024]{0}', space=vmem, size = 0x400, scoped, tag = 'input window, operand 8, single buffered']
    #allocation16 [shape = 's32[1]{0}', space=sflag, size = 0x4, scoped, tag = 'scoped memory for tpu_custom_call.1']
    #allocation17 [shape = 'u8[65536]{0}', space=vmem, size = 0x10000, scoped, tag = 'input window, operand 9, single buffered']
    #allocation18 [shape = 'u8[512]{0}', space=vmem, size = 0x400, scoped, tag = 'input window, operand 10, single buffered']
    #allocation19 [shape = 's32[1]{0}', space=sflag, size = 0x4, scoped, tag = 'scoped memory for tpu_custom_call.1']
    #allocation20 [shape = 'u8[1024]{0}', space=vmem, size = 0x400, scoped, tag = 'output window, operand 0']
    %16 = vsyncpa [#allocation4], 0
    %17 = vsyncpa [#allocation7], 0
    %18 = vsyncpa [#allocation10], 0
    %19 = vsyncpa [#allocation13], 0
    %20 = vsyncpa [#allocation16], 0
    %21 = vsyncpa [#allocation19], 0
    %22 = vsyncpa [#allocation5], 0
    %s23 = scalar_lea.sflag [#allocation5], 1
    %24 = vsyncpa %s23, 0
    loop: start=0, step=1, limit=4
    $region2: #{tpu_custom_call.1} parent=1 // loop_pre_header
      _
    $region3: #{tpu_custom_call.1} parent=1 // loop_header
      %s26 = sphi 0, %s30
      %p27 = scmp.ge.s32.totalorder %s26, 4
      %s33 = sphi 0, %s45
      %s34 = sphi 0, %s41
      %s35 = sphi 0, %s33
      %s36 = sphi 0, %s34
      %s37 = sphi 0, %s35
      %s38 = sphi 0, %s36
      %s50 = sphi 0, %s52
      %s53 = sphi 0, %s50
      %s54 = sphi 0, %s53
      %s70 = sphi 0, %s54
      %s74 = sphi 0, %s74
      %s76 = sphi 0, %s74
      %s77 = sphi 0, %s76
      %s91 = sphi 0, %s77
      %s95 = sphi 0, %s95
      %s97 = sphi 0, %s95
      %s98 = sphi 0, %s97
      %s112 = sphi 0, %s98
      %s116 = sphi 0, %s116
      %s118 = sphi 0, %s116
      %s119 = sphi 0, %s118
      %s133 = sphi 0, %s119
      %s137 = sphi 0, %s137
      %s139 = sphi 0, %s137
      %s140 = sphi 0, %s139
      %s154 = sphi 0, %s140
      %s158 = sphi 0, %s158
      %s160 = sphi 0, %s158
      %s161 = sphi 0, %s160
      %s175 = sphi 0, %s161
      %s179 = sphi 0, %s179
      %s181 = sphi 0, %s179
      %s182 = sphi 0, %s181
      %s196 = sphi 0, %s182
      %s200 = sphi 0, %s200
      %s202 = sphi 0, %s200
      %s203 = sphi 0, %s202
      %s217 = sphi 0, %s203
      %s221 = sphi 0, %s221
      %s223 = sphi 0, %s221
      %s224 = sphi 0, %s223
      %s238 = sphi 0, %s224
      %s242 = sphi 0, %s242
      %s244 = sphi 0, %s242
      %s245 = sphi 0, %s244
      %s259 = sphi 0, %s245
      %s263 = sphi 0, %s263
      %s265 = sphi 0, %s263
      %s266 = sphi 0, %s265
      %s280 = sphi 0, %s266
      %s286 = sphi 0, %s288
      %s289 = sphi 0, %s286
      %s290 = sphi 0, %s289
      %s306 = sphi 0, %s290
    $region4: #{tpu_custom_call.1} parent=1 // loop_header_branch
      %29 = sbr.rel (%p27) target = $region8
    $region5: #{tpu_custom_call.1} parent=1 // loop_body
      %s31 = ssub.s32 %s26, 1
      %s32 = ssub.s32 %s26, 2
      %s39 = sadd.s32 1, %s34
      %p40 = scmp.ge.s32.totalorder %s39, 1
      %s41 = scalar_select %p40, 0, %s39
      %s42 = sadd.s32 1, %s33
      %s43 = scalar_select %p40, %s42, %s33
      %p44 = scmp.ge.s32.totalorder %s43, 2
      %s45 = scalar_select %p44, 0, %s43
      %s46 = ssub.s32 %s33, %s45
      %s47 = ssub.s32 %s34, %s41
      %s48 = sor.u32 %s46, %s47
      %p49 = scmp.eq.s32.totalorder %s48, 0
      %s51 = sadd.s32 %s50, 1
      %s52 = scalar_select %p49, %s50, %s51
      %p55 = pneg %p49
      %p56 = scmp.eq.s32.totalorder %s26, 1
      %p57 = por %p55, %p56
      %p58 = scmp.ne.s32.totalorder %s50, %s53
      %p59 = scmp.eq.s32.totalorder %s26, 0
      %p60 = por %p58, %p59
      %p61 = scmp.ne.s32.totalorder %s50, %s53
      %p62 = scmp.eq.s32.totalorder %s31, 1
      %p63 = por %p61, %p62
      %p64 = scmp.ne.s32.totalorder %s53, %s54
      %p65 = scmp.eq.s32.totalorder %s31, 0
      %p66 = por %p64, %p65
      %p67 = scmp.ne.s32.totalorder %s53, %s54
      %p68 = scmp.eq.s32.totalorder %s32, 1
      %p69 = por %p67, %p68
      %p71 = scmp.ne.s32.totalorder %s54, %s70
      %p72 = scmp.eq.s32.totalorder %s32, 0
      %p73 = por %p71, %p72
      %s75 = sadd.s32 %s74, 1
      %p78 = scmp.eq.s32.totalorder %s26, 1
      %p79 = scmp.ne.s32.totalorder %s74, %s76
      %p80 = scmp.eq.s32.totalorder %s26, 0
      %p81 = por %p79, %p80
      %p82 = scmp.ne.s32.totalorder %s74, %s76
      %p83 = scmp.eq.s32.totalorder %s31, 1
      %p84 = por %p82, %p83
      %p85 = scmp.ne.s32.totalorder %s76, %s77
      %p86 = scmp.eq.s32.totalorder %s31, 0
      %p87 = por %p85, %p86
      %p88 = scmp.ne.s32.totalorder %s76, %s77
      %p89 = scmp.eq.s32.totalorder %s32, 1
      %p90 = por %p88, %p89
      %p92 = scmp.ne.s32.totalorder %s77, %s91
      %p93 = scmp.eq.s32.totalorder %s32, 0
      %p94 = por %p92, %p93
      %s96 = sadd.s32 %s95, 1
      %p99 = scmp.eq.s32.totalorder %s26, 1
      %p100 = scmp.ne.s32.totalorder %s95, %s97
      %p101 = scmp.eq.s32.totalorder %s26, 0
      %p102 = por %p100, %p101
      %p103 = scmp.ne.s32.totalorder %s95, %s97
      %p104 = scmp.eq.s32.totalorder %s31, 1
      %p105 = por %p103, %p104
      %p106 = scmp.ne.s32.totalorder %s97, %s98
      %p107 = scmp.eq.s32.totalorder %s31, 0
      %p108 = por %p106, %p107
      %p109 = scmp.ne.s32.totalorder %s97, %s98
      %p110 = scmp.eq.s32.totalorder %s32, 1
      %p111 = por %p109, %p110
      %p113 = scmp.ne.s32.totalorder %s98, %s112
      %p114 = scmp.eq.s32.totalorder %s32, 0
      %p115 = por %p113, %p114
      %s117 = sadd.s32 %s116, 1
      %p120 = scmp.eq.s32.totalorder %s26, 1
      %p121 = scmp.ne.s32.totalorder %s116, %s118
      %p122 = scmp.eq.s32.totalorder %s26, 0
      %p123 = por %p121, %p122
      %p124 = scmp.ne.s32.totalorder %s116, %s118
      %p125 = scmp.eq.s32.totalorder %s31, 1
      %p126 = por %p124, %p125
      %p127 = scmp.ne.s32.totalorder %s118, %s119
      %p128 = scmp.eq.s32.totalorder %s31, 0
      %p129 = por %p127, %p128
      %p130 = scmp.ne.s32.totalorder %s118, %s119
      %p131 = scmp.eq.s32.totalorder %s32, 1
      %p132 = por %p130, %p131
      %p134 = scmp.ne.s32.totalorder %s119, %s133
      %p135 = scmp.eq.s32.totalorder %s32, 0
      %p136 = por %p134, %p135
      %s138 = sadd.s32 %s137, 1
      %p141 = scmp.eq.s32.totalorder %s26, 1
      %p142 = scmp.ne.s32.totalorder %s137, %s139
      %p143 = scmp.eq.s32.totalorder %s26, 0
      %p144 = por %p142, %p143
      %p145 = scmp.ne.s32.totalorder %s137, %s139
      %p146 = scmp.eq.s32.totalorder %s31, 1
      %p147 = por %p145, %p146
      %p148 = scmp.ne.s32.totalorder %s139, %s140
      %p149 = scmp.eq.s32.totalorder %s31, 0
      %p150 = por %p148, %p149
      %p151 = scmp.ne.s32.totalorder %s139, %s140
      %p152 = scmp.eq.s32.totalorder %s32, 1
      %p153 = por %p151, %p152
      %p155 = scmp.ne.s32.totalorder %s140, %s154
      %p156 = scmp.eq.s32.totalorder %s32, 0
      %p157 = por %p155, %p156
      %s159 = sadd.s32 %s158, 1
      %p162 = scmp.eq.s32.totalorder %s26, 1
      %p163 = scmp.ne.s32.totalorder %s158, %s160
      %p164 = scmp.eq.s32.totalorder %s26, 0
      %p165 = por %p163, %p164
      %p166 = scmp.ne.s32.totalorder %s158, %s160
      %p167 = scmp.eq.s32.totalorder %s31, 1
      %p168 = por %p166, %p167
      %p169 = scmp.ne.s32.totalorder %s160, %s161
      %p170 = scmp.eq.s32.totalorder %s31, 0
      %p171 = por %p169, %p170
      %p172 = scmp.ne.s32.totalorder %s160, %s161
      %p173 = scmp.eq.s32.totalorder %s32, 1
      %p174 = por %p172, %p173
      %p176 = scmp.ne.s32.totalorder %s161, %s175
      %p177 = scmp.eq.s32.totalorder %s32, 0
      %p178 = por %p176, %p177
      %s180 = sadd.s32 %s179, 1
      %p183 = scmp.eq.s32.totalorder %s26, 1
      %p184 = scmp.ne.s32.totalorder %s179, %s181
      %p185 = scmp.eq.s32.totalorder %s26, 0
      %p186 = por %p184, %p185
      %p187 = scmp.ne.s32.totalorder %s179, %s181
      %p188 = scmp.eq.s32.totalorder %s31, 1
      %p189 = por %p187, %p188
      %p190 = scmp.ne.s32.totalorder %s181, %s182
      %p191 = scmp.eq.s32.totalorder %s31, 0
      %p192 = por %p190, %p191
      %p193 = scmp.ne.s32.totalorder %s181, %s182
      %p194 = scmp.eq.s32.totalorder %s32, 1
      %p195 = por %p193, %p194
      %p197 = scmp.ne.s32.totalorder %s182, %s196
      %p198 = scmp.eq.s32.totalorder %s32, 0
      %p199 = por %p197, %p198
      %s201 = sadd.s32 %s200, 1
      %p204 = scmp.eq.s32.totalorder %s26, 1
      %p205 = scmp.ne.s32.totalorder %s200, %s202
      %p206 = scmp.eq.s32.totalorder %s26, 0
      %p207 = por %p205, %p206
      %p208 = scmp.ne.s32.totalorder %s200, %s202
      %p209 = scmp.eq.s32.totalorder %s31, 1
      %p210 = por %p208, %p209
      %p211 = scmp.ne.s32.totalorder %s202, %s203
      %p212 = scmp.eq.s32.totalorder %s31, 0
      %p213 = por %p211, %p212
      %p214 = scmp.ne.s32.totalorder %s202, %s203
      %p215 = scmp.eq.s32.totalorder %s32, 1
      %p216 = por %p214, %p215
      %p218 = scmp.ne.s32.totalorder %s203, %s217
      %p219 = scmp.eq.s32.totalorder %s32, 0
      %p220 = por %p218, %p219
      %s222 = sadd.s32 %s221, 1
      %p225 = scmp.eq.s32.totalorder %s26, 1
      %p226 = scmp.ne.s32.totalorder %s221, %s223
      %p227 = scmp.eq.s32.totalorder %s26, 0
      %p228 = por %p226, %p227
      %p229 = scmp.ne.s32.totalorder %s221, %s223
      %p230 = scmp.eq.s32.totalorder %s31, 1
      %p231 = por %p229, %p230
      %p232 = scmp.ne.s32.totalorder %s223, %s224
      %p233 = scmp.eq.s32.totalorder %s31, 0
      %p234 = por %p232, %p233
      %p235 = scmp.ne.s32.totalorder %s223, %s224
      %p236 = scmp.eq.s32.totalorder %s32, 1
      %p237 = por %p235, %p236
      %p239 = scmp.ne.s32.totalorder %s224, %s238
      %p240 = scmp.eq.s32.totalorder %s32, 0
      %p241 = por %p239, %p240
      %s243 = sadd.s32 %s242, 1
      %p246 = scmp.eq.s32.totalorder %s26, 1
      %p247 = scmp.ne.s32.totalorder %s242, %s244
      %p248 = scmp.eq.s32.totalorder %s26, 0
      %p249 = por %p247, %p248
      %p250 = scmp.ne.s32.totalorder %s242, %s244
      %p251 = scmp.eq.s32.totalorder %s31, 1
      %p252 = por %p250, %p251
      %p253 = scmp.ne.s32.totalorder %s244, %s245
      %p254 = scmp.eq.s32.totalorder %s31, 0
      %p255 = por %p253, %p254
      %p256 = scmp.ne.s32.totalorder %s244, %s245
      %p257 = scmp.eq.s32.totalorder %s32, 1
      %p258 = por %p256, %p257
      %p260 = scmp.ne.s32.totalorder %s245, %s259
      %p261 = scmp.eq.s32.totalorder %s32, 0
      %p262 = por %p260, %p261
      %s264 = sadd.s32 %s263, 1
      %p267 = scmp.eq.s32.totalorder %s26, 1
      %p268 = scmp.ne.s32.totalorder %s263, %s265
      %p269 = scmp.eq.s32.totalorder %s26, 0
      %p270 = por %p268, %p269
      %p271 = scmp.ne.s32.totalorder %s263, %s265
      %p272 = scmp.eq.s32.totalorder %s31, 1
      %p273 = por %p271, %p272
      %p274 = scmp.ne.s32.totalorder %s265, %s266
      %p275 = scmp.eq.s32.totalorder %s31, 0
      %p276 = por %p274, %p275
      %p277 = scmp.ne.s32.totalorder %s265, %s266
      %p278 = scmp.eq.s32.totalorder %s32, 1
      %p279 = por %p277, %p278
      %p281 = scmp.ne.s32.totalorder %s266, %s280
      %p282 = scmp.eq.s32.totalorder %s32, 0
      %p283 = por %p281, %p282
      %s284 = ssub.s32 %s33, %s45
      %p285 = scmp.eq.s32.totalorder %s284, 0
      %s287 = sadd.s32 %s286, 1
      %s288 = scalar_select %p285, %s286, %s287
      %p291 = pneg %p285
      %p292 = scmp.eq.s32.totalorder %s26, 1
      %p293 = por %p291, %p292
      %p294 = scmp.ne.s32.totalorder %s286, %s289
      %p295 = scmp.eq.s32.totalorder %s26, 0
      %p296 = por %p294, %p295
      %p297 = scmp.ne.s32.totalorder %s286, %s289
      %p298 = scmp.eq.s32.totalorder %s31, 1
      %p299 = por %p297, %p298
      %p300 = scmp.ne.s32.totalorder %s289, %s290
      %p301 = scmp.eq.s32.totalorder %s31, 0
      %p302 = por %p300, %p301
      %p303 = scmp.ne.s32.totalorder %s289, %s290
      %p304 = scmp.eq.s32.totalorder %s32, 1
      %p305 = por %p303, %p304
      %p307 = scmp.ne.s32.totalorder %s290, %s306
      %p308 = scmp.eq.s32.totalorder %s32, 0
      %p309 = por %p307, %p308
      %p310 = scmp.le.s32.totalorder 1, %s26
      %p311 = scmp.lt.s32.totalorder %s26, 3
      %p312 = pnand %p310, %p311
      %p313 = pneg %p312
      // Predicated region
      $region9: #{tpu_custom_call.1} parent=5 // pred_check
        _
      $region10: #{tpu_custom_call.1} parent=5 // pred_check_branch
        %315 = sbr.rel (%p312) target = $region12
      $region11: #{tpu_custom_call.1} parent=5 // pred_region
        %s316 = ssub.s32 %s26, 1
        // Predicated region
        $region13: #{tpu_custom_call.1} parent=11 // pred_check
          %p317 = pneg %p87
        $region14: #{tpu_custom_call.1} parent=11 // pred_check_branch
          %319 = sbr.rel (%p317) target = $region16
        $region15: #{tpu_custom_call.1} parent=11 // pred_region
          %s321 = ssub.s32 256, 256
          %322 = vsyncadd [#allocation4], %s321
          %s323 = sshll.u32 [#allocation3], 4
          %s324 = int_to_ptr.vmem [resolvable:$true] %s323
          %329 = dma.hbm_to_vmem [thread:$0]  %s1, 256, %s324, [#allocation4], 64, 64, 4
        $region16: #{tpu_custom_call.1} parent=11 // pred_fallthru
          _
        // Predicated region
        $region17: #{tpu_custom_call.1} parent=11 // pred_check
          %p330 = pneg %p108
        $region18: #{tpu_custom_call.1} parent=11 // pred_check_branch
          %332 = sbr.rel (%p330) target = $region20
        $region19: #{tpu_custom_call.1} parent=11 // pred_region
          %s334 = ssub.s32 16, 16
          %335 = vsyncadd [#allocation7], %s334
          %s337 = sshll.u32 [#allocation6], 4
          %s338 = int_to_ptr.vmem [resolvable:$true] %s337
          %340 = dma.hbm_to_vmem [thread:$0]  %s2, 16, %s338, [#allocation7]
        $region20: #{tpu_custom_call.1} parent=11 // pred_fallthru
          _
        // Predicated region
        $region21: #{tpu_custom_call.1} parent=11 // pred_check
          %p341 = pneg %p129
        $region22: #{tpu_custom_call.1} parent=11 // pred_check_branch
          %343 = sbr.rel (%p341) target = $region24
        $region23: #{tpu_custom_call.1} parent=11 // pred_region
          %s345 = ssub.s32 12288, 12288
          %346 = vsyncadd [#allocation7], %s345
          %s347 = sshll.u32 [#allocation8], 4
          %s348 = int_to_ptr.vmem [resolvable:$true] %s347
          %353 = dma.hbm_to_vmem [thread:$0]  %s3, 12288, %s348, [#allocation7], 768, 768, 48
        $region24: #{tpu_custom_call.1} parent=11 // pred_fallthru
          _
        // Predicated region
        $region25: #{tpu_custom_call.1} parent=11 // pred_check
          %p354 = pneg %p150
        $region26: #{tpu_custom_call.1} parent=11 // pred_check_branch
          %356 = sbr.rel (%p354) target = $region28
        $region27: #{tpu_custom_call.1} parent=11 // pred_region
          %s358 = ssub.s32 192, 192
          %359 = vsyncadd [#allocation10], %s358
          %s361 = sshll.u32 [#allocation9], 4
          %s362 = int_to_ptr.vmem [resolvable:$true] %s361
          %364 = dma.hbm_to_vmem [thread:$0]  %s4, 192, %s362, [#allocation10]
        $region28: #{tpu_custom_call.1} parent=11 // pred_fallthru
          _
        // Predicated region
        $region29: #{tpu_custom_call.1} parent=11 // pred_check
          %p365 = pneg %p171
        $region30: #{tpu_custom_call.1} parent=11 // pred_check_branch
          %367 = sbr.rel (%p365) target = $region32
        $region31: #{tpu_custom_call.1} parent=11 // pred_region
          %s369 = ssub.s32 61440, 61440
          %370 = vsyncadd [#allocation10], %s369
          %s371 = sshll.u32 [#allocation11], 4
          %s372 = int_to_ptr.vmem [resolvable:$true] %s371
          %377 = dma.hbm_to_vmem [thread:$0]  %s5, 61440, %s372, [#allocation10], 320, 320, 20
        $region32: #{tpu_custom_call.1} parent=11 // pred_fallthru
          _
        // Predicated region
        $region33: #{tpu_custom_call.1} parent=11 // pred_check
          %p378 = pneg %p192
        $region34: #{tpu_custom_call.1} parent=11 // pred_check_branch
          %380 = sbr.rel (%p378) target = $region36
        $region35: #{tpu_custom_call.1} parent=11 // pred_region
          %s382 = ssub.s32 80, 80
          %383 = vsyncadd [#allocation13], %s382
          %s385 = sshll.u32 [#allocation12], 4
          %s386 = int_to_ptr.vmem [resolvable:$true] %s385
          %388 = dma.hbm_to_vmem [thread:$0]  %s6, 80, %s386, [#allocation13]
        $region36: #{tpu_custom_call.1} parent=11 // pred_fallthru
          _
        // Predicated region
        $region37: #{tpu_custom_call.1} parent=11 // pred_check
          %p389 = pneg %p213
        $region38: #{tpu_custom_call.1} parent=11 // pred_check_branch
          %391 = sbr.rel (%p389) target = $region40
        $region39: #{tpu_custom_call.1} parent=11 // pred_region
          %s393 = ssub.s32 10240, 10240
          %394 = vsyncadd [#allocation13], %s393
          %s395 = sshll.u32 [#allocation14], 4
          %s396 = int_to_ptr.vmem [resolvable:$true] %s395
          %401 = dma.hbm_to_vmem [thread:$0]  %s7, 10240, %s396, [#allocation13], 128, 128, 8
        $region40: #{tpu_custom_call.1} parent=11 // pred_fallthru
          _
        // Predicated region
        $region41: #{tpu_custom_call.1} parent=11 // pred_check
          %p402 = pneg %p234
        $region42: #{tpu_custom_call.1} parent=11 // pred_check_branch
          %404 = sbr.rel (%p402) target = $region44
        $region43: #{tpu_custom_call.1} parent=11 // pred_region
          %s406 = ssub.s32 32, 32
          %407 = vsyncadd [#allocation16], %s406
          %s409 = sshll.u32 [#allocation15], 4
          %s410 = int_to_ptr.vmem [resolvable:$true] %s409
          %412 = dma.hbm_to_vmem [thread:$0]  %s8, 32, %s410, [#allocation16]
        $region44: #{tpu_custom_call.1} parent=11 // pred_fallthru
          _
        // Predicated region
        $region45: #{tpu_custom_call.1} parent=11 // pred_check
          %p413 = pneg %p255
        $region46: #{tpu_custom_call.1} parent=11 // pred_check_branch
          %415 = sbr.rel (%p413) target = $region48
        $region47: #{tpu_custom_call.1} parent=11 // pred_region
          %s417 = ssub.s32 2048, 2048
          %418 = vsyncadd [#allocation16], %s417
          %s419 = sshll.u32 [#allocation17], 4
          %s420 = int_to_ptr.vmem [resolvable:$true] %s419
          %425 = dma.hbm_to_vmem [thread:$0]  %s9, 2048, %s420, [#allocation16], 64, 64, 4
        $region48: #{tpu_custom_call.1} parent=11 // pred_fallthru
          _
        // Predicated region
        $region49: #{tpu_custom_call.1} parent=11 // pred_check
          %p426 = pneg %p276
        $region50: #{tpu_custom_call.1} parent=11 // pred_check_branch
          %428 = sbr.rel (%p426) target = $region52
        $region51: #{tpu_custom_call.1} parent=11 // pred_region
          %s430 = ssub.s32 16, 16
          %431 = vsyncadd [#allocation19], %s430
          %s433 = sshll.u32 [#allocation18], 4
          %s434 = int_to_ptr.vmem [resolvable:$true] %s433
          %436 = dma.hbm_to_vmem [thread:$0]  %s10, 16, %s434, [#allocation19]
        $region52: #{tpu_custom_call.1} parent=11 // pred_fallthru
          _
      $region12: #{tpu_custom_call.1} parent=5 // pred_fallthru
        _
      %p437 = scmp.lt.s32.totalorder %s26, 2
      // Predicated region
      $region53: #{tpu_custom_call.1} parent=5 // pred_check
        %p438 = pneg %p437
      $region54: #{tpu_custom_call.1} parent=5 // pred_check_branch
        %440 = sbr.rel (%p438) target = $region56
      $region55: #{tpu_custom_call.1} parent=5 // pred_region
        // Predicated region
        $region57: #{tpu_custom_call.1} parent=55 // pred_check
          %p441 = pneg %p60
        $region58: #{tpu_custom_call.1} parent=55 // pred_check_branch
          %443 = sbr.rel (%p441) target = $region60
        $region59: #{tpu_custom_call.1} parent=55 // pred_region
          %s444 = smul.u32 8, %s34
          %p445 = scmp.lt.s32.totalorder %s33, 1
          %s446 = scalar_select %p445, %s33, 1
          %p447 = scmp.lt.s32.totalorder %s444, 7
          %s448 = scalar_select %p447, %s444, 7
          %s449 = smul.addr %s446, 8
          %s450 = sadd.s32 %s448, %s449
          %s451 = smul.addr %s450, 4
          %s452 = scalar_lea.vmem %s0, %s451
          %s453 = smul.u32 8, %s34
        $region60: #{tpu_custom_call.1} parent=55 // pred_fallthru
          _
      $region56: #{tpu_custom_call.1} parent=5 // pred_fallthru
        _
      %p454 = scmp.le.s32.totalorder 1, %s26
      %p455 = scmp.lt.s32.totalorder %s26, 3
      %p456 = pnand %p454, %p455
      %p457 = pneg %p456
      // Predicated region
      $region61: #{tpu_custom_call.1} parent=5 // pred_check
        _
      $region62: #{tpu_custom_call.1} parent=5 // pred_check_branch
        %459 = sbr.rel (%p456) target = $region64
      $region63: #{tpu_custom_call.1} parent=5 // pred_region
        %s460 = ssub.s32 %s26, 1
        // Predicated region
        $region65: #{tpu_custom_call.1} parent=63 // pred_check
          %p461 = pneg %p87
        $region66: #{tpu_custom_call.1} parent=63 // pred_check_branch
          %463 = sbr.rel (%p461) target = $region68
        $region67: #{tpu_custom_call.1} parent=63 // pred_region
          %464 = dma.done [#allocation4], 256
        $region68: #{tpu_custom_call.1} parent=63 // pred_fallthru
          _
        // Predicated region
        $region69: #{tpu_custom_call.1} parent=63 // pred_check
          %p465 = pneg %p108
        $region70: #{tpu_custom_call.1} parent=63 // pred_check_branch
          %467 = sbr.rel (%p465) target = $region72
        $region71: #{tpu_custom_call.1} parent=63 // pred_region
          %468 = dma.done [#allocation7], 16
        $region72: #{tpu_custom_call.1} parent=63 // pred_fallthru
          _
        // Predicated region
        $region73: #{tpu_custom_call.1} parent=63 // pred_check
          %p469 = pneg %p129
        $region74: #{tpu_custom_call.1} parent=63 // pred_check_branch
          %471 = sbr.rel (%p469) target = $region76
        $region75: #{tpu_custom_call.1} parent=63 // pred_region
          %472 = dma.done [#allocation7], 12288
        $region76: #{tpu_custom_call.1} parent=63 // pred_fallthru
          _
        // Predicated region
        $region77: #{tpu_custom_call.1} parent=63 // pred_check
          %p473 = pneg %p150
        $region78: #{tpu_custom_call.1} parent=63 // pred_check_branch
          %475 = sbr.rel (%p473) target = $region80
        $region79: #{tpu_custom_call.1} parent=63 // pred_region
          %476 = dma.done [#allocation10], 192
        $region80: #{tpu_custom_call.1} parent=63 // pred_fallthru
          _
        // Predicated region
        $region81: #{tpu_custom_call.1} parent=63 // pred_check
          %p477 = pneg %p171
        $region82: #{tpu_custom_call.1} parent=63 // pred_check_branch
          %479 = sbr.rel (%p477) target = $region84
        $region83: #{tpu_custom_call.1} parent=63 // pred_region
          %480 = dma.done [#allocation10], 61440
        $region84: #{tpu_custom_call.1} parent=63 // pred_fallthru
          _
        // Predicated region
        $region85: #{tpu_custom_call.1} parent=63 // pred_check
          %p481 = pneg %p192
        $region86: #{tpu_custom_call.1} parent=63 // pred_check_branch
          %483 = sbr.rel (%p481) target = $region88
        $region87: #{tpu_custom_call.1} parent=63 // pred_region
          %484 = dma.done [#allocation13], 80
        $region88: #{tpu_custom_call.1} parent=63 // pred_fallthru
          _
        // Predicated region
        $region89: #{tpu_custom_call.1} parent=63 // pred_check
          %p485 = pneg %p213
        $region90: #{tpu_custom_call.1} parent=63 // pred_check_branch
          %487 = sbr.rel (%p485) target = $region92
        $region91: #{tpu_custom_call.1} parent=63 // pred_region
          %488 = dma.done [#allocation13], 10240
        $region92: #{tpu_custom_call.1} parent=63 // pred_fallthru
          _
        // Predicated region
        $region93: #{tpu_custom_call.1} parent=63 // pred_check
          %p489 = pneg %p234
        $region94: #{tpu_custom_call.1} parent=63 // pred_check_branch
          %491 = sbr.rel (%p489) target = $region96
        $region95: #{tpu_custom_call.1} parent=63 // pred_region
          %492 = dma.done [#allocation16], 32
        $region96: #{tpu_custom_call.1} parent=63 // pred_fallthru
          _
        // Predicated region
        $region97: #{tpu_custom_call.1} parent=63 // pred_check
          %p493 = pneg %p255
        $region98: #{tpu_custom_call.1} parent=63 // pred_check_branch
          %495 = sbr.rel (%p493) target = $region100
        $region99: #{tpu_custom_call.1} parent=63 // pred_region
          %496 = dma.done [#allocation16], 2048
        $region100: #{tpu_custom_call.1} parent=63 // pred_fallthru
          _
        // Predicated region
        $region101: #{tpu_custom_call.1} parent=63 // pred_check
          %p497 = pneg %p276
        $region102: #{tpu_custom_call.1} parent=63 // pred_check_branch
          %499 = sbr.rel (%p497) target = $region104
        $region103: #{tpu_custom_call.1} parent=63 // pred_region
          %500 = dma.done [#allocation19], 16
        $region104: #{tpu_custom_call.1} parent=63 // pred_fallthru
          _
        %s501 = smul.u32 8, %s36
        %p502 = scmp.lt.s32.totalorder %s35, 1
        %s503 = scalar_select %p502, %s35, 1
        %p504 = scmp.lt.s32.totalorder %s501, 7
        %s505 = scalar_select %p504, %s501, 7
        %s506 = smul.addr %s503, 8
        %s507 = sadd.s32 %s505, %s506
        %s508 = smul.addr %s507, 4
        %s509 = scalar_lea.vmem %s0, %s508
        %p510 = pneg %p66
        %p511 = pneg %p63
        %p512 = pneg %p87
        %p513 = pneg %p84
        %p514 = pneg %p108
        %p515 = pneg %p105
        %p516 = pneg %p129
        %p517 = pneg %p126
        %p518 = pneg %p150
        %p519 = pneg %p147
        %p520 = pneg %p171
        %p521 = pneg %p168
        %p522 = pneg %p192
        %p523 = pneg %p189
        %p524 = pneg %p213
        %p525 = pneg %p210
        %p526 = pneg %p234
        %p527 = pneg %p231
        %p528 = pneg %p255
        %p529 = pneg %p252
        %p530 = pneg %p276
        %p531 = pneg %p273
        %p532 = pneg %p302
        %p533 = pneg %p299
        %s534 = sand.u32 %s289, 1
        %s535 = scalar_lea.sflag [#allocation5], %s534
        %s536 = sand.u32 %s289, 1
        %s537 = scalar_lea.vmem [#allocation20], %s536
        %s538 = smul.u32 8, %s36
        %p539 = scmp.lt.s32.totalorder %s35, 1
        %s540 = scalar_select %p539, %s35, 1
        %p541 = scmp.lt.s32.totalorder %s538, 7
        %s542 = scalar_select %p541, %s538, 7
        %s543 = smul.addr %s540, 8
        %s544 = sadd.s32 %s542, %s543
        %s545 = smul.addr %s544, 4
        %s546 = scalar_lea.vmem %s0, %s545
        %s547 = smul.u32 8, %s36
        %p549 = scmp.eq.s32.totalorder %s36, 0
        // Predicated region
        $region105: #{tpu_custom_call.1} parent=63 // pred_check
          %p550 = pneg %p549
        $region106: #{tpu_custom_call.1} parent=63 // pred_check_branch
          %552 = sbr.rel (%p550) target = $region108
        $region107: #{tpu_custom_call.1} parent=63 // pred_region
          %553 = vst [vmem:[#allocation2] sm:$0xff] 0.0
          %v554 = vlaneseq
          %vm555 = vcmp.ge.s32.totalorder %v554, 0
          %vm556 = vcmp.lt.s32.totalorder %v554, 512
          %vm557 = vmand %vm555, %vm556
          %558 = vst.msk [vmem:[#allocation2 + $0x8] sm:$0xf] %vm557, 0.0
        $region108: #{tpu_custom_call.1} parent=63 // pred_fallthru
          _
        %v559 = vld [vmem:[%s546] sm:$0xf]
        %v560 = vld [vmem:[%s546 + $0x4] sm:$0xf]
        %v561 = vld [vmem:[%s546 + $0x8] sm:$0xf]
        %v562 = vld [vmem:[%s546 + $0xc] sm:$0xf]
        %v563 = vld [vmem:[%s546 + $0x10] sm:$0xf]
        %v564 = vld [vmem:[%s546 + $0x14] sm:$0xf]
        %v565 = vld [vmem:[%s546 + $0x18] sm:$0xf]
        %v566 = vld [vmem:[%s546 + $0x1c] sm:$0xf]
        %v567 = vld [vmem:[#allocation3] sm:$0xf]
        %v568 = vld [vmem:[#allocation3 + $0x4] sm:$0xf]
        %v569 = vld [vmem:[#allocation3 + $0x8] sm:$0xf]
        %v570 = vld [vmem:[#allocation3 + $0xc] sm:$0xf]
        %v571 = vld [vmem:[#allocation6] sm:$0x1]
        %v573 = vlaneseq
        %v574 = vshrl.u32 %v573, 7
        %v575 = vsub.s32 0, %v574
        %v576 = vrot.slane %v571, %v575
        %v586 = vunpack.c.l.b16 %v559
        %v587 = vunpack.c.l.b16 %v560
        %v588 = vunpack.c.l.b16 %v561
        %v589 = vunpack.c.l.b16 %v562
        %v590 = vunpack.c.l.b16 %v563
        %v591 = vunpack.c.l.b16 %v564
        %v592 = vunpack.c.l.b16 %v565
        %v593 = vunpack.c.l.b16 %v566
        %v594 = vpack.c.b16 %v587, %v586
        %v595 = vpack.c.b16 %v589, %v588
        %v596 = vpack.c.b16 %v591, %v590
        %v597 = vpack.c.b16 %v593, %v592
        %v602 = vunpack.c.l.b16 %v567
        %v603 = vunpack.c.l.b16 %v568
        %v604 = vunpack.c.l.b16 %v569
        %v605 = vunpack.c.l.b16 %v570
        %v606 = vpack.c.b16 %v603, %v602
        %v607 = vpack.c.b16 %v605, %v604
        %vm610 = vcmask 261120
        %v612 = vsel %vm610, %v594, 0
        %v615 = vsel %vm610, %v595, 0
        %v618 = vsel %vm610, %v596, 0
        %v621 = vsel %vm610, %v597, 0
        %623 = vmatprep.subr.bf16.mxu0 0
        %624 = vmatpush1.bf16.msra.mxu0 %v606
        %625 = vmatprep.subr.bf16.mxu0 0
        %626 = vmatpush1.bf16.msra.mxu0 %v607
        %627 = vmatprep.subr.bf16.mxu0 0
        %628 = vmatpush1.bf16.msra.mxu0 0
        %629 = vmatprep.subr.bf16.mxu0 0
        %630 = vmatpush1.bf16.msra.mxu0 0
        %631 = vmatprep.subr.bf16.mxu0 0
        %632 = vmatpush1.bf16.msra.mxu0 0
        %633 = vmatprep.subr.bf16.mxu0 0
        %634 = vmatpush1.bf16.msra.mxu0 0
        %635 = vmatprep.subr.bf16.mxu0 0
        %636 = vmatpush1.bf16.msra.mxu0 0
        %637 = vmatprep.subr.bf16.mxu0 0
        %638 = vmatpush1.bf16.msra.mxu0 0
        %639 = vmatprep.subr.bf16.mxu0 0
        %640 = vmatpush1.bf16.msra.mxu0 0
        %641 = vmatprep.subr.bf16.mxu0 0
        %642 = vmatpush1.bf16.msra.mxu0 0
        %643 = vmatprep.subr.bf16.mxu0 0
        %644 = vmatpush1.bf16.msra.mxu0 0
        %645 = vmatprep.subr.bf16.mxu0 0
        %646 = vmatpush1.bf16.msra.mxu0 0
        %647 = vmatprep.subr.bf16.mxu0 0
        %648 = vmatpush1.bf16.msra.mxu0 0
        %649 = vmatprep.subr.bf16.mxu0 0
        %650 = vmatpush1.bf16.msra.mxu0 0
        %651 = vmatprep.subr.bf16.mxu0 0
        %652 = vmatpush1.bf16.msra.mxu0 0
        %653 = vmatprep.subr.bf16.mxu0 0
        %654 = vmatpush1.bf16.msra.mxu0 0
        %655 = vmatprep.mubr.bf16.mxu0 0
        %656 = vmatmul.mubr.bf16.gmra.mrb[0].mxu0 %v612
        %v657 = vpop.f32.mrb[0].mxu0
        %v658 = vadd.f32 %v576, %v657
        %v659 = vpop.f32.mrb[0].mxu0
        %v660 = vpop.f32.mrb[0].mxu0
        %v661 = vadd.f32 %v576, %v660
        %v662 = vpop.f32.mrb[0].mxu0
        %663 = vmatprep.mubr.bf16.mxu0 0
        %664 = vmatmul.mubr.bf16.gmra.mrb[0].mxu0 %v615
        %v665 = vpop.f32.mrb[0].mxu0
        %v666 = vadd.f32 %v576, %v665
        %v667 = vpop.f32.mrb[0].mxu0
        %v668 = vpop.f32.mrb[0].mxu0
        %v669 = vadd.f32 %v576, %v668
        %v670 = vpop.f32.mrb[0].mxu0
        %671 = vmatprep.mubr.bf16.mxu0 0
        %672 = vmatmul.mubr.bf16.gmra.mrb[0].mxu0 %v618
        %v673 = vpop.f32.mrb[0].mxu0
        %v674 = vadd.f32 %v576, %v673
        %v675 = vpop.f32.mrb[0].mxu0
        %v676 = vpop.f32.mrb[0].mxu0
        %v677 = vadd.f32 %v576, %v676
        %v678 = vpop.f32.mrb[0].mxu0
        %679 = vmatprep.mubr.bf16.mxu0 0
        %680 = vmatmul.mubr.bf16.gmra.mrb[0].mxu0 %v621
        %v681 = vpop.f32.mrb[0].mxu0
        %v682 = vadd.f32 %v576, %v681
        %v683 = vpop.f32.mrb[0].mxu0
        %v684 = vpop.f32.mrb[0].mxu0
        %v685 = vadd.f32 %v576, %v684
        %v686 = vpop.f32.mrb[0].mxu0
        %687 = vdwg.mxu0
        %v688 = vxor.u32 %v658, 2147483648
        %v689 = vxor.u32 %v661, 2147483648
        %v690 = vxor.u32 %v666, 2147483648
        %v691 = vxor.u32 %v669, 2147483648
        %v692 = vxor.u32 %v674, 2147483648
        %v693 = vxor.u32 %v677, 2147483648
        %v694 = vxor.u32 %v682, 2147483648
        %v695 = vxor.u32 %v685, 2147483648
        %v696 = vmul.f32 %v688, 1.442695
        %v697 = vpow.pop %v696
        %v698 = vmul.f32 %v689, 1.442695
        %v699 = vpow.pop %v698
        %v700 = vmul.f32 %v690, 1.442695
        %v701 = vpow.pop %v700
        %v702 = vmul.f32 %v691, 1.442695
        %v703 = vpow.pop %v702
        %v704 = vmul.f32 %v692, 1.442695
        %v705 = vpow.pop %v704
        %v706 = vmul.f32 %v693, 1.442695
        %v707 = vpow.pop %v706
        %v708 = vmul.f32 %v694, 1.442695
        %v709 = vpow.pop %v708
        %v710 = vmul.f32 %v695, 1.442695
        %v711 = vpow.pop %v710
        %v712 = vadd.f32 %v697, 1.0
        %v713 = vadd.f32 %v699, 1.0
        %v714 = vadd.f32 %v701, 1.0
        %v715 = vadd.f32 %v703, 1.0
        %v716 = vadd.f32 %v705, 1.0
        %v717 = vadd.f32 %v707, 1.0
        %v718 = vadd.f32 %v709, 1.0
        %v719 = vadd.f32 %v711, 1.0
        %v720 = vrcp.pop %v712
        %v721 = vmul.f32 1.0, %v720
        %v722 = vrcp.pop %v713
        %v723 = vmul.f32 1.0, %v722
        %v724 = vrcp.pop %v714
        %v725 = vmul.f32 1.0, %v724
        %v726 = vrcp.pop %v715
        %v727 = vmul.f32 1.0, %v726
        %v728 = vrcp.pop %v716
        %v729 = vmul.f32 1.0, %v728
        %v730 = vrcp.pop %v717
        %v731 = vmul.f32 1.0, %v730
        %v732 = vrcp.pop %v718
        %v733 = vmul.f32 1.0, %v732
        %v734 = vrcp.pop %v719
        %v735 = vmul.f32 1.0, %v734
        %v736 = vmul.f32 %v658, %v721
        %v737 = vmul.f32 %v661, %v723
        %v738 = vmul.f32 %v666, %v725
        %v739 = vmul.f32 %v669, %v727
        %v740 = vmul.f32 %v674, %v729
        %v741 = vmul.f32 %v677, %v731
        %v742 = vmul.f32 %v682, %v733
        %v743 = vmul.f32 %v685, %v735
        %v744 = vpack.c.bf16 %v737, %v736
        %v745 = vpack.c.bf16 %v739, %v738
        %v746 = vpack.c.bf16 %v741, %v740
        %v747 = vpack.c.bf16 %v743, %v742
        %v748 = vld [vmem:[#allocation8] sm:$0xff]
        %v749 = vld [vmem:[#allocation8 + $0x8] sm:$0xff]
        %v750 = vld [vmem:[#allocation8 + $0x10] sm:$0xff]
        %v751 = vld [vmem:[#allocation8 + $0x18] sm:$0xff]
        %v752 = vld [vmem:[#allocation8 + $0x20] sm:$0xff]
        %v753 = vld [vmem:[#allocation8 + $0x28] sm:$0xff]
        %v754 = vld [vmem:[#allocation8 + $0x30] sm:$0xff]
        %v755 = vld [vmem:[#allocation8 + $0x38] sm:$0xff]
        %v756 = vld [vmem:[#allocation8 + $0x40] sm:$0xff]
        %v757 = vld [vmem:[#allocation8 + $0x48] sm:$0xff]
        %v758 = vld [vmem:[#allocation8 + $0x50] sm:$0xff]
        %v759 = vld [vmem:[#allocation8 + $0x58] sm:$0xff]
        %v760 = vld [vmem:[#allocation8 + $0x60] sm:$0xff]
        %v761 = vld [vmem:[#allocation8 + $0x68] sm:$0xff]
        %v762 = vld [vmem:[#allocation8 + $0x70] sm:$0xff]
        %v763 = vld [vmem:[#allocation8 + $0x78] sm:$0xff]
        %v764 = vld [vmem:[#allocation8 + $0x80] sm:$0xff]
        %v765 = vld [vmem:[#allocation8 + $0x88] sm:$0xff]
        %v766 = vld [vmem:[#allocation8 + $0x90] sm:$0xff]
        %v767 = vld [vmem:[#allocation8 + $0x98] sm:$0xff]
        %v768 = vld [vmem:[#allocation8 + $0xa0] sm:$0xff]
        %v769 = vld [vmem:[#allocation8 + $0xa8] sm:$0xff]
        %v770 = vld [vmem:[#allocation8 + $0xb0] sm:$0xff]
        %v771 = vld [vmem:[#allocation8 + $0xb8] sm:$0xff]
        %v772 = vld [vmem:[#allocation8 + $0xc0] sm:$0xff]
        %v773 = vld [vmem:[#allocation8 + $0xc8] sm:$0xff]
        %v774 = vld [vmem:[#allocation8 + $0xd0] sm:$0xff]
        %v775 = vld [vmem:[#allocation8 + $0xd8] sm:$0xff]
        %v776 = vld [vmem:[#allocation8 + $0xe0] sm:$0xff]
        %v777 = vld [vmem:[#allocation8 + $0xe8] sm:$0xff]
        %v778 = vld [vmem:[#allocation8 + $0xf0] sm:$0xff]
        %v779 = vld [vmem:[#allocation8 + $0xf8] sm:$0xff]
        %v780 = vld [vmem:[#allocation8 + $0x100] sm:$0xff]
        %v781 = vld [vmem:[#allocation8 + $0x108] sm:$0xff]
        %v782 = vld [vmem:[#allocation8 + $0x110] sm:$0xff]
        %v783 = vld [vmem:[#allocation8 + $0x118] sm:$0xff]
        %v784 = vld [vmem:[#allocation8 + $0x120] sm:$0xff]
        %v785 = vld [vmem:[#allocation8 + $0x128] sm:$0xff]
        %v786 = vld [vmem:[#allocation8 + $0x130] sm:$0xff]
        %v787 = vld [vmem:[#allocation8 + $0x138] sm:$0xff]
        %v788 = vld [vmem:[#allocation8 + $0x140] sm:$0xff]
        %v789 = vld [vmem:[#allocation8 + $0x148] sm:$0xff]
        %v790 = vld [vmem:[#allocation8 + $0x150] sm:$0xff]
        %v791 = vld [vmem:[#allocation8 + $0x158] sm:$0xff]
        %v792 = vld [vmem:[#allocation8 + $0x160] sm:$0xff]
        %v793 = vld [vmem:[#allocation8 + $0x168] sm:$0xff]
        %v794 = vld [vmem:[#allocation8 + $0x170] sm:$0xff]
        %v795 = vld [vmem:[#allocation8 + $0x178] sm:$0xff]
        %v796 = vld [vmem:[#allocation8 + $0x180] sm:$0xff]
        %v797 = vld [vmem:[#allocation8 + $0x188] sm:$0xff]
        %v798 = vld [vmem:[#allocation8 + $0x190] sm:$0xff]
        %v799 = vld [vmem:[#allocation8 + $0x198] sm:$0xff]
        %v800 = vld [vmem:[#allocation8 + $0x1a0] sm:$0xff]
        %v801 = vld [vmem:[#allocation8 + $0x1a8] sm:$0xff]
        %v802 = vld [vmem:[#allocation8 + $0x1b0] sm:$0xff]
        %v803 = vld [vmem:[#allocation8 + $0x1b8] sm:$0xff]
        %v804 = vld [vmem:[#allocation8 + $0x1c0] sm:$0xff]
        %v805 = vld [vmem:[#allocation8 + $0x1c8] sm:$0xff]
        %v806 = vld [vmem:[#allocation8 + $0x1d0] sm:$0xff]
        %v807 = vld [vmem:[#allocation8 + $0x1d8] sm:$0xff]
        %v808 = vld [vmem:[#allocation8 + $0x1e0] sm:$0xff]
        %v809 = vld [vmem:[#allocation8 + $0x1e8] sm:$0xff]
        %v810 = vld [vmem:[#allocation8 + $0x1f0] sm:$0xff]
        %v811 = vld [vmem:[#allocation8 + $0x1f8] sm:$0xff]
        %v812 = vld [vmem:[#allocation8 + $0x200] sm:$0xff]
        %v813 = vld [vmem:[#allocation8 + $0x208] sm:$0xff]
        %v814 = vld [vmem:[#allocation8 + $0x210] sm:$0xff]
        %v815 = vld [vmem:[#allocation8 + $0x218] sm:$0xff]
        %v816 = vld [vmem:[#allocation8 + $0x220] sm:$0xff]
        %v817 = vld [vmem:[#allocation8 + $0x228] sm:$0xff]
        %v818 = vld [vmem:[#allocation8 + $0x230] sm:$0xff]
        %v819 = vld [vmem:[#allocation8 + $0x238] sm:$0xff]
        %v820 = vld [vmem:[#allocation8 + $0x240] sm:$0xff]
        %v821 = vld [vmem:[#allocation8 + $0x248] sm:$0xff]
        %v822 = vld [vmem:[#allocation8 + $0x250] sm:$0xff]
        %v823 = vld [vmem:[#allocation8 + $0x258] sm:$0xff]
        %v824 = vld [vmem:[#allocation8 + $0x260] sm:$0xff]
        %v825 = vld [vmem:[#allocation8 + $0x268] sm:$0xff]
        %v826 = vld [vmem:[#allocation8 + $0x270] sm:$0xff]
        %v827 = vld [vmem:[#allocation8 + $0x278] sm:$0xff]
        %v828 = vld [vmem:[#allocation8 + $0x280] sm:$0xff]
        %v829 = vld [vmem:[#allocation8 + $0x288] sm:$0xff]
        %v830 = vld [vmem:[#allocation8 + $0x290] sm:$0xff]
        %v831 = vld [vmem:[#allocation8 + $0x298] sm:$0xff]
        %v832 = vld [vmem:[#allocation8 + $0x2a0] sm:$0xff]
        %v833 = vld [vmem:[#allocation8 + $0x2a8] sm:$0xff]
        %v834 = vld [vmem:[#allocation8 + $0x2b0] sm:$0xff]
        %v835 = vld [vmem:[#allocation8 + $0x2b8] sm:$0xff]
        %v836 = vld [vmem:[#allocation8 + $0x2c0] sm:$0xff]
        %v837 = vld [vmem:[#allocation8 + $0x2c8] sm:$0xff]
        %v838 = vld [vmem:[#allocation8 + $0x2d0] sm:$0xff]
        %v839 = vld [vmem:[#allocation8 + $0x2d8] sm:$0xff]
        %v840 = vld [vmem:[#allocation8 + $0x2e0] sm:$0xff]
        %v841 = vld [vmem:[#allocation8 + $0x2e8] sm:$0xff]
        %v842 = vld [vmem:[#allocation8 + $0x2f0] sm:$0xff]
        %v843 = vld [vmem:[#allocation8 + $0x2f8] sm:$0xff]
        %v844 = vld [vmem:[#allocation9] sm:$0xff]
        %v845 = vld [vmem:[#allocation9 + $0x8] sm:$0xf]
        %v848 = vlaneseq
        %v849 = vshrl.u32 %v848, 7
        %v850 = vsub.s32 0, %v849
        %v851 = vrot.slane %v844, %v850
        %v852 = vlaneseq
        %v853 = vshrl.u32 %v852, 7
        %v854 = vsub.s32 1, %v853
        %v855 = vrot.slane %v844, %v854
        %v856 = vlaneseq
        %v857 = vshrl.u32 %v856, 7
        %v858 = vsub.s32 2, %v857
        %v859 = vrot.slane %v844, %v858
        %v860 = vlaneseq
        %v861 = vshrl.u32 %v860, 7
        %v862 = vsub.s32 3, %v861
        %v863 = vrot.slane %v844, %v862
        %v864 = vlaneseq
        %v865 = vshrl.u32 %v864, 7
        %v866 = vsub.s32 4, %v865
        %v867 = vrot.slane %v844, %v866
        %v868 = vlaneseq
        %v869 = vshrl.u32 %v868, 7
        %v870 = vsub.s32 5, %v869
        %v871 = vrot.slane %v844, %v870
        %v872 = vlaneseq
        %v873 = vshrl.u32 %v872, 7
        %v874 = vsub.s32 6, %v873
        %v875 = vrot.slane %v844, %v874
        %v876 = vlaneseq
        %v877 = vshrl.u32 %v876, 7
        %v878 = vsub.s32 7, %v877
        %v879 = vrot.slane %v844, %v878
        %v880 = vlaneseq
        %v881 = vshrl.u32 %v880, 7
        %v882 = vsub.s32 0, %v881
        %v883 = vrot.slane %v845, %v882
        %v884 = vlaneseq
        %v885 = vshrl.u32 %v884, 7
        %v886 = vsub.s32 1, %v885
        %v887 = vrot.slane %v845, %v886
        %v888 = vlaneseq
        %v889 = vshrl.u32 %v888, 7
        %v890 = vsub.s32 2, %v889
        %v891 = vrot.slane %v845, %v890
        %v892 = vlaneseq
        %v893 = vshrl.u32 %v892, 7
        %v894 = vsub.s32 3, %v893
        %v895 = vrot.slane %v845, %v894
        %v1004 = vunpack.c.l.b16 %v748
        %v1005 = vunpack.c.h.b16 %v748
        %v1006 = vunpack.c.l.b16 %v749
        %v1007 = vunpack.c.h.b16 %v749
        %v1008 = vunpack.c.l.b16 %v750
        %v1009 = vunpack.c.h.b16 %v750
        %v1010 = vunpack.c.l.b16 %v751
        %v1011 = vunpack.c.h.b16 %v751
        %v1012 = vunpack.c.l.b16 %v752
        %v1013 = vunpack.c.h.b16 %v752
        %v1014 = vunpack.c.l.b16 %v753
        %v1015 = vunpack.c.h.b16 %v753
        %v1016 = vunpack.c.l.b16 %v754
        %v1017 = vunpack.c.h.b16 %v754
        %v1018 = vunpack.c.l.b16 %v755
        %v1019 = vunpack.c.h.b16 %v755
        %v1020 = vunpack.c.l.b16 %v756
        %v1021 = vunpack.c.h.b16 %v756
        %v1022 = vunpack.c.l.b16 %v757
        %v1023 = vunpack.c.h.b16 %v757
        %v1024 = vunpack.c.l.b16 %v758
        %v1025 = vunpack.c.h.b16 %v758
        %v1026 = vunpack.c.l.b16 %v759
        %v1027 = vunpack.c.h.b16 %v759
        %v1028 = vunpack.c.l.b16 %v760
        %v1029 = vunpack.c.h.b16 %v760
        %v1030 = vunpack.c.l.b16 %v761
        %v1031 = vunpack.c.h.b16 %v761
        %v1032 = vunpack.c.l.b16 %v762
        %v1033 = vunpack.c.h.b16 %v762
        %v1034 = vunpack.c.l.b16 %v763
        %v1035 = vunpack.c.h.b16 %v763
        %v1036 = vunpack.c.l.b16 %v764
        %v1037 = vunpack.c.h.b16 %v764
        %v1038 = vunpack.c.l.b16 %v765
        %v1039 = vunpack.c.h.b16 %v765
        %v1040 = vunpack.c.l.b16 %v766
        %v1041 = vunpack.c.h.b16 %v766
        %v1042 = vunpack.c.l.b16 %v767
        %v1043 = vunpack.c.h.b16 %v767
        %v1044 = vunpack.c.l.b16 %v768
        %v1045 = vunpack.c.h.b16 %v768
        %v1046 = vunpack.c.l.b16 %v769
        %v1047 = vunpack.c.h.b16 %v769
        %v1048 = vunpack.c.l.b16 %v770
        %v1049 = vunpack.c.h.b16 %v770
        %v1050 = vunpack.c.l.b16 %v771
        %v1051 = vunpack.c.h.b16 %v771
        %v1052 = vunpack.c.l.b16 %v772
        %v1053 = vunpack.c.h.b16 %v772
        %v1054 = vunpack.c.l.b16 %v773
        %v1055 = vunpack.c.h.b16 %v773
        %v1056 = vunpack.c.l.b16 %v774
        %v1057 = vunpack.c.h.b16 %v774
        %v1058 = vunpack.c.l.b16 %v775
        %v1059 = vunpack.c.h.b16 %v775
        %v1060 = vunpack.c.l.b16 %v776
        %v1061 = vunpack.c.h.b16 %v776
        %v1062 = vunpack.c.l.b16 %v777
        %v1063 = vunpack.c.h.b16 %v777
        %v1064 = vunpack.c.l.b16 %v778
        %v1065 = vunpack.c.h.b16 %v778
        %v1066 = vunpack.c.l.b16 %v779
        %v1067 = vunpack.c.h.b16 %v779
        %v1068 = vunpack.c.l.b16 %v780
        %v1069 = vunpack.c.h.b16 %v780
        %v1070 = vunpack.c.l.b16 %v781
        %v1071 = vunpack.c.h.b16 %v781
        %v1072 = vunpack.c.l.b16 %v782
        %v1073 = vunpack.c.h.b16 %v782
        %v1074 = vunpack.c.l.b16 %v783
        %v1075 = vunpack.c.h.b16 %v783
        %v1076 = vunpack.c.l.b16 %v784
        %v1077 = vunpack.c.h.b16 %v784
        %v1078 = vunpack.c.l.b16 %v785
        %v1079 = vunpack.c.h.b16 %v785
        %v1080 = vunpack.c.l.b16 %v786
        %v1081 = vunpack.c.h.b16 %v786
        %v1082 = vunpack.c.l.b16 %v787
        %v1083 = vunpack.c.h.b16 %v787
        %v1084 = vunpack.c.l.b16 %v788
        %v1085 = vunpack.c.h.b16 %v788
        %v1086 = vunpack.c.l.b16 %v789
        %v1087 = vunpack.c.h.b16 %v789
        %v1088 = vunpack.c.l.b16 %v790
        %v1089 = vunpack.c.h.b16 %v790
        %v1090 = vunpack.c.l.b16 %v791
        %v1091 = vunpack.c.h.b16 %v791
        %v1092 = vunpack.c.l.b16 %v792
        %v1093 = vunpack.c.h.b16 %v792
        %v1094 = vunpack.c.l.b16 %v793
        %v1095 = vunpack.c.h.b16 %v793
        %v1096 = vunpack.c.l.b16 %v794
        %v1097 = vunpack.c.h.b16 %v794
        %v1098 = vunpack.c.l.b16 %v795
        %v1099 = vunpack.c.h.b16 %v795
        %v1100 = vunpack.c.l.b16 %v796
        %v1101 = vunpack.c.h.b16 %v796
        %v1102 = vunpack.c.l.b16 %v797
        %v1103 = vunpack.c.h.b16 %v797
        %v1104 = vunpack.c.l.b16 %v798
        %v1105 = vunpack.c.h.b16 %v798
        %v1106 = vunpack.c.l.b16 %v799
        %v1107 = vunpack.c.h.b16 %v799
        %v1108 = vunpack.c.l.b16 %v800
        %v1109 = vunpack.c.h.b16 %v800
        %v1110 = vunpack.c.l.b16 %v801
        %v1111 = vunpack.c.h.b16 %v801
        %v1112 = vunpack.c.l.b16 %v802
        %v1113 = vunpack.c.h.b16 %v802
        %v1114 = vunpack.c.l.b16 %v803
        %v1115 = vunpack.c.h.b16 %v803
        %v1116 = vunpack.c.l.b16 %v804
        %v1117 = vunpack.c.h.b16 %v804
        %v1118 = vunpack.c.l.b16 %v805
        %v1119 = vunpack.c.h.b16 %v805
        %v1120 = vunpack.c.l.b16 %v806
        %v1121 = vunpack.c.h.b16 %v806
        %v1122 = vunpack.c.l.b16 %v807
        %v1123 = vunpack.c.h.b16 %v807
        %v1124 = vunpack.c.l.b16 %v808
        %v1125 = vunpack.c.h.b16 %v808
        %v1126 = vunpack.c.l.b16 %v809
        %v1127 = vunpack.c.h.b16 %v809
        %v1128 = vunpack.c.l.b16 %v810
        %v1129 = vunpack.c.h.b16 %v810
        %v1130 = vunpack.c.l.b16 %v811
        %v1131 = vunpack.c.h.b16 %v811
        %v1132 = vunpack.c.l.b16 %v812
        %v1133 = vunpack.c.h.b16 %v812
        %v1134 = vunpack.c.l.b16 %v813
        %v1135 = vunpack.c.h.b16 %v813
        %v1136 = vunpack.c.l.b16 %v814
        %v1137 = vunpack.c.h.b16 %v814
        %v1138 = vunpack.c.l.b16 %v815
        %v1139 = vunpack.c.h.b16 %v815
        %v1140 = vunpack.c.l.b16 %v816
        %v1141 = vunpack.c.h.b16 %v816
        %v1142 = vunpack.c.l.b16 %v817
        %v1143 = vunpack.c.h.b16 %v817
        %v1144 = vunpack.c.l.b16 %v818
        %v1145 = vunpack.c.h.b16 %v818
        %v1146 = vunpack.c.l.b16 %v819
        %v1147 = vunpack.c.h.b16 %v819
        %v1148 = vunpack.c.l.b16 %v820
        %v1149 = vunpack.c.h.b16 %v820
        %v1150 = vunpack.c.l.b16 %v821
        %v1151 = vunpack.c.h.b16 %v821
        %v1152 = vunpack.c.l.b16 %v822
        %v1153 = vunpack.c.h.b16 %v822
        %v1154 = vunpack.c.l.b16 %v823
        %v1155 = vunpack.c.h.b16 %v823
        %v1156 = vunpack.c.l.b16 %v824
        %v1157 = vunpack.c.h.b16 %v824
        %v1158 = vunpack.c.l.b16 %v825
        %v1159 = vunpack.c.h.b16 %v825
        %v1160 = vunpack.c.l.b16 %v826
        %v1161 = vunpack.c.h.b16 %v826
        %v1162 = vunpack.c.l.b16 %v827
        %v1163 = vunpack.c.h.b16 %v827
        %v1164 = vunpack.c.l.b16 %v828
        %v1165 = vunpack.c.h.b16 %v828
        %v1166 = vunpack.c.l.b16 %v829
        %v1167 = vunpack.c.h.b16 %v829
        %v1168 = vunpack.c.l.b16 %v830
        %v1169 = vunpack.c.h.b16 %v830
        %v1170 = vunpack.c.l.b16 %v831
        %v1171 = vunpack.c.h.b16 %v831
        %v1172 = vunpack.c.l.b16 %v832
        %v1173 = vunpack.c.h.b16 %v832
        %v1174 = vunpack.c.l.b16 %v833
        %v1175 = vunpack.c.h.b16 %v833
        %v1176 = vunpack.c.l.b16 %v834
        %v1177 = vunpack.c.h.b16 %v834
        %v1178 = vunpack.c.l.b16 %v835
        %v1179 = vunpack.c.h.b16 %v835
        %v1180 = vunpack.c.l.b16 %v836
        %v1181 = vunpack.c.h.b16 %v836
        %v1182 = vunpack.c.l.b16 %v837
        %v1183 = vunpack.c.h.b16 %v837
        %v1184 = vunpack.c.l.b16 %v838
        %v1185 = vunpack.c.h.b16 %v838
        %v1186 = vunpack.c.l.b16 %v839
        %v1187 = vunpack.c.h.b16 %v839
        %v1188 = vunpack.c.l.b16 %v840
        %v1189 = vunpack.c.h.b16 %v840
        %v1190 = vunpack.c.l.b16 %v841
        %v1191 = vunpack.c.h.b16 %v841
        %v1192 = vunpack.c.l.b16 %v842
        %v1193 = vunpack.c.h.b16 %v842
        %v1194 = vunpack.c.l.b16 %v843
        %v1195 = vunpack.c.h.b16 %v843
        %v1196 = vpack.c.b16 %v1016, %v1004
        %v1197 = vpack.c.b16 %v1017, %v1005
        %v1198 = vpack.c.b16 %v1018, %v1006
        %v1199 = vpack.c.b16 %v1019, %v1007
        %v1200 = vpack.c.b16 %v1020, %v1008
        %v1201 = vpack.c.b16 %v1021, %v1009
        %v1202 = vpack.c.b16 %v1022, %v1010
        %v1203 = vpack.c.b16 %v1023, %v1011
        %v1204 = vpack.c.b16 %v1024, %v1012
        %v1205 = vpack.c.b16 %v1025, %v1013
        %v1206 = vpack.c.b16 %v1026, %v1014
        %v1207 = vpack.c.b16 %v1027, %v1015
        %v1208 = vpack.c.b16 %v1040, %v1028
        %v1209 = vpack.c.b16 %v1041, %v1029
        %v1210 = vpack.c.b16 %v1042, %v1030
        %v1211 = vpack.c.b16 %v1043, %v1031
        %v1212 = vpack.c.b16 %v1044, %v1032
        %v1213 = vpack.c.b16 %v1045, %v1033
        %v1214 = vpack.c.b16 %v1046, %v1034
        %v1215 = vpack.c.b16 %v1047, %v1035
        %v1216 = vpack.c.b16 %v1048, %v1036
        %v1217 = vpack.c.b16 %v1049, %v1037
        %v1218 = vpack.c.b16 %v1050, %v1038
        %v1219 = vpack.c.b16 %v1051, %v1039
        %v1220 = vpack.c.b16 %v1064, %v1052
        %v1221 = vpack.c.b16 %v1065, %v1053
        %v1222 = vpack.c.b16 %v1066, %v1054
        %v1223 = vpack.c.b16 %v1067, %v1055
        %v1224 = vpack.c.b16 %v1068, %v1056
        %v1225 = vpack.c.b16 %v1069, %v1057
        %v1226 = vpack.c.b16 %v1070, %v1058
        %v1227 = vpack.c.b16 %v1071, %v1059
        %v1228 = vpack.c.b16 %v1072, %v1060
        %v1229 = vpack.c.b16 %v1073, %v1061
        %v1230 = vpack.c.b16 %v1074, %v1062
        %v1231 = vpack.c.b16 %v1075, %v1063
        %v1232 = vpack.c.b16 %v1088, %v1076
        %v1233 = vpack.c.b16 %v1089, %v1077
        %v1234 = vpack.c.b16 %v1090, %v1078
        %v1235 = vpack.c.b16 %v1091, %v1079
        %v1236 = vpack.c.b16 %v1092, %v1080
        %v1237 = vpack.c.b16 %v1093, %v1081
        %v1238 = vpack.c.b16 %v1094, %v1082
        %v1239 = vpack.c.b16 %v1095, %v1083
        %v1240 = vpack.c.b16 %v1096, %v1084
        %v1241 = vpack.c.b16 %v1097, %v1085
        %v1242 = vpack.c.b16 %v1098, %v1086
        %v1243 = vpack.c.b16 %v1099, %v1087
        %v1244 = vpack.c.b16 %v1112, %v1100
        %v1245 = vpack.c.b16 %v1113, %v1101
        %v1246 = vpack.c.b16 %v1114, %v1102
        %v1247 = vpack.c.b16 %v1115, %v1103
        %v1248 = vpack.c.b16 %v1116, %v1104
        %v1249 = vpack.c.b16 %v1117, %v1105
        %v1250 = vpack.c.b16 %v1118, %v1106
        %v1251 = vpack.c.b16 %v1119, %v1107
        %v1252 = vpack.c.b16 %v1120, %v1108
        %v1253 = vpack.c.b16 %v1121, %v1109
        %v1254 = vpack.c.b16 %v1122, %v1110
        %v1255 = vpack.c.b16 %v1123, %v1111
        %v1256 = vpack.c.b16 %v1136, %v1124
        %v1257 = vpack.c.b16 %v1137, %v1125
        %v1258 = vpack.c.b16 %v1138, %v1126
        %v1259 = vpack.c.b16 %v1139, %v1127
        %v1260 = vpack.c.b16 %v1140, %v1128
        %v1261 = vpack.c.b16 %v1141, %v1129
        %v1262 = vpack.c.b16 %v1142, %v1130
        %v1263 = vpack.c.b16 %v1143, %v1131
        %v1264 = vpack.c.b16 %v1144, %v1132
        %v1265 = vpack.c.b16 %v1145, %v1133
        %v1266 = vpack.c.b16 %v1146, %v1134
        %v1267 = vpack.c.b16 %v1147, %v1135
        %v1268 = vpack.c.b16 %v1160, %v1148
        %v1269 = vpack.c.b16 %v1161, %v1149
        %v1270 = vpack.c.b16 %v1162, %v1150
        %v1271 = vpack.c.b16 %v1163, %v1151
        %v1272 = vpack.c.b16 %v1164, %v1152
        %v1273 = vpack.c.b16 %v1165, %v1153
        %v1274 = vpack.c.b16 %v1166, %v1154
        %v1275 = vpack.c.b16 %v1167, %v1155
        %v1276 = vpack.c.b16 %v1168, %v1156
        %v1277 = vpack.c.b16 %v1169, %v1157
        %v1278 = vpack.c.b16 %v1170, %v1158
        %v1279 = vpack.c.b16 %v1171, %v1159
        %v1280 = vpack.c.b16 %v1184, %v1172
        %v1281 = vpack.c.b16 %v1185, %v1173
        %v1282 = vpack.c.b16 %v1186, %v1174
        %v1283 = vpack.c.b16 %v1187, %v1175
        %v1284 = vpack.c.b16 %v1188, %v1176
        %v1285 = vpack.c.b16 %v1189, %v1177
        %v1286 = vpack.c.b16 %v1190, %v1178
        %v1287 = vpack.c.b16 %v1191, %v1179
        %v1288 = vpack.c.b16 %v1192, %v1180
        %v1289 = vpack.c.b16 %v1193, %v1181
        %v1290 = vpack.c.b16 %v1194, %v1182
        %v1291 = vpack.c.b16 %v1195, %v1183
        %1388 = vmatprep.subr.bf16.mxu0 %v1197
        %1389 = vmatpush1.bf16.msra.mxu0 %v1196
        %1390 = vmatprep.subr.bf16.mxu0 %v1209
        %1391 = vmatpush1.bf16.msra.mxu0 %v1208
        %1392 = vmatprep.subr.bf16.mxu0 %v1221
        %1393 = vmatpush1.bf16.msra.mxu0 %v1220
        %1394 = vmatprep.subr.bf16.mxu0 %v1233
        %1395 = vmatpush1.bf16.msra.mxu0 %v1232
        %1396 = vmatprep.subr.bf16.mxu0 %v1245
        %1397 = vmatpush1.bf16.msra.mxu0 %v1244
        %1398 = vmatprep.subr.bf16.mxu0 %v1257
        %1399 = vmatpush1.bf16.msra.mxu0 %v1256
        %1400 = vmatprep.subr.bf16.mxu0 %v1269
        %1401 = vmatpush1.bf16.msra.mxu0 %v1268
        %1402 = vmatprep.subr.bf16.mxu0 %v1281
        %1403 = vmatpush1.bf16.msra.mxu0 %v1280
        %1404 = vmatprep.subr.bf16.mxu0 0
        %1405 = vmatpush1.bf16.msra.mxu0 0
        %1406 = vmatprep.subr.bf16.mxu0 0
        %1407 = vmatpush1.bf16.msra.mxu0 0
        %1408 = vmatprep.subr.bf16.mxu0 0
        %1409 = vmatpush1.bf16.msra.mxu0 0
        %1410 = vmatprep.subr.bf16.mxu0 0
        %1411 = vmatpush1.bf16.msra.mxu0 0
        %1412 = vmatprep.subr.bf16.mxu0 0
        %1413 = vmatpush1.bf16.msra.mxu0 0
        %1414 = vmatprep.subr.bf16.mxu0 0
        %1415 = vmatpush1.bf16.msra.mxu0 0
        %1416 = vmatprep.subr.bf16.mxu0 0
        %1417 = vmatpush1.bf16.msra.mxu0 0
        %1418 = vmatprep.subr.bf16.mxu0 0
        %1419 = vmatpush1.bf16.msra.mxu0 0
        %1420 = vmatprep.mubr.bf16.mxu0 0
        %1421 = vmatmul.mubr.bf16.gmra.mrb[0].mxu0 %v744
        %v1422 = vpop.f32.mrb[0].mxu0
        %v1423 = vadd.f32 %v851, %v1422
        %v1424 = vpop.f32.mrb[0].mxu0
        %v1425 = vadd.f32 %v855, %v1424
        %v1426 = vpop.f32.mrb[0].mxu0
        %v1427 = vadd.f32 %v851, %v1426
        %v1428 = vpop.f32.mrb[0].mxu0
        %v1429 = vadd.f32 %v855, %v1428
        %1430 = vmatprep.mubr.bf16.mxu0 0
        %1431 = vmatmul.mubr.bf16.gmra.mrb[0].mxu0 %v745
        %v1432 = vpop.f32.mrb[0].mxu0
        %v1433 = vadd.f32 %v851, %v1432
        %v1434 = vpop.f32.mrb[0].mxu0
        %v1435 = vadd.f32 %v855, %v1434
        %v1436 = vpop.f32.mrb[0].mxu0
        %v1437 = vadd.f32 %v851, %v1436
        %v1438 = vpop.f32.mrb[0].mxu0
        %v1439 = vadd.f32 %v855, %v1438
        %1440 = vmatprep.mubr.bf16.mxu0 0
        %1441 = vmatmul.mubr.bf16.gmra.mrb[0].mxu0 %v746
        %v1442 = vpop.f32.mrb[0].mxu0
        %v1443 = vadd.f32 %v851, %v1442
        %v1444 = vpop.f32.mrb[0].mxu0
        %v1445 = vadd.f32 %v855, %v1444
        %v1446 = vpop.f32.mrb[0].mxu0
        %v1447 = vadd.f32 %v851, %v1446
        %v1448 = vpop.f32.mrb[0].mxu0
        %v1449 = vadd.f32 %v855, %v1448
        %1450 = vmatprep.mubr.bf16.mxu0 0
        %1451 = vmatmul.mubr.bf16.gmra.mrb[0].mxu0 %v747
        %v1452 = vpop.f32.mrb[0].mxu0
        %v1453 = vadd.f32 %v851, %v1452
        %v1454 = vpop.f32.mrb[0].mxu0
        %v1455 = vadd.f32 %v855, %v1454
        %v1456 = vpop.f32.mrb[0].mxu0
        %v1457 = vadd.f32 %v851, %v1456
        %v1458 = vpop.f32.mrb[0].mxu0
        %v1459 = vadd.f32 %v855, %v1458
        %1460 = vdwg.mxu0
        %1461 = vmatprep.subr.bf16.mxu0 %v1199
        %1462 = vmatpush1.bf16.msra.mxu0 %v1198
        %1463 = vmatprep.subr.bf16.mxu0 %v1211
        %1464 = vmatpush1.bf16.msra.mxu0 %v1210
        %1465 = vmatprep.subr.bf16.mxu0 %v1223
        %1466 = vmatpush1.bf16.msra.mxu0 %v1222
        %1467 = vmatprep.subr.bf16.mxu0 %v1235
        %1468 = vmatpush1.bf16.msra.mxu0 %v1234
        %1469 = vmatprep.subr.bf16.mxu0 %v1247
        %1470 = vmatpush1.bf16.msra.mxu0 %v1246
        %1471 = vmatprep.subr.bf16.mxu0 %v1259
        %1472 = vmatpush1.bf16.msra.mxu0 %v1258
        %1473 = vmatprep.subr.bf16.mxu0 %v1271
        %1474 = vmatpush1.bf16.msra.mxu0 %v1270
        %1475 = vmatprep.subr.bf16.mxu0 %v1283
        %1476 = vmatpush1.bf16.msra.mxu0 %v1282
        %1477 = vmatprep.subr.bf16.mxu0 0
        %1478 = vmatpush1.bf16.msra.mxu0 0
        %1479 = vmatprep.subr.bf16.mxu0 0
        %1480 = vmatpush1.bf16.msra.mxu0 0
        %1481 = vmatprep.subr.bf16.mxu0 0
        %1482 = vmatpush1.bf16.msra.mxu0 0
        %1483 = vmatprep.subr.bf16.mxu0 0
        %1484 = vmatpush1.bf16.msra.mxu0 0
        %1485 = vmatprep.subr.bf16.mxu0 0
        %1486 = vmatpush1.bf16.msra.mxu0 0
        %1487 = vmatprep.subr.bf16.mxu0 0
        %1488 = vmatpush1.bf16.msra.mxu0 0
        %1489 = vmatprep.subr.bf16.mxu0 0
        %1490 = vmatpush1.bf16.msra.mxu0 0
        %1491 = vmatprep.subr.bf16.mxu0 0
        %1492 = vmatpush1.bf16.msra.mxu0 0
        %1493 = vmatprep.mubr.bf16.mxu0 0
        %1494 = vmatmul.mubr.bf16.gmra.mrb[0].mxu0 %v744
        %v1495 = vpop.f32.mrb[0].mxu0
        %v1496 = vadd.f32 %v859, %v1495
        %v1497 = vpop.f32.mrb[0].mxu0
        %v1498 = vadd.f32 %v863, %v1497
        %v1499 = vpop.f32.mrb[0].mxu0
        %v1500 = vadd.f32 %v859, %v1499
        %v1501 = vpop.f32.mrb[0].mxu0
        %v1502 = vadd.f32 %v863, %v1501
        %1503 = vmatprep.mubr.bf16.mxu0 0
        %1504 = vmatmul.mubr.bf16.gmra.mrb[0].mxu0 %v745
        %v1505 = vpop.f32.mrb[0].mxu0
        %v1506 = vadd.f32 %v859, %v1505
        %v1507 = vpop.f32.mrb[0].mxu0
        %v1508 = vadd.f32 %v863, %v1507
        %v1509 = vpop.f32.mrb[0].mxu0
        %v1510 = vadd.f32 %v859, %v1509
        %v1511 = vpop.f32.mrb[0].mxu0
        %v1512 = vadd.f32 %v863, %v1511
        %1513 = vmatprep.mubr.bf16.mxu0 0
        %1514 = vmatmul.mubr.bf16.gmra.mrb[0].mxu0 %v746
        %v1515 = vpop.f32.mrb[0].mxu0
        %v1516 = vadd.f32 %v859, %v1515
        %v1517 = vpop.f32.mrb[0].mxu0
        %v1518 = vadd.f32 %v863, %v1517
        %v1519 = vpop.f32.mrb[0].mxu0
        %v1520 = vadd.f32 %v859, %v1519
        %v1521 = vpop.f32.mrb[0].mxu0
        %v1522 = vadd.f32 %v863, %v1521
        %1523 = vmatprep.mubr.bf16.mxu0 0
        %1524 = vmatmul.mubr.bf16.gmra.mrb[0].mxu0 %v747
        %v1525 = vpop.f32.mrb[0].mxu0
        %v1526 = vadd.f32 %v859, %v1525
        %v1527 = vpop.f32.mrb[0].mxu0
        %v1528 = vadd.f32 %v863, %v1527
        %v1529 = vpop.f32.mrb[0].mxu0
        %v1530 = vadd.f32 %v859, %v1529
        %v1531 = vpop.f32.mrb[0].mxu0
        %v1532 = vadd.f32 %v863, %v1531
        %1533 = vdwg.mxu0
        %1534 = vmatprep.subr.bf16.mxu0 %v1201
        %1535 = vmatpush1.bf16.msra.mxu0 %v1200
        %1536 = vmatprep.subr.bf16.mxu0 %v1213
        %1537 = vmatpush1.bf16.msra.mxu0 %v1212
        %1538 = vmatprep.subr.bf16.mxu0 %v1225
        %1539 = vmatpush1.bf16.msra.mxu0 %v1224
        %1540 = vmatprep.subr.bf16.mxu0 %v1237
        %1541 = vmatpush1.bf16.msra.mxu0 %v1236
        %1542 = vmatprep.subr.bf16.mxu0 %v1249
        %1543 = vmatpush1.bf16.msra.mxu0 %v1248
        %1544 = vmatprep.subr.bf16.mxu0 %v1261
        %1545 = vmatpush1.bf16.msra.mxu0 %v1260
        %1546 = vmatprep.subr.bf16.mxu0 %v1273
        %1547 = vmatpush1.bf16.msra.mxu0 %v1272
        %1548 = vmatprep.subr.bf16.mxu0 %v1285
        %1549 = vmatpush1.bf16.msra.mxu0 %v1284
        %1550 = vmatprep.subr.bf16.mxu0 0
        %1551 = vmatpush1.bf16.msra.mxu0 0
        %1552 = vmatprep.subr.bf16.mxu0 0
        %1553 = vmatpush1.bf16.msra.mxu0 0
        %1554 = vmatprep.subr.bf16.mxu0 0
        %1555 = vmatpush1.bf16.msra.mxu0 0
        %1556 = vmatprep.subr.bf16.mxu0 0
        %1557 = vmatpush1.bf16.msra.mxu0 0
        %1558 = vmatprep.subr.bf16.mxu0 0
        %1559 = vmatpush1.bf16.msra.mxu0 0
        %1560 = vmatprep.subr.bf16.mxu0 0
        %1561 = vmatpush1.bf16.msra.mxu0 0
        %1562 = vmatprep.subr.bf16.mxu0 0
        %1563 = vmatpush1.bf16.msra.mxu0 0
        %1564 = vmatprep.subr.bf16.mxu0 0
        %1565 = vmatpush1.bf16.msra.mxu0 0
        %1566 = vmatprep.mubr.bf16.mxu0 0
        %1567 = vmatmul.mubr.bf16.gmra.mrb[0].mxu0 %v744
        %v1568 = vpop.f32.mrb[0].mxu0
        %v1569 = vadd.f32 %v867, %v1568
        %v1570 = vpop.f32.mrb[0].mxu0
        %v1571 = vadd.f32 %v871, %v1570
        %v1572 = vpop.f32.mrb[0].mxu0
        %v1573 = vadd.f32 %v867, %v1572
        %v1574 = vpop.f32.mrb[0].mxu0
        %v1575 = vadd.f32 %v871, %v1574
        %1576 = vmatprep.mubr.bf16.mxu0 0
        %1577 = vmatmul.mubr.bf16.gmra.mrb[0].mxu0 %v745
        %v1578 = vpop.f32.mrb[0].mxu0
        %v1579 = vadd.f32 %v867, %v1578
        %v1580 = vpop.f32.mrb[0].mxu0
        %v1581 = vadd.f32 %v871, %v1580
        %v1582 = vpop.f32.mrb[0].mxu0
        %v1583 = vadd.f32 %v867, %v1582
        %v1584 = vpop.f32.mrb[0].mxu0
        %v1585 = vadd.f32 %v871, %v1584
        %1586 = vmatprep.mubr.bf16.mxu0 0
        %1587 = vmatmul.mubr.bf16.gmra.mrb[0].mxu0 %v746
        %v1588 = vpop.f32.mrb[0].mxu0
        %v1589 = vadd.f32 %v867, %v1588
        %v1590 = vpop.f32.mrb[0].mxu0
        %v1591 = vadd.f32 %v871, %v1590
        %v1592 = vpop.f32.mrb[0].mxu0
        %v1593 = vadd.f32 %v867, %v1592
        %v1594 = vpop.f32.mrb[0].mxu0
        %v1595 = vadd.f32 %v871, %v1594
        %1596 = vmatprep.mubr.bf16.mxu0 0
        %1597 = vmatmul.mubr.bf16.gmra.mrb[0].mxu0 %v747
        %v1598 = vpop.f32.mrb[0].mxu0
        %v1599 = vadd.f32 %v867, %v1598
        %v1600 = vpop.f32.mrb[0].mxu0
        %v1601 = vadd.f32 %v871, %v1600
        %v1602 = vpop.f32.mrb[0].mxu0
        %v1603 = vadd.f32 %v867, %v1602
        %v1604 = vpop.f32.mrb[0].mxu0
        %v1605 = vadd.f32 %v871, %v1604
        %1606 = vdwg.mxu0
        %1607 = vmatprep.subr.bf16.mxu0 %v1203
        %1608 = vmatpush1.bf16.msra.mxu0 %v1202
        %1609 = vmatprep.subr.bf16.mxu0 %v1215
        %1610 = vmatpush1.bf16.msra.mxu0 %v1214
        %1611 = vmatprep.subr.bf16.mxu0 %v1227
        %1612 = vmatpush1.bf16.msra.mxu0 %v1226
        %1613 = vmatprep.subr.bf16.mxu0 %v1239
        %1614 = vmatpush1.bf16.msra.mxu0 %v1238
        %1615 = vmatprep.subr.bf16.mxu0 %v1251
        %1616 = vmatpush1.bf16.msra.mxu0 %v1250
        %1617 = vmatprep.subr.bf16.mxu0 %v1263
        %1618 = vmatpush1.bf16.msra.mxu0 %v1262
        %1619 = vmatprep.subr.bf16.mxu0 %v1275
        %1620 = vmatpush1.bf16.msra.mxu0 %v1274
        %1621 = vmatprep.subr.bf16.mxu0 %v1287
        %1622 = vmatpush1.bf16.msra.mxu0 %v1286
        %1623 = vmatprep.subr.bf16.mxu0 0
        %1624 = vmatpush1.bf16.msra.mxu0 0
        %1625 = vmatprep.subr.bf16.mxu0 0
        %1626 = vmatpush1.bf16.msra.mxu0 0
        %1627 = vmatprep.subr.bf16.mxu0 0
        %1628 = vmatpush1.bf16.msra.mxu0 0
        %1629 = vmatprep.subr.bf16.mxu0 0
        %1630 = vmatpush1.bf16.msra.mxu0 0
        %1631 = vmatprep.subr.bf16.mxu0 0
        %1632 = vmatpush1.bf16.msra.mxu0 0
        %1633 = vmatprep.subr.bf16.mxu0 0
        %1634 = vmatpush1.bf16.msra.mxu0 0
        %1635 = vmatprep.subr.bf16.mxu0 0
        %1636 = vmatpush1.bf16.msra.mxu0 0
        %1637 = vmatprep.subr.bf16.mxu0 0
        %1638 = vmatpush1.bf16.msra.mxu0 0
        %1639 = vmatprep.mubr.bf16.mxu0 0
        %1640 = vmatmul.mubr.bf16.gmra.mrb[0].mxu0 %v744
        %v1641 = vpop.f32.mrb[0].mxu0
        %v1642 = vadd.f32 %v875, %v1641
        %v1643 = vpop.f32.mrb[0].mxu0
        %v1644 = vadd.f32 %v879, %v1643
        %v1645 = vpop.f32.mrb[0].mxu0
        %v1646 = vadd.f32 %v875, %v1645
        %v1647 = vpop.f32.mrb[0].mxu0
        %v1648 = vadd.f32 %v879, %v1647
        %1649 = vmatprep.mubr.bf16.mxu0 0
        %1650 = vmatmul.mubr.bf16.gmra.mrb[0].mxu0 %v745
        %v1651 = vpop.f32.mrb[0].mxu0
        %v1652 = vadd.f32 %v875, %v1651
        %v1653 = vpop.f32.mrb[0].mxu0
        %v1654 = vadd.f32 %v879, %v1653
        %v1655 = vpop.f32.mrb[0].mxu0
        %v1656 = vadd.f32 %v875, %v1655
        %v1657 = vpop.f32.mrb[0].mxu0
        %v1658 = vadd.f32 %v879, %v1657
        %1659 = vmatprep.mubr.bf16.mxu0 0
        %1660 = vmatmul.mubr.bf16.gmra.mrb[0].mxu0 %v746
        %v1661 = vpop.f32.mrb[0].mxu0
        %v1662 = vadd.f32 %v875, %v1661
        %v1663 = vpop.f32.mrb[0].mxu0
        %v1664 = vadd.f32 %v879, %v1663
        %v1665 = vpop.f32.mrb[0].mxu0
        %v1666 = vadd.f32 %v875, %v1665
        %v1667 = vpop.f32.mrb[0].mxu0
        %v1668 = vadd.f32 %v879, %v1667
        %1669 = vmatprep.mubr.bf16.mxu0 0
        %1670 = vmatmul.mubr.bf16.gmra.mrb[0].mxu0 %v747
        %v1671 = vpop.f32.mrb[0].mxu0
        %v1672 = vadd.f32 %v875, %v1671
        %v1673 = vpop.f32.mrb[0].mxu0
        %v1674 = vadd.f32 %v879, %v1673
        %v1675 = vpop.f32.mrb[0].mxu0
        %v1676 = vadd.f32 %v875, %v1675
        %v1677 = vpop.f32.mrb[0].mxu0
        %v1678 = vadd.f32 %v879, %v1677
        %1679 = vdwg.mxu0
        %1680 = vmatprep.subr.bf16.mxu0 %v1205
        %1681 = vmatpush1.bf16.msra.mxu0 %v1204
        %1682 = vmatprep.subr.bf16.mxu0 %v1217
        %1683 = vmatpush1.bf16.msra.mxu0 %v1216
        %1684 = vmatprep.subr.bf16.mxu0 %v1229
        %1685 = vmatpush1.bf16.msra.mxu0 %v1228
        %1686 = vmatprep.subr.bf16.mxu0 %v1241
        %1687 = vmatpush1.bf16.msra.mxu0 %v1240
        %1688 = vmatprep.subr.bf16.mxu0 %v1253
        %1689 = vmatpush1.bf16.msra.mxu0 %v1252
        %1690 = vmatprep.subr.bf16.mxu0 %v1265
        %1691 = vmatpush1.bf16.msra.mxu0 %v1264
        %1692 = vmatprep.subr.bf16.mxu0 %v1277
        %1693 = vmatpush1.bf16.msra.mxu0 %v1276
        %1694 = vmatprep.subr.bf16.mxu0 %v1289
        %1695 = vmatpush1.bf16.msra.mxu0 %v1288
        %1696 = vmatprep.subr.bf16.mxu0 0
        %1697 = vmatpush1.bf16.msra.mxu0 0
        %1698 = vmatprep.subr.bf16.mxu0 0
        %1699 = vmatpush1.bf16.msra.mxu0 0
        %1700 = vmatprep.subr.bf16.mxu0 0
        %1701 = vmatpush1.bf16.msra.mxu0 0
        %1702 = vmatprep.subr.bf16.mxu0 0
        %1703 = vmatpush1.bf16.msra.mxu0 0
        %1704 = vmatprep.subr.bf16.mxu0 0
        %1705 = vmatpush1.bf16.msra.mxu0 0
        %1706 = vmatprep.subr.bf16.mxu0 0
        %1707 = vmatpush1.bf16.msra.mxu0 0
        %1708 = vmatprep.subr.bf16.mxu0 0
        %1709 = vmatpush1.bf16.msra.mxu0 0
        %1710 = vmatprep.subr.bf16.mxu0 0
        %1711 = vmatpush1.bf16.msra.mxu0 0
        %1712 = vmatprep.mubr.bf16.mxu0 0
        %1713 = vmatmul.mubr.bf16.gmra.mrb[0].mxu0 %v744
        %v1714 = vpop.f32.mrb[0].mxu0
        %v1715 = vadd.f32 %v883, %v1714
        %v1716 = vpop.f32.mrb[0].mxu0
        %v1717 = vadd.f32 %v887, %v1716
        %v1718 = vpop.f32.mrb[0].mxu0
        %v1719 = vadd.f32 %v883, %v1718
        %v1720 = vpop.f32.mrb[0].mxu0
        %v1721 = vadd.f32 %v887, %v1720
        %1722 = vmatprep.mubr.bf16.mxu0 0
        %1723 = vmatmul.mubr.bf16.gmra.mrb[0].mxu0 %v745
        %v1724 = vpop.f32.mrb[0].mxu0
        %v1725 = vadd.f32 %v883, %v1724
        %v1726 = vpop.f32.mrb[0].mxu0
        %v1727 = vadd.f32 %v887, %v1726
        %v1728 = vpop.f32.mrb[0].mxu0
        %v1729 = vadd.f32 %v883, %v1728
        %v1730 = vpop.f32.mrb[0].mxu0
        %v1731 = vadd.f32 %v887, %v1730
        %1732 = vmatprep.mubr.bf16.mxu0 0
        %1733 = vmatmul.mubr.bf16.gmra.mrb[0].mxu0 %v746
        %v1734 = vpop.f32.mrb[0].mxu0
        %v1735 = vadd.f32 %v883, %v1734
        %v1736 = vpop.f32.mrb[0].mxu0
        %v1737 = vadd.f32 %v887, %v1736
        %v1738 = vpop.f32.mrb[0].mxu0
        %v1739 = vadd.f32 %v883, %v1738
        %v1740 = vpop.f32.mrb[0].mxu0
        %v1741 = vadd.f32 %v887, %v1740
        %1742 = vmatprep.mubr.bf16.mxu0 0
        %1743 = vmatmul.mubr.bf16.gmra.mrb[0].mxu0 %v747
        %v1744 = vpop.f32.mrb[0].mxu0
        %v1745 = vadd.f32 %v883, %v1744
        %v1746 = vpop.f32.mrb[0].mxu0
        %v1747 = vadd.f32 %v887, %v1746
        %v1748 = vpop.f32.mrb[0].mxu0
        %v1749 = vadd.f32 %v883, %v1748
        %v1750 = vpop.f32.mrb[0].mxu0
        %v1751 = vadd.f32 %v887, %v1750
        %1752 = vdwg.mxu0
        %1753 = vmatprep.subr.bf16.mxu0 %v1207
        %1754 = vmatpush1.bf16.msra.mxu0 %v1206
        %1755 = vmatprep.subr.bf16.mxu0 %v1219
        %1756 = vmatpush1.bf16.msra.mxu0 %v1218
        %1757 = vmatprep.subr.bf16.mxu0 %v1231
        %1758 = vmatpush1.bf16.msra.mxu0 %v1230
        %1759 = vmatprep.subr.bf16.mxu0 %v1243
        %1760 = vmatpush1.bf16.msra.mxu0 %v1242
        %1761 = vmatprep.subr.bf16.mxu0 %v1255
        %1762 = vmatpush1.bf16.msra.mxu0 %v1254
        %1763 = vmatprep.subr.bf16.mxu0 %v1267
        %1764 = vmatpush1.bf16.msra.mxu0 %v1266
        %1765 = vmatprep.subr.bf16.mxu0 %v1279
        %1766 = vmatpush1.bf16.msra.mxu0 %v1278
        %1767 = vmatprep.subr.bf16.mxu0 %v1291
        %1768 = vmatpush1.bf16.msra.mxu0 %v1290
        %1769 = vmatprep.subr.bf16.mxu0 0
        %1770 = vmatpush1.bf16.msra.mxu0 0
        %1771 = vmatprep.subr.bf16.mxu0 0
        %1772 = vmatpush1.bf16.msra.mxu0 0
        %1773 = vmatprep.subr.bf16.mxu0 0
        %1774 = vmatpush1.bf16.msra.mxu0 0
        %1775 = vmatprep.subr.bf16.mxu0 0
        %1776 = vmatpush1.bf16.msra.mxu0 0
        %1777 = vmatprep.subr.bf16.mxu0 0
        %1778 = vmatpush1.bf16.msra.mxu0 0
        %1779 = vmatprep.subr.bf16.mxu0 0
        %1780 = vmatpush1.bf16.msra.mxu0 0
        %1781 = vmatprep.subr.bf16.mxu0 0
        %1782 = vmatpush1.bf16.msra.mxu0 0
        %1783 = vmatprep.subr.bf16.mxu0 0
        %1784 = vmatpush1.bf16.msra.mxu0 0
        %1785 = vmatprep.mubr.bf16.mxu0 0
        %1786 = vmatmul.mubr.bf16.gmra.mrb[0].mxu0 %v744
        %v1787 = vpop.f32.mrb[0].mxu0
        %v1788 = vadd.f32 %v891, %v1787
        %v1789 = vpop.f32.mrb[0].mxu0
        %v1790 = vadd.f32 %v895, %v1789
        %v1791 = vpop.f32.mrb[0].mxu0
        %v1792 = vadd.f32 %v891, %v1791
        %v1793 = vpop.f32.mrb[0].mxu0
        %v1794 = vadd.f32 %v895, %v1793
        %1795 = vmatprep.mubr.bf16.mxu0 0
        %1796 = vmatmul.mubr.bf16.gmra.mrb[0].mxu0 %v745
        %v1797 = vpop.f32.mrb[0].mxu0
        %v1798 = vadd.f32 %v891, %v1797
        %v1799 = vpop.f32.mrb[0].mxu0
        %v1800 = vadd.f32 %v895, %v1799
        %v1801 = vpop.f32.mrb[0].mxu0
        %v1802 = vadd.f32 %v891, %v1801
        %v1803 = vpop.f32.mrb[0].mxu0
        %v1804 = vadd.f32 %v895, %v1803
        %1805 = vmatprep.mubr.bf16.mxu0 0
        %1806 = vmatmul.mubr.bf16.gmra.mrb[0].mxu0 %v746
        %v1807 = vpop.f32.mrb[0].mxu0
        %v1808 = vadd.f32 %v891, %v1807
        %v1809 = vpop.f32.mrb[0].mxu0
        %v1810 = vadd.f32 %v895, %v1809
        %v1811 = vpop.f32.mrb[0].mxu0
        %v1812 = vadd.f32 %v891, %v1811
        %v1813 = vpop.f32.mrb[0].mxu0
        %v1814 = vadd.f32 %v895, %v1813
        %1815 = vmatprep.mubr.bf16.mxu0 0
        %1816 = vmatmul.mubr.bf16.gmra.mrb[0].mxu0 %v747
        %v1817 = vpop.f32.mrb[0].mxu0
        %v1818 = vadd.f32 %v891, %v1817
        %v1819 = vpop.f32.mrb[0].mxu0
        %v1820 = vadd.f32 %v895, %v1819
        %v1821 = vpop.f32.mrb[0].mxu0
        %v1822 = vadd.f32 %v891, %v1821
        %v1823 = vpop.f32.mrb[0].mxu0
        %v1824 = vadd.f32 %v895, %v1823
        %1825 = vdwg.mxu0
        %v1826 = vxor.u32 %v1423, 2147483648
        %v1827 = vxor.u32 %v1425, 2147483648
        %v1828 = vxor.u32 %v1496, 2147483648
        %v1829 = vxor.u32 %v1498, 2147483648
        %v1830 = vxor.u32 %v1569, 2147483648
        %v1831 = vxor.u32 %v1571, 2147483648
        %v1832 = vxor.u32 %v1642, 2147483648
        %v1833 = vxor.u32 %v1644, 2147483648
        %v1834 = vxor.u32 %v1715, 2147483648
        %v1835 = vxor.u32 %v1717, 2147483648
        %v1836 = vxor.u32 %v1788, 2147483648
        %v1837 = vxor.u32 %v1790, 2147483648
        %v1838 = vxor.u32 %v1427, 2147483648
        %v1839 = vxor.u32 %v1429, 2147483648
        %v1840 = vxor.u32 %v1500, 2147483648
        %v1841 = vxor.u32 %v1502, 2147483648
        %v1842 = vxor.u32 %v1573, 2147483648
        %v1843 = vxor.u32 %v1575, 2147483648
        %v1844 = vxor.u32 %v1646, 2147483648
        %v1845 = vxor.u32 %v1648, 2147483648
        %v1846 = vxor.u32 %v1719, 2147483648
        %v1847 = vxor.u32 %v1721, 2147483648
        %v1848 = vxor.u32 %v1792, 2147483648
        %v1849 = vxor.u32 %v1794, 2147483648
        %v1850 = vxor.u32 %v1433, 2147483648
        %v1851 = vxor.u32 %v1435, 2147483648
        %v1852 = vxor.u32 %v1506, 2147483648
        %v1853 = vxor.u32 %v1508, 2147483648
        %v1854 = vxor.u32 %v1579, 2147483648
        %v1855 = vxor.u32 %v1581, 2147483648
        %v1856 = vxor.u32 %v1652, 2147483648
        %v1857 = vxor.u32 %v1654, 2147483648
        %v1858 = vxor.u32 %v1725, 2147483648
        %v1859 = vxor.u32 %v1727, 2147483648
        %v1860 = vxor.u32 %v1798, 2147483648
        %v1861 = vxor.u32 %v1800, 2147483648
        %v1862 = vxor.u32 %v1437, 2147483648
        %v1863 = vxor.u32 %v1439, 2147483648
        %v1864 = vxor.u32 %v1510, 2147483648
        %v1865 = vxor.u32 %v1512, 2147483648
        %v1866 = vxor.u32 %v1583, 2147483648
        %v1867 = vxor.u32 %v1585, 2147483648
        %v1868 = vxor.u32 %v1656, 2147483648
        %v1869 = vxor.u32 %v1658, 2147483648
        %v1870 = vxor.u32 %v1729, 2147483648
        %v1871 = vxor.u32 %v1731, 2147483648
        %v1872 = vxor.u32 %v1802, 2147483648
        %v1873 = vxor.u32 %v1804, 2147483648
        %v1874 = vxor.u32 %v1443, 2147483648
        %v1875 = vxor.u32 %v1445, 2147483648
        %v1876 = vxor.u32 %v1516, 2147483648
        %v1877 = vxor.u32 %v1518, 2147483648
        %v1878 = vxor.u32 %v1589, 2147483648
        %v1879 = vxor.u32 %v1591, 2147483648
        %v1880 = vxor.u32 %v1662, 2147483648
        %v1881 = vxor.u32 %v1664, 2147483648
        %v1882 = vxor.u32 %v1735, 2147483648
        %v1883 = vxor.u32 %v1737, 2147483648
        %v1884 = vxor.u32 %v1808, 2147483648
        %v1885 = vxor.u32 %v1810, 2147483648
        %v1886 = vxor.u32 %v1447, 2147483648
        %v1887 = vxor.u32 %v1449, 2147483648
        %v1888 = vxor.u32 %v1520, 2147483648
        %v1889 = vxor.u32 %v1522, 2147483648
        %v1890 = vxor.u32 %v1593, 2147483648
        %v1891 = vxor.u32 %v1595, 2147483648
        %v1892 = vxor.u32 %v1666, 2147483648
        %v1893 = vxor.u32 %v1668, 2147483648
        %v1894 = vxor.u32 %v1739, 2147483648
        %v1895 = vxor.u32 %v1741, 2147483648
        %v1896 = vxor.u32 %v1812, 2147483648
        %v1897 = vxor.u32 %v1814, 2147483648
        %v1898 = vxor.u32 %v1453, 2147483648
        %v1899 = vxor.u32 %v1455, 2147483648
        %v1900 = vxor.u32 %v1526, 2147483648
        %v1901 = vxor.u32 %v1528, 2147483648
        %v1902 = vxor.u32 %v1599, 2147483648
        %v1903 = vxor.u32 %v1601, 2147483648
        %v1904 = vxor.u32 %v1672, 2147483648
        %v1905 = vxor.u32 %v1674, 2147483648
        %v1906 = vxor.u32 %v1745, 2147483648
        %v1907 = vxor.u32 %v1747, 2147483648
        %v1908 = vxor.u32 %v1818, 2147483648
        %v1909 = vxor.u32 %v1820, 2147483648
        %v1910 = vxor.u32 %v1457, 2147483648
        %v1911 = vxor.u32 %v1459, 2147483648
        %v1912 = vxor.u32 %v1530, 2147483648
        %v1913 = vxor.u32 %v1532, 2147483648
        %v1914 = vxor.u32 %v1603, 2147483648
        %v1915 = vxor.u32 %v1605, 2147483648
        %v1916 = vxor.u32 %v1676, 2147483648
        %v1917 = vxor.u32 %v1678, 2147483648
        %v1918 = vxor.u32 %v1749, 2147483648
        %v1919 = vxor.u32 %v1751, 2147483648
        %v1920 = vxor.u32 %v1822, 2147483648
        %v1921 = vxor.u32 %v1824, 2147483648
        %v1922 = vmul.f32 %v1826, 1.442695
        %v1923 = vpow.pop %v1922
        %v1924 = vmul.f32 %v1827, 1.442695
        %v1925 = vpow.pop %v1924
        %v1926 = vmul.f32 %v1828, 1.442695
        %v1927 = vpow.pop %v1926
        %v1928 = vmul.f32 %v1829, 1.442695
        %v1929 = vpow.pop %v1928
        %v1930 = vmul.f32 %v1830, 1.442695
        %v1931 = vpow.pop %v1930
        %v1932 = vmul.f32 %v1831, 1.442695
        %v1933 = vpow.pop %v1932
        %v1934 = vmul.f32 %v1832, 1.442695
        %v1935 = vpow.pop %v1934
        %v1936 = vmul.f32 %v1833, 1.442695
        %v1937 = vpow.pop %v1936
        %v1938 = vmul.f32 %v1834, 1.442695
        %v1939 = vpow.pop %v1938
        %v1940 = vmul.f32 %v1835, 1.442695
        %v1941 = vpow.pop %v1940
        %v1942 = vmul.f32 %v1836, 1.442695
        %v1943 = vpow.pop %v1942
        %v1944 = vmul.f32 %v1837, 1.442695
        %v1945 = vpow.pop %v1944
        %v1946 = vmul.f32 %v1838, 1.442695
        %v1947 = vpow.pop %v1946
        %v1948 = vmul.f32 %v1839, 1.442695
        %v1949 = vpow.pop %v1948
        %v1950 = vmul.f32 %v1840, 1.442695
        %v1951 = vpow.pop %v1950
        %v1952 = vmul.f32 %v1841, 1.442695
        %v1953 = vpow.pop %v1952
        %v1954 = vmul.f32 %v1842, 1.442695
        %v1955 = vpow.pop %v1954
        %v1956 = vmul.f32 %v1843, 1.442695
        %v1957 = vpow.pop %v1956
        %v1958 = vmul.f32 %v1844, 1.442695
        %v1959 = vpow.pop %v1958
        %v1960 = vmul.f32 %v1845, 1.442695
        %v1961 = vpow.pop %v1960
        %v1962 = vmul.f32 %v1846, 1.442695
        %v1963 = vpow.pop %v1962
        %v1964 = vmul.f32 %v1847, 1.442695
        %v1965 = vpow.pop %v1964
        %v1966 = vmul.f32 %v1848, 1.442695
        %v1967 = vpow.pop %v1966
        %v1968 = vmul.f32 %v1849, 1.442695
        %v1969 = vpow.pop %v1968
        %v1970 = vmul.f32 %v1850, 1.442695
        %v1971 = vpow.pop %v1970
        %v1972 = vmul.f32 %v1851, 1.442695
        %v1973 = vpow.pop %v1972
        %v1974 = vmul.f32 %v1852, 1.442695
        %v1975 = vpow.pop %v1974
        %v1976 = vmul.f32 %v1853, 1.442695
        %v1977 = vpow.pop %v1976
        %v1978 = vmul.f32 %v1854, 1.442695
        %v1979 = vpow.pop %v1978
        %v1980 = vmul.f32 %v1855, 1.442695
        %v1981 = vpow.pop %v1980
        %v1982 = vmul.f32 %v1856, 1.442695
        %v1983 = vpow.pop %v1982
        %v1984 = vmul.f32 %v1857, 1.442695
        %v1985 = vpow.pop %v1984
        %v1986 = vmul.f32 %v1858, 1.442695
        %v1987 = vpow.pop %v1986
        %v1988 = vmul.f32 %v1859, 1.442695
        %v1989 = vpow.pop %v1988
        %v1990 = vmul.f32 %v1860, 1.442695
        %v1991 = vpow.pop %v1990
        %v1992 = vmul.f32 %v1861, 1.442695
        %v1993 = vpow.pop %v1992
        %v1994 = vmul.f32 %v1862, 1.442695
        %v1995 = vpow.pop %v1994
        %v1996 = vmul.f32 %v1863, 1.442695
        %v1997 = vpow.pop %v1996
        %v1998 = vmul.f32 %v1864, 1.442695
        %v1999 = vpow.pop %v1998
        %v2000 = vmul.f32 %v1865, 1.442695
        %v2001 = vpow.pop %v2000
        %v2002 = vmul.f32 %v1866, 1.442695
        %v2003 = vpow.pop %v2002
        %v2004 = vmul.f32 %v1867, 1.442695
        %v2005 = vpow.pop %v2004
        %v2006 = vmul.f32 %v1868, 1.442695
        %v2007 = vpow.pop %v2006
        %v2008 = vmul.f32 %v1869, 1.442695
        %v2009 = vpow.pop %v2008
        %v2010 = vmul.f32 %v1870, 1.442695
        %v2011 = vpow.pop %v2010
        %v2012 = vmul.f32 %v1871, 1.442695
        %v2013 = vpow.pop %v2012
        %v2014 = vmul.f32 %v1872, 1.442695
        %v2015 = vpow.pop %v2014
        %v2016 = vmul.f32 %v1873, 1.442695
        %v2017 = vpow.pop %v2016
        %v2018 = vmul.f32 %v1874, 1.442695
        %v2019 = vpow.pop %v2018
        %v2020 = vmul.f32 %v1875, 1.442695
        %v2021 = vpow.pop %v2020
        %v2022 = vmul.f32 %v1876, 1.442695
        %v2023 = vpow.pop %v2022
        %v2024 = vmul.f32 %v1877, 1.442695
        %v2025 = vpow.pop %v2024
        %v2026 = vmul.f32 %v1878, 1.442695
        %v2027 = vpow.pop %v2026
        %v2028 = vmul.f32 %v1879, 1.442695
        %v2029 = vpow.pop %v2028
        %v2030 = vmul.f32 %v1880, 1.442695
        %v2031 = vpow.pop %v2030
        %v2032 = vmul.f32 %v1881, 1.442695
        %v2033 = vpow.pop %v2032
        %v2034 = vmul.f32 %v1882, 1.442695
        %v2035 = vpow.pop %v2034
        %v2036 = vmul.f32 %v1883, 1.442695
        %v2037 = vpow.pop %v2036
        %v2038 = vmul.f32 %v1884, 1.442695
        %v2039 = vpow.pop %v2038
        %v2040 = vmul.f32 %v1885, 1.442695
        %v2041 = vpow.pop %v2040
        %v2042 = vmul.f32 %v1886, 1.442695
        %v2043 = vpow.pop %v2042
        %v2044 = vmul.f32 %v1887, 1.442695
        %v2045 = vpow.pop %v2044
        %v2046 = vmul.f32 %v1888, 1.442695
        %v2047 = vpow.pop %v2046
        %v2048 = vmul.f32 %v1889, 1.442695
        %v2049 = vpow.pop %v2048
        %v2050 = vmul.f32 %v1890, 1.442695
        %v2051 = vpow.pop %v2050
        %v2052 = vmul.f32 %v1891, 1.442695
        %v2053 = vpow.pop %v2052
        %v2054 = vmul.f32 %v1892, 1.442695
        %v2055 = vpow.pop %v2054
        %v2056 = vmul.f32 %v1893, 1.442695
        %v2057 = vpow.pop %v2056
        %v2058 = vmul.f32 %v1894, 1.442695
        %v2059 = vpow.pop %v2058
        %v2060 = vmul.f32 %v1895, 1.442695
        %v2061 = vpow.pop %v2060
        %v2062 = vmul.f32 %v1896, 1.442695
        %v2063 = vpow.pop %v2062
        %v2064 = vmul.f32 %v1897, 1.442695
        %v2065 = vpow.pop %v2064
        %v2066 = vmul.f32 %v1898, 1.442695
        %v2067 = vpow.pop %v2066
        %v2068 = vmul.f32 %v1899, 1.442695
        %v2069 = vpow.pop %v2068
        %v2070 = vmul.f32 %v1900, 1.442695
        %v2071 = vpow.pop %v2070
        %v2072 = vmul.f32 %v1901, 1.442695
        %v2073 = vpow.pop %v2072
        %v2074 = vmul.f32 %v1902, 1.442695
        %v2075 = vpow.pop %v2074
        %v2076 = vmul.f32 %v1903, 1.442695
        %v2077 = vpow.pop %v2076
        %v2078 = vmul.f32 %v1904, 1.442695
        %v2079 = vpow.pop %v2078
        %v2080 = vmul.f32 %v1905, 1.442695
        %v2081 = vpow.pop %v2080
        %v2082 = vmul.f32 %v1906, 1.442695
        %v2083 = vpow.pop %v2082
        %v2084 = vmul.f32 %v1907, 1.442695
        %v2085 = vpow.pop %v2084
        %v2086 = vmul.f32 %v1908, 1.442695
        %v2087 = vpow.pop %v2086
        %v2088 = vmul.f32 %v1909, 1.442695
        %v2089 = vpow.pop %v2088
        %v2090 = vmul.f32 %v1910, 1.442695
        %v2091 = vpow.pop %v2090
        %v2092 = vmul.f32 %v1911, 1.442695
        %v2093 = vpow.pop %v2092
        %v2094 = vmul.f32 %v1912, 1.442695
        %v2095 = vpow.pop %v2094
        %v2096 = vmul.f32 %v1913, 1.442695
        %v2097 = vpow.pop %v2096
        %v2098 = vmul.f32 %v1914, 1.442695
        %v2099 = vpow.pop %v2098
        %v2100 = vmul.f32 %v1915, 1.442695
        %v2101 = vpow.pop %v2100
        %v2102 = vmul.f32 %v1916, 1.442695
        %v2103 = vpow.pop %v2102
        %v2104 = vmul.f32 %v1917, 1.442695
        %v2105 = vpow.pop %v2104
        %v2106 = vmul.f32 %v1918, 1.442695
        %v2107 = vpow.pop %v2106
        %v2108 = vmul.f32 %v1919, 1.442695
        %v2109 = vpow.pop %v2108
        %v2110 = vmul.f32 %v1920, 1.442695
        %v2111 = vpow.pop %v2110
        %v2112 = vmul.f32 %v1921, 1.442695
        %v2113 = vpow.pop %v2112
        %v2114 = vadd.f32 %v1923, 1.0
        %v2115 = vadd.f32 %v1925, 1.0
        %v2116 = vadd.f32 %v1927, 1.0
        %v2117 = vadd.f32 %v1929, 1.0
        %v2118 = vadd.f32 %v1931, 1.0
        %v2119 = vadd.f32 %v1933, 1.0
        %v2120 = vadd.f32 %v1935, 1.0
        %v2121 = vadd.f32 %v1937, 1.0
        %v2122 = vadd.f32 %v1939, 1.0
        %v2123 = vadd.f32 %v1941, 1.0
        %v2124 = vadd.f32 %v1943, 1.0
        %v2125 = vadd.f32 %v1945, 1.0
        %v2126 = vadd.f32 %v1947, 1.0
        %v2127 = vadd.f32 %v1949, 1.0
        %v2128 = vadd.f32 %v1951, 1.0
        %v2129 = vadd.f32 %v1953, 1.0
        %v2130 = vadd.f32 %v1955, 1.0
        %v2131 = vadd.f32 %v1957, 1.0
        %v2132 = vadd.f32 %v1959, 1.0
        %v2133 = vadd.f32 %v1961, 1.0
        %v2134 = vadd.f32 %v1963, 1.0
        %v2135 = vadd.f32 %v1965, 1.0
        %v2136 = vadd.f32 %v1967, 1.0
        %v2137 = vadd.f32 %v1969, 1.0
        %v2138 = vadd.f32 %v1971, 1.0
        %v2139 = vadd.f32 %v1973, 1.0
        %v2140 = vadd.f32 %v1975, 1.0
        %v2141 = vadd.f32 %v1977, 1.0
        %v2142 = vadd.f32 %v1979, 1.0
        %v2143 = vadd.f32 %v1981, 1.0
        %v2144 = vadd.f32 %v1983, 1.0
        %v2145 = vadd.f32 %v1985, 1.0
        %v2146 = vadd.f32 %v1987, 1.0
        %v2147 = vadd.f32 %v1989, 1.0
        %v2148 = vadd.f32 %v1991, 1.0
        %v2149 = vadd.f32 %v1993, 1.0
        %v2150 = vadd.f32 %v1995, 1.0
        %v2151 = vadd.f32 %v1997, 1.0
        %v2152 = vadd.f32 %v1999, 1.0
        %v2153 = vadd.f32 %v2001, 1.0
        %v2154 = vadd.f32 %v2003, 1.0
        %v2155 = vadd.f32 %v2005, 1.0
        %v2156 = vadd.f32 %v2007, 1.0
        %v2157 = vadd.f32 %v2009, 1.0
        %v2158 = vadd.f32 %v2011, 1.0
        %v2159 = vadd.f32 %v2013, 1.0
        %v2160 = vadd.f32 %v2015, 1.0
        %v2161 = vadd.f32 %v2017, 1.0
        %v2162 = vadd.f32 %v2019, 1.0
        %v2163 = vadd.f32 %v2021, 1.0
        %v2164 = vadd.f32 %v2023, 1.0
        %v2165 = vadd.f32 %v2025, 1.0
        %v2166 = vadd.f32 %v2027, 1.0
        %v2167 = vadd.f32 %v2029, 1.0
        %v2168 = vadd.f32 %v2031, 1.0
        %v2169 = vadd.f32 %v2033, 1.0
        %v2170 = vadd.f32 %v2035, 1.0
        %v2171 = vadd.f32 %v2037, 1.0
        %v2172 = vadd.f32 %v2039, 1.0
        %v2173 = vadd.f32 %v2041, 1.0
        %v2174 = vadd.f32 %v2043, 1.0
        %v2175 = vadd.f32 %v2045, 1.0
        %v2176 = vadd.f32 %v2047, 1.0
        %v2177 = vadd.f32 %v2049, 1.0
        %v2178 = vadd.f32 %v2051, 1.0
        %v2179 = vadd.f32 %v2053, 1.0
        %v2180 = vadd.f32 %v2055, 1.0
        %v2181 = vadd.f32 %v2057, 1.0
        %v2182 = vadd.f32 %v2059, 1.0
        %v2183 = vadd.f32 %v2061, 1.0
        %v2184 = vadd.f32 %v2063, 1.0
        %v2185 = vadd.f32 %v2065, 1.0
        %v2186 = vadd.f32 %v2067, 1.0
        %v2187 = vadd.f32 %v2069, 1.0
        %v2188 = vadd.f32 %v2071, 1.0
        %v2189 = vadd.f32 %v2073, 1.0
        %v2190 = vadd.f32 %v2075, 1.0
        %v2191 = vadd.f32 %v2077, 1.0
        %v2192 = vadd.f32 %v2079, 1.0
        %v2193 = vadd.f32 %v2081, 1.0
        %v2194 = vadd.f32 %v2083, 1.0
        %v2195 = vadd.f32 %v2085, 1.0
        %v2196 = vadd.f32 %v2087, 1.0
        %v2197 = vadd.f32 %v2089, 1.0
        %v2198 = vadd.f32 %v2091, 1.0
        %v2199 = vadd.f32 %v2093, 1.0
        %v2200 = vadd.f32 %v2095, 1.0
        %v2201 = vadd.f32 %v2097, 1.0
        %v2202 = vadd.f32 %v2099, 1.0
        %v2203 = vadd.f32 %v2101, 1.0
        %v2204 = vadd.f32 %v2103, 1.0
        %v2205 = vadd.f32 %v2105, 1.0
        %v2206 = vadd.f32 %v2107, 1.0
        %v2207 = vadd.f32 %v2109, 1.0
        %v2208 = vadd.f32 %v2111, 1.0
        %v2209 = vadd.f32 %v2113, 1.0
        %v2210 = vrcp.pop %v2114
        %v2211 = vmul.f32 1.0, %v2210
        %v2212 = vrcp.pop %v2115
        %v2213 = vmul.f32 1.0, %v2212
        %v2214 = vrcp.pop %v2116
        %v2215 = vmul.f32 1.0, %v2214
        %v2216 = vrcp.pop %v2117
        %v2217 = vmul.f32 1.0, %v2216
        %v2218 = vrcp.pop %v2118
        %v2219 = vmul.f32 1.0, %v2218
        %v2220 = vrcp.pop %v2119
        %v2221 = vmul.f32 1.0, %v2220
        %v2222 = vrcp.pop %v2120
        %v2223 = vmul.f32 1.0, %v2222
        %v2224 = vrcp.pop %v2121
        %v2225 = vmul.f32 1.0, %v2224
        %v2226 = vrcp.pop %v2122
        %v2227 = vmul.f32 1.0, %v2226
        %v2228 = vrcp.pop %v2123
        %v2229 = vmul.f32 1.0, %v2228
        %v2230 = vrcp.pop %v2124
        %v2231 = vmul.f32 1.0, %v2230
        %v2232 = vrcp.pop %v2125
        %v2233 = vmul.f32 1.0, %v2232
        %v2234 = vrcp.pop %v2126
        %v2235 = vmul.f32 1.0, %v2234
        %v2236 = vrcp.pop %v2127
        %v2237 = vmul.f32 1.0, %v2236
        %v2238 = vrcp.pop %v2128
        %v2239 = vmul.f32 1.0, %v2238
        %v2240 = vrcp.pop %v2129
        %v2241 = vmul.f32 1.0, %v2240
        %v2242 = vrcp.pop %v2130
        %v2243 = vmul.f32 1.0, %v2242
        %v2244 = vrcp.pop %v2131
        %v2245 = vmul.f32 1.0, %v2244
        %v2246 = vrcp.pop %v2132
        %v2247 = vmul.f32 1.0, %v2246
        %v2248 = vrcp.pop %v2133
        %v2249 = vmul.f32 1.0, %v2248
        %v2250 = vrcp.pop %v2134
        %v2251 = vmul.f32 1.0, %v2250
        %v2252 = vrcp.pop %v2135
        %v2253 = vmul.f32 1.0, %v2252
        %v2254 = vrcp.pop %v2136
        %v2255 = vmul.f32 1.0, %v2254
        %v2256 = vrcp.pop %v2137
        %v2257 = vmul.f32 1.0, %v2256
        %v2258 = vrcp.pop %v2138
        %v2259 = vmul.f32 1.0, %v2258
        %v2260 = vrcp.pop %v2139
        %v2261 = vmul.f32 1.0, %v2260
        %v2262 = vrcp.pop %v2140
        %v2263 = vmul.f32 1.0, %v2262
        %v2264 = vrcp.pop %v2141
        %v2265 = vmul.f32 1.0, %v2264
        %v2266 = vrcp.pop %v2142
        %v2267 = vmul.f32 1.0, %v2266
        %v2268 = vrcp.pop %v2143
        %v2269 = vmul.f32 1.0, %v2268
        %v2270 = vrcp.pop %v2144
        %v2271 = vmul.f32 1.0, %v2270
        %v2272 = vrcp.pop %v2145
        %v2273 = vmul.f32 1.0, %v2272
        %v2274 = vrcp.pop %v2146
        %v2275 = vmul.f32 1.0, %v2274
        %v2276 = vrcp.pop %v2147
        %v2277 = vmul.f32 1.0, %v2276
        %v2278 = vrcp.pop %v2148
        %v2279 = vmul.f32 1.0, %v2278
        %v2280 = vrcp.pop %v2149
        %v2281 = vmul.f32 1.0, %v2280
        %v2282 = vrcp.pop %v2150
        %v2283 = vmul.f32 1.0, %v2282
        %v2284 = vrcp.pop %v2151
        %v2285 = vmul.f32 1.0, %v2284
        %v2286 = vrcp.pop %v2152
        %v2287 = vmul.f32 1.0, %v2286
        %v2288 = vrcp.pop %v2153
        %v2289 = vmul.f32 1.0, %v2288
        %v2290 = vrcp.pop %v2154
        %v2291 = vmul.f32 1.0, %v2290
        %v2292 = vrcp.pop %v2155
        %v2293 = vmul.f32 1.0, %v2292
        %v2294 = vrcp.pop %v2156
        %v2295 = vmul.f32 1.0, %v2294
        %v2296 = vrcp.pop %v2157
        %v2297 = vmul.f32 1.0, %v2296
        %v2298 = vrcp.pop %v2158
        %v2299 = vmul.f32 1.0, %v2298
        %v2300 = vrcp.pop %v2159
        %v2301 = vmul.f32 1.0, %v2300
        %v2302 = vrcp.pop %v2160
        %v2303 = vmul.f32 1.0, %v2302
        %v2304 = vrcp.pop %v2161
        %v2305 = vmul.f32 1.0, %v2304
        %v2306 = vrcp.pop %v2162
        %v2307 = vmul.f32 1.0, %v2306
        %v2308 = vrcp.pop %v2163
        %v2309 = vmul.f32 1.0, %v2308
        %v2310 = vrcp.pop %v2164
        %v2311 = vmul.f32 1.0, %v2310
        %v2312 = vrcp.pop %v2165
        %v2313 = vmul.f32 1.0, %v2312
        %v2314 = vrcp.pop %v2166
        %v2315 = vmul.f32 1.0, %v2314
        %v2316 = vrcp.pop %v2167
        %v2317 = vmul.f32 1.0, %v2316
        %v2318 = vrcp.pop %v2168
        %v2319 = vmul.f32 1.0, %v2318
        %v2320 = vrcp.pop %v2169
        %v2321 = vmul.f32 1.0, %v2320
        %v2322 = vrcp.pop %v2170
        %v2323 = vmul.f32 1.0, %v2322
        %v2324 = vrcp.pop %v2171
        %v2325 = vmul.f32 1.0, %v2324
        %v2326 = vrcp.pop %v2172
        %v2327 = vmul.f32 1.0, %v2326
        %v2328 = vrcp.pop %v2173
        %v2329 = vmul.f32 1.0, %v2328
        %v2330 = vrcp.pop %v2174
        %v2331 = vmul.f32 1.0, %v2330
        %v2332 = vrcp.pop %v2175
        %v2333 = vmul.f32 1.0, %v2332
        %v2334 = vrcp.pop %v2176
        %v2335 = vmul.f32 1.0, %v2334
        %v2336 = vrcp.pop %v2177
        %v2337 = vmul.f32 1.0, %v2336
        %v2338 = vrcp.pop %v2178
        %v2339 = vmul.f32 1.0, %v2338
        %v2340 = vrcp.pop %v2179
        %v2341 = vmul.f32 1.0, %v2340
        %v2342 = vrcp.pop %v2180
        %v2343 = vmul.f32 1.0, %v2342
        %v2344 = vrcp.pop %v2181
        %v2345 = vmul.f32 1.0, %v2344
        %v2346 = vrcp.pop %v2182
        %v2347 = vmul.f32 1.0, %v2346
        %v2348 = vrcp.pop %v2183
        %v2349 = vmul.f32 1.0, %v2348
        %v2350 = vrcp.pop %v2184
        %v2351 = vmul.f32 1.0, %v2350
        %v2352 = vrcp.pop %v2185
        %v2353 = vmul.f32 1.0, %v2352
        %v2354 = vrcp.pop %v2186
        %v2355 = vmul.f32 1.0, %v2354
        %v2356 = vrcp.pop %v2187
        %v2357 = vmul.f32 1.0, %v2356
        %v2358 = vrcp.pop %v2188
        %v2359 = vmul.f32 1.0, %v2358
        %v2360 = vrcp.pop %v2189
        %v2361 = vmul.f32 1.0, %v2360
        %v2362 = vrcp.pop %v2190
        %v2363 = vmul.f32 1.0, %v2362
        %v2364 = vrcp.pop %v2191
        %v2365 = vmul.f32 1.0, %v2364
        %v2366 = vrcp.pop %v2192
        %v2367 = vmul.f32 1.0, %v2366
        %v2368 = vrcp.pop %v2193
        %v2369 = vmul.f32 1.0, %v2368
        %v2370 = vrcp.pop %v2194
        %v2371 = vmul.f32 1.0, %v2370
        %v2372 = vrcp.pop %v2195
        %v2373 = vmul.f32 1.0, %v2372
        %v2374 = vrcp.pop %v2196
        %v2375 = vmul.f32 1.0, %v2374
        %v2376 = vrcp.pop %v2197
        %v2377 = vmul.f32 1.0, %v2376
        %v2378 = vrcp.pop %v2198
        %v2379 = vmul.f32 1.0, %v2378
        %v2380 = vrcp.pop %v2199
        %v2381 = vmul.f32 1.0, %v2380
        %v2382 = vrcp.pop %v2200
        %v2383 = vmul.f32 1.0, %v2382
        %v2384 = vrcp.pop %v2201
        %v2385 = vmul.f32 1.0, %v2384
        %v2386 = vrcp.pop %v2202
        %v2387 = vmul.f32 1.0, %v2386
        %v2388 = vrcp.pop %v2203
        %v2389 = vmul.f32 1.0, %v2388
        %v2390 = vrcp.pop %v2204
        %v2391 = vmul.f32 1.0, %v2390
        %v2392 = vrcp.pop %v2205
        %v2393 = vmul.f32 1.0, %v2392
        %v2394 = vrcp.pop %v2206
        %v2395 = vmul.f32 1.0, %v2394
        %v2396 = vrcp.pop %v2207
        %v2397 = vmul.f32 1.0, %v2396
        %v2398 = vrcp.pop %v2208
        %v2399 = vmul.f32 1.0, %v2398
        %v2400 = vrcp.pop %v2209
        %v2401 = vmul.f32 1.0, %v2400
        %v2402 = vmul.f32 %v1423, %v2211
        %v2403 = vmul.f32 %v1425, %v2213
        %v2404 = vmul.f32 %v1496, %v2215
        %v2405 = vmul.f32 %v1498, %v2217
        %v2406 = vmul.f32 %v1569, %v2219
        %v2407 = vmul.f32 %v1571, %v2221
        %v2408 = vmul.f32 %v1642, %v2223
        %v2409 = vmul.f32 %v1644, %v2225
        %v2410 = vmul.f32 %v1715, %v2227
        %v2411 = vmul.f32 %v1717, %v2229
        %v2412 = vmul.f32 %v1788, %v2231
        %v2413 = vmul.f32 %v1790, %v2233
        %v2414 = vmul.f32 %v1427, %v2235
        %v2415 = vmul.f32 %v1429, %v2237
        %v2416 = vmul.f32 %v1500, %v2239
        %v2417 = vmul.f32 %v1502, %v2241
        %v2418 = vmul.f32 %v1573, %v2243
        %v2419 = vmul.f32 %v1575, %v2245
        %v2420 = vmul.f32 %v1646, %v2247
        %v2421 = vmul.f32 %v1648, %v2249
        %v2422 = vmul.f32 %v1719, %v2251
        %v2423 = vmul.f32 %v1721, %v2253
        %v2424 = vmul.f32 %v1792, %v2255
        %v2425 = vmul.f32 %v1794, %v2257
        %v2426 = vmul.f32 %v1433, %v2259
        %v2427 = vmul.f32 %v1435, %v2261
        %v2428 = vmul.f32 %v1506, %v2263
        %v2429 = vmul.f32 %v1508, %v2265
        %v2430 = vmul.f32 %v1579, %v2267
        %v2431 = vmul.f32 %v1581, %v2269
        %v2432 = vmul.f32 %v1652, %v2271
        %v2433 = vmul.f32 %v1654, %v2273
        %v2434 = vmul.f32 %v1725, %v2275
        %v2435 = vmul.f32 %v1727, %v2277
        %v2436 = vmul.f32 %v1798, %v2279
        %v2437 = vmul.f32 %v1800, %v2281
        %v2438 = vmul.f32 %v1437, %v2283
        %v2439 = vmul.f32 %v1439, %v2285
        %v2440 = vmul.f32 %v1510, %v2287
        %v2441 = vmul.f32 %v1512, %v2289
        %v2442 = vmul.f32 %v1583, %v2291
        %v2443 = vmul.f32 %v1585, %v2293
        %v2444 = vmul.f32 %v1656, %v2295
        %v2445 = vmul.f32 %v1658, %v2297
        %v2446 = vmul.f32 %v1729, %v2299
        %v2447 = vmul.f32 %v1731, %v2301
        %v2448 = vmul.f32 %v1802, %v2303
        %v2449 = vmul.f32 %v1804, %v2305
        %v2450 = vmul.f32 %v1443, %v2307
        %v2451 = vmul.f32 %v1445, %v2309
        %v2452 = vmul.f32 %v1516, %v2311
        %v2453 = vmul.f32 %v1518, %v2313
        %v2454 = vmul.f32 %v1589, %v2315
        %v2455 = vmul.f32 %v1591, %v2317
        %v2456 = vmul.f32 %v1662, %v2319
        %v2457 = vmul.f32 %v1664, %v2321
        %v2458 = vmul.f32 %v1735, %v2323
        %v2459 = vmul.f32 %v1737, %v2325
        %v2460 = vmul.f32 %v1808, %v2327
        %v2461 = vmul.f32 %v1810, %v2329
        %v2462 = vmul.f32 %v1447, %v2331
        %v2463 = vmul.f32 %v1449, %v2333
        %v2464 = vmul.f32 %v1520, %v2335
        %v2465 = vmul.f32 %v1522, %v2337
        %v2466 = vmul.f32 %v1593, %v2339
        %v2467 = vmul.f32 %v1595, %v2341
        %v2468 = vmul.f32 %v1666, %v2343
        %v2469 = vmul.f32 %v1668, %v2345
        %v2470 = vmul.f32 %v1739, %v2347
        %v2471 = vmul.f32 %v1741, %v2349
        %v2472 = vmul.f32 %v1812, %v2351
        %v2473 = vmul.f32 %v1814, %v2353
        %v2474 = vmul.f32 %v1453, %v2355
        %v2475 = vmul.f32 %v1455, %v2357
        %v2476 = vmul.f32 %v1526, %v2359
        %v2477 = vmul.f32 %v1528, %v2361
        %v2478 = vmul.f32 %v1599, %v2363
        %v2479 = vmul.f32 %v1601, %v2365
        %v2480 = vmul.f32 %v1672, %v2367
        %v2481 = vmul.f32 %v1674, %v2369
        %v2482 = vmul.f32 %v1745, %v2371
        %v2483 = vmul.f32 %v1747, %v2373
        %v2484 = vmul.f32 %v1818, %v2375
        %v2485 = vmul.f32 %v1820, %v2377
        %v2486 = vmul.f32 %v1457, %v2379
        %v2487 = vmul.f32 %v1459, %v2381
        %v2488 = vmul.f32 %v1530, %v2383
        %v2489 = vmul.f32 %v1532, %v2385
        %v2490 = vmul.f32 %v1603, %v2387
        %v2491 = vmul.f32 %v1605, %v2389
        %v2492 = vmul.f32 %v1676, %v2391
        %v2493 = vmul.f32 %v1678, %v2393
        %v2494 = vmul.f32 %v1749, %v2395
        %v2495 = vmul.f32 %v1751, %v2397
        %v2496 = vmul.f32 %v1822, %v2399
        %v2497 = vmul.f32 %v1824, %v2401
        %v2498 = vld [vmem:[#allocation2] sm:$0xff]
        %v2499 = vld [vmem:[#allocation2 + $0x8] sm:$0xf]
        %v2500 = vadd.f32 %v2402, %v2414
        %v2501 = vadd.f32 %v2500, %v2426
        %v2502 = vadd.f32 %v2501, %v2438
        %v2503 = vadd.f32 %v2502, %v2450
        %v2504 = vadd.f32 %v2503, %v2462
        %v2505 = vadd.f32 %v2504, %v2474
        %v2506 = vadd.f32 %v2505, %v2486
        %v2507 = vrot.slane %v2506, 4
        %v2508 = vadd.f32 %v2506, %v2507
        %v2509 = vrot.slane %v2508, 2
        %v2510 = vadd.f32 %v2508, %v2509
        %v2511 = vrot.slane %v2510, 1
        %v2512 = vadd.f32 %v2510, %v2511
        %v2513 = vadd.f32 %v2403, %v2415
        %v2514 = vadd.f32 %v2513, %v2427
        %v2515 = vadd.f32 %v2514, %v2439
        %v2516 = vadd.f32 %v2515, %v2451
        %v2517 = vadd.f32 %v2516, %v2463
        %v2518 = vadd.f32 %v2517, %v2475
        %v2519 = vadd.f32 %v2518, %v2487
        %v2520 = vrot.slane %v2519, 4
        %v2521 = vadd.f32 %v2519, %v2520
        %v2522 = vrot.slane %v2521, 2
        %v2523 = vadd.f32 %v2521, %v2522
        %v2524 = vrot.slane %v2523, 1
        %v2525 = vadd.f32 %v2523, %v2524
        %v2526 = vadd.f32 %v2404, %v2416
        %v2527 = vadd.f32 %v2526, %v2428
        %v2528 = vadd.f32 %v2527, %v2440
        %v2529 = vadd.f32 %v2528, %v2452
        %v2530 = vadd.f32 %v2529, %v2464
        %v2531 = vadd.f32 %v2530, %v2476
        %v2532 = vadd.f32 %v2531, %v2488
        %v2533 = vrot.slane %v2532, 4
        %v2534 = vadd.f32 %v2532, %v2533
        %v2535 = vrot.slane %v2534, 2
        %v2536 = vadd.f32 %v2534, %v2535
        %v2537 = vrot.slane %v2536, 1
        %v2538 = vadd.f32 %v2536, %v2537
        %v2539 = vadd.f32 %v2405, %v2417
        %v2540 = vadd.f32 %v2539, %v2429
        %v2541 = vadd.f32 %v2540, %v2441
        %v2542 = vadd.f32 %v2541, %v2453
        %v2543 = vadd.f32 %v2542, %v2465
        %v2544 = vadd.f32 %v2543, %v2477
        %v2545 = vadd.f32 %v2544, %v2489
        %v2546 = vrot.slane %v2545, 4
        %v2547 = vadd.f32 %v2545, %v2546
        %v2548 = vrot.slane %v2547, 2
        %v2549 = vadd.f32 %v2547, %v2548
        %v2550 = vrot.slane %v2549, 1
        %v2551 = vadd.f32 %v2549, %v2550
        %v2552 = vadd.f32 %v2406, %v2418
        %v2553 = vadd.f32 %v2552, %v2430
        %v2554 = vadd.f32 %v2553, %v2442
        %v2555 = vadd.f32 %v2554, %v2454
        %v2556 = vadd.f32 %v2555, %v2466
        %v2557 = vadd.f32 %v2556, %v2478
        %v2558 = vadd.f32 %v2557, %v2490
        %v2559 = vrot.slane %v2558, 4
        %v2560 = vadd.f32 %v2558, %v2559
        %v2561 = vrot.slane %v2560, 2
        %v2562 = vadd.f32 %v2560, %v2561
        %v2563 = vrot.slane %v2562, 1
        %v2564 = vadd.f32 %v2562, %v2563
        %v2565 = vadd.f32 %v2407, %v2419
        %v2566 = vadd.f32 %v2565, %v2431
        %v2567 = vadd.f32 %v2566, %v2443
        %v2568 = vadd.f32 %v2567, %v2455
        %v2569 = vadd.f32 %v2568, %v2467
        %v2570 = vadd.f32 %v2569, %v2479
        %v2571 = vadd.f32 %v2570, %v2491
        %v2572 = vrot.slane %v2571, 4
        %v2573 = vadd.f32 %v2571, %v2572
        %v2574 = vrot.slane %v2573, 2
        %v2575 = vadd.f32 %v2573, %v2574
        %v2576 = vrot.slane %v2575, 1
        %v2577 = vadd.f32 %v2575, %v2576
        %v2578 = vadd.f32 %v2408, %v2420
        %v2579 = vadd.f32 %v2578, %v2432
        %v2580 = vadd.f32 %v2579, %v2444
        %v2581 = vadd.f32 %v2580, %v2456
        %v2582 = vadd.f32 %v2581, %v2468
        %v2583 = vadd.f32 %v2582, %v2480
        %v2584 = vadd.f32 %v2583, %v2492
        %v2585 = vrot.slane %v2584, 4
        %v2586 = vadd.f32 %v2584, %v2585
        %v2587 = vrot.slane %v2586, 2
        %v2588 = vadd.f32 %v2586, %v2587
        %v2589 = vrot.slane %v2588, 1
        %v2590 = vadd.f32 %v2588, %v2589
        %v2591 = vadd.f32 %v2409, %v2421
        %v2592 = vadd.f32 %v2591, %v2433
        %v2593 = vadd.f32 %v2592, %v2445
        %v2594 = vadd.f32 %v2593, %v2457
        %v2595 = vadd.f32 %v2594, %v2469
        %v2596 = vadd.f32 %v2595, %v2481
        %v2597 = vadd.f32 %v2596, %v2493
        %v2598 = vrot.slane %v2597, 4
        %v2599 = vadd.f32 %v2597, %v2598
        %v2600 = vrot.slane %v2599, 2
        %v2601 = vadd.f32 %v2599, %v2600
        %v2602 = vrot.slane %v2601, 1
        %v2603 = vadd.f32 %v2601, %v2602
        %v2604 = vadd.f32 %v2410, %v2422
        %v2605 = vadd.f32 %v2604, %v2434
        %v2606 = vadd.f32 %v2605, %v2446
        %v2607 = vadd.f32 %v2606, %v2458
        %v2608 = vadd.f32 %v2607, %v2470
        %v2609 = vadd.f32 %v2608, %v2482
        %v2610 = vadd.f32 %v2609, %v2494
        %v2611 = vrot.slane %v2610, 4
        %v2612 = vadd.f32 %v2610, %v2611
        %v2613 = vrot.slane %v2612, 2
        %v2614 = vadd.f32 %v2612, %v2613
        %v2615 = vrot.slane %v2614, 1
        %v2616 = vadd.f32 %v2614, %v2615
        %v2617 = vadd.f32 %v2411, %v2423
        %v2618 = vadd.f32 %v2617, %v2435
        %v2619 = vadd.f32 %v2618, %v2447
        %v2620 = vadd.f32 %v2619, %v2459
        %v2621 = vadd.f32 %v2620, %v2471
        %v2622 = vadd.f32 %v2621, %v2483
        %v2623 = vadd.f32 %v2622, %v2495
        %v2624 = vrot.slane %v2623, 4
        %v2625 = vadd.f32 %v2623, %v2624
        %v2626 = vrot.slane %v2625, 2
        %v2627 = vadd.f32 %v2625, %v2626
        %v2628 = vrot.slane %v2627, 1
        %v2629 = vadd.f32 %v2627, %v2628
        %v2630 = vadd.f32 %v2412, %v2424
        %v2631 = vadd.f32 %v2630, %v2436
        %v2632 = vadd.f32 %v2631, %v2448
        %v2633 = vadd.f32 %v2632, %v2460
        %v2634 = vadd.f32 %v2633, %v2472
        %v2635 = vadd.f32 %v2634, %v2484
        %v2636 = vadd.f32 %v2635, %v2496
        %v2637 = vrot.slane %v2636, 4
        %v2638 = vadd.f32 %v2636, %v2637
        %v2639 = vrot.slane %v2638, 2
        %v2640 = vadd.f32 %v2638, %v2639
        %v2641 = vrot.slane %v2640, 1
        %v2642 = vadd.f32 %v2640, %v2641
        %v2643 = vadd.f32 %v2413, %v2425
        %v2644 = vadd.f32 %v2643, %v2437
        %v2645 = vadd.f32 %v2644, %v2449
        %v2646 = vadd.f32 %v2645, %v2461
        %v2647 = vadd.f32 %v2646, %v2473
        %v2648 = vadd.f32 %v2647, %v2485
        %v2649 = vadd.f32 %v2648, %v2497
        %v2650 = vrot.slane %v2649, 4
        %v2651 = vadd.f32 %v2649, %v2650
        %v2652 = vrot.slane %v2651, 2
        %v2653 = vadd.f32 %v2651, %v2652
        %v2654 = vrot.slane %v2653, 1
        %v2655 = vadd.f32 %v2653, %v2654
        %v2668 = vcombine.low %v2512, %v2525
        %v2669 = vcombine.low %v2538, %v2551
        %v2670 = vcombine.low %v2564, %v2577
        %v2671 = vcombine.low %v2590, %v2603
        %v2673 = vunpack.c.l.s4 1966171168
        %v2674 = vunpack.c.0.s8 %v2673
        %v2675 = vlaneseq
        %v2676 = vshrl.u32 %v2675, 7
        %v2677 = vsub.s32 %v2674, %v2676
        %v2678 = vrot.slane %v2668, %v2677
        %v2680 = vunpack.c.l.s4 1966171168
        %v2681 = vunpack.c.0.s8 %v2680
        %v2682 = vlaneseq
        %v2683 = vshrl.u32 %v2682, 7
        %v2684 = vsub.s32 %v2681, %v2683
        %v2685 = vrot.slane %v2669, %v2684
        %v2687 = vunpack.c.l.s4 1966171168
        %v2688 = vunpack.c.0.s8 %v2687
        %v2689 = vlaneseq
        %v2690 = vshrl.u32 %v2689, 7
        %v2691 = vsub.s32 %v2688, %v2690
        %v2692 = vrot.slane %v2670, %v2691
        %v2694 = vunpack.c.l.s4 1966171168
        %v2695 = vunpack.c.0.s8 %v2694
        %v2696 = vlaneseq
        %v2697 = vshrl.u32 %v2696, 7
        %v2698 = vsub.s32 %v2695, %v2697
        %v2699 = vrot.slane %v2671, %v2698
        %v2700 = vcombine.low %v2678, %v2685
        %v2701 = vcombine.low %v2692, %v2699
        %v2703 = vunpack.c.l.s4 1966171168
        %v2704 = vunpack.c.0.s8 %v2703
        %v2705 = vlaneseq
        %v2706 = vshrl.u32 %v2705, 7
        %v2707 = vsub.s32 %v2704, %v2706
        %v2708 = vrot.slane %v2700, %v2707
        %v2710 = vunpack.c.l.s4 1966171168
        %v2711 = vunpack.c.0.s8 %v2710
        %v2712 = vlaneseq
        %v2713 = vshrl.u32 %v2712, 7
        %v2714 = vsub.s32 %v2711, %v2713
        %v2715 = vrot.slane %v2701, %v2714
        %v2716 = vcombine.low %v2708, %v2715
        %v2717 = vcombine.low %v2616, %v2629
        %v2718 = vcombine.low %v2642, %v2655
        %v2720 = vunpack.c.l.s4 1966171168
        %v2721 = vunpack.c.0.s8 %v2720
        %v2722 = vlaneseq
        %v2723 = vshrl.u32 %v2722, 7
        %v2724 = vsub.s32 %v2721, %v2723
        %v2725 = vrot.slane %v2717, %v2724
        %v2727 = vunpack.c.l.s4 1966171168
        %v2728 = vunpack.c.0.s8 %v2727
        %v2729 = vlaneseq
        %v2730 = vshrl.u32 %v2729, 7
        %v2731 = vsub.s32 %v2728, %v2730
        %v2732 = vrot.slane %v2718, %v2731
        %v2733 = vcombine.low %v2725, %v2732
        %v2735 = vunpack.c.l.s4 1966171168
        %v2736 = vunpack.c.0.s8 %v2735
        %v2737 = vlaneseq
        %v2738 = vshrl.u32 %v2737, 7
        %v2739 = vsub.s32 %v2736, %v2738
        %v2740 = vrot.slane %v2733, %v2739
        %v2743 = vadd.f32 %v2498, %v2716
        %v2744 = vadd.f32 %v2499, %v2740
        %2745 = vst [vmem:[#allocation2] sm:$0xff] %v2743
        %v2746 = vlaneseq
        %vm2747 = vcmp.ge.s32.totalorder %v2746, 0
        %vm2748 = vcmp.lt.s32.totalorder %v2746, 512
        %vm2749 = vmand %vm2747, %vm2748
        %2750 = vst.msk [vmem:[#allocation2 + $0x8] sm:$0xf] %vm2749, %v2744
        // Predicated region
        $region109: #{tpu_custom_call.1} parent=63 // pred_check
          %p2751 = pneg %p549
        $region110: #{tpu_custom_call.1} parent=63 // pred_check_branch
          %2753 = sbr.rel (%p2751) target = $region112
        $region111: #{tpu_custom_call.1} parent=63 // pred_region
          %v2754 = vld [vmem:[#allocation2] sm:$0xff]
          %v2755 = vld [vmem:[#allocation2 + $0x8] sm:$0xf]
          %v2756 = vmul.f32 %v2754, 0.015625
          %v2757 = vmul.f32 %v2755, 0.015625
          %v2760 = vlaneseq
          %v2761 = vshrl.u32 %v2760, 7
          %v2762 = vsub.s32 0, %v2761
          %v2763 = vrot.slane %v2756, %v2762
          %v2764 = vlaneseq
          %v2765 = vshrl.u32 %v2764, 7
          %v2766 = vsub.s32 1, %v2765
          %v2767 = vrot.slane %v2756, %v2766
          %v2768 = vlaneseq
          %v2769 = vshrl.u32 %v2768, 7
          %v2770 = vsub.s32 2, %v2769
          %v2771 = vrot.slane %v2756, %v2770
          %v2772 = vlaneseq
          %v2773 = vshrl.u32 %v2772, 7
          %v2774 = vsub.s32 3, %v2773
          %v2775 = vrot.slane %v2756, %v2774
          %v2776 = vlaneseq
          %v2777 = vshrl.u32 %v2776, 7
          %v2778 = vsub.s32 4, %v2777
          %v2779 = vrot.slane %v2756, %v2778
          %v2780 = vlaneseq
          %v2781 = vshrl.u32 %v2780, 7
          %v2782 = vsub.s32 5, %v2781
          %v2783 = vrot.slane %v2756, %v2782
          %v2784 = vlaneseq
          %v2785 = vshrl.u32 %v2784, 7
          %v2786 = vsub.s32 6, %v2785
          %v2787 = vrot.slane %v2756, %v2786
          %v2788 = vlaneseq
          %v2789 = vshrl.u32 %v2788, 7
          %v2790 = vsub.s32 7, %v2789
          %v2791 = vrot.slane %v2756, %v2790
          %v2792 = vlaneseq
          %v2793 = vshrl.u32 %v2792, 7
          %v2794 = vsub.s32 0, %v2793
          %v2795 = vrot.slane %v2757, %v2794
          %v2796 = vlaneseq
          %v2797 = vshrl.u32 %v2796, 7
          %v2798 = vsub.s32 1, %v2797
          %v2799 = vrot.slane %v2757, %v2798
          %v2800 = vlaneseq
          %v2801 = vshrl.u32 %v2800, 7
          %v2802 = vsub.s32 2, %v2801
          %v2803 = vrot.slane %v2757, %v2802
          %v2804 = vlaneseq
          %v2805 = vshrl.u32 %v2804, 7
          %v2806 = vsub.s32 3, %v2805
          %v2807 = vrot.slane %v2757, %v2806
          %v2820 = vpack.c.bf16 %v2763, %v2763
          %v2821 = vpack.c.bf16 %v2767, %v2767
          %v2822 = vpack.c.bf16 %v2771, %v2771
          %v2823 = vpack.c.bf16 %v2775, %v2775
          %v2824 = vpack.c.bf16 %v2779, %v2779
          %v2825 = vpack.c.bf16 %v2783, %v2783
          %v2826 = vpack.c.bf16 %v2787, %v2787
          %v2827 = vpack.c.bf16 %v2791, %v2791
          %v2828 = vpack.c.bf16 %v2795, %v2795
          %v2829 = vpack.c.bf16 %v2799, %v2799
          %v2830 = vpack.c.bf16 %v2803, %v2803
          %v2831 = vpack.c.bf16 %v2807, %v2807
          %v2832 = vld [vmem:[#allocation11] sm:$0xff]
          %v2833 = vld [vmem:[#allocation11 + $0x8] sm:$0xff]
          %v2834 = vld [vmem:[#allocation11 + $0x10] sm:$0xf]
          %v2835 = vld [vmem:[#allocation11 + $0x14] sm:$0xff]
          %v2836 = vld [vmem:[#allocation11 + $0x1c] sm:$0xff]
          %v2837 = vld [vmem:[#allocation11 + $0x24] sm:$0xf]
          %v2838 = vld [vmem:[#allocation11 + $0x28] sm:$0xff]
          %v2839 = vld [vmem:[#allocation11 + $0x30] sm:$0xff]
          %v2840 = vld [vmem:[#allocation11 + $0x38] sm:$0xf]
          %v2841 = vld [vmem:[#allocation11 + $0x3c] sm:$0xff]
          %v2842 = vld [vmem:[#allocation11 + $0x44] sm:$0xff]
          %v2843 = vld [vmem:[#allocation11 + $0x4c] sm:$0xf]
          %v2844 = vld [vmem:[#allocation11 + $0x50] sm:$0xff]
          %v2845 = vld [vmem:[#allocation11 + $0x58] sm:$0xff]
          %v2846 = vld [vmem:[#allocation11 + $0x60] sm:$0xf]
          %v2847 = vld [vmem:[#allocation11 + $0x64] sm:$0xff]
          %v2848 = vld [vmem:[#allocation11 + $0x6c] sm:$0xff]
          %v2849 = vld [vmem:[#allocation11 + $0x74] sm:$0xf]
          %v2850 = vld [vmem:[#allocation11 + $0x78] sm:$0xff]
          %v2851 = vld [vmem:[#allocation11 + $0x80] sm:$0xff]
          %v2852 = vld [vmem:[#allocation11 + $0x88] sm:$0xf]
          %v2853 = vld [vmem:[#allocation11 + $0x8c] sm:$0xff]
          %v2854 = vld [vmem:[#allocation11 + $0x94] sm:$0xff]
          %v2855 = vld [vmem:[#allocation11 + $0x9c] sm:$0xf]
          %v2856 = vld [vmem:[#allocation11 + $0xa0] sm:$0xff]
          %v2857 = vld [vmem:[#allocation11 + $0xa8] sm:$0xff]
          %v2858 = vld [vmem:[#allocation11 + $0xb0] sm:$0xf]
          %v2859 = vld [vmem:[#allocation11 + $0xb4] sm:$0xff]
          %v2860 = vld [vmem:[#allocation11 + $0xbc] sm:$0xff]
          %v2861 = vld [vmem:[#allocation11 + $0xc4] sm:$0xf]
          %v2862 = vld [vmem:[#allocation11 + $0xc8] sm:$0xff]
          %v2863 = vld [vmem:[#allocation11 + $0xd0] sm:$0xff]
          %v2864 = vld [vmem:[#allocation11 + $0xd8] sm:$0xf]
          %v2865 = vld [vmem:[#allocation11 + $0xdc] sm:$0xff]
          %v2866 = vld [vmem:[#allocation11 + $0xe4] sm:$0xff]
          %v2867 = vld [vmem:[#allocation11 + $0xec] sm:$0xf]
          %v2868 = vld [vmem:[#allocation11 + $0xf0] sm:$0xff]
          %v2869 = vld [vmem:[#allocation11 + $0xf8] sm:$0xff]
          %v2870 = vld [vmem:[#allocation11 + $0x100] sm:$0xf]
          %v2871 = vld [vmem:[#allocation11 + $0x104] sm:$0xff]
          %v2872 = vld [vmem:[#allocation11 + $0x10c] sm:$0xff]
          %v2873 = vld [vmem:[#allocation11 + $0x114] sm:$0xf]
          %v2874 = vld [vmem:[#allocation11 + $0x118] sm:$0xff]
          %v2875 = vld [vmem:[#allocation11 + $0x120] sm:$0xff]
          %v2876 = vld [vmem:[#allocation11 + $0x128] sm:$0xf]
          %v2877 = vld [vmem:[#allocation11 + $0x12c] sm:$0xff]
          %v2878 = vld [vmem:[#allocation11 + $0x134] sm:$0xff]
          %v2879 = vld [vmem:[#allocation11 + $0x13c] sm:$0xf]
          %v2880 = vld [vmem:[#allocation11 + $0x140] sm:$0xff]
          %v2881 = vld [vmem:[#allocation11 + $0x148] sm:$0xff]
          %v2882 = vld [vmem:[#allocation11 + $0x150] sm:$0xf]
          %v2883 = vld [vmem:[#allocation11 + $0x154] sm:$0xff]
          %v2884 = vld [vmem:[#allocation11 + $0x15c] sm:$0xff]
          %v2885 = vld [vmem:[#allocation11 + $0x164] sm:$0xf]
          %v2886 = vld [vmem:[#allocation11 + $0x168] sm:$0xff]
          %v2887 = vld [vmem:[#allocation11 + $0x170] sm:$0xff]
          %v2888 = vld [vmem:[#allocation11 + $0x178] sm:$0xf]
          %v2889 = vld [vmem:[#allocation11 + $0x17c] sm:$0xff]
          %v2890 = vld [vmem:[#allocation11 + $0x184] sm:$0xff]
          %v2891 = vld [vmem:[#allocation11 + $0x18c] sm:$0xf]
          %v2892 = vld [vmem:[#allocation11 + $0x190] sm:$0xff]
          %v2893 = vld [vmem:[#allocation11 + $0x198] sm:$0xff]
          %v2894 = vld [vmem:[#allocation11 + $0x1a0] sm:$0xf]
          %v2895 = vld [vmem:[#allocation11 + $0x1a4] sm:$0xff]
          %v2896 = vld [vmem:[#allocation11 + $0x1ac] sm:$0xff]
          %v2897 = vld [vmem:[#allocation11 + $0x1b4] sm:$0xf]
          %v2898 = vld [vmem:[#allocation11 + $0x1b8] sm:$0xff]
          %v2899 = vld [vmem:[#allocation11 + $0x1c0] sm:$0xff]
          %v2900 = vld [vmem:[#allocation11 + $0x1c8] sm:$0xf]
          %v2901 = vld [vmem:[#allocation11 + $0x1cc] sm:$0xff]
          %v2902 = vld [vmem:[#allocation11 + $0x1d4] sm:$0xff]
          %v2903 = vld [vmem:[#allocation11 + $0x1dc] sm:$0xf]
          %v2904 = vld [vmem:[#allocation11 + $0x1e0] sm:$0xff]
          %v2905 = vld [vmem:[#allocation11 + $0x1e8] sm:$0xff]
          %v2906 = vld [vmem:[#allocation11 + $0x1f0] sm:$0xf]
          %v2907 = vld [vmem:[#allocation11 + $0x1f4] sm:$0xff]
          %v2908 = vld [vmem:[#allocation11 + $0x1fc] sm:$0xff]
          %v2909 = vld [vmem:[#allocation11 + $0x204] sm:$0xf]
          %v2910 = vld [vmem:[#allocation11 + $0x208] sm:$0xff]
          %v2911 = vld [vmem:[#allocation11 + $0x210] sm:$0xff]
          %v2912 = vld [vmem:[#allocation11 + $0x218] sm:$0xf]
          %v2913 = vld [vmem:[#allocation11 + $0x21c] sm:$0xff]
          %v2914 = vld [vmem:[#allocation11 + $0x224] sm:$0xff]
          %v2915 = vld [vmem:[#allocation11 + $0x22c] sm:$0xf]
          %v2916 = vld [vmem:[#allocation11 + $0x230] sm:$0xff]
          %v2917 = vld [vmem:[#allocation11 + $0x238] sm:$0xff]
          %v2918 = vld [vmem:[#allocation11 + $0x240] sm:$0xf]
          %v2919 = vld [vmem:[#allocation11 + $0x244] sm:$0xff]
          %v2920 = vld [vmem:[#allocation11 + $0x24c] sm:$0xff]
          %v2921 = vld [vmem:[#allocation11 + $0x254] sm:$0xf]
          %v2922 = vld [vmem:[#allocation11 + $0x258] sm:$0xff]
          %v2923 = vld [vmem:[#allocation11 + $0x260] sm:$0xff]
          %v2924 = vld [vmem:[#allocation11 + $0x268] sm:$0xf]
          %v2925 = vld [vmem:[#allocation11 + $0x26c] sm:$0xff]
          %v2926 = vld [vmem:[#allocation11 + $0x274] sm:$0xff]
          %v2927 = vld [vmem:[#allocation11 + $0x27c] sm:$0xf]
          %v2928 = vld [vmem:[#allocation11 + $0x280] sm:$0xff]
          %v2929 = vld [vmem:[#allocation11 + $0x288] sm:$0xff]
          %v2930 = vld [vmem:[#allocation11 + $0x290] sm:$0xf]
          %v2931 = vld [vmem:[#allocation11 + $0x294] sm:$0xff]
          %v2932 = vld [vmem:[#allocation11 + $0x29c] sm:$0xff]
          %v2933 = vld [vmem:[#allocation11 + $0x2a4] sm:$0xf]
          %v2934 = vld [vmem:[#allocation11 + $0x2a8] sm:$0xff]
          %v2935 = vld [vmem:[#allocation11 + $0x2b0] sm:$0xff]
          %v2936 = vld [vmem:[#allocation11 + $0x2b8] sm:$0xf]
          %v2937 = vld [vmem:[#allocation11 + $0x2bc] sm:$0xff]
          %v2938 = vld [vmem:[#allocation11 + $0x2c4] sm:$0xff]
          %v2939 = vld [vmem:[#allocation11 + $0x2cc] sm:$0xf]
          %v2940 = vld [vmem:[#allocation11 + $0x2d0] sm:$0xff]
          %v2941 = vld [vmem:[#allocation11 + $0x2d8] sm:$0xff]
          %v2942 = vld [vmem:[#allocation11 + $0x2e0] sm:$0xf]
          %v2943 = vld [vmem:[#allocation11 + $0x2e4] sm:$0xff]
          %v2944 = vld [vmem:[#allocation11 + $0x2ec] sm:$0xff]
          %v2945 = vld [vmem:[#allocation11 + $0x2f4] sm:$0xf]
          %v2946 = vld [vmem:[#allocation11 + $0x2f8] sm:$0xff]
          %v2947 = vld [vmem:[#allocation11 + $0x300] sm:$0xff]
          %v2948 = vld [vmem:[#allocation11 + $0x308] sm:$0xf]
          %v2949 = vld [vmem:[#allocation11 + $0x30c] sm:$0xff]
          %v2950 = vld [vmem:[#allocation11 + $0x314] sm:$0xff]
          %v2951 = vld [vmem:[#allocation11 + $0x31c] sm:$0xf]
          %v2952 = vld [vmem:[#allocation11 + $0x320] sm:$0xff]
          %v2953 = vld [vmem:[#allocation11 + $0x328] sm:$0xff]
          %v2954 = vld [vmem:[#allocation11 + $0x330] sm:$0xf]
          %v2955 = vld [vmem:[#allocation11 + $0x334] sm:$0xff]
          %v2956 = vld [vmem:[#allocation11 + $0x33c] sm:$0xff]
          %v2957 = vld [vmem:[#allocation11 + $0x344] sm:$0xf]
          %v2958 = vld [vmem:[#allocation11 + $0x348] sm:$0xff]
          %v2959 = vld [vmem:[#allocation11 + $0x350] sm:$0xff]
          %v2960 = vld [vmem:[#allocation11 + $0x358] sm:$0xf]
          %v2961 = vld [vmem:[#allocation11 + $0x35c] sm:$0xff]
          %v2962 = vld [vmem:[#allocation11 + $0x364] sm:$0xff]
          %v2963 = vld [vmem:[#allocation11 + $0x36c] sm:$0xf]
          %v2964 = vld [vmem:[#allocation11 + $0x370] sm:$0xff]
          %v2965 = vld [vmem:[#allocation11 + $0x378] sm:$0xff]
          %v2966 = vld [vmem:[#allocation11 + $0x380] sm:$0xf]
          %v2967 = vld [vmem:[#allocation11 + $0x384] sm:$0xff]
          %v2968 = vld [vmem:[#allocation11 + $0x38c] sm:$0xff]
          %v2969 = vld [vmem:[#allocation11 + $0x394] sm:$0xf]
          %v2970 = vld [vmem:[#allocation11 + $0x398] sm:$0xff]
          %v2971 = vld [vmem:[#allocation11 + $0x3a0] sm:$0xff]
          %v2972 = vld [vmem:[#allocation11 + $0x3a8] sm:$0xf]
          %v2973 = vld [vmem:[#allocation11 + $0x3ac] sm:$0xff]
          %v2974 = vld [vmem:[#allocation11 + $0x3b4] sm:$0xff]
          %v2975 = vld [vmem:[#allocation11 + $0x3bc] sm:$0xf]
          %v2976 = vld [vmem:[#allocation11 + $0x3c0] sm:$0xff]
          %v2977 = vld [vmem:[#allocation11 + $0x3c8] sm:$0xff]
          %v2978 = vld [vmem:[#allocation11 + $0x3d0] sm:$0xf]
          %v2979 = vld [vmem:[#allocation11 + $0x3d4] sm:$0xff]
          %v2980 = vld [vmem:[#allocation11 + $0x3dc] sm:$0xff]
          %v2981 = vld [vmem:[#allocation11 + $0x3e4] sm:$0xf]
          %v2982 = vld [vmem:[#allocation11 + $0x3e8] sm:$0xff]
          %v2983 = vld [vmem:[#allocation11 + $0x3f0] sm:$0xff]
          %v2984 = vld [vmem:[#allocation11 + $0x3f8] sm:$0xf]
          %v2985 = vld [vmem:[#allocation11 + $0x3fc] sm:$0xff]
          %v2986 = vld [vmem:[#allocation11 + $0x404] sm:$0xff]
          %v2987 = vld [vmem:[#allocation11 + $0x40c] sm:$0xf]
          %v2988 = vld [vmem:[#allocation11 + $0x410] sm:$0xff]
          %v2989 = vld [vmem:[#allocation11 + $0x418] sm:$0xff]
          %v2990 = vld [vmem:[#allocation11 + $0x420] sm:$0xf]
          %v2991 = vld [vmem:[#allocation11 + $0x424] sm:$0xff]
          %v2992 = vld [vmem:[#allocation11 + $0x42c] sm:$0xff]
          %v2993 = vld [vmem:[#allocation11 + $0x434] sm:$0xf]
          %v2994 = vld [vmem:[#allocation11 + $0x438] sm:$0xff]
          %v2995 = vld [vmem:[#allocation11 + $0x440] sm:$0xff]
          %v2996 = vld [vmem:[#allocation11 + $0x448] sm:$0xf]
          %v2997 = vld [vmem:[#allocation11 + $0x44c] sm:$0xff]
          %v2998 = vld [vmem:[#allocation11 + $0x454] sm:$0xff]
          %v2999 = vld [vmem:[#allocation11 + $0x45c] sm:$0xf]
          %v3000 = vld [vmem:[#allocation11 + $0x460] sm:$0xff]
          %v3001 = vld [vmem:[#allocation11 + $0x468] sm:$0xff]
          %v3002 = vld [vmem:[#allocation11 + $0x470] sm:$0xf]
          %v3003 = vld [vmem:[#allocation11 + $0x474] sm:$0xff]
          %v3004 = vld [vmem:[#allocation11 + $0x47c] sm:$0xff]
          %v3005 = vld [vmem:[#allocation11 + $0x484] sm:$0xf]
          %v3006 = vld [vmem:[#allocation11 + $0x488] sm:$0xff]
          %v3007 = vld [vmem:[#allocation11 + $0x490] sm:$0xff]
          %v3008 = vld [vmem:[#allocation11 + $0x498] sm:$0xf]
          %v3009 = vld [vmem:[#allocation11 + $0x49c] sm:$0xff]
          %v3010 = vld [vmem:[#allocation11 + $0x4a4] sm:$0xff]
          %v3011 = vld [vmem:[#allocation11 + $0x4ac] sm:$0xf]
          %v3012 = vld [vmem:[#allocation11 + $0x4b0] sm:$0xff]
          %v3013 = vld [vmem:[#allocation11 + $0x4b8] sm:$0xff]
          %v3014 = vld [vmem:[#allocation11 + $0x4c0] sm:$0xf]
          %v3015 = vld [vmem:[#allocation11 + $0x4c4] sm:$0xff]
          %v3016 = vld [vmem:[#allocation11 + $0x4cc] sm:$0xff]
          %v3017 = vld [vmem:[#allocation11 + $0x4d4] sm:$0xf]
          %v3018 = vld [vmem:[#allocation11 + $0x4d8] sm:$0xff]
          %v3019 = vld [vmem:[#allocation11 + $0x4e0] sm:$0xff]
          %v3020 = vld [vmem:[#allocation11 + $0x4e8] sm:$0xf]
          %v3021 = vld [vmem:[#allocation11 + $0x4ec] sm:$0xff]
          %v3022 = vld [vmem:[#allocation11 + $0x4f4] sm:$0xff]
          %v3023 = vld [vmem:[#allocation11 + $0x4fc] sm:$0xf]
          %v3024 = vld [vmem:[#allocation11 + $0x500] sm:$0xff]
          %v3025 = vld [vmem:[#allocation11 + $0x508] sm:$0xff]
          %v3026 = vld [vmem:[#allocation11 + $0x510] sm:$0xf]
          %v3027 = vld [vmem:[#allocation11 + $0x514] sm:$0xff]
          %v3028 = vld [vmem:[#allocation11 + $0x51c] sm:$0xff]
          %v3029 = vld [vmem:[#allocation11 + $0x524] sm:$0xf]
          %v3030 = vld [vmem:[#allocation11 + $0x528] sm:$0xff]
          %v3031 = vld [vmem:[#allocation11 + $0x530] sm:$0xff]
          %v3032 = vld [vmem:[#allocation11 + $0x538] sm:$0xf]
          %v3033 = vld [vmem:[#allocation11 + $0x53c] sm:$0xff]
          %v3034 = vld [vmem:[#allocation11 + $0x544] sm:$0xff]
          %v3035 = vld [vmem:[#allocation11 + $0x54c] sm:$0xf]
          %v3036 = vld [vmem:[#allocation11 + $0x550] sm:$0xff]
          %v3037 = vld [vmem:[#allocation11 + $0x558] sm:$0xff]
          %v3038 = vld [vmem:[#allocation11 + $0x560] sm:$0xf]
          %v3039 = vld [vmem:[#allocation11 + $0x564] sm:$0xff]
          %v3040 = vld [vmem:[#allocation11 + $0x56c] sm:$0xff]
          %v3041 = vld [vmem:[#allocation11 + $0x574] sm:$0xf]
          %v3042 = vld [vmem:[#allocation11 + $0x578] sm:$0xff]
          %v3043 = vld [vmem:[#allocation11 + $0x580] sm:$0xff]
          %v3044 = vld [vmem:[#allocation11 + $0x588] sm:$0xf]
          %v3045 = vld [vmem:[#allocation11 + $0x58c] sm:$0xff]
          %v3046 = vld [vmem:[#allocation11 + $0x594] sm:$0xff]
          %v3047 = vld [vmem:[#allocation11 + $0x59c] sm:$0xf]
          %v3048 = vld [vmem:[#allocation11 + $0x5a0] sm:$0xff]
          %v3049 = vld [vmem:[#allocation11 + $0x5a8] sm:$0xff]
          %v3050 = vld [vmem:[#allocation11 + $0x5b0] sm:$0xf]
          %v3051 = vld [vmem:[#allocation11 + $0x5b4] sm:$0xff]
          %v3052 = vld [vmem:[#allocation11 + $0x5bc] sm:$0xff]
          %v3053 = vld [vmem:[#allocation11 + $0x5c4] sm:$0xf]
          %v3054 = vld [vmem:[#allocation11 + $0x5c8] sm:$0xff]
          %v3055 = vld [vmem:[#allocation11 + $0x5d0] sm:$0xff]
          %v3056 = vld [vmem:[#allocation11 + $0x5d8] sm:$0xf]
          %v3057 = vld [vmem:[#allocation11 + $0x5dc] sm:$0xff]
          %v3058 = vld [vmem:[#allocation11 + $0x5e4] sm:$0xff]
          %v3059 = vld [vmem:[#allocation11 + $0x5ec] sm:$0xf]
          %v3060 = vld [vmem:[#allocation11 + $0x5f0] sm:$0xff]
          %v3061 = vld [vmem:[#allocation11 + $0x5f8] sm:$0xff]
          %v3062 = vld [vmem:[#allocation11 + $0x600] sm:$0xf]
          %v3063 = vld [vmem:[#allocation11 + $0x604] sm:$0xff]
          %v3064 = vld [vmem:[#allocation11 + $0x60c] sm:$0xff]
          %v3065 = vld [vmem:[#allocation11 + $0x614] sm:$0xf]
          %v3066 = vld [vmem:[#allocation11 + $0x618] sm:$0xff]
          %v3067 = vld [vmem:[#allocation11 + $0x620] sm:$0xff]
          %v3068 = vld [vmem:[#allocation11 + $0x628] sm:$0xf]
          %v3069 = vld [vmem:[#allocation11 + $0x62c] sm:$0xff]
          %v3070 = vld [vmem:[#allocation11 + $0x634] sm:$0xff]
          %v3071 = vld [vmem:[#allocation11 + $0x63c] sm:$0xf]
          %v3072 = vld [vmem:[#allocation11 + $0x640] sm:$0xff]
          %v3073 = vld [vmem:[#allocation11 + $0x648] sm:$0xff]
          %v3074 = vld [vmem:[#allocation11 + $0x650] sm:$0xf]
          %v3075 = vld [vmem:[#allocation11 + $0x654] sm:$0xff]
          %v3076 = vld [vmem:[#allocation11 + $0x65c] sm:$0xff]
          %v3077 = vld [vmem:[#allocation11 + $0x664] sm:$0xf]
          %v3078 = vld [vmem:[#allocation11 + $0x668] sm:$0xff]
          %v3079 = vld [vmem:[#allocation11 + $0x670] sm:$0xff]
          %v3080 = vld [vmem:[#allocation11 + $0x678] sm:$0xf]
          %v3081 = vld [vmem:[#allocation11 + $0x67c] sm:$0xff]
          %v3082 = vld [vmem:[#allocation11 + $0x684] sm:$0xff]
          %v3083 = vld [vmem:[#allocation11 + $0x68c] sm:$0xf]
          %v3084 = vld [vmem:[#allocation11 + $0x690] sm:$0xff]
          %v3085 = vld [vmem:[#allocation11 + $0x698] sm:$0xff]
          %v3086 = vld [vmem:[#allocation11 + $0x6a0] sm:$0xf]
          %v3087 = vld [vmem:[#allocation11 + $0x6a4] sm:$0xff]
          %v3088 = vld [vmem:[#allocation11 + $0x6ac] sm:$0xff]
          %v3089 = vld [vmem:[#allocation11 + $0x6b4] sm:$0xf]
          %v3090 = vld [vmem:[#allocation11 + $0x6b8] sm:$0xff]
          %v3091 = vld [vmem:[#allocation11 + $0x6c0] sm:$0xff]
          %v3092 = vld [vmem:[#allocation11 + $0x6c8] sm:$0xf]
          %v3093 = vld [vmem:[#allocation11 + $0x6cc] sm:$0xff]
          %v3094 = vld [vmem:[#allocation11 + $0x6d4] sm:$0xff]
          %v3095 = vld [vmem:[#allocation11 + $0x6dc] sm:$0xf]
          %v3096 = vld [vmem:[#allocation11 + $0x6e0] sm:$0xff]
          %v3097 = vld [vmem:[#allocation11 + $0x6e8] sm:$0xff]
          %v3098 = vld [vmem:[#allocation11 + $0x6f0] sm:$0xf]
          %v3099 = vld [vmem:[#allocation11 + $0x6f4] sm:$0xff]
          %v3100 = vld [vmem:[#allocation11 + $0x6fc] sm:$0xff]
          %v3101 = vld [vmem:[#allocation11 + $0x704] sm:$0xf]
          %v3102 = vld [vmem:[#allocation11 + $0x708] sm:$0xff]
          %v3103 = vld [vmem:[#allocation11 + $0x710] sm:$0xff]
          %v3104 = vld [vmem:[#allocation11 + $0x718] sm:$0xf]
          %v3105 = vld [vmem:[#allocation11 + $0x71c] sm:$0xff]
          %v3106 = vld [vmem:[#allocation11 + $0x724] sm:$0xff]
          %v3107 = vld [vmem:[#allocation11 + $0x72c] sm:$0xf]
          %v3108 = vld [vmem:[#allocation11 + $0x730] sm:$0xff]
          %v3109 = vld [vmem:[#allocation11 + $0x738] sm:$0xff]
          %v3110 = vld [vmem:[#allocation11 + $0x740] sm:$0xf]
          %v3111 = vld [vmem:[#allocation11 + $0x744] sm:$0xff]
          %v3112 = vld [vmem:[#allocation11 + $0x74c] sm:$0xff]
          %v3113 = vld [vmem:[#allocation11 + $0x754] sm:$0xf]
          %v3114 = vld [vmem:[#allocation11 + $0x758] sm:$0xff]
          %v3115 = vld [vmem:[#allocation11 + $0x760] sm:$0xff]
          %v3116 = vld [vmem:[#allocation11 + $0x768] sm:$0xf]
          %v3117 = vld [vmem:[#allocation11 + $0x76c] sm:$0xff]
          %v3118 = vld [vmem:[#allocation11 + $0x774] sm:$0xff]
          %v3119 = vld [vmem:[#allocation11 + $0x77c] sm:$0xf]
          %v3120 = vld [vmem:[#allocation11 + $0x780] sm:$0xff]
          %v3121 = vld [vmem:[#allocation11 + $0x788] sm:$0xff]
          %v3122 = vld [vmem:[#allocation11 + $0x790] sm:$0xf]
          %v3123 = vld [vmem:[#allocation11 + $0x794] sm:$0xff]
          %v3124 = vld [vmem:[#allocation11 + $0x79c] sm:$0xff]
          %v3125 = vld [vmem:[#allocation11 + $0x7a4] sm:$0xf]
          %v3126 = vld [vmem:[#allocation11 + $0x7a8] sm:$0xff]
          %v3127 = vld [vmem:[#allocation11 + $0x7b0] sm:$0xff]
          %v3128 = vld [vmem:[#allocation11 + $0x7b8] sm:$0xf]
          %v3129 = vld [vmem:[#allocation11 + $0x7bc] sm:$0xff]
          %v3130 = vld [vmem:[#allocation11 + $0x7c4] sm:$0xff]
          %v3131 = vld [vmem:[#allocation11 + $0x7cc] sm:$0xf]
          %v3132 = vld [vmem:[#allocation11 + $0x7d0] sm:$0xff]
          %v3133 = vld [vmem:[#allocation11 + $0x7d8] sm:$0xff]
          %v3134 = vld [vmem:[#allocation11 + $0x7e0] sm:$0xf]
          %v3135 = vld [vmem:[#allocation11 + $0x7e4] sm:$0xff]
          %v3136 = vld [vmem:[#allocation11 + $0x7ec] sm:$0xff]
          %v3137 = vld [vmem:[#allocation11 + $0x7f4] sm:$0xf]
          %v3138 = vld [vmem:[#allocation11 + $0x7f8] sm:$0xff]
          %v3139 = vld [vmem:[#allocation11 + $0x800] sm:$0xff]
          %v3140 = vld [vmem:[#allocation11 + $0x808] sm:$0xf]
          %v3141 = vld [vmem:[#allocation11 + $0x80c] sm:$0xff]
          %v3142 = vld [vmem:[#allocation11 + $0x814] sm:$0xff]
          %v3143 = vld [vmem:[#allocation11 + $0x81c] sm:$0xf]
          %v3144 = vld [vmem:[#allocation11 + $0x820] sm:$0xff]
          %v3145 = vld [vmem:[#allocation11 + $0x828] sm:$0xff]
          %v3146 = vld [vmem:[#allocation11 + $0x830] sm:$0xf]
          %v3147 = vld [vmem:[#allocation11 + $0x834] sm:$0xff]
          %v3148 = vld [vmem:[#allocation11 + $0x83c] sm:$0xff]
          %v3149 = vld [vmem:[#allocation11 + $0x844] sm:$0xf]
          %v3150 = vld [vmem:[#allocation11 + $0x848] sm:$0xff]
          %v3151 = vld [vmem:[#allocation11 + $0x850] sm:$0xff]
          %v3152 = vld [vmem:[#allocation11 + $0x858] sm:$0xf]
          %v3153 = vld [vmem:[#allocation11 + $0x85c] sm:$0xff]
          %v3154 = vld [vmem:[#allocation11 + $0x864] sm:$0xff]
          %v3155 = vld [vmem:[#allocation11 + $0x86c] sm:$0xf]
          %v3156 = vld [vmem:[#allocation11 + $0x870] sm:$0xff]
          %v3157 = vld [vmem:[#allocation11 + $0x878] sm:$0xff]
          %v3158 = vld [vmem:[#allocation11 + $0x880] sm:$0xf]
          %v3159 = vld [vmem:[#allocation11 + $0x884] sm:$0xff]
          %v3160 = vld [vmem:[#allocation11 + $0x88c] sm:$0xff]
          %v3161 = vld [vmem:[#allocation11 + $0x894] sm:$0xf]
          %v3162 = vld [vmem:[#allocation11 + $0x898] sm:$0xff]
          %v3163 = vld [vmem:[#allocation11 + $0x8a0] sm:$0xff]
          %v3164 = vld [vmem:[#allocation11 + $0x8a8] sm:$0xf]
          %v3165 = vld [vmem:[#allocation11 + $0x8ac] sm:$0xff]
          %v3166 = vld [vmem:[#allocation11 + $0x8b4] sm:$0xff]
          %v3167 = vld [vmem:[#allocation11 + $0x8bc] sm:$0xf]
          %v3168 = vld [vmem:[#allocation11 + $0x8c0] sm:$0xff]
          %v3169 = vld [vmem:[#allocation11 + $0x8c8] sm:$0xff]
          %v3170 = vld [vmem:[#allocation11 + $0x8d0] sm:$0xf]
          %v3171 = vld [vmem:[#allocation11 + $0x8d4] sm:$0xff]
          %v3172 = vld [vmem:[#allocation11 + $0x8dc] sm:$0xff]
          %v3173 = vld [vmem:[#allocation11 + $0x8e4] sm:$0xf]
          %v3174 = vld [vmem:[#allocation11 + $0x8e8] sm:$0xff]
          %v3175 = vld [vmem:[#allocation11 + $0x8f0] sm:$0xff]
          %v3176 = vld [vmem:[#allocation11 + $0x8f8] sm:$0xf]
          %v3177 = vld [vmem:[#allocation11 + $0x8fc] sm:$0xff]
          %v3178 = vld [vmem:[#allocation11 + $0x904] sm:$0xff]
          %v3179 = vld [vmem:[#allocation11 + $0x90c] sm:$0xf]
          %v3180 = vld [vmem:[#allocation11 + $0x910] sm:$0xff]
          %v3181 = vld [vmem:[#allocation11 + $0x918] sm:$0xff]
          %v3182 = vld [vmem:[#allocation11 + $0x920] sm:$0xf]
          %v3183 = vld [vmem:[#allocation11 + $0x924] sm:$0xff]
          %v3184 = vld [vmem:[#allocation11 + $0x92c] sm:$0xff]
          %v3185 = vld [vmem:[#allocation11 + $0x934] sm:$0xf]
          %v3186 = vld [vmem:[#allocation11 + $0x938] sm:$0xff]
          %v3187 = vld [vmem:[#allocation11 + $0x940] sm:$0xff]
          %v3188 = vld [vmem:[#allocation11 + $0x948] sm:$0xf]
          %v3189 = vld [vmem:[#allocation11 + $0x94c] sm:$0xff]
          %v3190 = vld [vmem:[#allocation11 + $0x954] sm:$0xff]
          %v3191 = vld [vmem:[#allocation11 + $0x95c] sm:$0xf]
          %v3192 = vld [vmem:[#allocation11 + $0x960] sm:$0xff]
          %v3193 = vld [vmem:[#allocation11 + $0x968] sm:$0xff]
          %v3194 = vld [vmem:[#allocation11 + $0x970] sm:$0xf]
          %v3195 = vld [vmem:[#allocation11 + $0x974] sm:$0xff]
          %v3196 = vld [vmem:[#allocation11 + $0x97c] sm:$0xff]
          %v3197 = vld [vmem:[#allocation11 + $0x984] sm:$0xf]
          %v3198 = vld [vmem:[#allocation11 + $0x988] sm:$0xff]
          %v3199 = vld [vmem:[#allocation11 + $0x990] sm:$0xff]
          %v3200 = vld [vmem:[#allocation11 + $0x998] sm:$0xf]
          %v3201 = vld [vmem:[#allocation11 + $0x99c] sm:$0xff]
          %v3202 = vld [vmem:[#allocation11 + $0x9a4] sm:$0xff]
          %v3203 = vld [vmem:[#allocation11 + $0x9ac] sm:$0xf]
          %v3204 = vld [vmem:[#allocation11 + $0x9b0] sm:$0xff]
          %v3205 = vld [vmem:[#allocation11 + $0x9b8] sm:$0xff]
          %v3206 = vld [vmem:[#allocation11 + $0x9c0] sm:$0xf]
          %v3207 = vld [vmem:[#allocation11 + $0x9c4] sm:$0xff]
          %v3208 = vld [vmem:[#allocation11 + $0x9cc] sm:$0xff]
          %v3209 = vld [vmem:[#allocation11 + $0x9d4] sm:$0xf]
          %v3210 = vld [vmem:[#allocation11 + $0x9d8] sm:$0xff]
          %v3211 = vld [vmem:[#allocation11 + $0x9e0] sm:$0xff]
          %v3212 = vld [vmem:[#allocation11 + $0x9e8] sm:$0xf]
          %v3213 = vld [vmem:[#allocation11 + $0x9ec] sm:$0xff]
          %v3214 = vld [vmem:[#allocation11 + $0x9f4] sm:$0xff]
          %v3215 = vld [vmem:[#allocation11 + $0x9fc] sm:$0xf]
          %v3216 = vld [vmem:[#allocation11 + $0xa00] sm:$0xff]
          %v3217 = vld [vmem:[#allocation11 + $0xa08] sm:$0xff]
          %v3218 = vld [vmem:[#allocation11 + $0xa10] sm:$0xf]
          %v3219 = vld [vmem:[#allocation11 + $0xa14] sm:$0xff]
          %v3220 = vld [vmem:[#allocation11 + $0xa1c] sm:$0xff]
          %v3221 = vld [vmem:[#allocation11 + $0xa24] sm:$0xf]
          %v3222 = vld [vmem:[#allocation11 + $0xa28] sm:$0xff]
          %v3223 = vld [vmem:[#allocation11 + $0xa30] sm:$0xff]
          %v3224 = vld [vmem:[#allocation11 + $0xa38] sm:$0xf]
          %v3225 = vld [vmem:[#allocation11 + $0xa3c] sm:$0xff]
          %v3226 = vld [vmem:[#allocation11 + $0xa44] sm:$0xff]
          %v3227 = vld [vmem:[#allocation11 + $0xa4c] sm:$0xf]
          %v3228 = vld [vmem:[#allocation11 + $0xa50] sm:$0xff]
          %v3229 = vld [vmem:[#allocation11 + $0xa58] sm:$0xff]
          %v3230 = vld [vmem:[#allocation11 + $0xa60] sm:$0xf]
          %v3231 = vld [vmem:[#allocation11 + $0xa64] sm:$0xff]
          %v3232 = vld [vmem:[#allocation11 + $0xa6c] sm:$0xff]
          %v3233 = vld [vmem:[#allocation11 + $0xa74] sm:$0xf]
          %v3234 = vld [vmem:[#allocation11 + $0xa78] sm:$0xff]
          %v3235 = vld [vmem:[#allocation11 + $0xa80] sm:$0xff]
          %v3236 = vld [vmem:[#allocation11 + $0xa88] sm:$0xf]
          %v3237 = vld [vmem:[#allocation11 + $0xa8c] sm:$0xff]
          %v3238 = vld [vmem:[#allocation11 + $0xa94] sm:$0xff]
          %v3239 = vld [vmem:[#allocation11 + $0xa9c] sm:$0xf]
          %v3240 = vld [vmem:[#allocation11 + $0xaa0] sm:$0xff]
          %v3241 = vld [vmem:[#allocation11 + $0xaa8] sm:$0xff]
          %v3242 = vld [vmem:[#allocation11 + $0xab0] sm:$0xf]
          %v3243 = vld [vmem:[#allocation11 + $0xab4] sm:$0xff]
          %v3244 = vld [vmem:[#allocation11 + $0xabc] sm:$0xff]
          %v3245 = vld [vmem:[#allocation11 + $0xac4] sm:$0xf]
          %v3246 = vld [vmem:[#allocation11 + $0xac8] sm:$0xff]
          %v3247 = vld [vmem:[#allocation11 + $0xad0] sm:$0xff]
          %v3248 = vld [vmem:[#allocation11 + $0xad8] sm:$0xf]
          %v3249 = vld [vmem:[#allocation11 + $0xadc] sm:$0xff]
          %v3250 = vld [vmem:[#allocation11 + $0xae4] sm:$0xff]
          %v3251 = vld [vmem:[#allocation11 + $0xaec] sm:$0xf]
          %v3252 = vld [vmem:[#allocation11 + $0xaf0] sm:$0xff]
          %v3253 = vld [vmem:[#allocation11 + $0xaf8] sm:$0xff]
          %v3254 = vld [vmem:[#allocation11 + $0xb00] sm:$0xf]
          %v3255 = vld [vmem:[#allocation11 + $0xb04] sm:$0xff]
          %v3256 = vld [vmem:[#allocation11 + $0xb0c] sm:$0xff]
          %v3257 = vld [vmem:[#allocation11 + $0xb14] sm:$0xf]
          %v3258 = vld [vmem:[#allocation11 + $0xb18] sm:$0xff]
          %v3259 = vld [vmem:[#allocation11 + $0xb20] sm:$0xff]
          %v3260 = vld [vmem:[#allocation11 + $0xb28] sm:$0xf]
          %v3261 = vld [vmem:[#allocation11 + $0xb2c] sm:$0xff]
          %v3262 = vld [vmem:[#allocation11 + $0xb34] sm:$0xff]
          %v3263 = vld [vmem:[#allocation11 + $0xb3c] sm:$0xf]
          %v3264 = vld [vmem:[#allocation11 + $0xb40] sm:$0xff]
          %v3265 = vld [vmem:[#allocation11 + $0xb48] sm:$0xff]
          %v3266 = vld [vmem:[#allocation11 + $0xb50] sm:$0xf]
          %v3267 = vld [vmem:[#allocation11 + $0xb54] sm:$0xff]
          %v3268 = vld [vmem:[#allocation11 + $0xb5c] sm:$0xff]
          %v3269 = vld [vmem:[#allocation11 + $0xb64] sm:$0xf]
          %v3270 = vld [vmem:[#allocation11 + $0xb68] sm:$0xff]
          %v3271 = vld [vmem:[#allocation11 + $0xb70] sm:$0xff]
          %v3272 = vld [vmem:[#allocation11 + $0xb78] sm:$0xf]
          %v3273 = vld [vmem:[#allocation11 + $0xb7c] sm:$0xff]
          %v3274 = vld [vmem:[#allocation11 + $0xb84] sm:$0xff]
          %v3275 = vld [vmem:[#allocation11 + $0xb8c] sm:$0xf]
          %v3276 = vld [vmem:[#allocation11 + $0xb90] sm:$0xff]
          %v3277 = vld [vmem:[#allocation11 + $0xb98] sm:$0xff]
          %v3278 = vld [vmem:[#allocation11 + $0xba0] sm:$0xf]
          %v3279 = vld [vmem:[#allocation11 + $0xba4] sm:$0xff]
          %v3280 = vld [vmem:[#allocation11 + $0xbac] sm:$0xff]
          %v3281 = vld [vmem:[#allocation11 + $0xbb4] sm:$0xf]
          %v3282 = vld [vmem:[#allocation11 + $0xbb8] sm:$0xff]
          %v3283 = vld [vmem:[#allocation11 + $0xbc0] sm:$0xff]
          %v3284 = vld [vmem:[#allocation11 + $0xbc8] sm:$0xf]
          %v3285 = vld [vmem:[#allocation11 + $0xbcc] sm:$0xff]
          %v3286 = vld [vmem:[#allocation11 + $0xbd4] sm:$0xff]
          %v3287 = vld [vmem:[#allocation11 + $0xbdc] sm:$0xf]
          %v3288 = vld [vmem:[#allocation11 + $0xbe0] sm:$0xff]
          %v3289 = vld [vmem:[#allocation11 + $0xbe8] sm:$0xff]
          %v3290 = vld [vmem:[#allocation11 + $0xbf0] sm:$0xf]
          %v3291 = vld [vmem:[#allocation11 + $0xbf4] sm:$0xff]
          %v3292 = vld [vmem:[#allocation11 + $0xbfc] sm:$0xff]
          %v3293 = vld [vmem:[#allocation11 + $0xc04] sm:$0xf]
          %v3294 = vld [vmem:[#allocation11 + $0xc08] sm:$0xff]
          %v3295 = vld [vmem:[#allocation11 + $0xc10] sm:$0xff]
          %v3296 = vld [vmem:[#allocation11 + $0xc18] sm:$0xf]
          %v3297 = vld [vmem:[#allocation11 + $0xc1c] sm:$0xff]
          %v3298 = vld [vmem:[#allocation11 + $0xc24] sm:$0xff]
          %v3299 = vld [vmem:[#allocation11 + $0xc2c] sm:$0xf]
          %v3300 = vld [vmem:[#allocation11 + $0xc30] sm:$0xff]
          %v3301 = vld [vmem:[#allocation11 + $0xc38] sm:$0xff]
          %v3302 = vld [vmem:[#allocation11 + $0xc40] sm:$0xf]
          %v3303 = vld [vmem:[#allocation11 + $0xc44] sm:$0xff]
          %v3304 = vld [vmem:[#allocation11 + $0xc4c] sm:$0xff]
          %v3305 = vld [vmem:[#allocation11 + $0xc54] sm:$0xf]
          %v3306 = vld [vmem:[#allocation11 + $0xc58] sm:$0xff]
          %v3307 = vld [vmem:[#allocation11 + $0xc60] sm:$0xff]
          %v3308 = vld [vmem:[#allocation11 + $0xc68] sm:$0xf]
          %v3309 = vld [vmem:[#allocation11 + $0xc6c] sm:$0xff]
          %v3310 = vld [vmem:[#allocation11 + $0xc74] sm:$0xff]
          %v3311 = vld [vmem:[#allocation11 + $0xc7c] sm:$0xf]
          %v3312 = vld [vmem:[#allocation11 + $0xc80] sm:$0xff]
          %v3313 = vld [vmem:[#allocation11 + $0xc88] sm:$0xff]
          %v3314 = vld [vmem:[#allocation11 + $0xc90] sm:$0xf]
          %v3315 = vld [vmem:[#allocation11 + $0xc94] sm:$0xff]
          %v3316 = vld [vmem:[#allocation11 + $0xc9c] sm:$0xff]
          %v3317 = vld [vmem:[#allocation11 + $0xca4] sm:$0xf]
          %v3318 = vld [vmem:[#allocation11 + $0xca8] sm:$0xff]
          %v3319 = vld [vmem:[#allocation11 + $0xcb0] sm:$0xff]
          %v3320 = vld [vmem:[#allocation11 + $0xcb8] sm:$0xf]
          %v3321 = vld [vmem:[#allocation11 + $0xcbc] sm:$0xff]
          %v3322 = vld [vmem:[#allocation11 + $0xcc4] sm:$0xff]
          %v3323 = vld [vmem:[#allocation11 + $0xccc] sm:$0xf]
          %v3324 = vld [vmem:[#allocation11 + $0xcd0] sm:$0xff]
          %v3325 = vld [vmem:[#allocation11 + $0xcd8] sm:$0xff]
          %v3326 = vld [vmem:[#allocation11 + $0xce0] sm:$0xf]
          %v3327 = vld [vmem:[#allocation11 + $0xce4] sm:$0xff]
          %v3328 = vld [vmem:[#allocation11 + $0xcec] sm:$0xff]
          %v3329 = vld [vmem:[#allocation11 + $0xcf4] sm:$0xf]
          %v3330 = vld [vmem:[#allocation11 + $0xcf8] sm:$0xff]
          %v3331 = vld [vmem:[#allocation11 + $0xd00] sm:$0xff]
          %v3332 = vld [vmem:[#allocation11 + $0xd08] sm:$0xf]
          %v3333 = vld [vmem:[#allocation11 + $0xd0c] sm:$0xff]
          %v3334 = vld [vmem:[#allocation11 + $0xd14] sm:$0xff]
          %v3335 = vld [vmem:[#allocation11 + $0xd1c] sm:$0xf]
          %v3336 = vld [vmem:[#allocation11 + $0xd20] sm:$0xff]
          %v3337 = vld [vmem:[#allocation11 + $0xd28] sm:$0xff]
          %v3338 = vld [vmem:[#allocation11 + $0xd30] sm:$0xf]
          %v3339 = vld [vmem:[#allocation11 + $0xd34] sm:$0xff]
          %v3340 = vld [vmem:[#allocation11 + $0xd3c] sm:$0xff]
          %v3341 = vld [vmem:[#allocation11 + $0xd44] sm:$0xf]
          %v3342 = vld [vmem:[#allocation11 + $0xd48] sm:$0xff]
          %v3343 = vld [vmem:[#allocation11 + $0xd50] sm:$0xff]
          %v3344 = vld [vmem:[#allocation11 + $0xd58] sm:$0xf]
          %v3345 = vld [vmem:[#allocation11 + $0xd5c] sm:$0xff]
          %v3346 = vld [vmem:[#allocation11 + $0xd64] sm:$0xff]
          %v3347 = vld [vmem:[#allocation11 + $0xd6c] sm:$0xf]
          %v3348 = vld [vmem:[#allocation11 + $0xd70] sm:$0xff]
          %v3349 = vld [vmem:[#allocation11 + $0xd78] sm:$0xff]
          %v3350 = vld [vmem:[#allocation11 + $0xd80] sm:$0xf]
          %v3351 = vld [vmem:[#allocation11 + $0xd84] sm:$0xff]
          %v3352 = vld [vmem:[#allocation11 + $0xd8c] sm:$0xff]
          %v3353 = vld [vmem:[#allocation11 + $0xd94] sm:$0xf]
          %v3354 = vld [vmem:[#allocation11 + $0xd98] sm:$0xff]
          %v3355 = vld [vmem:[#allocation11 + $0xda0] sm:$0xff]
          %v3356 = vld [vmem:[#allocation11 + $0xda8] sm:$0xf]
          %v3357 = vld [vmem:[#allocation11 + $0xdac] sm:$0xff]
          %v3358 = vld [vmem:[#allocation11 + $0xdb4] sm:$0xff]
          %v3359 = vld [vmem:[#allocation11 + $0xdbc] sm:$0xf]
          %v3360 = vld [vmem:[#allocation11 + $0xdc0] sm:$0xff]
          %v3361 = vld [vmem:[#allocation11 + $0xdc8] sm:$0xff]
          %v3362 = vld [vmem:[#allocation11 + $0xdd0] sm:$0xf]
          %v3363 = vld [vmem:[#allocation11 + $0xdd4] sm:$0xff]
          %v3364 = vld [vmem:[#allocation11 + $0xddc] sm:$0xff]
          %v3365 = vld [vmem:[#allocation11 + $0xde4] sm:$0xf]
          %v3366 = vld [vmem:[#allocation11 + $0xde8] sm:$0xff]
          %v3367 = vld [vmem:[#allocation11 + $0xdf0] sm:$0xff]
          %v3368 = vld [vmem:[#allocation11 + $0xdf8] sm:$0xf]
          %v3369 = vld [vmem:[#allocation11 + $0xdfc] sm:$0xff]
          %v3370 = vld [vmem:[#allocation11 + $0xe04] sm:$0xff]
          %v3371 = vld [vmem:[#allocation11 + $0xe0c] sm:$0xf]
          %v3372 = vld [vmem:[#allocation11 + $0xe10] sm:$0xff]
          %v3373 = vld [vmem:[#allocation11 + $0xe18] sm:$0xff]
          %v3374 = vld [vmem:[#allocation11 + $0xe20] sm:$0xf]
          %v3375 = vld [vmem:[#allocation11 + $0xe24] sm:$0xff]
          %v3376 = vld [vmem:[#allocation11 + $0xe2c] sm:$0xff]
          %v3377 = vld [vmem:[#allocation11 + $0xe34] sm:$0xf]
          %v3378 = vld [vmem:[#allocation11 + $0xe38] sm:$0xff]
          %v3379 = vld [vmem:[#allocation11 + $0xe40] sm:$0xff]
          %v3380 = vld [vmem:[#allocation11 + $0xe48] sm:$0xf]
          %v3381 = vld [vmem:[#allocation11 + $0xe4c] sm:$0xff]
          %v3382 = vld [vmem:[#allocation11 + $0xe54] sm:$0xff]
          %v3383 = vld [vmem:[#allocation11 + $0xe5c] sm:$0xf]
          %v3384 = vld [vmem:[#allocation11 + $0xe60] sm:$0xff]
          %v3385 = vld [vmem:[#allocation11 + $0xe68] sm:$0xff]
          %v3386 = vld [vmem:[#allocation11 + $0xe70] sm:$0xf]
          %v3387 = vld [vmem:[#allocation11 + $0xe74] sm:$0xff]
          %v3388 = vld [vmem:[#allocation11 + $0xe7c] sm:$0xff]
          %v3389 = vld [vmem:[#allocation11 + $0xe84] sm:$0xf]
          %v3390 = vld [vmem:[#allocation11 + $0xe88] sm:$0xff]
          %v3391 = vld [vmem:[#allocation11 + $0xe90] sm:$0xff]
          %v3392 = vld [vmem:[#allocation11 + $0xe98] sm:$0xf]
          %v3393 = vld [vmem:[#allocation11 + $0xe9c] sm:$0xff]
          %v3394 = vld [vmem:[#allocation11 + $0xea4] sm:$0xff]
          %v3395 = vld [vmem:[#allocation11 + $0xeac] sm:$0xf]
          %v3396 = vld [vmem:[#allocation11 + $0xeb0] sm:$0xff]
          %v3397 = vld [vmem:[#allocation11 + $0xeb8] sm:$0xff]
          %v3398 = vld [vmem:[#allocation11 + $0xec0] sm:$0xf]
          %v3399 = vld [vmem:[#allocation11 + $0xec4] sm:$0xff]
          %v3400 = vld [vmem:[#allocation11 + $0xecc] sm:$0xff]
          %v3401 = vld [vmem:[#allocation11 + $0xed4] sm:$0xf]
          %v3402 = vld [vmem:[#allocation11 + $0xed8] sm:$0xff]
          %v3403 = vld [vmem:[#allocation11 + $0xee0] sm:$0xff]
          %v3404 = vld [vmem:[#allocation11 + $0xee8] sm:$0xf]
          %v3405 = vld [vmem:[#allocation11 + $0xeec] sm:$0xff]
          %v3406 = vld [vmem:[#allocation11 + $0xef4] sm:$0xff]
          %v3407 = vld [vmem:[#allocation11 + $0xefc] sm:$0xf]
          %v3408 = vld [vmem:[#allocation12] sm:$0x1f]
          %v3985 = vunpack.c.l.b16 %v2832
          %v3986 = vunpack.c.h.b16 %v2832
          %v3987 = vunpack.c.l.b16 %v2833
          %v3988 = vunpack.c.h.b16 %v2833
          %v3989 = vunpack.c.l.b16 %v2834
          %v3990 = vunpack.c.l.b16 %v2835
          %v3991 = vunpack.c.h.b16 %v2835
          %v3992 = vunpack.c.l.b16 %v2836
          %v3993 = vunpack.c.h.b16 %v2836
          %v3994 = vunpack.c.l.b16 %v2837
          %v3995 = vunpack.c.l.b16 %v2838
          %v3996 = vunpack.c.h.b16 %v2838
          %v3997 = vunpack.c.l.b16 %v2839
          %v3998 = vunpack.c.h.b16 %v2839
          %v3999 = vunpack.c.l.b16 %v2840
          %v4000 = vunpack.c.l.b16 %v2841
          %v4001 = vunpack.c.h.b16 %v2841
          %v4002 = vunpack.c.l.b16 %v2842
          %v4003 = vunpack.c.h.b16 %v2842
          %v4004 = vunpack.c.l.b16 %v2843
          %v4005 = vunpack.c.l.b16 %v2844
          %v4006 = vunpack.c.h.b16 %v2844
          %v4007 = vunpack.c.l.b16 %v2845
          %v4008 = vunpack.c.h.b16 %v2845
          %v4009 = vunpack.c.l.b16 %v2846
          %v4010 = vunpack.c.l.b16 %v2847
          %v4011 = vunpack.c.h.b16 %v2847
          %v4012 = vunpack.c.l.b16 %v2848
          %v4013 = vunpack.c.h.b16 %v2848
          %v4014 = vunpack.c.l.b16 %v2849
          %v4015 = vunpack.c.l.b16 %v2850
          %v4016 = vunpack.c.h.b16 %v2850
          %v4017 = vunpack.c.l.b16 %v2851
          %v4018 = vunpack.c.h.b16 %v2851
          %v4019 = vunpack.c.l.b16 %v2852
          %v4020 = vunpack.c.l.b16 %v2853
          %v4021 = vunpack.c.h.b16 %v2853
          %v4022 = vunpack.c.l.b16 %v2854
          %v4023 = vunpack.c.h.b16 %v2854
          %v4024 = vunpack.c.l.b16 %v2855
          %v4025 = vunpack.c.l.b16 %v2856
          %v4026 = vunpack.c.h.b16 %v2856
          %v4027 = vunpack.c.l.b16 %v2857
          %v4028 = vunpack.c.h.b16 %v2857
          %v4029 = vunpack.c.l.b16 %v2858
          %v4030 = vunpack.c.l.b16 %v2859
          %v4031 = vunpack.c.h.b16 %v2859
          %v4032 = vunpack.c.l.b16 %v2860
          %v4033 = vunpack.c.h.b16 %v2860
          %v4034 = vunpack.c.l.b16 %v2861
          %v4035 = vunpack.c.l.b16 %v2862
          %v4036 = vunpack.c.h.b16 %v2862
          %v4037 = vunpack.c.l.b16 %v2863
          %v4038 = vunpack.c.h.b16 %v2863
          %v4039 = vunpack.c.l.b16 %v2864
          %v4040 = vunpack.c.l.b16 %v2865
          %v4041 = vunpack.c.h.b16 %v2865
          %v4042 = vunpack.c.l.b16 %v2866
          %v4043 = vunpack.c.h.b16 %v2866
          %v4044 = vunpack.c.l.b16 %v2867
          %v4045 = vunpack.c.l.b16 %v2868
          %v4046 = vunpack.c.h.b16 %v2868
          %v4047 = vunpack.c.l.b16 %v2869
          %v4048 = vunpack.c.h.b16 %v2869
          %v4049 = vunpack.c.l.b16 %v2870
          %v4050 = vunpack.c.l.b16 %v2871
          %v4051 = vunpack.c.h.b16 %v2871
          %v4052 = vunpack.c.l.b16 %v2872
          %v4053 = vunpack.c.h.b16 %v2872
          %v4054 = vunpack.c.l.b16 %v2873
          %v4055 = vunpack.c.l.b16 %v2874
          %v4056 = vunpack.c.h.b16 %v2874
          %v4057 = vunpack.c.l.b16 %v2875
          %v4058 = vunpack.c.h.b16 %v2875
          %v4059 = vunpack.c.l.b16 %v2876
          %v4060 = vunpack.c.l.b16 %v2877
          %v4061 = vunpack.c.h.b16 %v2877
          %v4062 = vunpack.c.l.b16 %v2878
          %v4063 = vunpack.c.h.b16 %v2878
          %v4064 = vunpack.c.l.b16 %v2879
          %v4065 = vunpack.c.l.b16 %v2880
          %v4066 = vunpack.c.h.b16 %v2880
          %v4067 = vunpack.c.l.b16 %v2881
          %v4068 = vunpack.c.h.b16 %v2881
          %v4069 = vunpack.c.l.b16 %v2882
          %v4070 = vunpack.c.l.b16 %v2883
          %v4071 = vunpack.c.h.b16 %v2883
          %v4072 = vunpack.c.l.b16 %v2884
          %v4073 = vunpack.c.h.b16 %v2884
          %v4074 = vunpack.c.l.b16 %v2885
          %v4075 = vunpack.c.l.b16 %v2886
          %v4076 = vunpack.c.h.b16 %v2886
          %v4077 = vunpack.c.l.b16 %v2887
          %v4078 = vunpack.c.h.b16 %v2887
          %v4079 = vunpack.c.l.b16 %v2888
          %v4080 = vunpack.c.l.b16 %v2889
          %v4081 = vunpack.c.h.b16 %v2889
          %v4082 = vunpack.c.l.b16 %v2890
          %v4083 = vunpack.c.h.b16 %v2890
          %v4084 = vunpack.c.l.b16 %v2891
          %v4085 = vunpack.c.l.b16 %v2892
          %v4086 = vunpack.c.h.b16 %v2892
          %v4087 = vunpack.c.l.b16 %v2893
          %v4088 = vunpack.c.h.b16 %v2893
          %v4089 = vunpack.c.l.b16 %v2894
          %v4090 = vunpack.c.l.b16 %v2895
          %v4091 = vunpack.c.h.b16 %v2895
          %v4092 = vunpack.c.l.b16 %v2896
          %v4093 = vunpack.c.h.b16 %v2896
          %v4094 = vunpack.c.l.b16 %v2897
          %v4095 = vunpack.c.l.b16 %v2898
          %v4096 = vunpack.c.h.b16 %v2898
          %v4097 = vunpack.c.l.b16 %v2899
          %v4098 = vunpack.c.h.b16 %v2899
          %v4099 = vunpack.c.l.b16 %v2900
          %v4100 = vunpack.c.l.b16 %v2901
          %v4101 = vunpack.c.h.b16 %v2901
          %v4102 = vunpack.c.l.b16 %v2902
          %v4103 = vunpack.c.h.b16 %v2902
          %v4104 = vunpack.c.l.b16 %v2903
          %v4105 = vunpack.c.l.b16 %v2904
          %v4106 = vunpack.c.h.b16 %v2904
          %v4107 = vunpack.c.l.b16 %v2905
          %v4108 = vunpack.c.h.b16 %v2905
          %v4109 = vunpack.c.l.b16 %v2906
          %v4110 = vunpack.c.l.b16 %v2907
          %v4111 = vunpack.c.h.b16 %v2907
          %v4112 = vunpack.c.l.b16 %v2908
          %v4113 = vunpack.c.h.b16 %v2908
          %v4114 = vunpack.c.l.b16 %v2909
          %v4115 = vunpack.c.l.b16 %v2910
          %v4116 = vunpack.c.h.b16 %v2910
          %v4117 = vunpack.c.l.b16 %v2911
          %v4118 = vunpack.c.h.b16 %v2911
          %v4119 = vunpack.c.l.b16 %v2912
          %v4120 = vunpack.c.l.b16 %v2913
          %v4121 = vunpack.c.h.b16 %v2913
          %v4122 = vunpack.c.l.b16 %v2914
          %v4123 = vunpack.c.h.b16 %v2914
          %v4124 = vunpack.c.l.b16 %v2915
          %v4125 = vunpack.c.l.b16 %v2916
          %v4126 = vunpack.c.h.b16 %v2916
          %v4127 = vunpack.c.l.b16 %v2917
          %v4128 = vunpack.c.h.b16 %v2917
          %v4129 = vunpack.c.l.b16 %v2918
          %v4130 = vunpack.c.l.b16 %v2919
          %v4131 = vunpack.c.h.b16 %v2919
          %v4132 = vunpack.c.l.b16 %v2920
          %v4133 = vunpack.c.h.b16 %v2920
          %v4134 = vunpack.c.l.b16 %v2921
          %v4135 = vunpack.c.l.b16 %v2922
          %v4136 = vunpack.c.h.b16 %v2922
          %v4137 = vunpack.c.l.b16 %v2923
          %v4138 = vunpack.c.h.b16 %v2923
          %v4139 = vunpack.c.l.b16 %v2924
          %v4140 = vunpack.c.l.b16 %v2925
          %v4141 = vunpack.c.h.b16 %v2925
          %v4142 = vunpack.c.l.b16 %v2926
          %v4143 = vunpack.c.h.b16 %v2926
          %v4144 = vunpack.c.l.b16 %v2927
          %v4145 = vunpack.c.l.b16 %v2928
          %v4146 = vunpack.c.h.b16 %v2928
          %v4147 = vunpack.c.l.b16 %v2929
          %v4148 = vunpack.c.h.b16 %v2929
          %v4149 = vunpack.c.l.b16 %v2930
          %v4150 = vunpack.c.l.b16 %v2931
          %v4151 = vunpack.c.h.b16 %v2931
          %v4152 = vunpack.c.l.b16 %v2932
          %v4153 = vunpack.c.h.b16 %v2932
          %v4154 = vunpack.c.l.b16 %v2933
          %v4155 = vunpack.c.l.b16 %v2934
          %v4156 = vunpack.c.h.b16 %v2934
          %v4157 = vunpack.c.l.b16 %v2935
          %v4158 = vunpack.c.h.b16 %v2935
          %v4159 = vunpack.c.l.b16 %v2936
          %v4160 = vunpack.c.l.b16 %v2937
          %v4161 = vunpack.c.h.b16 %v2937
          %v4162 = vunpack.c.l.b16 %v2938
          %v4163 = vunpack.c.h.b16 %v2938
          %v4164 = vunpack.c.l.b16 %v2939
          %v4165 = vunpack.c.l.b16 %v2940
          %v4166 = vunpack.c.h.b16 %v2940
          %v4167 = vunpack.c.l.b16 %v2941
          %v4168 = vunpack.c.h.b16 %v2941
          %v4169 = vunpack.c.l.b16 %v2942
          %v4170 = vunpack.c.l.b16 %v2943
          %v4171 = vunpack.c.h.b16 %v2943
          %v4172 = vunpack.c.l.b16 %v2944
          %v4173 = vunpack.c.h.b16 %v2944
          %v4174 = vunpack.c.l.b16 %v2945
          %v4175 = vunpack.c.l.b16 %v2946
          %v4176 = vunpack.c.h.b16 %v2946
          %v4177 = vunpack.c.l.b16 %v2947
          %v4178 = vunpack.c.h.b16 %v2947
          %v4179 = vunpack.c.l.b16 %v2948
          %v4180 = vunpack.c.l.b16 %v2949
          %v4181 = vunpack.c.h.b16 %v2949
          %v4182 = vunpack.c.l.b16 %v2950
          %v4183 = vunpack.c.h.b16 %v2950
          %v4184 = vunpack.c.l.b16 %v2951
          %v4185 = vunpack.c.l.b16 %v2952
          %v4186 = vunpack.c.h.b16 %v2952
          %v4187 = vunpack.c.l.b16 %v2953
          %v4188 = vunpack.c.h.b16 %v2953
          %v4189 = vunpack.c.l.b16 %v2954
          %v4190 = vunpack.c.l.b16 %v2955
          %v4191 = vunpack.c.h.b16 %v2955
          %v4192 = vunpack.c.l.b16 %v2956
          %v4193 = vunpack.c.h.b16 %v2956
          %v4194 = vunpack.c.l.b16 %v2957
          %v4195 = vunpack.c.l.b16 %v2958
          %v4196 = vunpack.c.h.b16 %v2958
          %v4197 = vunpack.c.l.b16 %v2959
          %v4198 = vunpack.c.h.b16 %v2959
          %v4199 = vunpack.c.l.b16 %v2960
          %v4200 = vunpack.c.l.b16 %v2961
          %v4201 = vunpack.c.h.b16 %v2961
          %v4202 = vunpack.c.l.b16 %v2962
          %v4203 = vunpack.c.h.b16 %v2962
          %v4204 = vunpack.c.l.b16 %v2963
          %v4205 = vunpack.c.l.b16 %v2964
          %v4206 = vunpack.c.h.b16 %v2964
          %v4207 = vunpack.c.l.b16 %v2965
          %v4208 = vunpack.c.h.b16 %v2965
          %v4209 = vunpack.c.l.b16 %v2966
          %v4210 = vunpack.c.l.b16 %v2967
          %v4211 = vunpack.c.h.b16 %v2967
          %v4212 = vunpack.c.l.b16 %v2968
          %v4213 = vunpack.c.h.b16 %v2968
          %v4214 = vunpack.c.l.b16 %v2969
          %v4215 = vunpack.c.l.b16 %v2970
          %v4216 = vunpack.c.h.b16 %v2970
          %v4217 = vunpack.c.l.b16 %v2971
          %v4218 = vunpack.c.h.b16 %v2971
          %v4219 = vunpack.c.l.b16 %v2972
          %v4220 = vunpack.c.l.b16 %v2973
          %v4221 = vunpack.c.h.b16 %v2973
          %v4222 = vunpack.c.l.b16 %v2974
          %v4223 = vunpack.c.h.b16 %v2974
          %v4224 = vunpack.c.l.b16 %v2975
          %v4225 = vunpack.c.l.b16 %v2976
          %v4226 = vunpack.c.h.b16 %v2976
          %v4227 = vunpack.c.l.b16 %v2977
          %v4228 = vunpack.c.h.b16 %v2977
          %v4229 = vunpack.c.l.b16 %v2978
          %v4230 = vunpack.c.l.b16 %v2979
          %v4231 = vunpack.c.h.b16 %v2979
          %v4232 = vunpack.c.l.b16 %v2980
          %v4233 = vunpack.c.h.b16 %v2980
          %v4234 = vunpack.c.l.b16 %v2981
          %v4235 = vunpack.c.l.b16 %v2982
          %v4236 = vunpack.c.h.b16 %v2982
          %v4237 = vunpack.c.l.b16 %v2983
          %v4238 = vunpack.c.h.b16 %v2983
          %v4239 = vunpack.c.l.b16 %v2984
          %v4240 = vunpack.c.l.b16 %v2985
          %v4241 = vunpack.c.h.b16 %v2985
          %v4242 = vunpack.c.l.b16 %v2986
          %v4243 = vunpack.c.h.b16 %v2986
          %v4244 = vunpack.c.l.b16 %v2987
          %v4245 = vunpack.c.l.b16 %v2988
          %v4246 = vunpack.c.h.b16 %v2988
          %v4247 = vunpack.c.l.b16 %v2989
          %v4248 = vunpack.c.h.b16 %v2989
          %v4249 = vunpack.c.l.b16 %v2990
          %v4250 = vunpack.c.l.b16 %v2991
          %v4251 = vunpack.c.h.b16 %v2991
          %v4252 = vunpack.c.l.b16 %v2992
          %v4253 = vunpack.c.h.b16 %v2992
          %v4254 = vunpack.c.l.b16 %v2993
          %v4255 = vunpack.c.l.b16 %v2994
          %v4256 = vunpack.c.h.b16 %v2994
          %v4257 = vunpack.c.l.b16 %v2995
          %v4258 = vunpack.c.h.b16 %v2995
          %v4259 = vunpack.c.l.b16 %v2996
          %v4260 = vunpack.c.l.b16 %v2997
          %v4261 = vunpack.c.h.b16 %v2997
          %v4262 = vunpack.c.l.b16 %v2998
          %v4263 = vunpack.c.h.b16 %v2998
          %v4264 = vunpack.c.l.b16 %v2999
          %v4265 = vunpack.c.l.b16 %v3000
          %v4266 = vunpack.c.h.b16 %v3000
          %v4267 = vunpack.c.l.b16 %v3001
          %v4268 = vunpack.c.h.b16 %v3001
          %v4269 = vunpack.c.l.b16 %v3002
          %v4270 = vunpack.c.l.b16 %v3003
          %v4271 = vunpack.c.h.b16 %v3003
          %v4272 = vunpack.c.l.b16 %v3004
          %v4273 = vunpack.c.h.b16 %v3004
          %v4274 = vunpack.c.l.b16 %v3005
          %v4275 = vunpack.c.l.b16 %v3006
          %v4276 = vunpack.c.h.b16 %v3006
          %v4277 = vunpack.c.l.b16 %v3007
          %v4278 = vunpack.c.h.b16 %v3007
          %v4279 = vunpack.c.l.b16 %v3008
          %v4280 = vunpack.c.l.b16 %v3009
          %v4281 = vunpack.c.h.b16 %v3009
          %v4282 = vunpack.c.l.b16 %v3010
          %v4283 = vunpack.c.h.b16 %v3010
          %v4284 = vunpack.c.l.b16 %v3011
          %v4285 = vunpack.c.l.b16 %v3012
          %v4286 = vunpack.c.h.b16 %v3012
          %v4287 = vunpack.c.l.b16 %v3013
          %v4288 = vunpack.c.h.b16 %v3013
          %v4289 = vunpack.c.l.b16 %v3014
          %v4290 = vunpack.c.l.b16 %v3015
          %v4291 = vunpack.c.h.b16 %v3015
          %v4292 = vunpack.c.l.b16 %v3016
          %v4293 = vunpack.c.h.b16 %v3016
          %v4294 = vunpack.c.l.b16 %v3017
          %v4295 = vunpack.c.l.b16 %v3018
          %v4296 = vunpack.c.h.b16 %v3018
          %v4297 = vunpack.c.l.b16 %v3019
          %v4298 = vunpack.c.h.b16 %v3019
          %v4299 = vunpack.c.l.b16 %v3020
          %v4300 = vunpack.c.l.b16 %v3021
          %v4301 = vunpack.c.h.b16 %v3021
          %v4302 = vunpack.c.l.b16 %v3022
          %v4303 = vunpack.c.h.b16 %v3022
          %v4304 = vunpack.c.l.b16 %v3023
          %v4305 = vunpack.c.l.b16 %v3024
          %v4306 = vunpack.c.h.b16 %v3024
          %v4307 = vunpack.c.l.b16 %v3025
          %v4308 = vunpack.c.h.b16 %v3025
          %v4309 = vunpack.c.l.b16 %v3026
          %v4310 = vunpack.c.l.b16 %v3027
          %v4311 = vunpack.c.h.b16 %v3027
          %v4312 = vunpack.c.l.b16 %v3028
          %v4313 = vunpack.c.h.b16 %v3028
          %v4314 = vunpack.c.l.b16 %v3029
          %v4315 = vunpack.c.l.b16 %v3030
          %v4316 = vunpack.c.h.b16 %v3030
          %v4317 = vunpack.c.l.b16 %v3031
          %v4318 = vunpack.c.h.b16 %v3031
          %v4319 = vunpack.c.l.b16 %v3032
          %v4320 = vunpack.c.l.b16 %v3033
          %v4321 = vunpack.c.h.b16 %v3033
          %v4322 = vunpack.c.l.b16 %v3034
          %v4323 = vunpack.c.h.b16 %v3034
          %v4324 = vunpack.c.l.b16 %v3035
          %v4325 = vunpack.c.l.b16 %v3036
          %v4326 = vunpack.c.h.b16 %v3036
          %v4327 = vunpack.c.l.b16 %v3037
          %v4328 = vunpack.c.h.b16 %v3037
          %v4329 = vunpack.c.l.b16 %v3038
          %v4330 = vunpack.c.l.b16 %v3039
          %v4331 = vunpack.c.h.b16 %v3039
          %v4332 = vunpack.c.l.b16 %v3040
          %v4333 = vunpack.c.h.b16 %v3040
          %v4334 = vunpack.c.l.b16 %v3041
          %v4335 = vunpack.c.l.b16 %v3042
          %v4336 = vunpack.c.h.b16 %v3042
          %v4337 = vunpack.c.l.b16 %v3043
          %v4338 = vunpack.c.h.b16 %v3043
          %v4339 = vunpack.c.l.b16 %v3044
          %v4340 = vunpack.c.l.b16 %v3045
          %v4341 = vunpack.c.h.b16 %v3045
          %v4342 = vunpack.c.l.b16 %v3046
          %v4343 = vunpack.c.h.b16 %v3046
          %v4344 = vunpack.c.l.b16 %v3047
          %v4345 = vunpack.c.l.b16 %v3048
          %v4346 = vunpack.c.h.b16 %v3048
          %v4347 = vunpack.c.l.b16 %v3049
          %v4348 = vunpack.c.h.b16 %v3049
          %v4349 = vunpack.c.l.b16 %v3050
          %v4350 = vunpack.c.l.b16 %v3051
          %v4351 = vunpack.c.h.b16 %v3051
          %v4352 = vunpack.c.l.b16 %v3052
          %v4353 = vunpack.c.h.b16 %v3052
          %v4354 = vunpack.c.l.b16 %v3053
          %v4355 = vunpack.c.l.b16 %v3054
          %v4356 = vunpack.c.h.b16 %v3054
          %v4357 = vunpack.c.l.b16 %v3055
          %v4358 = vunpack.c.h.b16 %v3055
          %v4359 = vunpack.c.l.b16 %v3056
          %v4360 = vunpack.c.l.b16 %v3057
          %v4361 = vunpack.c.h.b16 %v3057
          %v4362 = vunpack.c.l.b16 %v3058
          %v4363 = vunpack.c.h.b16 %v3058
          %v4364 = vunpack.c.l.b16 %v3059
          %v4365 = vunpack.c.l.b16 %v3060
          %v4366 = vunpack.c.h.b16 %v3060
          %v4367 = vunpack.c.l.b16 %v3061
          %v4368 = vunpack.c.h.b16 %v3061
          %v4369 = vunpack.c.l.b16 %v3062
          %v4370 = vunpack.c.l.b16 %v3063
          %v4371 = vunpack.c.h.b16 %v3063
          %v4372 = vunpack.c.l.b16 %v3064
          %v4373 = vunpack.c.h.b16 %v3064
          %v4374 = vunpack.c.l.b16 %v3065
          %v4375 = vunpack.c.l.b16 %v3066
          %v4376 = vunpack.c.h.b16 %v3066
          %v4377 = vunpack.c.l.b16 %v3067
          %v4378 = vunpack.c.h.b16 %v3067
          %v4379 = vunpack.c.l.b16 %v3068
          %v4380 = vunpack.c.l.b16 %v3069
          %v4381 = vunpack.c.h.b16 %v3069
          %v4382 = vunpack.c.l.b16 %v3070
          %v4383 = vunpack.c.h.b16 %v3070
          %v4384 = vunpack.c.l.b16 %v3071
          %v4385 = vunpack.c.l.b16 %v3072
          %v4386 = vunpack.c.h.b16 %v3072
          %v4387 = vunpack.c.l.b16 %v3073
          %v4388 = vunpack.c.h.b16 %v3073
          %v4389 = vunpack.c.l.b16 %v3074
          %v4390 = vunpack.c.l.b16 %v3075
          %v4391 = vunpack.c.h.b16 %v3075
          %v4392 = vunpack.c.l.b16 %v3076
          %v4393 = vunpack.c.h.b16 %v3076
          %v4394 = vunpack.c.l.b16 %v3077
          %v4395 = vunpack.c.l.b16 %v3078
          %v4396 = vunpack.c.h.b16 %v3078
          %v4397 = vunpack.c.l.b16 %v3079
          %v4398 = vunpack.c.h.b16 %v3079
          %v4399 = vunpack.c.l.b16 %v3080
          %v4400 = vunpack.c.l.b16 %v3081
          %v4401 = vunpack.c.h.b16 %v3081
          %v4402 = vunpack.c.l.b16 %v3082
          %v4403 = vunpack.c.h.b16 %v3082
          %v4404 = vunpack.c.l.b16 %v3083
          %v4405 = vunpack.c.l.b16 %v3084
          %v4406 = vunpack.c.h.b16 %v3084
          %v4407 = vunpack.c.l.b16 %v3085
          %v4408 = vunpack.c.h.b16 %v3085
          %v4409 = vunpack.c.l.b16 %v3086
          %v4410 = vunpack.c.l.b16 %v3087
          %v4411 = vunpack.c.h.b16 %v3087
          %v4412 = vunpack.c.l.b16 %v3088
          %v4413 = vunpack.c.h.b16 %v3088
          %v4414 = vunpack.c.l.b16 %v3089
          %v4415 = vunpack.c.l.b16 %v3090
          %v4416 = vunpack.c.h.b16 %v3090
          %v4417 = vunpack.c.l.b16 %v3091
          %v4418 = vunpack.c.h.b16 %v3091
          %v4419 = vunpack.c.l.b16 %v3092
          %v4420 = vunpack.c.l.b16 %v3093
          %v4421 = vunpack.c.h.b16 %v3093
          %v4422 = vunpack.c.l.b16 %v3094
          %v4423 = vunpack.c.h.b16 %v3094
          %v4424 = vunpack.c.l.b16 %v3095
          %v4425 = vunpack.c.l.b16 %v3096
          %v4426 = vunpack.c.h.b16 %v3096
          %v4427 = vunpack.c.l.b16 %v3097
          %v4428 = vunpack.c.h.b16 %v3097
          %v4429 = vunpack.c.l.b16 %v3098
          %v4430 = vunpack.c.l.b16 %v3099
          %v4431 = vunpack.c.h.b16 %v3099
          %v4432 = vunpack.c.l.b16 %v3100
          %v4433 = vunpack.c.h.b16 %v3100
          %v4434 = vunpack.c.l.b16 %v3101
          %v4435 = vunpack.c.l.b16 %v3102
          %v4436 = vunpack.c.h.b16 %v3102
          %v4437 = vunpack.c.l.b16 %v3103
          %v4438 = vunpack.c.h.b16 %v3103
          %v4439 = vunpack.c.l.b16 %v3104
          %v4440 = vunpack.c.l.b16 %v3105
          %v4441 = vunpack.c.h.b16 %v3105
          %v4442 = vunpack.c.l.b16 %v3106
          %v4443 = vunpack.c.h.b16 %v3106
          %v4444 = vunpack.c.l.b16 %v3107
          %v4445 = vunpack.c.l.b16 %v3108
          %v4446 = vunpack.c.h.b16 %v3108
          %v4447 = vunpack.c.l.b16 %v3109
          %v4448 = vunpack.c.h.b16 %v3109
          %v4449 = vunpack.c.l.b16 %v3110
          %v4450 = vunpack.c.l.b16 %v3111
          %v4451 = vunpack.c.h.b16 %v3111
          %v4452 = vunpack.c.l.b16 %v3112
          %v4453 = vunpack.c.h.b16 %v3112
          %v4454 = vunpack.c.l.b16 %v3113
          %v4455 = vunpack.c.l.b16 %v3114
          %v4456 = vunpack.c.h.b16 %v3114
          %v4457 = vunpack.c.l.b16 %v3115
          %v4458 = vunpack.c.h.b16 %v3115
          %v4459 = vunpack.c.l.b16 %v3116
          %v4460 = vunpack.c.l.b16 %v3117
          %v4461 = vunpack.c.h.b16 %v3117
          %v4462 = vunpack.c.l.b16 %v3118
          %v4463 = vunpack.c.h.b16 %v3118
          %v4464 = vunpack.c.l.b16 %v3119
          %v4465 = vunpack.c.l.b16 %v3120
          %v4466 = vunpack.c.h.b16 %v3120
          %v4467 = vunpack.c.l.b16 %v3121
          %v4468 = vunpack.c.h.b16 %v3121
          %v4469 = vunpack.c.l.b16 %v3122
          %v4470 = vunpack.c.l.b16 %v3123
          %v4471 = vunpack.c.h.b16 %v3123
          %v4472 = vunpack.c.l.b16 %v3124
          %v4473 = vunpack.c.h.b16 %v3124
          %v4474 = vunpack.c.l.b16 %v3125
          %v4475 = vunpack.c.l.b16 %v3126
          %v4476 = vunpack.c.h.b16 %v3126
          %v4477 = vunpack.c.l.b16 %v3127
          %v4478 = vunpack.c.h.b16 %v3127
          %v4479 = vunpack.c.l.b16 %v3128
          %v4480 = vunpack.c.l.b16 %v3129
          %v4481 = vunpack.c.h.b16 %v3129
          %v4482 = vunpack.c.l.b16 %v3130
          %v4483 = vunpack.c.h.b16 %v3130
          %v4484 = vunpack.c.l.b16 %v3131
          %v4485 = vunpack.c.l.b16 %v3132
          %v4486 = vunpack.c.h.b16 %v3132
          %v4487 = vunpack.c.l.b16 %v3133
          %v4488 = vunpack.c.h.b16 %v3133
          %v4489 = vunpack.c.l.b16 %v3134
          %v4490 = vunpack.c.l.b16 %v3135
          %v4491 = vunpack.c.h.b16 %v3135
          %v4492 = vunpack.c.l.b16 %v3136
          %v4493 = vunpack.c.h.b16 %v3136
          %v4494 = vunpack.c.l.b16 %v3137
          %v4495 = vunpack.c.l.b16 %v3138
          %v4496 = vunpack.c.h.b16 %v3138
          %v4497 = vunpack.c.l.b16 %v3139
          %v4498 = vunpack.c.h.b16 %v3139
          %v4499 = vunpack.c.l.b16 %v3140
          %v4500 = vunpack.c.l.b16 %v3141
          %v4501 = vunpack.c.h.b16 %v3141
          %v4502 = vunpack.c.l.b16 %v3142
          %v4503 = vunpack.c.h.b16 %v3142
          %v4504 = vunpack.c.l.b16 %v3143
          %v4505 = vunpack.c.l.b16 %v3144
          %v4506 = vunpack.c.h.b16 %v3144
          %v4507 = vunpack.c.l.b16 %v3145
          %v4508 = vunpack.c.h.b16 %v3145
          %v4509 = vunpack.c.l.b16 %v3146
          %v4510 = vunpack.c.l.b16 %v3147
          %v4511 = vunpack.c.h.b16 %v3147
          %v4512 = vunpack.c.l.b16 %v3148
          %v4513 = vunpack.c.h.b16 %v3148
          %v4514 = vunpack.c.l.b16 %v3149
          %v4515 = vunpack.c.l.b16 %v3150
          %v4516 = vunpack.c.h.b16 %v3150
          %v4517 = vunpack.c.l.b16 %v3151
          %v4518 = vunpack.c.h.b16 %v3151
          %v4519 = vunpack.c.l.b16 %v3152
          %v4520 = vunpack.c.l.b16 %v3153
          %v4521 = vunpack.c.h.b16 %v3153
          %v4522 = vunpack.c.l.b16 %v3154
          %v4523 = vunpack.c.h.b16 %v3154
          %v4524 = vunpack.c.l.b16 %v3155
          %v4525 = vunpack.c.l.b16 %v3156
          %v4526 = vunpack.c.h.b16 %v3156
          %v4527 = vunpack.c.l.b16 %v3157
          %v4528 = vunpack.c.h.b16 %v3157
          %v4529 = vunpack.c.l.b16 %v3158
          %v4530 = vunpack.c.l.b16 %v3159
          %v4531 = vunpack.c.h.b16 %v3159
          %v4532 = vunpack.c.l.b16 %v3160
          %v4533 = vunpack.c.h.b16 %v3160
          %v4534 = vunpack.c.l.b16 %v3161
          %v4535 = vunpack.c.l.b16 %v3162
          %v4536 = vunpack.c.h.b16 %v3162
          %v4537 = vunpack.c.l.b16 %v3163
          %v4538 = vunpack.c.h.b16 %v3163
          %v4539 = vunpack.c.l.b16 %v3164
          %v4540 = vunpack.c.l.b16 %v3165
          %v4541 = vunpack.c.h.b16 %v3165
          %v4542 = vunpack.c.l.b16 %v3166
          %v4543 = vunpack.c.h.b16 %v3166
          %v4544 = vunpack.c.l.b16 %v3167
          %v4545 = vunpack.c.l.b16 %v3168
          %v4546 = vunpack.c.h.b16 %v3168
          %v4547 = vunpack.c.l.b16 %v3169
          %v4548 = vunpack.c.h.b16 %v3169
          %v4549 = vunpack.c.l.b16 %v3170
          %v4550 = vunpack.c.l.b16 %v3171
          %v4551 = vunpack.c.h.b16 %v3171
          %v4552 = vunpack.c.l.b16 %v3172
          %v4553 = vunpack.c.h.b16 %v3172
          %v4554 = vunpack.c.l.b16 %v3173
          %v4555 = vunpack.c.l.b16 %v3174
          %v4556 = vunpack.c.h.b16 %v3174
          %v4557 = vunpack.c.l.b16 %v3175
          %v4558 = vunpack.c.h.b16 %v3175
          %v4559 = vunpack.c.l.b16 %v3176
          %v4560 = vunpack.c.l.b16 %v3177
          %v4561 = vunpack.c.h.b16 %v3177
          %v4562 = vunpack.c.l.b16 %v3178
          %v4563 = vunpack.c.h.b16 %v3178
          %v4564 = vunpack.c.l.b16 %v3179
          %v4565 = vunpack.c.l.b16 %v3180
          %v4566 = vunpack.c.h.b16 %v3180
          %v4567 = vunpack.c.l.b16 %v3181
          %v4568 = vunpack.c.h.b16 %v3181
          %v4569 = vunpack.c.l.b16 %v3182
          %v4570 = vunpack.c.l.b16 %v3183
          %v4571 = vunpack.c.h.b16 %v3183
          %v4572 = vunpack.c.l.b16 %v3184
          %v4573 = vunpack.c.h.b16 %v3184
          %v4574 = vunpack.c.l.b16 %v3185
          %v4575 = vunpack.c.l.b16 %v3186
          %v4576 = vunpack.c.h.b16 %v3186
          %v4577 = vunpack.c.l.b16 %v3187
          %v4578 = vunpack.c.h.b16 %v3187
          %v4579 = vunpack.c.l.b16 %v3188
          %v4580 = vunpack.c.l.b16 %v3189
          %v4581 = vunpack.c.h.b16 %v3189
          %v4582 = vunpack.c.l.b16 %v3190
          %v4583 = vunpack.c.h.b16 %v3190
          %v4584 = vunpack.c.l.b16 %v3191
          %v4585 = vunpack.c.l.b16 %v3192
          %v4586 = vunpack.c.h.b16 %v3192
          %v4587 = vunpack.c.l.b16 %v3193
          %v4588 = vunpack.c.h.b16 %v3193
          %v4589 = vunpack.c.l.b16 %v3194
          %v4590 = vunpack.c.l.b16 %v3195
          %v4591 = vunpack.c.h.b16 %v3195
          %v4592 = vunpack.c.l.b16 %v3196
          %v4593 = vunpack.c.h.b16 %v3196
          %v4594 = vunpack.c.l.b16 %v3197
          %v4595 = vunpack.c.l.b16 %v3198
          %v4596 = vunpack.c.h.b16 %v3198
          %v4597 = vunpack.c.l.b16 %v3199
          %v4598 = vunpack.c.h.b16 %v3199
          %v4599 = vunpack.c.l.b16 %v3200
          %v4600 = vunpack.c.l.b16 %v3201
          %v4601 = vunpack.c.h.b16 %v3201
          %v4602 = vunpack.c.l.b16 %v3202
          %v4603 = vunpack.c.h.b16 %v3202
          %v4604 = vunpack.c.l.b16 %v3203
          %v4605 = vunpack.c.l.b16 %v3204
          %v4606 = vunpack.c.h.b16 %v3204
          %v4607 = vunpack.c.l.b16 %v3205
          %v4608 = vunpack.c.h.b16 %v3205
          %v4609 = vunpack.c.l.b16 %v3206
          %v4610 = vunpack.c.l.b16 %v3207
          %v4611 = vunpack.c.h.b16 %v3207
          %v4612 = vunpack.c.l.b16 %v3208
          %v4613 = vunpack.c.h.b16 %v3208
          %v4614 = vunpack.c.l.b16 %v3209
          %v4615 = vunpack.c.l.b16 %v3210
          %v4616 = vunpack.c.h.b16 %v3210
          %v4617 = vunpack.c.l.b16 %v3211
          %v4618 = vunpack.c.h.b16 %v3211
          %v4619 = vunpack.c.l.b16 %v3212
          %v4620 = vunpack.c.l.b16 %v3213
          %v4621 = vunpack.c.h.b16 %v3213
          %v4622 = vunpack.c.l.b16 %v3214
          %v4623 = vunpack.c.h.b16 %v3214
          %v4624 = vunpack.c.l.b16 %v3215
          %v4625 = vunpack.c.l.b16 %v3216
          %v4626 = vunpack.c.h.b16 %v3216
          %v4627 = vunpack.c.l.b16 %v3217
          %v4628 = vunpack.c.h.b16 %v3217
          %v4629 = vunpack.c.l.b16 %v3218
          %v4630 = vunpack.c.l.b16 %v3219
          %v4631 = vunpack.c.h.b16 %v3219
          %v4632 = vunpack.c.l.b16 %v3220
          %v4633 = vunpack.c.h.b16 %v3220
          %v4634 = vunpack.c.l.b16 %v3221
          %v4635 = vunpack.c.l.b16 %v3222
          %v4636 = vunpack.c.h.b16 %v3222
          %v4637 = vunpack.c.l.b16 %v3223
          %v4638 = vunpack.c.h.b16 %v3223
          %v4639 = vunpack.c.l.b16 %v3224
          %v4640 = vunpack.c.l.b16 %v3225
          %v4641 = vunpack.c.h.b16 %v3225
          %v4642 = vunpack.c.l.b16 %v3226
          %v4643 = vunpack.c.h.b16 %v3226
          %v4644 = vunpack.c.l.b16 %v3227
          %v4645 = vunpack.c.l.b16 %v3228
          %v4646 = vunpack.c.h.b16 %v3228
          %v4647 = vunpack.c.l.b16 %v3229
          %v4648 = vunpack.c.h.b16 %v3229
          %v4649 = vunpack.c.l.b16 %v3230
          %v4650 = vunpack.c.l.b16 %v3231
          %v4651 = vunpack.c.h.b16 %v3231
          %v4652 = vunpack.c.l.b16 %v3232
          %v4653 = vunpack.c.h.b16 %v3232
          %v4654 = vunpack.c.l.b16 %v3233
          %v4655 = vunpack.c.l.b16 %v3234
          %v4656 = vunpack.c.h.b16 %v3234
          %v4657 = vunpack.c.l.b16 %v3235
          %v4658 = vunpack.c.h.b16 %v3235
          %v4659 = vunpack.c.l.b16 %v3236
          %v4660 = vunpack.c.l.b16 %v3237
          %v4661 = vunpack.c.h.b16 %v3237
          %v4662 = vunpack.c.l.b16 %v3238
          %v4663 = vunpack.c.h.b16 %v3238
          %v4664 = vunpack.c.l.b16 %v3239
          %v4665 = vunpack.c.l.b16 %v3240
          %v4666 = vunpack.c.h.b16 %v3240
          %v4667 = vunpack.c.l.b16 %v3241
          %v4668 = vunpack.c.h.b16 %v3241
          %v4669 = vunpack.c.l.b16 %v3242
          %v4670 = vunpack.c.l.b16 %v3243
          %v4671 = vunpack.c.h.b16 %v3243
          %v4672 = vunpack.c.l.b16 %v3244
          %v4673 = vunpack.c.h.b16 %v3244
          %v4674 = vunpack.c.l.b16 %v3245
          %v4675 = vunpack.c.l.b16 %v3246
          %v4676 = vunpack.c.h.b16 %v3246
          %v4677 = vunpack.c.l.b16 %v3247
          %v4678 = vunpack.c.h.b16 %v3247
          %v4679 = vunpack.c.l.b16 %v3248
          %v4680 = vunpack.c.l.b16 %v3249
          %v4681 = vunpack.c.h.b16 %v3249
          %v4682 = vunpack.c.l.b16 %v3250
          %v4683 = vunpack.c.h.b16 %v3250
          %v4684 = vunpack.c.l.b16 %v3251
          %v4685 = vunpack.c.l.b16 %v3252
          %v4686 = vunpack.c.h.b16 %v3252
          %v4687 = vunpack.c.l.b16 %v3253
          %v4688 = vunpack.c.h.b16 %v3253
          %v4689 = vunpack.c.l.b16 %v3254
          %v4690 = vunpack.c.l.b16 %v3255
          %v4691 = vunpack.c.h.b16 %v3255
          %v4692 = vunpack.c.l.b16 %v3256
          %v4693 = vunpack.c.h.b16 %v3256
          %v4694 = vunpack.c.l.b16 %v3257
          %v4695 = vunpack.c.l.b16 %v3258
          %v4696 = vunpack.c.h.b16 %v3258
          %v4697 = vunpack.c.l.b16 %v3259
          %v4698 = vunpack.c.h.b16 %v3259
          %v4699 = vunpack.c.l.b16 %v3260
          %v4700 = vunpack.c.l.b16 %v3261
          %v4701 = vunpack.c.h.b16 %v3261
          %v4702 = vunpack.c.l.b16 %v3262
          %v4703 = vunpack.c.h.b16 %v3262
          %v4704 = vunpack.c.l.b16 %v3263
          %v4705 = vunpack.c.l.b16 %v3264
          %v4706 = vunpack.c.h.b16 %v3264
          %v4707 = vunpack.c.l.b16 %v3265
          %v4708 = vunpack.c.h.b16 %v3265
          %v4709 = vunpack.c.l.b16 %v3266
          %v4710 = vunpack.c.l.b16 %v3267
          %v4711 = vunpack.c.h.b16 %v3267
          %v4712 = vunpack.c.l.b16 %v3268
          %v4713 = vunpack.c.h.b16 %v3268
          %v4714 = vunpack.c.l.b16 %v3269
          %v4715 = vunpack.c.l.b16 %v3270
          %v4716 = vunpack.c.h.b16 %v3270
          %v4717 = vunpack.c.l.b16 %v3271
          %v4718 = vunpack.c.h.b16 %v3271
          %v4719 = vunpack.c.l.b16 %v3272
          %v4720 = vunpack.c.l.b16 %v3273
          %v4721 = vunpack.c.h.b16 %v3273
          %v4722 = vunpack.c.l.b16 %v3274
          %v4723 = vunpack.c.h.b16 %v3274
          %v4724 = vunpack.c.l.b16 %v3275
          %v4725 = vunpack.c.l.b16 %v3276
          %v4726 = vunpack.c.h.b16 %v3276
          %v4727 = vunpack.c.l.b16 %v3277
          %v4728 = vunpack.c.h.b16 %v3277
          %v4729 = vunpack.c.l.b16 %v3278
          %v4730 = vunpack.c.l.b16 %v3279
          %v4731 = vunpack.c.h.b16 %v3279
          %v4732 = vunpack.c.l.b16 %v3280
          %v4733 = vunpack.c.h.b16 %v3280
          %v4734 = vunpack.c.l.b16 %v3281
          %v4735 = vunpack.c.l.b16 %v3282
          %v4736 = vunpack.c.h.b16 %v3282
          %v4737 = vunpack.c.l.b16 %v3283
          %v4738 = vunpack.c.h.b16 %v3283
          %v4739 = vunpack.c.l.b16 %v3284
          %v4740 = vunpack.c.l.b16 %v3285
          %v4741 = vunpack.c.h.b16 %v3285
          %v4742 = vunpack.c.l.b16 %v3286
          %v4743 = vunpack.c.h.b16 %v3286
          %v4744 = vunpack.c.l.b16 %v3287
          %v4745 = vunpack.c.l.b16 %v3288
          %v4746 = vunpack.c.h.b16 %v3288
          %v4747 = vunpack.c.l.b16 %v3289
          %v4748 = vunpack.c.h.b16 %v3289
          %v4749 = vunpack.c.l.b16 %v3290
          %v4750 = vunpack.c.l.b16 %v3291
          %v4751 = vunpack.c.h.b16 %v3291
          %v4752 = vunpack.c.l.b16 %v3292
          %v4753 = vunpack.c.h.b16 %v3292
          %v4754 = vunpack.c.l.b16 %v3293
          %v4755 = vunpack.c.l.b16 %v3294
          %v4756 = vunpack.c.h.b16 %v3294
          %v4757 = vunpack.c.l.b16 %v3295
          %v4758 = vunpack.c.h.b16 %v3295
          %v4759 = vunpack.c.l.b16 %v3296
          %v4760 = vunpack.c.l.b16 %v3297
          %v4761 = vunpack.c.h.b16 %v3297
          %v4762 = vunpack.c.l.b16 %v3298
          %v4763 = vunpack.c.h.b16 %v3298
          %v4764 = vunpack.c.l.b16 %v3299
          %v4765 = vunpack.c.l.b16 %v3300
          %v4766 = vunpack.c.h.b16 %v3300
          %v4767 = vunpack.c.l.b16 %v3301
          %v4768 = vunpack.c.h.b16 %v3301
          %v4769 = vunpack.c.l.b16 %v3302
          %v4770 = vunpack.c.l.b16 %v3303
          %v4771 = vunpack.c.h.b16 %v3303
          %v4772 = vunpack.c.l.b16 %v3304
          %v4773 = vunpack.c.h.b16 %v3304
          %v4774 = vunpack.c.l.b16 %v3305
          %v4775 = vunpack.c.l.b16 %v3306
          %v4776 = vunpack.c.h.b16 %v3306
          %v4777 = vunpack.c.l.b16 %v3307
          %v4778 = vunpack.c.h.b16 %v3307
          %v4779 = vunpack.c.l.b16 %v3308
          %v4780 = vunpack.c.l.b16 %v3309
          %v4781 = vunpack.c.h.b16 %v3309
          %v4782 = vunpack.c.l.b16 %v3310
          %v4783 = vunpack.c.h.b16 %v3310
          %v4784 = vunpack.c.l.b16 %v3311
          %v4785 = vunpack.c.l.b16 %v3312
          %v4786 = vunpack.c.h.b16 %v3312
          %v4787 = vunpack.c.l.b16 %v3313
          %v4788 = vunpack.c.h.b16 %v3313
          %v4789 = vunpack.c.l.b16 %v3314
          %v4790 = vunpack.c.l.b16 %v3315
          %v4791 = vunpack.c.h.b16 %v3315
          %v4792 = vunpack.c.l.b16 %v3316
          %v4793 = vunpack.c.h.b16 %v3316
          %v4794 = vunpack.c.l.b16 %v3317
          %v4795 = vunpack.c.l.b16 %v3318
          %v4796 = vunpack.c.h.b16 %v3318
          %v4797 = vunpack.c.l.b16 %v3319
          %v4798 = vunpack.c.h.b16 %v3319
          %v4799 = vunpack.c.l.b16 %v3320
          %v4800 = vunpack.c.l.b16 %v3321
          %v4801 = vunpack.c.h.b16 %v3321
          %v4802 = vunpack.c.l.b16 %v3322
          %v4803 = vunpack.c.h.b16 %v3322
          %v4804 = vunpack.c.l.b16 %v3323
          %v4805 = vunpack.c.l.b16 %v3324
          %v4806 = vunpack.c.h.b16 %v3324
          %v4807 = vunpack.c.l.b16 %v3325
          %v4808 = vunpack.c.h.b16 %v3325
          %v4809 = vunpack.c.l.b16 %v3326
          %v4810 = vunpack.c.l.b16 %v3327
          %v4811 = vunpack.c.h.b16 %v3327
          %v4812 = vunpack.c.l.b16 %v3328
          %v4813 = vunpack.c.h.b16 %v3328
          %v4814 = vunpack.c.l.b16 %v3329
          %v4815 = vunpack.c.l.b16 %v3330
          %v4816 = vunpack.c.h.b16 %v3330
          %v4817 = vunpack.c.l.b16 %v3331
          %v4818 = vunpack.c.h.b16 %v3331
          %v4819 = vunpack.c.l.b16 %v3332
          %v4820 = vunpack.c.l.b16 %v3333
          %v4821 = vunpack.c.h.b16 %v3333
          %v4822 = vunpack.c.l.b16 %v3334
          %v4823 = vunpack.c.h.b16 %v3334
          %v4824 = vunpack.c.l.b16 %v3335
          %v4825 = vunpack.c.l.b16 %v3336
          %v4826 = vunpack.c.h.b16 %v3336
          %v4827 = vunpack.c.l.b16 %v3337
          %v4828 = vunpack.c.h.b16 %v3337
          %v4829 = vunpack.c.l.b16 %v3338
          %v4830 = vunpack.c.l.b16 %v3339
          %v4831 = vunpack.c.h.b16 %v3339
          %v4832 = vunpack.c.l.b16 %v3340
          %v4833 = vunpack.c.h.b16 %v3340
          %v4834 = vunpack.c.l.b16 %v3341
          %v4835 = vunpack.c.l.b16 %v3342
          %v4836 = vunpack.c.h.b16 %v3342
          %v4837 = vunpack.c.l.b16 %v3343
          %v4838 = vunpack.c.h.b16 %v3343
          %v4839 = vunpack.c.l.b16 %v3344
          %v4840 = vunpack.c.l.b16 %v3345
          %v4841 = vunpack.c.h.b16 %v3345
          %v4842 = vunpack.c.l.b16 %v3346
          %v4843 = vunpack.c.h.b16 %v3346
          %v4844 = vunpack.c.l.b16 %v3347
          %v4845 = vunpack.c.l.b16 %v3348
          %v4846 = vunpack.c.h.b16 %v3348
          %v4847 = vunpack.c.l.b16 %v3349
          %v4848 = vunpack.c.h.b16 %v3349
          %v4849 = vunpack.c.l.b16 %v3350
          %v4850 = vunpack.c.l.b16 %v3351
          %v4851 = vunpack.c.h.b16 %v3351
          %v4852 = vunpack.c.l.b16 %v3352
          %v4853 = vunpack.c.h.b16 %v3352
          %v4854 = vunpack.c.l.b16 %v3353
          %v4855 = vunpack.c.l.b16 %v3354
          %v4856 = vunpack.c.h.b16 %v3354
          %v4857 = vunpack.c.l.b16 %v3355
          %v4858 = vunpack.c.h.b16 %v3355
          %v4859 = vunpack.c.l.b16 %v3356
          %v4860 = vunpack.c.l.b16 %v3357
          %v4861 = vunpack.c.h.b16 %v3357
          %v4862 = vunpack.c.l.b16 %v3358
          %v4863 = vunpack.c.h.b16 %v3358
          %v4864 = vunpack.c.l.b16 %v3359
          %v4865 = vunpack.c.l.b16 %v3360
          %v4866 = vunpack.c.h.b16 %v3360
          %v4867 = vunpack.c.l.b16 %v3361
          %v4868 = vunpack.c.h.b16 %v3361
          %v4869 = vunpack.c.l.b16 %v3362
          %v4870 = vunpack.c.l.b16 %v3363
          %v4871 = vunpack.c.h.b16 %v3363
          %v4872 = vunpack.c.l.b16 %v3364
          %v4873 = vunpack.c.h.b16 %v3364
          %v4874 = vunpack.c.l.b16 %v3365
          %v4875 = vunpack.c.l.b16 %v3366
          %v4876 = vunpack.c.h.b16 %v3366
          %v4877 = vunpack.c.l.b16 %v3367
          %v4878 = vunpack.c.h.b16 %v3367
          %v4879 = vunpack.c.l.b16 %v3368
          %v4880 = vunpack.c.l.b16 %v3369
          %v4881 = vunpack.c.h.b16 %v3369
          %v4882 = vunpack.c.l.b16 %v3370
          %v4883 = vunpack.c.h.b16 %v3370
          %v4884 = vunpack.c.l.b16 %v3371
          %v4885 = vunpack.c.l.b16 %v3372
          %v4886 = vunpack.c.h.b16 %v3372
          %v4887 = vunpack.c.l.b16 %v3373
          %v4888 = vunpack.c.h.b16 %v3373
          %v4889 = vunpack.c.l.b16 %v3374
          %v4890 = vunpack.c.l.b16 %v3375
          %v4891 = vunpack.c.h.b16 %v3375
          %v4892 = vunpack.c.l.b16 %v3376
          %v4893 = vunpack.c.h.b16 %v3376
          %v4894 = vunpack.c.l.b16 %v3377
          %v4895 = vunpack.c.l.b16 %v3378
          %v4896 = vunpack.c.h.b16 %v3378
          %v4897 = vunpack.c.l.b16 %v3379
          %v4898 = vunpack.c.h.b16 %v3379
          %v4899 = vunpack.c.l.b16 %v3380
          %v4900 = vunpack.c.l.b16 %v3381
          %v4901 = vunpack.c.h.b16 %v3381
          %v4902 = vunpack.c.l.b16 %v3382
          %v4903 = vunpack.c.h.b16 %v3382
          %v4904 = vunpack.c.l.b16 %v3383
          %v4905 = vunpack.c.l.b16 %v3384
          %v4906 = vunpack.c.h.b16 %v3384
          %v4907 = vunpack.c.l.b16 %v3385
          %v4908 = vunpack.c.h.b16 %v3385
          %v4909 = vunpack.c.l.b16 %v3386
          %v4910 = vunpack.c.l.b16 %v3387
          %v4911 = vunpack.c.h.b16 %v3387
          %v4912 = vunpack.c.l.b16 %v3388
          %v4913 = vunpack.c.h.b16 %v3388
          %v4914 = vunpack.c.l.b16 %v3389
          %v4915 = vunpack.c.l.b16 %v3390
          %v4916 = vunpack.c.h.b16 %v3390
          %v4917 = vunpack.c.l.b16 %v3391
          %v4918 = vunpack.c.h.b16 %v3391
          %v4919 = vunpack.c.l.b16 %v3392
          %v4920 = vunpack.c.l.b16 %v3393
          %v4921 = vunpack.c.h.b16 %v3393
          %v4922 = vunpack.c.l.b16 %v3394
          %v4923 = vunpack.c.h.b16 %v3394
          %v4924 = vunpack.c.l.b16 %v3395
          %v4925 = vunpack.c.l.b16 %v3396
          %v4926 = vunpack.c.h.b16 %v3396
          %v4927 = vunpack.c.l.b16 %v3397
          %v4928 = vunpack.c.h.b16 %v3397
          %v4929 = vunpack.c.l.b16 %v3398
          %v4930 = vunpack.c.l.b16 %v3399
          %v4931 = vunpack.c.h.b16 %v3399
          %v4932 = vunpack.c.l.b16 %v3400
          %v4933 = vunpack.c.h.b16 %v3400
          %v4934 = vunpack.c.l.b16 %v3401
          %v4935 = vunpack.c.l.b16 %v3402
          %v4936 = vunpack.c.h.b16 %v3402
          %v4937 = vunpack.c.l.b16 %v3403
          %v4938 = vunpack.c.h.b16 %v3403
          %v4939 = vunpack.c.l.b16 %v3404
          %v4940 = vunpack.c.l.b16 %v3405
          %v4941 = vunpack.c.h.b16 %v3405
          %v4942 = vunpack.c.l.b16 %v3406
          %v4943 = vunpack.c.h.b16 %v3406
          %v4944 = vunpack.c.l.b16 %v3407
          %v4945 = vpack.c.b16 %v3990, %v3985
          %v4946 = vpack.c.b16 %v3991, %v3986
          %v4947 = vpack.c.b16 %v3992, %v3987
          %v4948 = vpack.c.b16 %v3993, %v3988
          %v4949 = vpack.c.b16 %v3994, %v3989
          %v4950 = vpack.c.b16 %v4000, %v3995
          %v4951 = vpack.c.b16 %v4001, %v3996
          %v4952 = vpack.c.b16 %v4002, %v3997
          %v4953 = vpack.c.b16 %v4003, %v3998
          %v4954 = vpack.c.b16 %v4004, %v3999
          %v4955 = vpack.c.b16 %v4010, %v4005
          %v4956 = vpack.c.b16 %v4011, %v4006
          %v4957 = vpack.c.b16 %v4012, %v4007
          %v4958 = vpack.c.b16 %v4013, %v4008
          %v4959 = vpack.c.b16 %v4014, %v4009
          %v4960 = vpack.c.b16 %v4020, %v4015
          %v4961 = vpack.c.b16 %v4021, %v4016
          %v4962 = vpack.c.b16 %v4022, %v4017
          %v4963 = vpack.c.b16 %v4023, %v4018
          %v4964 = vpack.c.b16 %v4024, %v4019
          %v4965 = vpack.c.b16 %v4030, %v4025
          %v4966 = vpack.c.b16 %v4031, %v4026
          %v4967 = vpack.c.b16 %v4032, %v4027
          %v4968 = vpack.c.b16 %v4033, %v4028
          %v4969 = vpack.c.b16 %v4034, %v4029
          %v4970 = vpack.c.b16 %v4040, %v4035
          %v4971 = vpack.c.b16 %v4041, %v4036
          %v4972 = vpack.c.b16 %v4042, %v4037
          %v4973 = vpack.c.b16 %v4043, %v4038
          %v4974 = vpack.c.b16 %v4044, %v4039
          %v4975 = vpack.c.b16 %v4050, %v4045
          %v4976 = vpack.c.b16 %v4051, %v4046
          %v4977 = vpack.c.b16 %v4052, %v4047
          %v4978 = vpack.c.b16 %v4053, %v4048
          %v4979 = vpack.c.b16 %v4054, %v4049
          %v4980 = vpack.c.b16 %v4060, %v4055
          %v4981 = vpack.c.b16 %v4061, %v4056
          %v4982 = vpack.c.b16 %v4062, %v4057
          %v4983 = vpack.c.b16 %v4063, %v4058
          %v4984 = vpack.c.b16 %v4064, %v4059
          %v4985 = vpack.c.b16 %v4070, %v4065
          %v4986 = vpack.c.b16 %v4071, %v4066
          %v4987 = vpack.c.b16 %v4072, %v4067
          %v4988 = vpack.c.b16 %v4073, %v4068
          %v4989 = vpack.c.b16 %v4074, %v4069
          %v4990 = vpack.c.b16 %v4080, %v4075
          %v4991 = vpack.c.b16 %v4081, %v4076
          %v4992 = vpack.c.b16 %v4082, %v4077
          %v4993 = vpack.c.b16 %v4083, %v4078
          %v4994 = vpack.c.b16 %v4084, %v4079
          %v4995 = vpack.c.b16 %v4090, %v4085
          %v4996 = vpack.c.b16 %v4091, %v4086
          %v4997 = vpack.c.b16 %v4092, %v4087
          %v4998 = vpack.c.b16 %v4093, %v4088
          %v4999 = vpack.c.b16 %v4094, %v4089
          %v5000 = vpack.c.b16 %v4100, %v4095
          %v5001 = vpack.c.b16 %v4101, %v4096
          %v5002 = vpack.c.b16 %v4102, %v4097
          %v5003 = vpack.c.b16 %v4103, %v4098
          %v5004 = vpack.c.b16 %v4104, %v4099
          %v5005 = vpack.c.b16 %v4110, %v4105
          %v5006 = vpack.c.b16 %v4111, %v4106
          %v5007 = vpack.c.b16 %v4112, %v4107
          %v5008 = vpack.c.b16 %v4113, %v4108
          %v5009 = vpack.c.b16 %v4114, %v4109
          %v5010 = vpack.c.b16 %v4120, %v4115
          %v5011 = vpack.c.b16 %v4121, %v4116
          %v5012 = vpack.c.b16 %v4122, %v4117
          %v5013 = vpack.c.b16 %v4123, %v4118
          %v5014 = vpack.c.b16 %v4124, %v4119
          %v5015 = vpack.c.b16 %v4130, %v4125
          %v5016 = vpack.c.b16 %v4131, %v4126
          %v5017 = vpack.c.b16 %v4132, %v4127
          %v5018 = vpack.c.b16 %v4133, %v4128
          %v5019 = vpack.c.b16 %v4134, %v4129
          %v5020 = vpack.c.b16 %v4140, %v4135
          %v5021 = vpack.c.b16 %v4141, %v4136
          %v5022 = vpack.c.b16 %v4142, %v4137
          %v5023 = vpack.c.b16 %v4143, %v4138
          %v5024 = vpack.c.b16 %v4144, %v4139
          %v5025 = vpack.c.b16 %v4150, %v4145
          %v5026 = vpack.c.b16 %v4151, %v4146
          %v5027 = vpack.c.b16 %v4152, %v4147
          %v5028 = vpack.c.b16 %v4153, %v4148
          %v5029 = vpack.c.b16 %v4154, %v4149
          %v5030 = vpack.c.b16 %v4160, %v4155
          %v5031 = vpack.c.b16 %v4161, %v4156
          %v5032 = vpack.c.b16 %v4162, %v4157
          %v5033 = vpack.c.b16 %v4163, %v4158
          %v5034 = vpack.c.b16 %v4164, %v4159
          %v5035 = vpack.c.b16 %v4170, %v4165
          %v5036 = vpack.c.b16 %v4171, %v4166
          %v5037 = vpack.c.b16 %v4172, %v4167
          %v5038 = vpack.c.b16 %v4173, %v4168
          %v5039 = vpack.c.b16 %v4174, %v4169
          %v5040 = vpack.c.b16 %v4180, %v4175
          %v5041 = vpack.c.b16 %v4181, %v4176
          %v5042 = vpack.c.b16 %v4182, %v4177
          %v5043 = vpack.c.b16 %v4183, %v4178
          %v5044 = vpack.c.b16 %v4184, %v4179
          %v5045 = vpack.c.b16 %v4190, %v4185
          %v5046 = vpack.c.b16 %v4191, %v4186
          %v5047 = vpack.c.b16 %v4192, %v4187
          %v5048 = vpack.c.b16 %v4193, %v4188
          %v5049 = vpack.c.b16 %v4194, %v4189
          %v5050 = vpack.c.b16 %v4200, %v4195
          %v5051 = vpack.c.b16 %v4201, %v4196
          %v5052 = vpack.c.b16 %v4202, %v4197
          %v5053 = vpack.c.b16 %v4203, %v4198
          %v5054 = vpack.c.b16 %v4204, %v4199
          %v5055 = vpack.c.b16 %v4210, %v4205
          %v5056 = vpack.c.b16 %v4211, %v4206
          %v5057 = vpack.c.b16 %v4212, %v4207
          %v5058 = vpack.c.b16 %v4213, %v4208
          %v5059 = vpack.c.b16 %v4214, %v4209
          %v5060 = vpack.c.b16 %v4220, %v4215
          %v5061 = vpack.c.b16 %v4221, %v4216
          %v5062 = vpack.c.b16 %v4222, %v4217
          %v5063 = vpack.c.b16 %v4223, %v4218
          %v5064 = vpack.c.b16 %v4224, %v4219
          %v5065 = vpack.c.b16 %v4230, %v4225
          %v5066 = vpack.c.b16 %v4231, %v4226
          %v5067 = vpack.c.b16 %v4232, %v4227
          %v5068 = vpack.c.b16 %v4233, %v4228
          %v5069 = vpack.c.b16 %v4234, %v4229
          %v5070 = vpack.c.b16 %v4240, %v4235
          %v5071 = vpack.c.b16 %v4241, %v4236
          %v5072 = vpack.c.b16 %v4242, %v4237
          %v5073 = vpack.c.b16 %v4243, %v4238
          %v5074 = vpack.c.b16 %v4244, %v4239
          %v5075 = vpack.c.b16 %v4250, %v4245
          %v5076 = vpack.c.b16 %v4251, %v4246
          %v5077 = vpack.c.b16 %v4252, %v4247
          %v5078 = vpack.c.b16 %v4253, %v4248
          %v5079 = vpack.c.b16 %v4254, %v4249
          %v5080 = vpack.c.b16 %v4260, %v4255
          %v5081 = vpack.c.b16 %v4261, %v4256
          %v5082 = vpack.c.b16 %v4262, %v4257
          %v5083 = vpack.c.b16 %v4263, %v4258
          %v5084 = vpack.c.b16 %v4264, %v4259
          %v5085 = vpack.c.b16 %v4270, %v4265
          %v5086 = vpack.c.b16 %v4271, %v4266
          %v5087 = vpack.c.b16 %v4272, %v4267
          %v5088 = vpack.c.b16 %v4273, %v4268
          %v5089 = vpack.c.b16 %v4274, %v4269
          %v5090 = vpack.c.b16 %v4280, %v4275
          %v5091 = vpack.c.b16 %v4281, %v4276
          %v5092 = vpack.c.b16 %v4282, %v4277
          %v5093 = vpack.c.b16 %v4283, %v4278
          %v5094 = vpack.c.b16 %v4284, %v4279
          %v5095 = vpack.c.b16 %v4290, %v4285
          %v5096 = vpack.c.b16 %v4291, %v4286
          %v5097 = vpack.c.b16 %v4292, %v4287
          %v5098 = vpack.c.b16 %v4293, %v4288
          %v5099 = vpack.c.b16 %v4294, %v4289
          %v5100 = vpack.c.b16 %v4300, %v4295
          %v5101 = vpack.c.b16 %v4301, %v4296
          %v5102 = vpack.c.b16 %v4302, %v4297
          %v5103 = vpack.c.b16 %v4303, %v4298
          %v5104 = vpack.c.b16 %v4304, %v4299
          %v5105 = vpack.c.b16 %v4310, %v4305
          %v5106 = vpack.c.b16 %v4311, %v4306
          %v5107 = vpack.c.b16 %v4312, %v4307
          %v5108 = vpack.c.b16 %v4313, %v4308
          %v5109 = vpack.c.b16 %v4314, %v4309
          %v5110 = vpack.c.b16 %v4320, %v4315
          %v5111 = vpack.c.b16 %v4321, %v4316
          %v5112 = vpack.c.b16 %v4322, %v4317
          %v5113 = vpack.c.b16 %v4323, %v4318
          %v5114 = vpack.c.b16 %v4324, %v4319
          %v5115 = vpack.c.b16 %v4330, %v4325
          %v5116 = vpack.c.b16 %v4331, %v4326
          %v5117 = vpack.c.b16 %v4332, %v4327
          %v5118 = vpack.c.b16 %v4333, %v4328
          %v5119 = vpack.c.b16 %v4334, %v4329
          %v5120 = vpack.c.b16 %v4340, %v4335
          %v5121 = vpack.c.b16 %v4341, %v4336
          %v5122 = vpack.c.b16 %v4342, %v4337
          %v5123 = vpack.c.b16 %v4343, %v4338
          %v5124 = vpack.c.b16 %v4344, %v4339
          %v5125 = vpack.c.b16 %v4350, %v4345
          %v5126 = vpack.c.b16 %v4351, %v4346
          %v5127 = vpack.c.b16 %v4352, %v4347
          %v5128 = vpack.c.b16 %v4353, %v4348
          %v5129 = vpack.c.b16 %v4354, %v4349
          %v5130 = vpack.c.b16 %v4360, %v4355
          %v5131 = vpack.c.b16 %v4361, %v4356
          %v5132 = vpack.c.b16 %v4362, %v4357
          %v5133 = vpack.c.b16 %v4363, %v4358
          %v5134 = vpack.c.b16 %v4364, %v4359
          %v5135 = vpack.c.b16 %v4370, %v4365
          %v5136 = vpack.c.b16 %v4371, %v4366
          %v5137 = vpack.c.b16 %v4372, %v4367
          %v5138 = vpack.c.b16 %v4373, %v4368
          %v5139 = vpack.c.b16 %v4374, %v4369
          %v5140 = vpack.c.b16 %v4380, %v4375
          %v5141 = vpack.c.b16 %v4381, %v4376
          %v5142 = vpack.c.b16 %v4382, %v4377
          %v5143 = vpack.c.b16 %v4383, %v4378
          %v5144 = vpack.c.b16 %v4384, %v4379
          %v5145 = vpack.c.b16 %v4390, %v4385
          %v5146 = vpack.c.b16 %v4391, %v4386
          %v5147 = vpack.c.b16 %v4392, %v4387
          %v5148 = vpack.c.b16 %v4393, %v4388
          %v5149 = vpack.c.b16 %v4394, %v4389
          %v5150 = vpack.c.b16 %v4400, %v4395
          %v5151 = vpack.c.b16 %v4401, %v4396
          %v5152 = vpack.c.b16 %v4402, %v4397
          %v5153 = vpack.c.b16 %v4403, %v4398
          %v5154 = vpack.c.b16 %v4404, %v4399
          %v5155 = vpack.c.b16 %v4410, %v4405
          %v5156 = vpack.c.b16 %v4411, %v4406
          %v5157 = vpack.c.b16 %v4412, %v4407
          %v5158 = vpack.c.b16 %v4413, %v4408
          %v5159 = vpack.c.b16 %v4414, %v4409
          %v5160 = vpack.c.b16 %v4420, %v4415
          %v5161 = vpack.c.b16 %v4421, %v4416
          %v5162 = vpack.c.b16 %v4422, %v4417
          %v5163 = vpack.c.b16 %v4423, %v4418
          %v5164 = vpack.c.b16 %v4424, %v4419
          %v5165 = vpack.c.b16 %v4430, %v4425
          %v5166 = vpack.c.b16 %v4431, %v4426
          %v5167 = vpack.c.b16 %v4432, %v4427
          %v5168 = vpack.c.b16 %v4433, %v4428
          %v5169 = vpack.c.b16 %v4434, %v4429
          %v5170 = vpack.c.b16 %v4440, %v4435
          %v5171 = vpack.c.b16 %v4441, %v4436
          %v5172 = vpack.c.b16 %v4442, %v4437
          %v5173 = vpack.c.b16 %v4443, %v4438
          %v5174 = vpack.c.b16 %v4444, %v4439
          %v5175 = vpack.c.b16 %v4450, %v4445
          %v5176 = vpack.c.b16 %v4451, %v4446
          %v5177 = vpack.c.b16 %v4452, %v4447
          %v5178 = vpack.c.b16 %v4453, %v4448
          %v5179 = vpack.c.b16 %v4454, %v4449
          %v5180 = vpack.c.b16 %v4460, %v4455
          %v5181 = vpack.c.b16 %v4461, %v4456
          %v5182 = vpack.c.b16 %v4462, %v4457
          %v5183 = vpack.c.b16 %v4463, %v4458
          %v5184 = vpack.c.b16 %v4464, %v4459
          %v5185 = vpack.c.b16 %v4470, %v4465
          %v5186 = vpack.c.b16 %v4471, %v4466
          %v5187 = vpack.c.b16 %v4472, %v4467
          %v5188 = vpack.c.b16 %v4473, %v4468
          %v5189 = vpack.c.b16 %v4474, %v4469
          %v5190 = vpack.c.b16 %v4480, %v4475
          %v5191 = vpack.c.b16 %v4481, %v4476
          %v5192 = vpack.c.b16 %v4482, %v4477
          %v5193 = vpack.c.b16 %v4483, %v4478
          %v5194 = vpack.c.b16 %v4484, %v4479
          %v5195 = vpack.c.b16 %v4490, %v4485
          %v5196 = vpack.c.b16 %v4491, %v4486
          %v5197 = vpack.c.b16 %v4492, %v4487
          %v5198 = vpack.c.b16 %v4493, %v4488
          %v5199 = vpack.c.b16 %v4494, %v4489
          %v5200 = vpack.c.b16 %v4500, %v4495
          %v5201 = vpack.c.b16 %v4501, %v4496
          %v5202 = vpack.c.b16 %v4502, %v4497
          %v5203 = vpack.c.b16 %v4503, %v4498
          %v5204 = vpack.c.b16 %v4504, %v4499
          %v5205 = vpack.c.b16 %v4510, %v4505
          %v5206 = vpack.c.b16 %v4511, %v4506
          %v5207 = vpack.c.b16 %v4512, %v4507
          %v5208 = vpack.c.b16 %v4513, %v4508
          %v5209 = vpack.c.b16 %v4514, %v4509
          %v5210 = vpack.c.b16 %v4520, %v4515
          %v5211 = vpack.c.b16 %v4521, %v4516
          %v5212 = vpack.c.b16 %v4522, %v4517
          %v5213 = vpack.c.b16 %v4523, %v4518
          %v5214 = vpack.c.b16 %v4524, %v4519
          %v5215 = vpack.c.b16 %v4530, %v4525
          %v5216 = vpack.c.b16 %v4531, %v4526
          %v5217 = vpack.c.b16 %v4532, %v4527
          %v5218 = vpack.c.b16 %v4533, %v4528
          %v5219 = vpack.c.b16 %v4534, %v4529
          %v5220 = vpack.c.b16 %v4540, %v4535
          %v5221 = vpack.c.b16 %v4541, %v4536
          %v5222 = vpack.c.b16 %v4542, %v4537
          %v5223 = vpack.c.b16 %v4543, %v4538
          %v5224 = vpack.c.b16 %v4544, %v4539
          %v5225 = vpack.c.b16 %v4550, %v4545
          %v5226 = vpack.c.b16 %v4551, %v4546
          %v5227 = vpack.c.b16 %v4552, %v4547
          %v5228 = vpack.c.b16 %v4553, %v4548
          %v5229 = vpack.c.b16 %v4554, %v4549
          %v5230 = vpack.c.b16 %v4560, %v4555
          %v5231 = vpack.c.b16 %v4561, %v4556
          %v5232 = vpack.c.b16 %v4562, %v4557
          %v5233 = vpack.c.b16 %v4563, %v4558
          %v5234 = vpack.c.b16 %v4564, %v4559
          %v5235 = vpack.c.b16 %v4570, %v4565
          %v5236 = vpack.c.b16 %v4571, %v4566
          %v5237 = vpack.c.b16 %v4572, %v4567
          %v5238 = vpack.c.b16 %v4573, %v4568
          %v5239 = vpack.c.b16 %v4574, %v4569
          %v5240 = vpack.c.b16 %v4580, %v4575
          %v5241 = vpack.c.b16 %v4581, %v4576
          %v5242 = vpack.c.b16 %v4582, %v4577
          %v5243 = vpack.c.b16 %v4583, %v4578
          %v5244 = vpack.c.b16 %v4584, %v4579
          %v5245 = vpack.c.b16 %v4590, %v4585
          %v5246 = vpack.c.b16 %v4591, %v4586
          %v5247 = vpack.c.b16 %v4592, %v4587
          %v5248 = vpack.c.b16 %v4593, %v4588
          %v5249 = vpack.c.b16 %v4594, %v4589
          %v5250 = vpack.c.b16 %v4600, %v4595
          %v5251 = vpack.c.b16 %v4601, %v4596
          %v5252 = vpack.c.b16 %v4602, %v4597
          %v5253 = vpack.c.b16 %v4603, %v4598
          %v5254 = vpack.c.b16 %v4604, %v4599
          %v5255 = vpack.c.b16 %v4610, %v4605
          %v5256 = vpack.c.b16 %v4611, %v4606
          %v5257 = vpack.c.b16 %v4612, %v4607
          %v5258 = vpack.c.b16 %v4613, %v4608
          %v5259 = vpack.c.b16 %v4614, %v4609
          %v5260 = vpack.c.b16 %v4620, %v4615
          %v5261 = vpack.c.b16 %v4621, %v4616
          %v5262 = vpack.c.b16 %v4622, %v4617
          %v5263 = vpack.c.b16 %v4623, %v4618
          %v5264 = vpack.c.b16 %v4624, %v4619
          %v5265 = vpack.c.b16 %v4630, %v4625
          %v5266 = vpack.c.b16 %v4631, %v4626
          %v5267 = vpack.c.b16 %v4632, %v4627
          %v5268 = vpack.c.b16 %v4633, %v4628
          %v5269 = vpack.c.b16 %v4634, %v4629
          %v5270 = vpack.c.b16 %v4640, %v4635
          %v5271 = vpack.c.b16 %v4641, %v4636
          %v5272 = vpack.c.b16 %v4642, %v4637
          %v5273 = vpack.c.b16 %v4643, %v4638
          %v5274 = vpack.c.b16 %v4644, %v4639
          %v5275 = vpack.c.b16 %v4650, %v4645
          %v5276 = vpack.c.b16 %v4651, %v4646
          %v5277 = vpack.c.b16 %v4652, %v4647
          %v5278 = vpack.c.b16 %v4653, %v4648
          %v5279 = vpack.c.b16 %v4654, %v4649
          %v5280 = vpack.c.b16 %v4660, %v4655
          %v5281 = vpack.c.b16 %v4661, %v4656
          %v5282 = vpack.c.b16 %v4662, %v4657
          %v5283 = vpack.c.b16 %v4663, %v4658
          %v5284 = vpack.c.b16 %v4664, %v4659
          %v5285 = vpack.c.b16 %v4670, %v4665
          %v5286 = vpack.c.b16 %v4671, %v4666
          %v5287 = vpack.c.b16 %v4672, %v4667
          %v5288 = vpack.c.b16 %v4673, %v4668
          %v5289 = vpack.c.b16 %v4674, %v4669
          %v5290 = vpack.c.b16 %v4680, %v4675
          %v5291 = vpack.c.b16 %v4681, %v4676
          %v5292 = vpack.c.b16 %v4682, %v4677
          %v5293 = vpack.c.b16 %v4683, %v4678
          %v5294 = vpack.c.b16 %v4684, %v4679
          %v5295 = vpack.c.b16 %v4690, %v4685
          %v5296 = vpack.c.b16 %v4691, %v4686
          %v5297 = vpack.c.b16 %v4692, %v4687
          %v5298 = vpack.c.b16 %v4693, %v4688
          %v5299 = vpack.c.b16 %v4694, %v4689
          %v5300 = vpack.c.b16 %v4700, %v4695
          %v5301 = vpack.c.b16 %v4701, %v4696
          %v5302 = vpack.c.b16 %v4702, %v4697
          %v5303 = vpack.c.b16 %v4703, %v4698
          %v5304 = vpack.c.b16 %v4704, %v4699
          %v5305 = vpack.c.b16 %v4710, %v4705
          %v5306 = vpack.c.b16 %v4711, %v4706
          %v5307 = vpack.c.b16 %v4712, %v4707
          %v5308 = vpack.c.b16 %v4713, %v4708
          %v5309 = vpack.c.b16 %v4714, %v4709
          %v5310 = vpack.c.b16 %v4720, %v4715
          %v5311 = vpack.c.b16 %v4721, %v4716
          %v5312 = vpack.c.b16 %v4722, %v4717
          %v5313 = vpack.c.b16 %v4723, %v4718
          %v5314 = vpack.c.b16 %v4724, %v4719
          %v5315 = vpack.c.b16 %v4730, %v4725
          %v5316 = vpack.c.b16 %v4731, %v4726
          %v5317 = vpack.c.b16 %v4732, %v4727
          %v5318 = vpack.c.b16 %v4733, %v4728
          %v5319 = vpack.c.b16 %v4734, %v4729
          %v5320 = vpack.c.b16 %v4740, %v4735
          %v5321 = vpack.c.b16 %v4741, %v4736
          %v5322 = vpack.c.b16 %v4742, %v4737
          %v5323 = vpack.c.b16 %v4743, %v4738
          %v5324 = vpack.c.b16 %v4744, %v4739
          %v5325 = vpack.c.b16 %v4750, %v4745
          %v5326 = vpack.c.b16 %v4751, %v4746
          %v5327 = vpack.c.b16 %v4752, %v4747
          %v5328 = vpack.c.b16 %v4753, %v4748
          %v5329 = vpack.c.b16 %v4754, %v4749
          %v5330 = vpack.c.b16 %v4760, %v4755
          %v5331 = vpack.c.b16 %v4761, %v4756
          %v5332 = vpack.c.b16 %v4762, %v4757
          %v5333 = vpack.c.b16 %v4763, %v4758
          %v5334 = vpack.c.b16 %v4764, %v4759
          %v5335 = vpack.c.b16 %v4770, %v4765
          %v5336 = vpack.c.b16 %v4771, %v4766
          %v5337 = vpack.c.b16 %v4772, %v4767
          %v5338 = vpack.c.b16 %v4773, %v4768
          %v5339 = vpack.c.b16 %v4774, %v4769
          %v5340 = vpack.c.b16 %v4780, %v4775
          %v5341 = vpack.c.b16 %v4781, %v4776
          %v5342 = vpack.c.b16 %v4782, %v4777
          %v5343 = vpack.c.b16 %v4783, %v4778
          %v5344 = vpack.c.b16 %v4784, %v4779
          %v5345 = vpack.c.b16 %v4790, %v4785
          %v5346 = vpack.c.b16 %v4791, %v4786
          %v5347 = vpack.c.b16 %v4792, %v4787
          %v5348 = vpack.c.b16 %v4793, %v4788
          %v5349 = vpack.c.b16 %v4794, %v4789
          %v5350 = vpack.c.b16 %v4800, %v4795
          %v5351 = vpack.c.b16 %v4801, %v4796
          %v5352 = vpack.c.b16 %v4802, %v4797
          %v5353 = vpack.c.b16 %v4803, %v4798
          %v5354 = vpack.c.b16 %v4804, %v4799
          %v5355 = vpack.c.b16 %v4810, %v4805
          %v5356 = vpack.c.b16 %v4811, %v4806
          %v5357 = vpack.c.b16 %v4812, %v4807
          %v5358 = vpack.c.b16 %v4813, %v4808
          %v5359 = vpack.c.b16 %v4814, %v4809
          %v5360 = vpack.c.b16 %v4820, %v4815
          %v5361 = vpack.c.b16 %v4821, %v4816
          %v5362 = vpack.c.b16 %v4822, %v4817
          %v5363 = vpack.c.b16 %v4823, %v4818
          %v5364 = vpack.c.b16 %v4824, %v4819
          %v5365 = vpack.c.b16 %v4830, %v4825
          %v5366 = vpack.c.b16 %v4831, %v4826
          %v5367 = vpack.c.b16 %v4832, %v4827
          %v5368 = vpack.c.b16 %v4833, %v4828
          %v5369 = vpack.c.b16 %v4834, %v4829
          %v5370 = vpack.c.b16 %v4840, %v4835
          %v5371 = vpack.c.b16 %v4841, %v4836
          %v5372 = vpack.c.b16 %v4842, %v4837
          %v5373 = vpack.c.b16 %v4843, %v4838
          %v5374 = vpack.c.b16 %v4844, %v4839
          %v5375 = vpack.c.b16 %v4850, %v4845
          %v5376 = vpack.c.b16 %v4851, %v4846
          %v5377 = vpack.c.b16 %v4852, %v4847
          %v5378 = vpack.c.b16 %v4853, %v4848
          %v5379 = vpack.c.b16 %v4854, %v4849
          %v5380 = vpack.c.b16 %v4860, %v4855
          %v5381 = vpack.c.b16 %v4861, %v4856
          %v5382 = vpack.c.b16 %v4862, %v4857
          %v5383 = vpack.c.b16 %v4863, %v4858
          %v5384 = vpack.c.b16 %v4864, %v4859
          %v5385 = vpack.c.b16 %v4870, %v4865
          %v5386 = vpack.c.b16 %v4871, %v4866
          %v5387 = vpack.c.b16 %v4872, %v4867
          %v5388 = vpack.c.b16 %v4873, %v4868
          %v5389 = vpack.c.b16 %v4874, %v4869
          %v5390 = vpack.c.b16 %v4880, %v4875
          %v5391 = vpack.c.b16 %v4881, %v4876
          %v5392 = vpack.c.b16 %v4882, %v4877
          %v5393 = vpack.c.b16 %v4883, %v4878
          %v5394 = vpack.c.b16 %v4884, %v4879
          %v5395 = vpack.c.b16 %v4890, %v4885
          %v5396 = vpack.c.b16 %v4891, %v4886
          %v5397 = vpack.c.b16 %v4892, %v4887
          %v5398 = vpack.c.b16 %v4893, %v4888
          %v5399 = vpack.c.b16 %v4894, %v4889
          %v5400 = vpack.c.b16 %v4900, %v4895
          %v5401 = vpack.c.b16 %v4901, %v4896
          %v5402 = vpack.c.b16 %v4902, %v4897
          %v5403 = vpack.c.b16 %v4903, %v4898
          %v5404 = vpack.c.b16 %v4904, %v4899
          %v5405 = vpack.c.b16 %v4910, %v4905
          %v5406 = vpack.c.b16 %v4911, %v4906
          %v5407 = vpack.c.b16 %v4912, %v4907
          %v5408 = vpack.c.b16 %v4913, %v4908
          %v5409 = vpack.c.b16 %v4914, %v4909
          %v5410 = vpack.c.b16 %v4920, %v4915
          %v5411 = vpack.c.b16 %v4921, %v4916
          %v5412 = vpack.c.b16 %v4922, %v4917
          %v5413 = vpack.c.b16 %v4923, %v4918
          %v5414 = vpack.c.b16 %v4924, %v4919
          %v5415 = vpack.c.b16 %v4930, %v4925
          %v5416 = vpack.c.b16 %v4931, %v4926
          %v5417 = vpack.c.b16 %v4932, %v4927
          %v5418 = vpack.c.b16 %v4933, %v4928
          %v5419 = vpack.c.b16 %v4934, %v4929
          %v5420 = vpack.c.b16 %v4940, %v4935
          %v5421 = vpack.c.b16 %v4941, %v4936
          %v5422 = vpack.c.b16 %v4942, %v4937
          %v5423 = vpack.c.b16 %v4943, %v4938
          %v5424 = vpack.c.b16 %v4944, %v4939
          %v5906 = vlaneseq
          %v5907 = vshrl.u32 %v5906, 7
          %v5908 = vsub.s32 0, %v5907
          %v5909 = vrot.slane %v3408, %v5908
          %v5910 = vlaneseq
          %v5911 = vshrl.u32 %v5910, 7
          %v5912 = vsub.s32 1, %v5911
          %v5913 = vrot.slane %v3408, %v5912
          %v5914 = vlaneseq
          %v5915 = vshrl.u32 %v5914, 7
          %v5916 = vsub.s32 2, %v5915
          %v5917 = vrot.slane %v3408, %v5916
          %v5918 = vlaneseq
          %v5919 = vshrl.u32 %v5918, 7
          %v5920 = vsub.s32 3, %v5919
          %v5921 = vrot.slane %v3408, %v5920
          %v5922 = vlaneseq
          %v5923 = vshrl.u32 %v5922, 7
          %v5924 = vsub.s32 4, %v5923
          %v5925 = vrot.slane %v3408, %v5924
          %5931 = vmatprep.subr.bf16.mxu0 %v4946
          %5932 = vmatpush1.bf16.msra.mxu0 %v4945
          %5933 = vmatprep.subr.bf16.mxu0 %v4951
          %5934 = vmatpush1.bf16.msra.mxu0 %v4950
          %5935 = vmatprep.subr.bf16.mxu0 %v4956
          %5936 = vmatpush1.bf16.msra.mxu0 %v4955
          %5937 = vmatprep.subr.bf16.mxu0 %v4961
          %5938 = vmatpush1.bf16.msra.mxu0 %v4960
          %5939 = vmatprep.subr.bf16.mxu0 %v4966
          %5940 = vmatpush1.bf16.msra.mxu0 %v4965
          %5941 = vmatprep.subr.bf16.mxu0 %v4971
          %5942 = vmatpush1.bf16.msra.mxu0 %v4970
          %5943 = vmatprep.subr.bf16.mxu0 %v4976
          %5944 = vmatpush1.bf16.msra.mxu0 %v4975
          %5945 = vmatprep.subr.bf16.mxu0 %v4981
          %5946 = vmatpush1.bf16.msra.mxu0 %v4980
          %5947 = vmatprep.subr.bf16.mxu0 %v4986
          %5948 = vmatpush1.bf16.msra.mxu0 %v4985
          %5949 = vmatprep.subr.bf16.mxu0 %v4991
          %5950 = vmatpush1.bf16.msra.mxu0 %v4990
          %5951 = vmatprep.subr.bf16.mxu0 %v4996
          %5952 = vmatpush1.bf16.msra.mxu0 %v4995
          %5953 = vmatprep.subr.bf16.mxu0 %v5001
          %5954 = vmatpush1.bf16.msra.mxu0 %v5000
          %5955 = vmatprep.subr.bf16.mxu0 %v5006
          %5956 = vmatpush1.bf16.msra.mxu0 %v5005
          %5957 = vmatprep.subr.bf16.mxu0 %v5011
          %5958 = vmatpush1.bf16.msra.mxu0 %v5010
          %5959 = vmatprep.subr.bf16.mxu0 %v5016
          %5960 = vmatpush1.bf16.msra.mxu0 %v5015
          %5961 = vmatprep.subr.bf16.mxu0 %v5021
          %5962 = vmatpush1.bf16.msra.mxu0 %v5020
          %5963 = vmatprep.mubr.bf16.mxu0 %v2821
          %5964 = vmatmul.mubr.bf16.gmra.mrb[0].mxu0 %v2820
          %v5965 = vpop.f32.mrb[0].mxu0
          %v5966 = vadd.f32 %v5909, %v5965
          %v5967 = vpop.f32.mrb[0].mxu0
          %v5968 = vadd.f32 %v5913, %v5967
          %v5969 = vpop.f32.mrb[0].mxu0
          %v5970 = vpop.f32.mrb[0].mxu0
          %5971 = vdwg.mxu0
          %5972 = vmatprep.subr.bf16.mxu0 %v5026
          %5973 = vmatpush1.bf16.msra.mxu0 %v5025
          %5974 = vmatprep.subr.bf16.mxu0 %v5031
          %5975 = vmatpush1.bf16.msra.mxu0 %v5030
          %5976 = vmatprep.subr.bf16.mxu0 %v5036
          %5977 = vmatpush1.bf16.msra.mxu0 %v5035
          %5978 = vmatprep.subr.bf16.mxu0 %v5041
          %5979 = vmatpush1.bf16.msra.mxu0 %v5040
          %5980 = vmatprep.subr.bf16.mxu0 %v5046
          %5981 = vmatpush1.bf16.msra.mxu0 %v5045
          %5982 = vmatprep.subr.bf16.mxu0 %v5051
          %5983 = vmatpush1.bf16.msra.mxu0 %v5050
          %5984 = vmatprep.subr.bf16.mxu0 %v5056
          %5985 = vmatpush1.bf16.msra.mxu0 %v5055
          %5986 = vmatprep.subr.bf16.mxu0 %v5061
          %5987 = vmatpush1.bf16.msra.mxu0 %v5060
          %5988 = vmatprep.subr.bf16.mxu0 %v5066
          %5989 = vmatpush1.bf16.msra.mxu0 %v5065
          %5990 = vmatprep.subr.bf16.mxu0 %v5071
          %5991 = vmatpush1.bf16.msra.mxu0 %v5070
          %5992 = vmatprep.subr.bf16.mxu0 %v5076
          %5993 = vmatpush1.bf16.msra.mxu0 %v5075
          %5994 = vmatprep.subr.bf16.mxu0 %v5081
          %5995 = vmatpush1.bf16.msra.mxu0 %v5080
          %5996 = vmatprep.subr.bf16.mxu0 %v5086
          %5997 = vmatpush1.bf16.msra.mxu0 %v5085
          %5998 = vmatprep.subr.bf16.mxu0 %v5091
          %5999 = vmatpush1.bf16.msra.mxu0 %v5090
          %6000 = vmatprep.subr.bf16.mxu0 %v5096
          %6001 = vmatpush1.bf16.msra.mxu0 %v5095
          %6002 = vmatprep.subr.bf16.mxu0 %v5101
          %6003 = vmatpush1.bf16.msra.mxu0 %v5100
          %6004 = vmatprep.mubr.bf16.mxu0 %v2823
          %6005 = vmatmul.mubr.bf16.gmra.mrb[0].mxu0 %v2822
          %v6006 = vpop.f32.mrb[0].mxu0
          %v6007 = vadd.f32 %v5966, %v6006
          %v6008 = vpop.f32.mrb[0].mxu0
          %v6009 = vadd.f32 %v5968, %v6008
          %v6010 = vpop.f32.mrb[0].mxu0
          %v6011 = vpop.f32.mrb[0].mxu0
          %6012 = vdwg.mxu0
          %6013 = vmatprep.subr.bf16.mxu0 %v5106
          %6014 = vmatpush1.bf16.msra.mxu0 %v5105
          %6015 = vmatprep.subr.bf16.mxu0 %v5111
          %6016 = vmatpush1.bf16.msra.mxu0 %v5110
          %6017 = vmatprep.subr.bf16.mxu0 %v5116
          %6018 = vmatpush1.bf16.msra.mxu0 %v5115
          %6019 = vmatprep.subr.bf16.mxu0 %v5121
          %6020 = vmatpush1.bf16.msra.mxu0 %v5120
          %6021 = vmatprep.subr.bf16.mxu0 %v5126
          %6022 = vmatpush1.bf16.msra.mxu0 %v5125
          %6023 = vmatprep.subr.bf16.mxu0 %v5131
          %6024 = vmatpush1.bf16.msra.mxu0 %v5130
          %6025 = vmatprep.subr.bf16.mxu0 %v5136
          %6026 = vmatpush1.bf16.msra.mxu0 %v5135
          %6027 = vmatprep.subr.bf16.mxu0 %v5141
          %6028 = vmatpush1.bf16.msra.mxu0 %v5140
          %6029 = vmatprep.subr.bf16.mxu0 %v5146
          %6030 = vmatpush1.bf16.msra.mxu0 %v5145
          %6031 = vmatprep.subr.bf16.mxu0 %v5151
          %6032 = vmatpush1.bf16.msra.mxu0 %v5150
          %6033 = vmatprep.subr.bf16.mxu0 %v5156
          %6034 = vmatpush1.bf16.msra.mxu0 %v5155
          %6035 = vmatprep.subr.bf16.mxu0 %v5161
          %6036 = vmatpush1.bf16.msra.mxu0 %v5160
          %6037 = vmatprep.subr.bf16.mxu0 %v5166
          %6038 = vmatpush1.bf16.msra.mxu0 %v5165
          %6039 = vmatprep.subr.bf16.mxu0 %v5171
          %6040 = vmatpush1.bf16.msra.mxu0 %v5170
          %6041 = vmatprep.subr.bf16.mxu0 %v5176
          %6042 = vmatpush1.bf16.msra.mxu0 %v5175
          %6043 = vmatprep.subr.bf16.mxu0 %v5181
          %6044 = vmatpush1.bf16.msra.mxu0 %v5180
          %6045 = vmatprep.mubr.bf16.mxu0 %v2825
          %6046 = vmatmul.mubr.bf16.gmra.mrb[0].mxu0 %v2824
          %v6047 = vpop.f32.mrb[0].mxu0
          %v6048 = vadd.f32 %v6007, %v6047
          %v6049 = vpop.f32.mrb[0].mxu0
          %v6050 = vadd.f32 %v6009, %v6049
          %v6051 = vpop.f32.mrb[0].mxu0
          %v6052 = vpop.f32.mrb[0].mxu0
          %6053 = vdwg.mxu0
          %6054 = vmatprep.subr.bf16.mxu0 %v5186
          %6055 = vmatpush1.bf16.msra.mxu0 %v5185
          %6056 = vmatprep.subr.bf16.mxu0 %v5191
          %6057 = vmatpush1.bf16.msra.mxu0 %v5190
          %6058 = vmatprep.subr.bf16.mxu0 %v5196
          %6059 = vmatpush1.bf16.msra.mxu0 %v5195
          %6060 = vmatprep.subr.bf16.mxu0 %v5201
          %6061 = vmatpush1.bf16.msra.mxu0 %v5200
          %6062 = vmatprep.subr.bf16.mxu0 %v5206
          %6063 = vmatpush1.bf16.msra.mxu0 %v5205
          %6064 = vmatprep.subr.bf16.mxu0 %v5211
          %6065 = vmatpush1.bf16.msra.mxu0 %v5210
          %6066 = vmatprep.subr.bf16.mxu0 %v5216
          %6067 = vmatpush1.bf16.msra.mxu0 %v5215
          %6068 = vmatprep.subr.bf16.mxu0 %v5221
          %6069 = vmatpush1.bf16.msra.mxu0 %v5220
          %6070 = vmatprep.subr.bf16.mxu0 %v5226
          %6071 = vmatpush1.bf16.msra.mxu0 %v5225
          %6072 = vmatprep.subr.bf16.mxu0 %v5231
          %6073 = vmatpush1.bf16.msra.mxu0 %v5230
          %6074 = vmatprep.subr.bf16.mxu0 %v5236
          %6075 = vmatpush1.bf16.msra.mxu0 %v5235
          %6076 = vmatprep.subr.bf16.mxu0 %v5241
          %6077 = vmatpush1.bf16.msra.mxu0 %v5240
          %6078 = vmatprep.subr.bf16.mxu0 %v5246
          %6079 = vmatpush1.bf16.msra.mxu0 %v5245
          %6080 = vmatprep.subr.bf16.mxu0 %v5251
          %6081 = vmatpush1.bf16.msra.mxu0 %v5250
          %6082 = vmatprep.subr.bf16.mxu0 %v5256
          %6083 = vmatpush1.bf16.msra.mxu0 %v5255
          %6084 = vmatprep.subr.bf16.mxu0 %v5261
          %6085 = vmatpush1.bf16.msra.mxu0 %v5260
          %6086 = vmatprep.mubr.bf16.mxu0 %v2827
          %6087 = vmatmul.mubr.bf16.gmra.mrb[0].mxu0 %v2826
          %v6088 = vpop.f32.mrb[0].mxu0
          %v6089 = vadd.f32 %v6048, %v6088
          %v6090 = vpop.f32.mrb[0].mxu0
          %v6091 = vadd.f32 %v6050, %v6090
          %v6092 = vpop.f32.mrb[0].mxu0
          %v6093 = vpop.f32.mrb[0].mxu0
          %6094 = vdwg.mxu0
          %6095 = vmatprep.subr.bf16.mxu0 %v5266
          %6096 = vmatpush1.bf16.msra.mxu0 %v5265
          %6097 = vmatprep.subr.bf16.mxu0 %v5271
          %6098 = vmatpush1.bf16.msra.mxu0 %v5270
          %6099 = vmatprep.subr.bf16.mxu0 %v5276
          %6100 = vmatpush1.bf16.msra.mxu0 %v5275
          %6101 = vmatprep.subr.bf16.mxu0 %v5281
          %6102 = vmatpush1.bf16.msra.mxu0 %v5280
          %6103 = vmatprep.subr.bf16.mxu0 %v5286
          %6104 = vmatpush1.bf16.msra.mxu0 %v5285
          %6105 = vmatprep.subr.bf16.mxu0 %v5291
          %6106 = vmatpush1.bf16.msra.mxu0 %v5290
          %6107 = vmatprep.subr.bf16.mxu0 %v5296
          %6108 = vmatpush1.bf16.msra.mxu0 %v5295
          %6109 = vmatprep.subr.bf16.mxu0 %v5301
          %6110 = vmatpush1.bf16.msra.mxu0 %v5300
          %6111 = vmatprep.subr.bf16.mxu0 %v5306
          %6112 = vmatpush1.bf16.msra.mxu0 %v5305
          %6113 = vmatprep.subr.bf16.mxu0 %v5311
          %6114 = vmatpush1.bf16.msra.mxu0 %v5310
          %6115 = vmatprep.subr.bf16.mxu0 %v5316
          %6116 = vmatpush1.bf16.msra.mxu0 %v5315
          %6117 = vmatprep.subr.bf16.mxu0 %v5321
          %6118 = vmatpush1.bf16.msra.mxu0 %v5320
          %6119 = vmatprep.subr.bf16.mxu0 %v5326
          %6120 = vmatpush1.bf16.msra.mxu0 %v5325
          %6121 = vmatprep.subr.bf16.mxu0 %v5331
          %6122 = vmatpush1.bf16.msra.mxu0 %v5330
          %6123 = vmatprep.subr.bf16.mxu0 %v5336
          %6124 = vmatpush1.bf16.msra.mxu0 %v5335
          %6125 = vmatprep.subr.bf16.mxu0 %v5341
          %6126 = vmatpush1.bf16.msra.mxu0 %v5340
          %6127 = vmatprep.mubr.bf16.mxu0 %v2829
          %6128 = vmatmul.mubr.bf16.gmra.mrb[0].mxu0 %v2828
          %v6129 = vpop.f32.mrb[0].mxu0
          %v6130 = vadd.f32 %v6089, %v6129
          %v6131 = vpop.f32.mrb[0].mxu0
          %v6132 = vadd.f32 %v6091, %v6131
          %v6133 = vpop.f32.mrb[0].mxu0
          %v6134 = vpop.f32.mrb[0].mxu0
          %6135 = vdwg.mxu0
          %6136 = vmatprep.subr.bf16.mxu0 %v5346
          %6137 = vmatpush1.bf16.msra.mxu0 %v5345
          %6138 = vmatprep.subr.bf16.mxu0 %v5351
          %6139 = vmatpush1.bf16.msra.mxu0 %v5350
          %6140 = vmatprep.subr.bf16.mxu0 %v5356
          %6141 = vmatpush1.bf16.msra.mxu0 %v5355
          %6142 = vmatprep.subr.bf16.mxu0 %v5361
          %6143 = vmatpush1.bf16.msra.mxu0 %v5360
          %6144 = vmatprep.subr.bf16.mxu0 %v5366
          %6145 = vmatpush1.bf16.msra.mxu0 %v5365
          %6146 = vmatprep.subr.bf16.mxu0 %v5371
          %6147 = vmatpush1.bf16.msra.mxu0 %v5370
          %6148 = vmatprep.subr.bf16.mxu0 %v5376
          %6149 = vmatpush1.bf16.msra.mxu0 %v5375
          %6150 = vmatprep.subr.bf16.mxu0 %v5381
          %6151 = vmatpush1.bf16.msra.mxu0 %v5380
          %6152 = vmatprep.subr.bf16.mxu0 %v5386
          %6153 = vmatpush1.bf16.msra.mxu0 %v5385
          %6154 = vmatprep.subr.bf16.mxu0 %v5391
          %6155 = vmatpush1.bf16.msra.mxu0 %v5390
          %6156 = vmatprep.subr.bf16.mxu0 %v5396
          %6157 = vmatpush1.bf16.msra.mxu0 %v5395
          %6158 = vmatprep.subr.bf16.mxu0 %v5401
          %6159 = vmatpush1.bf16.msra.mxu0 %v5400
          %6160 = vmatprep.subr.bf16.mxu0 %v5406
          %6161 = vmatpush1.bf16.msra.mxu0 %v5405
          %6162 = vmatprep.subr.bf16.mxu0 %v5411
          %6163 = vmatpush1.bf16.msra.mxu0 %v5410
          %6164 = vmatprep.subr.bf16.mxu0 %v5416
          %6165 = vmatpush1.bf16.msra.mxu0 %v5415
          %6166 = vmatprep.subr.bf16.mxu0 %v5421
          %6167 = vmatpush1.bf16.msra.mxu0 %v5420
          %6168 = vmatprep.mubr.bf16.mxu0 %v2831
          %6169 = vmatmul.mubr.bf16.gmra.mrb[0].mxu0 %v2830
          %v6170 = vpop.f32.mrb[0].mxu0
          %v6171 = vadd.f32 %v6130, %v6170
          %v6172 = vpop.f32.mrb[0].mxu0
          %v6173 = vadd.f32 %v6132, %v6172
          %v6174 = vpop.f32.mrb[0].mxu0
          %v6175 = vpop.f32.mrb[0].mxu0
          %6176 = vdwg.mxu0
          %6177 = vmatprep.subr.bf16.mxu0 %v4948
          %6178 = vmatpush1.bf16.msra.mxu0 %v4947
          %6179 = vmatprep.subr.bf16.mxu0 %v4953
          %6180 = vmatpush1.bf16.msra.mxu0 %v4952
          %6181 = vmatprep.subr.bf16.mxu0 %v4958
          %6182 = vmatpush1.bf16.msra.mxu0 %v4957
          %6183 = vmatprep.subr.bf16.mxu0 %v4963
          %6184 = vmatpush1.bf16.msra.mxu0 %v4962
          %6185 = vmatprep.subr.bf16.mxu0 %v4968
          %6186 = vmatpush1.bf16.msra.mxu0 %v4967
          %6187 = vmatprep.subr.bf16.mxu0 %v4973
          %6188 = vmatpush1.bf16.msra.mxu0 %v4972
          %6189 = vmatprep.subr.bf16.mxu0 %v4978
          %6190 = vmatpush1.bf16.msra.mxu0 %v4977
          %6191 = vmatprep.subr.bf16.mxu0 %v4983
          %6192 = vmatpush1.bf16.msra.mxu0 %v4982
          %6193 = vmatprep.subr.bf16.mxu0 %v4988
          %6194 = vmatpush1.bf16.msra.mxu0 %v4987
          %6195 = vmatprep.subr.bf16.mxu0 %v4993
          %6196 = vmatpush1.bf16.msra.mxu0 %v4992
          %6197 = vmatprep.subr.bf16.mxu0 %v4998
          %6198 = vmatpush1.bf16.msra.mxu0 %v4997
          %6199 = vmatprep.subr.bf16.mxu0 %v5003
          %6200 = vmatpush1.bf16.msra.mxu0 %v5002
          %6201 = vmatprep.subr.bf16.mxu0 %v5008
          %6202 = vmatpush1.bf16.msra.mxu0 %v5007
          %6203 = vmatprep.subr.bf16.mxu0 %v5013
          %6204 = vmatpush1.bf16.msra.mxu0 %v5012
          %6205 = vmatprep.subr.bf16.mxu0 %v5018
          %6206 = vmatpush1.bf16.msra.mxu0 %v5017
          %6207 = vmatprep.subr.bf16.mxu0 %v5023
          %6208 = vmatpush1.bf16.msra.mxu0 %v5022
          %6209 = vmatprep.mubr.bf16.mxu0 %v2821
          %6210 = vmatmul.mubr.bf16.gmra.mrb[0].mxu0 %v2820
          %v6211 = vpop.f32.mrb[0].mxu0
          %v6212 = vadd.f32 %v5917, %v6211
          %v6213 = vpop.f32.mrb[0].mxu0
          %v6214 = vadd.f32 %v5921, %v6213
          %v6215 = vpop.f32.mrb[0].mxu0
          %v6216 = vpop.f32.mrb[0].mxu0
          %6217 = vdwg.mxu0
          %6218 = vmatprep.subr.bf16.mxu0 %v5028
          %6219 = vmatpush1.bf16.msra.mxu0 %v5027
          %6220 = vmatprep.subr.bf16.mxu0 %v5033
          %6221 = vmatpush1.bf16.msra.mxu0 %v5032
          %6222 = vmatprep.subr.bf16.mxu0 %v5038
          %6223 = vmatpush1.bf16.msra.mxu0 %v5037
          %6224 = vmatprep.subr.bf16.mxu0 %v5043
          %6225 = vmatpush1.bf16.msra.mxu0 %v5042
          %6226 = vmatprep.subr.bf16.mxu0 %v5048
          %6227 = vmatpush1.bf16.msra.mxu0 %v5047
          %6228 = vmatprep.subr.bf16.mxu0 %v5053
          %6229 = vmatpush1.bf16.msra.mxu0 %v5052
          %6230 = vmatprep.subr.bf16.mxu0 %v5058
          %6231 = vmatpush1.bf16.msra.mxu0 %v5057
          %6232 = vmatprep.subr.bf16.mxu0 %v5063
          %6233 = vmatpush1.bf16.msra.mxu0 %v5062
          %6234 = vmatprep.subr.bf16.mxu0 %v5068
          %6235 = vmatpush1.bf16.msra.mxu0 %v5067
          %6236 = vmatprep.subr.bf16.mxu0 %v5073
          %6237 = vmatpush1.bf16.msra.mxu0 %v5072
          %6238 = vmatprep.subr.bf16.mxu0 %v5078
          %6239 = vmatpush1.bf16.msra.mxu0 %v5077
          %6240 = vmatprep.subr.bf16.mxu0 %v5083
          %6241 = vmatpush1.bf16.msra.mxu0 %v5082
          %6242 = vmatprep.subr.bf16.mxu0 %v5088
          %6243 = vmatpush1.bf16.msra.mxu0 %v5087
          %6244 = vmatprep.subr.bf16.mxu0 %v5093
          %6245 = vmatpush1.bf16.msra.mxu0 %v5092
          %6246 = vmatprep.subr.bf16.mxu0 %v5098
          %6247 = vmatpush1.bf16.msra.mxu0 %v5097
          %6248 = vmatprep.subr.bf16.mxu0 %v5103
          %6249 = vmatpush1.bf16.msra.mxu0 %v5102
          %6250 = vmatprep.mubr.bf16.mxu0 %v2823
          %6251 = vmatmul.mubr.bf16.gmra.mrb[0].mxu0 %v2822
          %v6252 = vpop.f32.mrb[0].mxu0
          %v6253 = vadd.f32 %v6212, %v6252
          %v6254 = vpop.f32.mrb[0].mxu0
          %v6255 = vadd.f32 %v6214, %v6254
          %v6256 = vpop.f32.mrb[0].mxu0
          %v6257 = vpop.f32.mrb[0].mxu0
          %6258 = vdwg.mxu0
          %6259 = vmatprep.subr.bf16.mxu0 %v5108
          %6260 = vmatpush1.bf16.msra.mxu0 %v5107
          %6261 = vmatprep.subr.bf16.mxu0 %v5113
          %6262 = vmatpush1.bf16.msra.mxu0 %v5112
          %6263 = vmatprep.subr.bf16.mxu0 %v5118
          %6264 = vmatpush1.bf16.msra.mxu0 %v5117
          %6265 = vmatprep.subr.bf16.mxu0 %v5123
          %6266 = vmatpush1.bf16.msra.mxu0 %v5122
          %6267 = vmatprep.subr.bf16.mxu0 %v5128
          %6268 = vmatpush1.bf16.msra.mxu0 %v5127
          %6269 = vmatprep.subr.bf16.mxu0 %v5133
          %6270 = vmatpush1.bf16.msra.mxu0 %v5132
          %6271 = vmatprep.subr.bf16.mxu0 %v5138
          %6272 = vmatpush1.bf16.msra.mxu0 %v5137
          %6273 = vmatprep.subr.bf16.mxu0 %v5143
          %6274 = vmatpush1.bf16.msra.mxu0 %v5142
          %6275 = vmatprep.subr.bf16.mxu0 %v5148
          %6276 = vmatpush1.bf16.msra.mxu0 %v5147
          %6277 = vmatprep.subr.bf16.mxu0 %v5153
          %6278 = vmatpush1.bf16.msra.mxu0 %v5152
          %6279 = vmatprep.subr.bf16.mxu0 %v5158
          %6280 = vmatpush1.bf16.msra.mxu0 %v5157
          %6281 = vmatprep.subr.bf16.mxu0 %v5163
          %6282 = vmatpush1.bf16.msra.mxu0 %v5162
          %6283 = vmatprep.subr.bf16.mxu0 %v5168
          %6284 = vmatpush1.bf16.msra.mxu0 %v5167
          %6285 = vmatprep.subr.bf16.mxu0 %v5173
          %6286 = vmatpush1.bf16.msra.mxu0 %v5172
          %6287 = vmatprep.subr.bf16.mxu0 %v5178
          %6288 = vmatpush1.bf16.msra.mxu0 %v5177
          %6289 = vmatprep.subr.bf16.mxu0 %v5183
          %6290 = vmatpush1.bf16.msra.mxu0 %v5182
          %6291 = vmatprep.mubr.bf16.mxu0 %v2825
          %6292 = vmatmul.mubr.bf16.gmra.mrb[0].mxu0 %v2824
          %v6293 = vpop.f32.mrb[0].mxu0
          %v6294 = vadd.f32 %v6253, %v6293
          %v6295 = vpop.f32.mrb[0].mxu0
          %v6296 = vadd.f32 %v6255, %v6295
          %v6297 = vpop.f32.mrb[0].mxu0
          %v6298 = vpop.f32.mrb[0].mxu0
          %6299 = vdwg.mxu0
          %6300 = vmatprep.subr.bf16.mxu0 %v5188
          %6301 = vmatpush1.bf16.msra.mxu0 %v5187
          %6302 = vmatprep.subr.bf16.mxu0 %v5193
          %6303 = vmatpush1.bf16.msra.mxu0 %v5192
          %6304 = vmatprep.subr.bf16.mxu0 %v5198
          %6305 = vmatpush1.bf16.msra.mxu0 %v5197
          %6306 = vmatprep.subr.bf16.mxu0 %v5203
          %6307 = vmatpush1.bf16.msra.mxu0 %v5202
          %6308 = vmatprep.subr.bf16.mxu0 %v5208
          %6309 = vmatpush1.bf16.msra.mxu0 %v5207
          %6310 = vmatprep.subr.bf16.mxu0 %v5213
          %6311 = vmatpush1.bf16.msra.mxu0 %v5212
          %6312 = vmatprep.subr.bf16.mxu0 %v5218
          %6313 = vmatpush1.bf16.msra.mxu0 %v5217
          %6314 = vmatprep.subr.bf16.mxu0 %v5223
          %6315 = vmatpush1.bf16.msra.mxu0 %v5222
          %6316 = vmatprep.subr.bf16.mxu0 %v5228
          %6317 = vmatpush1.bf16.msra.mxu0 %v5227
          %6318 = vmatprep.subr.bf16.mxu0 %v5233
          %6319 = vmatpush1.bf16.msra.mxu0 %v5232
          %6320 = vmatprep.subr.bf16.mxu0 %v5238
          %6321 = vmatpush1.bf16.msra.mxu0 %v5237
          %6322 = vmatprep.subr.bf16.mxu0 %v5243
          %6323 = vmatpush1.bf16.msra.mxu0 %v5242
          %6324 = vmatprep.subr.bf16.mxu0 %v5248
          %6325 = vmatpush1.bf16.msra.mxu0 %v5247
          %6326 = vmatprep.subr.bf16.mxu0 %v5253
          %6327 = vmatpush1.bf16.msra.mxu0 %v5252
          %6328 = vmatprep.subr.bf16.mxu0 %v5258
          %6329 = vmatpush1.bf16.msra.mxu0 %v5257
          %6330 = vmatprep.subr.bf16.mxu0 %v5263
          %6331 = vmatpush1.bf16.msra.mxu0 %v5262
          %6332 = vmatprep.mubr.bf16.mxu0 %v2827
          %6333 = vmatmul.mubr.bf16.gmra.mrb[0].mxu0 %v2826
          %v6334 = vpop.f32.mrb[0].mxu0
          %v6335 = vadd.f32 %v6294, %v6334
          %v6336 = vpop.f32.mrb[0].mxu0
          %v6337 = vadd.f32 %v6296, %v6336
          %v6338 = vpop.f32.mrb[0].mxu0
          %v6339 = vpop.f32.mrb[0].mxu0
          %6340 = vdwg.mxu0
          %6341 = vmatprep.subr.bf16.mxu0 %v5268
          %6342 = vmatpush1.bf16.msra.mxu0 %v5267
          %6343 = vmatprep.subr.bf16.mxu0 %v5273
          %6344 = vmatpush1.bf16.msra.mxu0 %v5272
          %6345 = vmatprep.subr.bf16.mxu0 %v5278
          %6346 = vmatpush1.bf16.msra.mxu0 %v5277
          %6347 = vmatprep.subr.bf16.mxu0 %v5283
          %6348 = vmatpush1.bf16.msra.mxu0 %v5282
          %6349 = vmatprep.subr.bf16.mxu0 %v5288
          %6350 = vmatpush1.bf16.msra.mxu0 %v5287
          %6351 = vmatprep.subr.bf16.mxu0 %v5293
          %6352 = vmatpush1.bf16.msra.mxu0 %v5292
          %6353 = vmatprep.subr.bf16.mxu0 %v5298
          %6354 = vmatpush1.bf16.msra.mxu0 %v5297
          %6355 = vmatprep.subr.bf16.mxu0 %v5303
          %6356 = vmatpush1.bf16.msra.mxu0 %v5302
          %6357 = vmatprep.subr.bf16.mxu0 %v5308
          %6358 = vmatpush1.bf16.msra.mxu0 %v5307
          %6359 = vmatprep.subr.bf16.mxu0 %v5313
          %6360 = vmatpush1.bf16.msra.mxu0 %v5312
          %6361 = vmatprep.subr.bf16.mxu0 %v5318
          %6362 = vmatpush1.bf16.msra.mxu0 %v5317
          %6363 = vmatprep.subr.bf16.mxu0 %v5323
          %6364 = vmatpush1.bf16.msra.mxu0 %v5322
          %6365 = vmatprep.subr.bf16.mxu0 %v5328
          %6366 = vmatpush1.bf16.msra.mxu0 %v5327
          %6367 = vmatprep.subr.bf16.mxu0 %v5333
          %6368 = vmatpush1.bf16.msra.mxu0 %v5332
          %6369 = vmatprep.subr.bf16.mxu0 %v5338
          %6370 = vmatpush1.bf16.msra.mxu0 %v5337
          %6371 = vmatprep.subr.bf16.mxu0 %v5343
          %6372 = vmatpush1.bf16.msra.mxu0 %v5342
          %6373 = vmatprep.mubr.bf16.mxu0 %v2829
          %6374 = vmatmul.mubr.bf16.gmra.mrb[0].mxu0 %v2828
          %v6375 = vpop.f32.mrb[0].mxu0
          %v6376 = vadd.f32 %v6335, %v6375
          %v6377 = vpop.f32.mrb[0].mxu0
          %v6378 = vadd.f32 %v6337, %v6377
          %v6379 = vpop.f32.mrb[0].mxu0
          %v6380 = vpop.f32.mrb[0].mxu0
          %6381 = vdwg.mxu0
          %6382 = vmatprep.subr.bf16.mxu0 %v5348
          %6383 = vmatpush1.bf16.msra.mxu0 %v5347
          %6384 = vmatprep.subr.bf16.mxu0 %v5353
          %6385 = vmatpush1.bf16.msra.mxu0 %v5352
          %6386 = vmatprep.subr.bf16.mxu0 %v5358
          %6387 = vmatpush1.bf16.msra.mxu0 %v5357
          %6388 = vmatprep.subr.bf16.mxu0 %v5363
          %6389 = vmatpush1.bf16.msra.mxu0 %v5362
          %6390 = vmatprep.subr.bf16.mxu0 %v5368
          %6391 = vmatpush1.bf16.msra.mxu0 %v5367
          %6392 = vmatprep.subr.bf16.mxu0 %v5373
          %6393 = vmatpush1.bf16.msra.mxu0 %v5372
          %6394 = vmatprep.subr.bf16.mxu0 %v5378
          %6395 = vmatpush1.bf16.msra.mxu0 %v5377
          %6396 = vmatprep.subr.bf16.mxu0 %v5383
          %6397 = vmatpush1.bf16.msra.mxu0 %v5382
          %6398 = vmatprep.subr.bf16.mxu0 %v5388
          %6399 = vmatpush1.bf16.msra.mxu0 %v5387
          %6400 = vmatprep.subr.bf16.mxu0 %v5393
          %6401 = vmatpush1.bf16.msra.mxu0 %v5392
          %6402 = vmatprep.subr.bf16.mxu0 %v5398
          %6403 = vmatpush1.bf16.msra.mxu0 %v5397
          %6404 = vmatprep.subr.bf16.mxu0 %v5403
          %6405 = vmatpush1.bf16.msra.mxu0 %v5402
          %6406 = vmatprep.subr.bf16.mxu0 %v5408
          %6407 = vmatpush1.bf16.msra.mxu0 %v5407
          %6408 = vmatprep.subr.bf16.mxu0 %v5413
          %6409 = vmatpush1.bf16.msra.mxu0 %v5412
          %6410 = vmatprep.subr.bf16.mxu0 %v5418
          %6411 = vmatpush1.bf16.msra.mxu0 %v5417
          %6412 = vmatprep.subr.bf16.mxu0 %v5423
          %6413 = vmatpush1.bf16.msra.mxu0 %v5422
          %6414 = vmatprep.mubr.bf16.mxu0 %v2831
          %6415 = vmatmul.mubr.bf16.gmra.mrb[0].mxu0 %v2830
          %v6416 = vpop.f32.mrb[0].mxu0
          %v6417 = vadd.f32 %v6376, %v6416
          %v6418 = vpop.f32.mrb[0].mxu0
          %v6419 = vadd.f32 %v6378, %v6418
          %v6420 = vpop.f32.mrb[0].mxu0
          %v6421 = vpop.f32.mrb[0].mxu0
          %6422 = vdwg.mxu0
          %6423 = vmatprep.subr.bf16.mxu0 0
          %6424 = vmatpush1.bf16.msra.mxu0 %v4949
          %6425 = vmatprep.subr.bf16.mxu0 0
          %6426 = vmatpush1.bf16.msra.mxu0 %v4954
          %6427 = vmatprep.subr.bf16.mxu0 0
          %6428 = vmatpush1.bf16.msra.mxu0 %v4959
          %6429 = vmatprep.subr.bf16.mxu0 0
          %6430 = vmatpush1.bf16.msra.mxu0 %v4964
          %6431 = vmatprep.subr.bf16.mxu0 0
          %6432 = vmatpush1.bf16.msra.mxu0 %v4969
          %6433 = vmatprep.subr.bf16.mxu0 0
          %6434 = vmatpush1.bf16.msra.mxu0 %v4974
          %6435 = vmatprep.subr.bf16.mxu0 0
          %6436 = vmatpush1.bf16.msra.mxu0 %v4979
          %6437 = vmatprep.subr.bf16.mxu0 0
          %6438 = vmatpush1.bf16.msra.mxu0 %v4984
          %6439 = vmatprep.subr.bf16.mxu0 0
          %6440 = vmatpush1.bf16.msra.mxu0 %v4989
          %6441 = vmatprep.subr.bf16.mxu0 0
          %6442 = vmatpush1.bf16.msra.mxu0 %v4994
          %6443 = vmatprep.subr.bf16.mxu0 0
          %6444 = vmatpush1.bf16.msra.mxu0 %v4999
          %6445 = vmatprep.subr.bf16.mxu0 0
          %6446 = vmatpush1.bf16.msra.mxu0 %v5004
          %6447 = vmatprep.subr.bf16.mxu0 0
          %6448 = vmatpush1.bf16.msra.mxu0 %v5009
          %6449 = vmatprep.subr.bf16.mxu0 0
          %6450 = vmatpush1.bf16.msra.mxu0 %v5014
          %6451 = vmatprep.subr.bf16.mxu0 0
          %6452 = vmatpush1.bf16.msra.mxu0 %v5019
          %6453 = vmatprep.subr.bf16.mxu0 0
          %6454 = vmatpush1.bf16.msra.mxu0 %v5024
          %6455 = vmatprep.mubr.bf16.mxu0 %v2821
          %6456 = vmatmul.mubr.bf16.gmra.mrb[0].mxu0 %v2820
          %v6457 = vpop.f32.mrb[0].mxu0
          %v6458 = vadd.f32 %v5925, %v6457
          %v6459 = vpop.f32.mrb[0].mxu0
          %v6460 = vpop.f32.mrb[0].mxu0
          %v6461 = vpop.f32.mrb[0].mxu0
          %6462 = vdwg.mxu0
          %6463 = vmatprep.subr.bf16.mxu0 0
          %6464 = vmatpush1.bf16.msra.mxu0 %v5029
          %6465 = vmatprep.subr.bf16.mxu0 0
          %6466 = vmatpush1.bf16.msra.mxu0 %v5034
          %6467 = vmatprep.subr.bf16.mxu0 0
          %6468 = vmatpush1.bf16.msra.mxu0 %v5039
          %6469 = vmatprep.subr.bf16.mxu0 0
          %6470 = vmatpush1.bf16.msra.mxu0 %v5044
          %6471 = vmatprep.subr.bf16.mxu0 0
          %6472 = vmatpush1.bf16.msra.mxu0 %v5049
          %6473 = vmatprep.subr.bf16.mxu0 0
          %6474 = vmatpush1.bf16.msra.mxu0 %v5054
          %6475 = vmatprep.subr.bf16.mxu0 0
          %6476 = vmatpush1.bf16.msra.mxu0 %v5059
          %6477 = vmatprep.subr.bf16.mxu0 0
          %6478 = vmatpush1.bf16.msra.mxu0 %v5064
          %6479 = vmatprep.subr.bf16.mxu0 0
          %6480 = vmatpush1.bf16.msra.mxu0 %v5069
          %6481 = vmatprep.subr.bf16.mxu0 0
          %6482 = vmatpush1.bf16.msra.mxu0 %v5074
          %6483 = vmatprep.subr.bf16.mxu0 0
          %6484 = vmatpush1.bf16.msra.mxu0 %v5079
          %6485 = vmatprep.subr.bf16.mxu0 0
          %6486 = vmatpush1.bf16.msra.mxu0 %v5084
          %6487 = vmatprep.subr.bf16.mxu0 0
          %6488 = vmatpush1.bf16.msra.mxu0 %v5089
          %6489 = vmatprep.subr.bf16.mxu0 0
          %6490 = vmatpush1.bf16.msra.mxu0 %v5094
          %6491 = vmatprep.subr.bf16.mxu0 0
          %6492 = vmatpush1.bf16.msra.mxu0 %v5099
          %6493 = vmatprep.subr.bf16.mxu0 0
          %6494 = vmatpush1.bf16.msra.mxu0 %v5104
          %6495 = vmatprep.mubr.bf16.mxu0 %v2823
          %6496 = vmatmul.mubr.bf16.gmra.mrb[0].mxu0 %v2822
          %v6497 = vpop.f32.mrb[0].mxu0
          %v6498 = vadd.f32 %v6458, %v6497
          %v6499 = vpop.f32.mrb[0].mxu0
          %v6500 = vpop.f32.mrb[0].mxu0
          %v6501 = vpop.f32.mrb[0].mxu0
          %6502 = vdwg.mxu0
          %6503 = vmatprep.subr.bf16.mxu0 0
          %6504 = vmatpush1.bf16.msra.mxu0 %v5109
          %6505 = vmatprep.subr.bf16.mxu0 0
          %6506 = vmatpush1.bf16.msra.mxu0 %v5114
          %6507 = vmatprep.subr.bf16.mxu0 0
          %6508 = vmatpush1.bf16.msra.mxu0 %v5119
          %6509 = vmatprep.subr.bf16.mxu0 0
          %6510 = vmatpush1.bf16.msra.mxu0 %v5124
          %6511 = vmatprep.subr.bf16.mxu0 0
          %6512 = vmatpush1.bf16.msra.mxu0 %v5129
          %6513 = vmatprep.subr.bf16.mxu0 0
          %6514 = vmatpush1.bf16.msra.mxu0 %v5134
          %6515 = vmatprep.subr.bf16.mxu0 0
          %6516 = vmatpush1.bf16.msra.mxu0 %v5139
          %6517 = vmatprep.subr.bf16.mxu0 0
          %6518 = vmatpush1.bf16.msra.mxu0 %v5144
          %6519 = vmatprep.subr.bf16.mxu0 0
          %6520 = vmatpush1.bf16.msra.mxu0 %v5149
          %6521 = vmatprep.subr.bf16.mxu0 0
          %6522 = vmatpush1.bf16.msra.mxu0 %v5154
          %6523 = vmatprep.subr.bf16.mxu0 0
          %6524 = vmatpush1.bf16.msra.mxu0 %v5159
          %6525 = vmatprep.subr.bf16.mxu0 0
          %6526 = vmatpush1.bf16.msra.mxu0 %v5164
          %6527 = vmatprep.subr.bf16.mxu0 0
          %6528 = vmatpush1.bf16.msra.mxu0 %v5169
          %6529 = vmatprep.subr.bf16.mxu0 0
          %6530 = vmatpush1.bf16.msra.mxu0 %v5174
          %6531 = vmatprep.subr.bf16.mxu0 0
          %6532 = vmatpush1.bf16.msra.mxu0 %v5179
          %6533 = vmatprep.subr.bf16.mxu0 0
          %6534 = vmatpush1.bf16.msra.mxu0 %v5184
          %6535 = vmatprep.mubr.bf16.mxu0 %v2825
          %6536 = vmatmul.mubr.bf16.gmra.mrb[0].mxu0 %v2824
          %v6537 = vpop.f32.mrb[0].mxu0
          %v6538 = vadd.f32 %v6498, %v6537
          %v6539 = vpop.f32.mrb[0].mxu0
          %v6540 = vpop.f32.mrb[0].mxu0
          %v6541 = vpop.f32.mrb[0].mxu0
          %6542 = vdwg.mxu0
          %6543 = vmatprep.subr.bf16.mxu0 0
          %6544 = vmatpush1.bf16.msra.mxu0 %v5189
          %6545 = vmatprep.subr.bf16.mxu0 0
          %6546 = vmatpush1.bf16.msra.mxu0 %v5194
          %6547 = vmatprep.subr.bf16.mxu0 0
          %6548 = vmatpush1.bf16.msra.mxu0 %v5199
          %6549 = vmatprep.subr.bf16.mxu0 0
          %6550 = vmatpush1.bf16.msra.mxu0 %v5204
          %6551 = vmatprep.subr.bf16.mxu0 0
          %6552 = vmatpush1.bf16.msra.mxu0 %v5209
          %6553 = vmatprep.subr.bf16.mxu0 0
          %6554 = vmatpush1.bf16.msra.mxu0 %v5214
          %6555 = vmatprep.subr.bf16.mxu0 0
          %6556 = vmatpush1.bf16.msra.mxu0 %v5219
          %6557 = vmatprep.subr.bf16.mxu0 0
          %6558 = vmatpush1.bf16.msra.mxu0 %v5224
          %6559 = vmatprep.subr.bf16.mxu0 0
          %6560 = vmatpush1.bf16.msra.mxu0 %v5229
          %6561 = vmatprep.subr.bf16.mxu0 0
          %6562 = vmatpush1.bf16.msra.mxu0 %v5234
          %6563 = vmatprep.subr.bf16.mxu0 0
          %6564 = vmatpush1.bf16.msra.mxu0 %v5239
          %6565 = vmatprep.subr.bf16.mxu0 0
          %6566 = vmatpush1.bf16.msra.mxu0 %v5244
          %6567 = vmatprep.subr.bf16.mxu0 0
          %6568 = vmatpush1.bf16.msra.mxu0 %v5249
          %6569 = vmatprep.subr.bf16.mxu0 0
          %6570 = vmatpush1.bf16.msra.mxu0 %v5254
          %6571 = vmatprep.subr.bf16.mxu0 0
          %6572 = vmatpush1.bf16.msra.mxu0 %v5259
          %6573 = vmatprep.subr.bf16.mxu0 0
          %6574 = vmatpush1.bf16.msra.mxu0 %v5264
          %6575 = vmatprep.mubr.bf16.mxu0 %v2827
          %6576 = vmatmul.mubr.bf16.gmra.mrb[0].mxu0 %v2826
          %v6577 = vpop.f32.mrb[0].mxu0
          %v6578 = vadd.f32 %v6538, %v6577
          %v6579 = vpop.f32.mrb[0].mxu0
          %v6580 = vpop.f32.mrb[0].mxu0
          %v6581 = vpop.f32.mrb[0].mxu0
          %6582 = vdwg.mxu0
          %6583 = vmatprep.subr.bf16.mxu0 0
          %6584 = vmatpush1.bf16.msra.mxu0 %v5269
          %6585 = vmatprep.subr.bf16.mxu0 0
          %6586 = vmatpush1.bf16.msra.mxu0 %v5274
          %6587 = vmatprep.subr.bf16.mxu0 0
          %6588 = vmatpush1.bf16.msra.mxu0 %v5279
          %6589 = vmatprep.subr.bf16.mxu0 0
          %6590 = vmatpush1.bf16.msra.mxu0 %v5284
          %6591 = vmatprep.subr.bf16.mxu0 0
          %6592 = vmatpush1.bf16.msra.mxu0 %v5289
          %6593 = vmatprep.subr.bf16.mxu0 0
          %6594 = vmatpush1.bf16.msra.mxu0 %v5294
          %6595 = vmatprep.subr.bf16.mxu0 0
          %6596 = vmatpush1.bf16.msra.mxu0 %v5299
          %6597 = vmatprep.subr.bf16.mxu0 0
          %6598 = vmatpush1.bf16.msra.mxu0 %v5304
          %6599 = vmatprep.subr.bf16.mxu0 0
          %6600 = vmatpush1.bf16.msra.mxu0 %v5309
          %6601 = vmatprep.subr.bf16.mxu0 0
          %6602 = vmatpush1.bf16.msra.mxu0 %v5314
          %6603 = vmatprep.subr.bf16.mxu0 0
          %6604 = vmatpush1.bf16.msra.mxu0 %v5319
          %6605 = vmatprep.subr.bf16.mxu0 0
          %6606 = vmatpush1.bf16.msra.mxu0 %v5324
          %6607 = vmatprep.subr.bf16.mxu0 0
          %6608 = vmatpush1.bf16.msra.mxu0 %v5329
          %6609 = vmatprep.subr.bf16.mxu0 0
          %6610 = vmatpush1.bf16.msra.mxu0 %v5334
          %6611 = vmatprep.subr.bf16.mxu0 0
          %6612 = vmatpush1.bf16.msra.mxu0 %v5339
          %6613 = vmatprep.subr.bf16.mxu0 0
          %6614 = vmatpush1.bf16.msra.mxu0 %v5344
          %6615 = vmatprep.mubr.bf16.mxu0 %v2829
          %6616 = vmatmul.mubr.bf16.gmra.mrb[0].mxu0 %v2828
          %v6617 = vpop.f32.mrb[0].mxu0
          %v6618 = vadd.f32 %v6578, %v6617
          %v6619 = vpop.f32.mrb[0].mxu0
          %v6620 = vpop.f32.mrb[0].mxu0
          %v6621 = vpop.f32.mrb[0].mxu0
          %6622 = vdwg.mxu0
          %6623 = vmatprep.subr.bf16.mxu0 0
          %6624 = vmatpush1.bf16.msra.mxu0 %v5349
          %6625 = vmatprep.subr.bf16.mxu0 0
          %6626 = vmatpush1.bf16.msra.mxu0 %v5354
          %6627 = vmatprep.subr.bf16.mxu0 0
          %6628 = vmatpush1.bf16.msra.mxu0 %v5359
          %6629 = vmatprep.subr.bf16.mxu0 0
          %6630 = vmatpush1.bf16.msra.mxu0 %v5364
          %6631 = vmatprep.subr.bf16.mxu0 0
          %6632 = vmatpush1.bf16.msra.mxu0 %v5369
          %6633 = vmatprep.subr.bf16.mxu0 0
          %6634 = vmatpush1.bf16.msra.mxu0 %v5374
          %6635 = vmatprep.subr.bf16.mxu0 0
          %6636 = vmatpush1.bf16.msra.mxu0 %v5379
          %6637 = vmatprep.subr.bf16.mxu0 0
          %6638 = vmatpush1.bf16.msra.mxu0 %v5384
          %6639 = vmatprep.subr.bf16.mxu0 0
          %6640 = vmatpush1.bf16.msra.mxu0 %v5389
          %6641 = vmatprep.subr.bf16.mxu0 0
          %6642 = vmatpush1.bf16.msra.mxu0 %v5394
          %6643 = vmatprep.subr.bf16.mxu0 0
          %6644 = vmatpush1.bf16.msra.mxu0 %v5399
          %6645 = vmatprep.subr.bf16.mxu0 0
          %6646 = vmatpush1.bf16.msra.mxu0 %v5404
          %6647 = vmatprep.subr.bf16.mxu0 0
          %6648 = vmatpush1.bf16.msra.mxu0 %v5409
          %6649 = vmatprep.subr.bf16.mxu0 0
          %6650 = vmatpush1.bf16.msra.mxu0 %v5414
          %6651 = vmatprep.subr.bf16.mxu0 0
          %6652 = vmatpush1.bf16.msra.mxu0 %v5419
          %6653 = vmatprep.subr.bf16.mxu0 0
          %6654 = vmatpush1.bf16.msra.mxu0 %v5424
          %6655 = vmatprep.mubr.bf16.mxu0 %v2831
          %6656 = vmatmul.mubr.bf16.gmra.mrb[0].mxu0 %v2830
          %v6657 = vpop.f32.mrb[0].mxu0
          %v6658 = vadd.f32 %v6618, %v6657
          %v6659 = vpop.f32.mrb[0].mxu0
          %v6660 = vpop.f32.mrb[0].mxu0
          %v6661 = vpop.f32.mrb[0].mxu0
          %6662 = vdwg.mxu0
          %v6663 = vmax.f32 %v6171, 0.0
          %v6664 = vmax.f32 %v6173, 0.0
          %v6665 = vmax.f32 %v6417, 0.0
          %v6666 = vmax.f32 %v6419, 0.0
          %v6667 = vmax.f32 %v6658, 0.0
          %v6668 = vpack.c.bf16 %v6663, %v6663
          %v6669 = vpack.c.bf16 %v6664, %v6664
          %v6670 = vpack.c.bf16 %v6665, %v6665
          %v6671 = vpack.c.bf16 %v6666, %v6666
          %v6672 = vpack.c.bf16 %v6667, %v6667
          %v6673 = vld [vmem:[#allocation14] sm:$0xff]
          %v6674 = vld [vmem:[#allocation14 + $0x8] sm:$0xff]
          %v6675 = vld [vmem:[#allocation14 + $0x10] sm:$0xff]
          %v6676 = vld [vmem:[#allocation14 + $0x18] sm:$0xff]
          %v6677 = vld [vmem:[#allocation14 + $0x20] sm:$0xff]
          %v6678 = vld [vmem:[#allocation14 + $0x28] sm:$0xff]
          %v6679 = vld [vmem:[#allocation14 + $0x30] sm:$0xff]
          %v6680 = vld [vmem:[#allocation14 + $0x38] sm:$0xff]
          %v6681 = vld [vmem:[#allocation14 + $0x40] sm:$0xff]
          %v6682 = vld [vmem:[#allocation14 + $0x48] sm:$0xff]
          %v6683 = vld [vmem:[#allocation14 + $0x50] sm:$0xff]
          %v6684 = vld [vmem:[#allocation14 + $0x58] sm:$0xff]
          %v6685 = vld [vmem:[#allocation14 + $0x60] sm:$0xff]
          %v6686 = vld [vmem:[#allocation14 + $0x68] sm:$0xff]
          %v6687 = vld [vmem:[#allocation14 + $0x70] sm:$0xff]
          %v6688 = vld [vmem:[#allocation14 + $0x78] sm:$0xff]
          %v6689 = vld [vmem:[#allocation14 + $0x80] sm:$0xff]
          %v6690 = vld [vmem:[#allocation14 + $0x88] sm:$0xff]
          %v6691 = vld [vmem:[#allocation14 + $0x90] sm:$0xff]
          %v6692 = vld [vmem:[#allocation14 + $0x98] sm:$0xff]
          %v6693 = vld [vmem:[#allocation14 + $0xa0] sm:$0xff]
          %v6694 = vld [vmem:[#allocation14 + $0xa8] sm:$0xff]
          %v6695 = vld [vmem:[#allocation14 + $0xb0] sm:$0xff]
          %v6696 = vld [vmem:[#allocation14 + $0xb8] sm:$0xff]
          %v6697 = vld [vmem:[#allocation14 + $0xc0] sm:$0xff]
          %v6698 = vld [vmem:[#allocation14 + $0xc8] sm:$0xff]
          %v6699 = vld [vmem:[#allocation14 + $0xd0] sm:$0xff]
          %v6700 = vld [vmem:[#allocation14 + $0xd8] sm:$0xff]
          %v6701 = vld [vmem:[#allocation14 + $0xe0] sm:$0xff]
          %v6702 = vld [vmem:[#allocation14 + $0xe8] sm:$0xff]
          %v6703 = vld [vmem:[#allocation14 + $0xf0] sm:$0xff]
          %v6704 = vld [vmem:[#allocation14 + $0xf8] sm:$0xff]
          %v6705 = vld [vmem:[#allocation14 + $0x100] sm:$0xff]
          %v6706 = vld [vmem:[#allocation14 + $0x108] sm:$0xff]
          %v6707 = vld [vmem:[#allocation14 + $0x110] sm:$0xff]
          %v6708 = vld [vmem:[#allocation14 + $0x118] sm:$0xff]
          %v6709 = vld [vmem:[#allocation14 + $0x120] sm:$0xff]
          %v6710 = vld [vmem:[#allocation14 + $0x128] sm:$0xff]
          %v6711 = vld [vmem:[#allocation14 + $0x130] sm:$0xff]
          %v6712 = vld [vmem:[#allocation14 + $0x138] sm:$0xff]
          %v6713 = vld [vmem:[#allocation14 + $0x140] sm:$0xff]
          %v6714 = vld [vmem:[#allocation14 + $0x148] sm:$0xff]
          %v6715 = vld [vmem:[#allocation14 + $0x150] sm:$0xff]
          %v6716 = vld [vmem:[#allocation14 + $0x158] sm:$0xff]
          %v6717 = vld [vmem:[#allocation14 + $0x160] sm:$0xff]
          %v6718 = vld [vmem:[#allocation14 + $0x168] sm:$0xff]
          %v6719 = vld [vmem:[#allocation14 + $0x170] sm:$0xff]
          %v6720 = vld [vmem:[#allocation14 + $0x178] sm:$0xff]
          %v6721 = vld [vmem:[#allocation14 + $0x180] sm:$0xff]
          %v6722 = vld [vmem:[#allocation14 + $0x188] sm:$0xff]
          %v6723 = vld [vmem:[#allocation14 + $0x190] sm:$0xff]
          %v6724 = vld [vmem:[#allocation14 + $0x198] sm:$0xff]
          %v6725 = vld [vmem:[#allocation14 + $0x1a0] sm:$0xff]
          %v6726 = vld [vmem:[#allocation14 + $0x1a8] sm:$0xff]
          %v6727 = vld [vmem:[#allocation14 + $0x1b0] sm:$0xff]
          %v6728 = vld [vmem:[#allocation14 + $0x1b8] sm:$0xff]
          %v6729 = vld [vmem:[#allocation14 + $0x1c0] sm:$0xff]
          %v6730 = vld [vmem:[#allocation14 + $0x1c8] sm:$0xff]
          %v6731 = vld [vmem:[#allocation14 + $0x1d0] sm:$0xff]
          %v6732 = vld [vmem:[#allocation14 + $0x1d8] sm:$0xff]
          %v6733 = vld [vmem:[#allocation14 + $0x1e0] sm:$0xff]
          %v6734 = vld [vmem:[#allocation14 + $0x1e8] sm:$0xff]
          %v6735 = vld [vmem:[#allocation14 + $0x1f0] sm:$0xff]
          %v6736 = vld [vmem:[#allocation14 + $0x1f8] sm:$0xff]
          %v6737 = vld [vmem:[#allocation14 + $0x200] sm:$0xff]
          %v6738 = vld [vmem:[#allocation14 + $0x208] sm:$0xff]
          %v6739 = vld [vmem:[#allocation14 + $0x210] sm:$0xff]
          %v6740 = vld [vmem:[#allocation14 + $0x218] sm:$0xff]
          %v6741 = vld [vmem:[#allocation14 + $0x220] sm:$0xff]
          %v6742 = vld [vmem:[#allocation14 + $0x228] sm:$0xff]
          %v6743 = vld [vmem:[#allocation14 + $0x230] sm:$0xff]
          %v6744 = vld [vmem:[#allocation14 + $0x238] sm:$0xff]
          %v6745 = vld [vmem:[#allocation14 + $0x240] sm:$0xff]
          %v6746 = vld [vmem:[#allocation14 + $0x248] sm:$0xff]
          %v6747 = vld [vmem:[#allocation14 + $0x250] sm:$0xff]
          %v6748 = vld [vmem:[#allocation14 + $0x258] sm:$0xff]
          %v6749 = vld [vmem:[#allocation14 + $0x260] sm:$0xff]
          %v6750 = vld [vmem:[#allocation14 + $0x268] sm:$0xff]
          %v6751 = vld [vmem:[#allocation14 + $0x270] sm:$0xff]
          %v6752 = vld [vmem:[#allocation14 + $0x278] sm:$0xff]
          %v6753 = vld [vmem:[#allocation15] sm:$0x3]
          %v6834 = vunpack.c.l.b16 %v6673
          %v6835 = vunpack.c.h.b16 %v6673
          %v6836 = vunpack.c.l.b16 %v6674
          %v6837 = vunpack.c.h.b16 %v6674
          %v6838 = vunpack.c.l.b16 %v6675
          %v6839 = vunpack.c.h.b16 %v6675
          %v6840 = vunpack.c.l.b16 %v6676
          %v6841 = vunpack.c.h.b16 %v6676
          %v6842 = vunpack.c.l.b16 %v6677
          %v6843 = vunpack.c.h.b16 %v6677
          %v6844 = vunpack.c.l.b16 %v6678
          %v6845 = vunpack.c.h.b16 %v6678
          %v6846 = vunpack.c.l.b16 %v6679
          %v6847 = vunpack.c.h.b16 %v6679
          %v6848 = vunpack.c.l.b16 %v6680
          %v6849 = vunpack.c.h.b16 %v6680
          %v6850 = vunpack.c.l.b16 %v6681
          %v6851 = vunpack.c.h.b16 %v6681
          %v6852 = vunpack.c.l.b16 %v6682
          %v6853 = vunpack.c.h.b16 %v6682
          %v6854 = vunpack.c.l.b16 %v6683
          %v6855 = vunpack.c.h.b16 %v6683
          %v6856 = vunpack.c.l.b16 %v6684
          %v6857 = vunpack.c.h.b16 %v6684
          %v6858 = vunpack.c.l.b16 %v6685
          %v6859 = vunpack.c.h.b16 %v6685
          %v6860 = vunpack.c.l.b16 %v6686
          %v6861 = vunpack.c.h.b16 %v6686
          %v6862 = vunpack.c.l.b16 %v6687
          %v6863 = vunpack.c.h.b16 %v6687
          %v6864 = vunpack.c.l.b16 %v6688
          %v6865 = vunpack.c.h.b16 %v6688
          %v6866 = vunpack.c.l.b16 %v6689
          %v6867 = vunpack.c.h.b16 %v6689
          %v6868 = vunpack.c.l.b16 %v6690
          %v6869 = vunpack.c.h.b16 %v6690
          %v6870 = vunpack.c.l.b16 %v6691
          %v6871 = vunpack.c.h.b16 %v6691
          %v6872 = vunpack.c.l.b16 %v6692
          %v6873 = vunpack.c.h.b16 %v6692
          %v6874 = vunpack.c.l.b16 %v6693
          %v6875 = vunpack.c.h.b16 %v6693
          %v6876 = vunpack.c.l.b16 %v6694
          %v6877 = vunpack.c.h.b16 %v6694
          %v6878 = vunpack.c.l.b16 %v6695
          %v6879 = vunpack.c.h.b16 %v6695
          %v6880 = vunpack.c.l.b16 %v6696
          %v6881 = vunpack.c.h.b16 %v6696
          %v6882 = vunpack.c.l.b16 %v6697
          %v6883 = vunpack.c.h.b16 %v6697
          %v6884 = vunpack.c.l.b16 %v6698
          %v6885 = vunpack.c.h.b16 %v6698
          %v6886 = vunpack.c.l.b16 %v6699
          %v6887 = vunpack.c.h.b16 %v6699
          %v6888 = vunpack.c.l.b16 %v6700
          %v6889 = vunpack.c.h.b16 %v6700
          %v6890 = vunpack.c.l.b16 %v6701
          %v6891 = vunpack.c.h.b16 %v6701
          %v6892 = vunpack.c.l.b16 %v6702
          %v6893 = vunpack.c.h.b16 %v6702
          %v6894 = vunpack.c.l.b16 %v6703
          %v6895 = vunpack.c.h.b16 %v6703
          %v6896 = vunpack.c.l.b16 %v6704
          %v6897 = vunpack.c.h.b16 %v6704
          %v6898 = vunpack.c.l.b16 %v6705
          %v6899 = vunpack.c.h.b16 %v6705
          %v6900 = vunpack.c.l.b16 %v6706
          %v6901 = vunpack.c.h.b16 %v6706
          %v6902 = vunpack.c.l.b16 %v6707
          %v6903 = vunpack.c.h.b16 %v6707
          %v6904 = vunpack.c.l.b16 %v6708
          %v6905 = vunpack.c.h.b16 %v6708
          %v6906 = vunpack.c.l.b16 %v6709
          %v6907 = vunpack.c.h.b16 %v6709
          %v6908 = vunpack.c.l.b16 %v6710
          %v6909 = vunpack.c.h.b16 %v6710
          %v6910 = vunpack.c.l.b16 %v6711
          %v6911 = vunpack.c.h.b16 %v6711
          %v6912 = vunpack.c.l.b16 %v6712
          %v6913 = vunpack.c.h.b16 %v6712
          %v6914 = vunpack.c.l.b16 %v6713
          %v6915 = vunpack.c.h.b16 %v6713
          %v6916 = vunpack.c.l.b16 %v6714
          %v6917 = vunpack.c.h.b16 %v6714
          %v6918 = vunpack.c.l.b16 %v6715
          %v6919 = vunpack.c.h.b16 %v6715
          %v6920 = vunpack.c.l.b16 %v6716
          %v6921 = vunpack.c.h.b16 %v6716
          %v6922 = vunpack.c.l.b16 %v6717
          %v6923 = vunpack.c.h.b16 %v6717
          %v6924 = vunpack.c.l.b16 %v6718
          %v6925 = vunpack.c.h.b16 %v6718
          %v6926 = vunpack.c.l.b16 %v6719
          %v6927 = vunpack.c.h.b16 %v6719
          %v6928 = vunpack.c.l.b16 %v6720
          %v6929 = vunpack.c.h.b16 %v6720
          %v6930 = vunpack.c.l.b16 %v6721
          %v6931 = vunpack.c.h.b16 %v6721
          %v6932 = vunpack.c.l.b16 %v6722
          %v6933 = vunpack.c.h.b16 %v6722
          %v6934 = vunpack.c.l.b16 %v6723
          %v6935 = vunpack.c.h.b16 %v6723
          %v6936 = vunpack.c.l.b16 %v6724
          %v6937 = vunpack.c.h.b16 %v6724
          %v6938 = vunpack.c.l.b16 %v6725
          %v6939 = vunpack.c.h.b16 %v6725
          %v6940 = vunpack.c.l.b16 %v6726
          %v6941 = vunpack.c.h.b16 %v6726
          %v6942 = vunpack.c.l.b16 %v6727
          %v6943 = vunpack.c.h.b16 %v6727
          %v6944 = vunpack.c.l.b16 %v6728
          %v6945 = vunpack.c.h.b16 %v6728
          %v6946 = vunpack.c.l.b16 %v6729
          %v6947 = vunpack.c.h.b16 %v6729
          %v6948 = vunpack.c.l.b16 %v6730
          %v6949 = vunpack.c.h.b16 %v6730
          %v6950 = vunpack.c.l.b16 %v6731
          %v6951 = vunpack.c.h.b16 %v6731
          %v6952 = vunpack.c.l.b16 %v6732
          %v6953 = vunpack.c.h.b16 %v6732
          %v6954 = vunpack.c.l.b16 %v6733
          %v6955 = vunpack.c.h.b16 %v6733
          %v6956 = vunpack.c.l.b16 %v6734
          %v6957 = vunpack.c.h.b16 %v6734
          %v6958 = vunpack.c.l.b16 %v6735
          %v6959 = vunpack.c.h.b16 %v6735
          %v6960 = vunpack.c.l.b16 %v6736
          %v6961 = vunpack.c.h.b16 %v6736
          %v6962 = vunpack.c.l.b16 %v6737
          %v6963 = vunpack.c.h.b16 %v6737
          %v6964 = vunpack.c.l.b16 %v6738
          %v6965 = vunpack.c.h.b16 %v6738
          %v6966 = vunpack.c.l.b16 %v6739
          %v6967 = vunpack.c.h.b16 %v6739
          %v6968 = vunpack.c.l.b16 %v6740
          %v6969 = vunpack.c.h.b16 %v6740
          %v6970 = vunpack.c.l.b16 %v6741
          %v6971 = vunpack.c.h.b16 %v6741
          %v6972 = vunpack.c.l.b16 %v6742
          %v6973 = vunpack.c.h.b16 %v6742
          %v6974 = vunpack.c.l.b16 %v6743
          %v6975 = vunpack.c.h.b16 %v6743
          %v6976 = vunpack.c.l.b16 %v6744
          %v6977 = vunpack.c.h.b16 %v6744
          %v6978 = vunpack.c.l.b16 %v6745
          %v6979 = vunpack.c.h.b16 %v6745
          %v6980 = vunpack.c.l.b16 %v6746
          %v6981 = vunpack.c.h.b16 %v6746
          %v6982 = vunpack.c.l.b16 %v6747
          %v6983 = vunpack.c.h.b16 %v6747
          %v6984 = vunpack.c.l.b16 %v6748
          %v6985 = vunpack.c.h.b16 %v6748
          %v6986 = vunpack.c.l.b16 %v6749
          %v6987 = vunpack.c.h.b16 %v6749
          %v6988 = vunpack.c.l.b16 %v6750
          %v6989 = vunpack.c.h.b16 %v6750
          %v6990 = vunpack.c.l.b16 %v6751
          %v6991 = vunpack.c.h.b16 %v6751
          %v6992 = vunpack.c.l.b16 %v6752
          %v6993 = vunpack.c.h.b16 %v6752
          %v6994 = vpack.c.b16 %v6836, %v6834
          %v6995 = vpack.c.b16 %v6837, %v6835
          %v6996 = vpack.c.b16 %v6840, %v6838
          %v6997 = vpack.c.b16 %v6841, %v6839
          %v6998 = vpack.c.b16 %v6844, %v6842
          %v6999 = vpack.c.b16 %v6845, %v6843
          %v7000 = vpack.c.b16 %v6848, %v6846
          %v7001 = vpack.c.b16 %v6849, %v6847
          %v7002 = vpack.c.b16 %v6852, %v6850
          %v7003 = vpack.c.b16 %v6853, %v6851
          %v7004 = vpack.c.b16 %v6856, %v6854
          %v7005 = vpack.c.b16 %v6857, %v6855
          %v7006 = vpack.c.b16 %v6860, %v6858
          %v7007 = vpack.c.b16 %v6861, %v6859
          %v7008 = vpack.c.b16 %v6864, %v6862
          %v7009 = vpack.c.b16 %v6865, %v6863
          %v7010 = vpack.c.b16 %v6868, %v6866
          %v7011 = vpack.c.b16 %v6869, %v6867
          %v7012 = vpack.c.b16 %v6872, %v6870
          %v7013 = vpack.c.b16 %v6873, %v6871
          %v7014 = vpack.c.b16 %v6876, %v6874
          %v7015 = vpack.c.b16 %v6877, %v6875
          %v7016 = vpack.c.b16 %v6880, %v6878
          %v7017 = vpack.c.b16 %v6881, %v6879
          %v7018 = vpack.c.b16 %v6884, %v6882
          %v7019 = vpack.c.b16 %v6885, %v6883
          %v7020 = vpack.c.b16 %v6888, %v6886
          %v7021 = vpack.c.b16 %v6889, %v6887
          %v7022 = vpack.c.b16 %v6892, %v6890
          %v7023 = vpack.c.b16 %v6893, %v6891
          %v7024 = vpack.c.b16 %v6896, %v6894
          %v7025 = vpack.c.b16 %v6897, %v6895
          %v7026 = vpack.c.b16 %v6900, %v6898
          %v7027 = vpack.c.b16 %v6901, %v6899
          %v7028 = vpack.c.b16 %v6904, %v6902
          %v7029 = vpack.c.b16 %v6905, %v6903
          %v7030 = vpack.c.b16 %v6908, %v6906
          %v7031 = vpack.c.b16 %v6909, %v6907
          %v7032 = vpack.c.b16 %v6912, %v6910
          %v7033 = vpack.c.b16 %v6913, %v6911
          %v7034 = vpack.c.b16 %v6916, %v6914
          %v7035 = vpack.c.b16 %v6917, %v6915
          %v7036 = vpack.c.b16 %v6920, %v6918
          %v7037 = vpack.c.b16 %v6921, %v6919
          %v7038 = vpack.c.b16 %v6924, %v6922
          %v7039 = vpack.c.b16 %v6925, %v6923
          %v7040 = vpack.c.b16 %v6928, %v6926
          %v7041 = vpack.c.b16 %v6929, %v6927
          %v7042 = vpack.c.b16 %v6932, %v6930
          %v7043 = vpack.c.b16 %v6933, %v6931
          %v7044 = vpack.c.b16 %v6936, %v6934
          %v7045 = vpack.c.b16 %v6937, %v6935
          %v7046 = vpack.c.b16 %v6940, %v6938
          %v7047 = vpack.c.b16 %v6941, %v6939
          %v7048 = vpack.c.b16 %v6944, %v6942
          %v7049 = vpack.c.b16 %v6945, %v6943
          %v7050 = vpack.c.b16 %v6948, %v6946
          %v7051 = vpack.c.b16 %v6949, %v6947
          %v7052 = vpack.c.b16 %v6952, %v6950
          %v7053 = vpack.c.b16 %v6953, %v6951
          %v7054 = vpack.c.b16 %v6956, %v6954
          %v7055 = vpack.c.b16 %v6957, %v6955
          %v7056 = vpack.c.b16 %v6960, %v6958
          %v7057 = vpack.c.b16 %v6961, %v6959
          %v7058 = vpack.c.b16 %v6964, %v6962
          %v7059 = vpack.c.b16 %v6965, %v6963
          %v7060 = vpack.c.b16 %v6968, %v6966
          %v7061 = vpack.c.b16 %v6969, %v6967
          %v7062 = vpack.c.b16 %v6972, %v6970
          %v7063 = vpack.c.b16 %v6973, %v6971
          %v7064 = vpack.c.b16 %v6976, %v6974
          %v7065 = vpack.c.b16 %v6977, %v6975
          %v7066 = vpack.c.b16 %v6980, %v6978
          %v7067 = vpack.c.b16 %v6981, %v6979
          %v7068 = vpack.c.b16 %v6984, %v6982
          %v7069 = vpack.c.b16 %v6985, %v6983
          %v7070 = vpack.c.b16 %v6988, %v6986
          %v7071 = vpack.c.b16 %v6989, %v6987
          %v7072 = vpack.c.b16 %v6992, %v6990
          %v7073 = vpack.c.b16 %v6993, %v6991
          %v7155 = vlaneseq
          %v7156 = vshrl.u32 %v7155, 7
          %v7157 = vsub.s32 0, %v7156
          %v7158 = vrot.slane %v6753, %v7157
          %v7159 = vlaneseq
          %v7160 = vshrl.u32 %v7159, 7
          %v7161 = vsub.s32 1, %v7160
          %v7162 = vrot.slane %v6753, %v7161
          %7165 = vmatprep.subr.bf16.mxu0 %v6995
          %7166 = vmatpush1.bf16.msra.mxu0 %v6994
          %7167 = vmatprep.subr.bf16.mxu0 %v6997
          %7168 = vmatpush1.bf16.msra.mxu0 %v6996
          %7169 = vmatprep.subr.bf16.mxu0 %v6999
          %7170 = vmatpush1.bf16.msra.mxu0 %v6998
          %7171 = vmatprep.subr.bf16.mxu0 %v7001
          %7172 = vmatpush1.bf16.msra.mxu0 %v7000
          %7173 = vmatprep.subr.bf16.mxu0 %v7003
          %7174 = vmatpush1.bf16.msra.mxu0 %v7002
          %7175 = vmatprep.subr.bf16.mxu0 %v7005
          %7176 = vmatpush1.bf16.msra.mxu0 %v7004
          %7177 = vmatprep.subr.bf16.mxu0 %v7007
          %7178 = vmatpush1.bf16.msra.mxu0 %v7006
          %7179 = vmatprep.subr.bf16.mxu0 %v7009
          %7180 = vmatpush1.bf16.msra.mxu0 %v7008
          %7181 = vmatprep.subr.bf16.mxu0 %v7011
          %7182 = vmatpush1.bf16.msra.mxu0 %v7010
          %7183 = vmatprep.subr.bf16.mxu0 %v7013
          %7184 = vmatpush1.bf16.msra.mxu0 %v7012
          %7185 = vmatprep.subr.bf16.mxu0 %v7015
          %7186 = vmatpush1.bf16.msra.mxu0 %v7014
          %7187 = vmatprep.subr.bf16.mxu0 %v7017
          %7188 = vmatpush1.bf16.msra.mxu0 %v7016
          %7189 = vmatprep.subr.bf16.mxu0 %v7019
          %7190 = vmatpush1.bf16.msra.mxu0 %v7018
          %7191 = vmatprep.subr.bf16.mxu0 %v7021
          %7192 = vmatpush1.bf16.msra.mxu0 %v7020
          %7193 = vmatprep.subr.bf16.mxu0 %v7023
          %7194 = vmatpush1.bf16.msra.mxu0 %v7022
          %7195 = vmatprep.subr.bf16.mxu0 %v7025
          %7196 = vmatpush1.bf16.msra.mxu0 %v7024
          %7197 = vmatprep.mubr.bf16.mxu0 %v6669
          %7198 = vmatmul.mubr.bf16.gmra.mrb[0].mxu0 %v6668
          %v7199 = vpop.f32.mrb[0].mxu0
          %v7200 = vadd.f32 %v7158, %v7199
          %v7201 = vpop.f32.mrb[0].mxu0
          %v7202 = vadd.f32 %v7162, %v7201
          %v7203 = vpop.f32.mrb[0].mxu0
          %v7204 = vpop.f32.mrb[0].mxu0
          %7205 = vdwg.mxu0
          %7206 = vmatprep.subr.bf16.mxu0 %v7027
          %7207 = vmatpush1.bf16.msra.mxu0 %v7026
          %7208 = vmatprep.subr.bf16.mxu0 %v7029
          %7209 = vmatpush1.bf16.msra.mxu0 %v7028
          %7210 = vmatprep.subr.bf16.mxu0 %v7031
          %7211 = vmatpush1.bf16.msra.mxu0 %v7030
          %7212 = vmatprep.subr.bf16.mxu0 %v7033
          %7213 = vmatpush1.bf16.msra.mxu0 %v7032
          %7214 = vmatprep.subr.bf16.mxu0 %v7035
          %7215 = vmatpush1.bf16.msra.mxu0 %v7034
          %7216 = vmatprep.subr.bf16.mxu0 %v7037
          %7217 = vmatpush1.bf16.msra.mxu0 %v7036
          %7218 = vmatprep.subr.bf16.mxu0 %v7039
          %7219 = vmatpush1.bf16.msra.mxu0 %v7038
          %7220 = vmatprep.subr.bf16.mxu0 %v7041
          %7221 = vmatpush1.bf16.msra.mxu0 %v7040
          %7222 = vmatprep.subr.bf16.mxu0 %v7043
          %7223 = vmatpush1.bf16.msra.mxu0 %v7042
          %7224 = vmatprep.subr.bf16.mxu0 %v7045
          %7225 = vmatpush1.bf16.msra.mxu0 %v7044
          %7226 = vmatprep.subr.bf16.mxu0 %v7047
          %7227 = vmatpush1.bf16.msra.mxu0 %v7046
          %7228 = vmatprep.subr.bf16.mxu0 %v7049
          %7229 = vmatpush1.bf16.msra.mxu0 %v7048
          %7230 = vmatprep.subr.bf16.mxu0 %v7051
          %7231 = vmatpush1.bf16.msra.mxu0 %v7050
          %7232 = vmatprep.subr.bf16.mxu0 %v7053
          %7233 = vmatpush1.bf16.msra.mxu0 %v7052
          %7234 = vmatprep.subr.bf16.mxu0 %v7055
          %7235 = vmatpush1.bf16.msra.mxu0 %v7054
          %7236 = vmatprep.subr.bf16.mxu0 %v7057
          %7237 = vmatpush1.bf16.msra.mxu0 %v7056
          %7238 = vmatprep.mubr.bf16.mxu0 %v6671
          %7239 = vmatmul.mubr.bf16.gmra.mrb[0].mxu0 %v6670
          %v7240 = vpop.f32.mrb[0].mxu0
          %v7241 = vadd.f32 %v7200, %v7240
          %v7242 = vpop.f32.mrb[0].mxu0
          %v7243 = vadd.f32 %v7202, %v7242
          %v7244 = vpop.f32.mrb[0].mxu0
          %v7245 = vpop.f32.mrb[0].mxu0
          %7246 = vdwg.mxu0
          %7247 = vmatprep.subr.bf16.mxu0 %v7059
          %7248 = vmatpush1.bf16.msra.mxu0 %v7058
          %7249 = vmatprep.subr.bf16.mxu0 %v7061
          %7250 = vmatpush1.bf16.msra.mxu0 %v7060
          %7251 = vmatprep.subr.bf16.mxu0 %v7063
          %7252 = vmatpush1.bf16.msra.mxu0 %v7062
          %7253 = vmatprep.subr.bf16.mxu0 %v7065
          %7254 = vmatpush1.bf16.msra.mxu0 %v7064
          %7255 = vmatprep.subr.bf16.mxu0 %v7067
          %7256 = vmatpush1.bf16.msra.mxu0 %v7066
          %7257 = vmatprep.subr.bf16.mxu0 %v7069
          %7258 = vmatpush1.bf16.msra.mxu0 %v7068
          %7259 = vmatprep.subr.bf16.mxu0 %v7071
          %7260 = vmatpush1.bf16.msra.mxu0 %v7070
          %7261 = vmatprep.subr.bf16.mxu0 %v7073
          %7262 = vmatpush1.bf16.msra.mxu0 %v7072
          %7263 = vmatprep.subr.bf16.mxu0 0
          %7264 = vmatpush1.bf16.msra.mxu0 0
          %7265 = vmatprep.subr.bf16.mxu0 0
          %7266 = vmatpush1.bf16.msra.mxu0 0
          %7267 = vmatprep.subr.bf16.mxu0 0
          %7268 = vmatpush1.bf16.msra.mxu0 0
          %7269 = vmatprep.subr.bf16.mxu0 0
          %7270 = vmatpush1.bf16.msra.mxu0 0
          %7271 = vmatprep.subr.bf16.mxu0 0
          %7272 = vmatpush1.bf16.msra.mxu0 0
          %7273 = vmatprep.subr.bf16.mxu0 0
          %7274 = vmatpush1.bf16.msra.mxu0 0
          %7275 = vmatprep.subr.bf16.mxu0 0
          %7276 = vmatpush1.bf16.msra.mxu0 0
          %7277 = vmatprep.subr.bf16.mxu0 0
          %7278 = vmatpush1.bf16.msra.mxu0 0
          %7279 = vmatprep.mubr.bf16.mxu0 0
          %7280 = vmatmul.mubr.bf16.gmra.mrb[0].mxu0 %v6672
          %v7281 = vpop.f32.mrb[0].mxu0
          %v7282 = vadd.f32 %v7241, %v7281
          %v7283 = vpop.f32.mrb[0].mxu0
          %v7284 = vadd.f32 %v7243, %v7283
          %v7285 = vpop.f32.mrb[0].mxu0
          %v7286 = vpop.f32.mrb[0].mxu0
          %7287 = vdwg.mxu0
          %v7288 = vmax.f32 %v7282, 0.0
          %v7289 = vmax.f32 %v7284, 0.0
          %v7290 = vpack.c.bf16 %v7288, %v7288
          %v7291 = vpack.c.bf16 %v7289, %v7289
          %v7292 = vld [vmem:[#allocation17] sm:$0xf]
          %v7293 = vld [vmem:[#allocation17 + $0x4] sm:$0xf]
          %v7294 = vld [vmem:[#allocation17 + $0x8] sm:$0xf]
          %v7295 = vld [vmem:[#allocation17 + $0xc] sm:$0xf]
          %v7296 = vld [vmem:[#allocation17 + $0x10] sm:$0xf]
          %v7297 = vld [vmem:[#allocation17 + $0x14] sm:$0xf]
          %v7298 = vld [vmem:[#allocation17 + $0x18] sm:$0xf]
          %v7299 = vld [vmem:[#allocation17 + $0x1c] sm:$0xf]
          %v7300 = vld [vmem:[#allocation17 + $0x20] sm:$0xf]
          %v7301 = vld [vmem:[#allocation17 + $0x24] sm:$0xf]
          %v7302 = vld [vmem:[#allocation17 + $0x28] sm:$0xf]
          %v7303 = vld [vmem:[#allocation17 + $0x2c] sm:$0xf]
          %v7304 = vld [vmem:[#allocation17 + $0x30] sm:$0xf]
          %v7305 = vld [vmem:[#allocation17 + $0x34] sm:$0xf]
          %v7306 = vld [vmem:[#allocation17 + $0x38] sm:$0xf]
          %v7307 = vld [vmem:[#allocation17 + $0x3c] sm:$0xf]
          %v7308 = vld [vmem:[#allocation17 + $0x40] sm:$0xf]
          %v7309 = vld [vmem:[#allocation17 + $0x44] sm:$0xf]
          %v7310 = vld [vmem:[#allocation17 + $0x48] sm:$0xf]
          %v7311 = vld [vmem:[#allocation17 + $0x4c] sm:$0xf]
          %v7312 = vld [vmem:[#allocation17 + $0x50] sm:$0xf]
          %v7313 = vld [vmem:[#allocation17 + $0x54] sm:$0xf]
          %v7314 = vld [vmem:[#allocation17 + $0x58] sm:$0xf]
          %v7315 = vld [vmem:[#allocation17 + $0x5c] sm:$0xf]
          %v7316 = vld [vmem:[#allocation17 + $0x60] sm:$0xf]
          %v7317 = vld [vmem:[#allocation17 + $0x64] sm:$0xf]
          %v7318 = vld [vmem:[#allocation17 + $0x68] sm:$0xf]
          %v7319 = vld [vmem:[#allocation17 + $0x6c] sm:$0xf]
          %v7320 = vld [vmem:[#allocation17 + $0x70] sm:$0xf]
          %v7321 = vld [vmem:[#allocation17 + $0x74] sm:$0xf]
          %v7322 = vld [vmem:[#allocation17 + $0x78] sm:$0xf]
          %v7323 = vld [vmem:[#allocation17 + $0x7c] sm:$0xf]
          %v7324 = vld [vmem:[#allocation18] sm:$0x1]
          %v7357 = vunpack.c.l.b16 %v7292
          %v7358 = vunpack.c.l.b16 %v7293
          %v7359 = vunpack.c.l.b16 %v7294
          %v7360 = vunpack.c.l.b16 %v7295
          %v7361 = vunpack.c.l.b16 %v7296
          %v7362 = vunpack.c.l.b16 %v7297
          %v7363 = vunpack.c.l.b16 %v7298
          %v7364 = vunpack.c.l.b16 %v7299
          %v7365 = vunpack.c.l.b16 %v7300
          %v7366 = vunpack.c.l.b16 %v7301
          %v7367 = vunpack.c.l.b16 %v7302
          %v7368 = vunpack.c.l.b16 %v7303
          %v7369 = vunpack.c.l.b16 %v7304
          %v7370 = vunpack.c.l.b16 %v7305
          %v7371 = vunpack.c.l.b16 %v7306
          %v7372 = vunpack.c.l.b16 %v7307
          %v7373 = vunpack.c.l.b16 %v7308
          %v7374 = vunpack.c.l.b16 %v7309
          %v7375 = vunpack.c.l.b16 %v7310
          %v7376 = vunpack.c.l.b16 %v7311
          %v7377 = vunpack.c.l.b16 %v7312
          %v7378 = vunpack.c.l.b16 %v7313
          %v7379 = vunpack.c.l.b16 %v7314
          %v7380 = vunpack.c.l.b16 %v7315
          %v7381 = vunpack.c.l.b16 %v7316
          %v7382 = vunpack.c.l.b16 %v7317
          %v7383 = vunpack.c.l.b16 %v7318
          %v7384 = vunpack.c.l.b16 %v7319
          %v7385 = vunpack.c.l.b16 %v7320
          %v7386 = vunpack.c.l.b16 %v7321
          %v7387 = vunpack.c.l.b16 %v7322
          %v7388 = vunpack.c.l.b16 %v7323
          %v7389 = vpack.c.b16 %v7358, %v7357
          %v7390 = vpack.c.b16 %v7360, %v7359
          %v7391 = vpack.c.b16 %v7362, %v7361
          %v7392 = vpack.c.b16 %v7364, %v7363
          %v7393 = vpack.c.b16 %v7366, %v7365
          %v7394 = vpack.c.b16 %v7368, %v7367
          %v7395 = vpack.c.b16 %v7370, %v7369
          %v7396 = vpack.c.b16 %v7372, %v7371
          %v7397 = vpack.c.b16 %v7374, %v7373
          %v7398 = vpack.c.b16 %v7376, %v7375
          %v7399 = vpack.c.b16 %v7378, %v7377
          %v7400 = vpack.c.b16 %v7380, %v7379
          %v7401 = vpack.c.b16 %v7382, %v7381
          %v7402 = vpack.c.b16 %v7384, %v7383
          %v7403 = vpack.c.b16 %v7386, %v7385
          %v7404 = vpack.c.b16 %v7388, %v7387
          %7421 = vmatprep.subr.bf16.mxu0 0
          %7422 = vmatpush1.bf16.msra.mxu0 %v7389
          %7423 = vmatprep.subr.bf16.mxu0 0
          %7424 = vmatpush1.bf16.msra.mxu0 %v7390
          %7425 = vmatprep.subr.bf16.mxu0 0
          %7426 = vmatpush1.bf16.msra.mxu0 %v7391
          %7427 = vmatprep.subr.bf16.mxu0 0
          %7428 = vmatpush1.bf16.msra.mxu0 %v7392
          %7429 = vmatprep.subr.bf16.mxu0 0
          %7430 = vmatpush1.bf16.msra.mxu0 %v7393
          %7431 = vmatprep.subr.bf16.mxu0 0
          %7432 = vmatpush1.bf16.msra.mxu0 %v7394
          %7433 = vmatprep.subr.bf16.mxu0 0
          %7434 = vmatpush1.bf16.msra.mxu0 %v7395
          %7435 = vmatprep.subr.bf16.mxu0 0
          %7436 = vmatpush1.bf16.msra.mxu0 %v7396
          %7437 = vmatprep.subr.bf16.mxu0 0
          %7438 = vmatpush1.bf16.msra.mxu0 %v7397
          %7439 = vmatprep.subr.bf16.mxu0 0
          %7440 = vmatpush1.bf16.msra.mxu0 %v7398
          %7441 = vmatprep.subr.bf16.mxu0 0
          %7442 = vmatpush1.bf16.msra.mxu0 %v7399
          %7443 = vmatprep.subr.bf16.mxu0 0
          %7444 = vmatpush1.bf16.msra.mxu0 %v7400
          %7445 = vmatprep.subr.bf16.mxu0 0
          %7446 = vmatpush1.bf16.msra.mxu0 %v7401
          %7447 = vmatprep.subr.bf16.mxu0 0
          %7448 = vmatpush1.bf16.msra.mxu0 %v7402
          %7449 = vmatprep.subr.bf16.mxu0 0
          %7450 = vmatpush1.bf16.msra.mxu0 %v7403
          %7451 = vmatprep.subr.bf16.mxu0 0
          %7452 = vmatpush1.bf16.msra.mxu0 %v7404
          %7453 = vmatprep.mubr.bf16.mxu0 %v7291
          %7454 = vmatmul.mubr.bf16.gmra.mrb[0].mxu0 %v7290
          %v7455 = vpop.f32.mrb[0].mxu0
          %v7456 = vadd.f32 %v7324, %v7455
          %v7457 = vpop.f32.mrb[0].mxu0
          %v7458 = vpop.f32.mrb[0].mxu0
          %v7459 = vpop.f32.mrb[0].mxu0
          %7460 = vdwg.mxu0
          %7461 = vst [vmem:[%s537] sm:$0x1] %v7456
        $region112: #{tpu_custom_call.1} parent=63 // pred_fallthru
          _
        %s7462 = sand.u32 %s289, 1
        %s7463 = scalar_lea.sflag [#allocation5], %s7462
        %s7464 = sand.u32 %s289, 1
        %s7465 = scalar_lea.vmem [#allocation20], %s7464
        // Predicated region
        $region113: #{tpu_custom_call.1} parent=63 // pred_check
          %p7466 = pneg %p299
        $region114: #{tpu_custom_call.1} parent=63 // pred_check_branch
          %7468 = sbr.rel (%p7466) target = $region116
        $region115: #{tpu_custom_call.1} parent=63 // pred_region
          %s7470 = ssub.s32 16, 16
          %7471 = vsyncadd %s7463, %s7470
          %s7472 = smul.addr %s35, 16
          %s7473 = scalar_lea.hbm %s11, %s7472
          %s7475 = sshll.u32 %s7465, 4
          %s7476 = int_to_ptr.vmem [resolvable:$true] %s7475
          %7478 = dma.vmem_to_hbm [thread:$0]  %s7476, 16, %s7473, %s7463
        $region116: #{tpu_custom_call.1} parent=63 // pred_fallthru
          _
      $region64: #{tpu_custom_call.1} parent=5 // pred_fallthru
        _
      %p7479 = scmp.le.s32.totalorder 2, %s26
      // Predicated region
      $region117: #{tpu_custom_call.1} parent=5 // pred_check
        %p7480 = pneg %p7479
      $region118: #{tpu_custom_call.1} parent=5 // pred_check_branch
        %7482 = sbr.rel (%p7480) target = $region120
      $region119: #{tpu_custom_call.1} parent=5 // pred_region
        %s7483 = ssub.s32 %s26, 2
        // Predicated region
        $region121: #{tpu_custom_call.1} parent=119 // pred_check
          %p7484 = pneg %p305
        $region122: #{tpu_custom_call.1} parent=119 // pred_check_branch
          %7486 = sbr.rel (%p7484) target = $region124
        $region123: #{tpu_custom_call.1} parent=119 // pred_region
          %s7487 = sand.u32 %s290, 1
          %s7488 = scalar_lea.sflag [#allocation5], %s7487
          %s7489 = sand.u32 %s290, 1
          %s7490 = scalar_lea.vmem [#allocation20], %s7489
          %7491 = dma.done %s7488, 16
        $region124: #{tpu_custom_call.1} parent=119 // pred_fallthru
          _
      $region120: #{tpu_custom_call.1} parent=5 // pred_fallthru
        _
    $region6: #{tpu_custom_call.1} parent=1 // loop_footer
      %s30 = sadd.s32 1, %s26
    $region7: #{tpu_custom_call.1} parent=1 // loop_footer_branch
      %25 = sbr.rel target = $region3
    $region8: #{tpu_custom_call.1} parent=1 // loop_exit
      _
    %7492 = vsyncpa [#allocation4], 1
    %s7493 = scalar_lea.sflag [#allocation4], 1
    %7494 = vsyncpa %s7493, 1
    %7495 = vsyncpa [#allocation7], 1
    %7496 = vsyncpa [#allocation10], 1
    %7497 = vsyncpa [#allocation13], 1
    %7498 = vsyncpa [#allocation16], 1
    %7499 = vsyncpa [#allocation19], 1
    %7500 = vsyncpa [#allocation5], 1
    %s7501 = scalar_lea.sflag [#allocation5], 1
    %7502 = vsyncpa %s7501, 1

</llo_original>
